<compile_context>
chip_gen: v7x
topology: tpu7x:2x2x1
jax: 0.10.0
libtpu: 0.0.40
codegen_flags: <defaults>
</compile_context>

<pallas_src>
import functools
import math

import jax
import jax.numpy as jnp
from jax.experimental import pallas as pl
from jax.experimental.pallas import tpu as pltpu


def transformer_kernel(x_ref, pe_ref, kb_ref, hm_ref,
                       wq_ref, wk_ref, wv_ref, bq_ref, bk_ref, bv_ref,
                       wo_ref, bo_ref, ln1w_ref, ln1b_ref,
                       w1_ref, b1_ref, w2_ref, b2_ref,
                       ln2w_ref, ln2b_ref, wc_ref, bc_ref,
                       out_ref, *, num_layers, nhead, d_model, batch, seqlen):
    """Single invocation == the full transformer forward for the whole batch."""
    B, T, E, H = batch, seqlen, d_model, nhead
    BT = B * T
    hd = E // H
    emb_scale = jnp.float32(math.sqrt(E))
    att_scale = jnp.float32(1.0 / math.sqrt(hd))
    eps = jnp.float32(1e-5)

    # (B*T, E) token embeddings * sqrt(d_model) + positional encoding
    # (dropout in PositionalEncoding is identity in eval mode).
    x = x_ref[...] * emb_scale + pe_ref[...]            # (BT, E)
    kb = kb_ref[...]                                     # (B, 1, T) 0 / -1e30
    masks = hm_ref[...]                                  # (H, E) one-hot head cols

    def layer_norm(y, gamma, beta):
        mu = jnp.mean(y, axis=-1, keepdims=True)
        d = y - mu
        var = jnp.mean(d * d, axis=-1, keepdims=True)
        return d * jax.lax.rsqrt(var + eps) * gamma + beta

    for l in range(num_layers):
        # ----- multi-head self attention (post-norm layer) -----
        # QKV projections for the whole flattened batch in one pass each.
        q = jnp.dot(x, wq_ref[l], preferred_element_type=jnp.float32) + bq_ref[l]
        k = jnp.dot(x, wk_ref[l], preferred_element_type=jnp.float32) + bk_ref[l]
        v = jnp.dot(x, wv_ref[l], preferred_element_type=jnp.float32) + bv_ref[l]

        qb = q.reshape(B, T, E)
        kbm = k.reshape(B, T, E)
        vb = v.reshape(B, T, E)

        # Stack all heads into the M dimension: (B, H*T, E).  Head h of
        # q is q * mask_h (zeros outside head-h columns), so a single
        # full-width contraction against K gives all head scores at once.
        qh = (qb[:, None, :, :] * masks[None, :, None, :]).reshape(B, H * T, E)
        s = jnp.einsum('bme,bke->bmk', qh, kbm,
                       preferred_element_type=jnp.float32)      # (B, H*T, T)
        s = s * att_scale + kb                                   # mask padded keys
        s = s - jnp.max(s, axis=-1, keepdims=True)
        e = jnp.exp(s)
        p = e * pl.reciprocal(jnp.sum(e, axis=-1, keepdims=True), approx=True)

        # All heads' weighted sums in one einsum, then scatter each head's
        # output back into its own columns via the same masks and sum.
        y = jnp.einsum('bmk,bke->bme', p, vb,
                       preferred_element_type=jnp.float32)       # (B, H*T, E)
        y = y.reshape(B, H, T, E)
        attn = jnp.sum(y * masks[None, :, None, :], axis=1)      # (B, T, E)
        attn = attn.reshape(BT, E)

        attn = jnp.dot(attn, wo_ref[l],
                       preferred_element_type=jnp.float32) + bo_ref[l]
        # dropout after attention is identity in eval mode
        x = layer_norm(x + attn, ln1w_ref[l], ln1b_ref[l])

        # ----- feed-forward block (whole batch at once) -----
        h1 = jnp.maximum(
            jnp.dot(x, w1_ref[l], preferred_element_type=jnp.float32) + b1_ref[l],
            0.0)
        ff = jnp.dot(h1, w2_ref[l], preferred_element_type=jnp.float32) + b2_ref[l]
        x = layer_norm(x + ff, ln2w_ref[l], ln2b_ref[l])

    # Pool over time first (unmasked mean, as in the reference), then a single
    # tiny classifier matmul and one (B, C) store.
    pooled = jnp.mean(x.reshape(B, T, E), axis=1)                # (B, E)
    out_ref[...] = (jnp.dot(pooled, wc_ref[...],
                            preferred_element_type=jnp.float32) + bc_ref[...])


def make_pe(T, E):
    pos = jnp.arange(T, dtype=jnp.float32)[:, None]
    div = jnp.exp(jnp.arange(0, E, 2, dtype=jnp.float32) * (-math.log(10000.0) / E))
    pe = jnp.zeros((T, E), jnp.float32)
    pe = pe.at[:, 0::2].set(jnp.sin(pos * div))
    pe = pe.at[:, 1::2].set(jnp.cos(pos * div))
    return pe


def model_tr_forward(tokens, params, *, num_layers, nhead):
    emb = params["emb"]                                  # (V, E), row 0 == 0 (pad)
    B, T = tokens.shape
    E = emb.shape[1]
    C = params["wc"].shape[-1]
    H = nhead
    hd = E // H

    # ---- plain-JAX glue: embedding gather + key-padding bias + constants ----
    x_emb = emb[tokens].astype(jnp.float32).reshape(B * T, E)       # (B*T, E)
    pe_bt = jnp.tile(make_pe(T, E), (B, 1))                          # (B*T, E)
    kbias = jnp.where(tokens == 0, -1e30, 0.0).astype(jnp.float32)
    kbias = kbias[:, None, :]                                        # (B, 1, T)
    hmask = (jnp.arange(E, dtype=jnp.int32)[None, :] // hd ==
             jnp.arange(H, dtype=jnp.int32)[:, None]).astype(jnp.float32)  # (H, E)

    kernel = functools.partial(transformer_kernel, num_layers=num_layers,
                               nhead=H, d_model=E, batch=B, seqlen=T)

    # No grid: one kernel invocation, every operand is a whole-array VMEM block
    # (weights + activations total well under 1 MiB on all generations).
    vmem = pl.BlockSpec(memory_space=pltpu.MemorySpace.VMEM)
    n_inputs = 22

    out = pl.pallas_call(
        kernel,
        out_shape=jax.ShapeDtypeStruct((B, C), jnp.float32),
        in_specs=[vmem] * n_inputs,
        out_specs=vmem,
    )(x_emb, pe_bt, kbias, hmask,
      params["wq"], params["wk"], params["wv"],
      params["bq"], params["bk"], params["bv"],
      params["wo"], params["bo"],
      params["ln1w"], params["ln1b"],
      params["w1"], params["b1"], params["w2"], params["b2"],
      params["ln2w"], params["ln2b"],
      params["wc"], params["bc"])
    return out


def init_params(key, vocab, E, FF, L, C):
    ks = iter(jax.random.split(key, 4 + 16 * L))

    def unif(shape, scale):
        return jax.random.uniform(next(ks), shape, jnp.float32, -scale, scale)

    emb = jax.random.normal(next(ks), (vocab, E), jnp.float32)
    emb = emb.at[0].set(0.0)                      # padding_idx=0

    kE = 1.0 / math.sqrt(E)
    kF = 1.0 / math.sqrt(FF)

    # NOTE: all matmuls are x @ W; weights ported from the real PyTorch module
    # (stored as (out, in)) would need a transpose / in_proj split.
    params = {
        "emb": emb,
        "wq": jnp.stack([unif((E, E), kE) for _ in range(L)]),
        "wk": jnp.stack([unif((E, E), kE) for _ in range(L)]),
        "wv": jnp.stack([unif((E, E), kE) for _ in range(L)]),
        "bq": jnp.stack([unif((1, E), kE) for _ in range(L)]),
        "bk": jnp.stack([unif((1, E), kE) for _ in range(L)]),
        "bv": jnp.stack([unif((1, E), kE) for _ in range(L)]),
        "wo": jnp.stack([unif((E, E), kE) for _ in range(L)]),
        "bo": jnp.stack([unif((1, E), kE) for _ in range(L)]),
        "ln1w": jnp.ones((L, 1, E), jnp.float32),
        "ln1b": jnp.zeros((L, 1, E), jnp.float32),
        "w1": jnp.stack([unif((E, FF), kE) for _ in range(L)]),
        "b1": jnp.stack([unif((1, FF), kE) for _ in range(L)]),
        "w2": jnp.stack([unif((FF, E), kF) for _ in range(L)]),
        "b2": jnp.stack([unif((1, E), kF) for _ in range(L)]),
        "ln2w": jnp.ones((L, 1, E), jnp.float32),
        "ln2b": jnp.zeros((L, 1, E), jnp.float32),
        "wc": unif((E, C), kE),
        "bc": unif((1, C), kE),
    }
    return params


if __name__ == "__main__":
    # Small config consistent with Model_tr:
    VOCAB = 20        # dataset.vocab_size
    EMBED = 16        # args.embeddingdim (d_model), divisible by nhead=8
    NHEAD = 8
    FFDIM = 256       # dim_feedforward
    LAYERS = 2        # args.layers
    CLASSES = 2       # classifier = Linear(d_model, 2)
    B, T = 8, 8

    key = jax.random.PRNGKey(0)
    pkey, tkey = jax.random.split(key)
    params = init_params(pkey, VOCAB, EMBED, FFDIM, LAYERS, CLASSES)

    # tokens with trailing padding (token 0); lengths are otherwise unused by
    # Model_tr.forward (only the x == 0 key-padding mask matters).
    lengths = jnp.array([8, 7, 6, 6, 5, 4, 3, 2], dtype=jnp.int32)
    tokens = jax.random.randint(tkey, (B, T), 1, VOCAB, dtype=jnp.int32)
    tokens = jnp.where(jnp.arange(T)[None, :] < lengths[:, None], tokens, 0)

    # TODO(synk): all Dropout modules (pos-encoder, attention, FFN, classifier)
    # are identity in eval mode and are therefore not implemented.
    fwd = jax.jit(functools.partial(model_tr_forward,
                                    num_layers=LAYERS, nhead=NHEAD))
    out = fwd(tokens, params)
    out = jax.block_until_ready(out)
    assert out.shape == (B, CLASSES)
    print("KERNEL_OK")
</pallas_src>

<mosaic_0001>
module attributes {stable_mosaic.version = 11 : i64} {
  func.func @transformer_kernel(%arg0: memref<64x16xf32, #tpu.memory_space<vmem>>, %arg1: memref<64x16xf32, #tpu.memory_space<vmem>>, %arg2: memref<8x1x8xf32, #tpu.memory_space<vmem>>, %arg3: memref<8x16xf32, #tpu.memory_space<vmem>>, %arg4: memref<2x16x16xf32, #tpu.memory_space<vmem>>, %arg5: memref<2x16x16xf32, #tpu.memory_space<vmem>>, %arg6: memref<2x16x16xf32, #tpu.memory_space<vmem>>, %arg7: memref<2x1x16xf32, #tpu.memory_space<vmem>>, %arg8: memref<2x1x16xf32, #tpu.memory_space<vmem>>, %arg9: memref<2x1x16xf32, #tpu.memory_space<vmem>>, %arg10: memref<2x16x16xf32, #tpu.memory_space<vmem>>, %arg11: memref<2x1x16xf32, #tpu.memory_space<vmem>>, %arg12: memref<2x1x16xf32, #tpu.memory_space<vmem>>, %arg13: memref<2x1x16xf32, #tpu.memory_space<vmem>>, %arg14: memref<2x16x256xf32, #tpu.memory_space<vmem>>, %arg15: memref<2x1x256xf32, #tpu.memory_space<vmem>>, %arg16: memref<2x256x16xf32, #tpu.memory_space<vmem>>, %arg17: memref<2x1x16xf32, #tpu.memory_space<vmem>>, %arg18: memref<2x1x16xf32, #tpu.memory_space<vmem>>, %arg19: memref<2x1x16xf32, #tpu.memory_space<vmem>>, %arg20: memref<16x2xf32, #tpu.memory_space<vmem>>, %arg21: memref<1x2xf32, #tpu.memory_space<vmem>>, %arg22: memref<8x2xf32, #tpu.memory_space<vmem>>) attributes {dimension_semantics = [], scalar_prefetch = 0 : i64, scratch_operands = 0 : i64, tpu.core_type = #tpu.core_type<tc>} {
    %c0 = arith.constant 0 : index
    %c0_0 = arith.constant 0 : index
    %0 = vector.load %arg0[%c0, %c0_0] : memref<64x16xf32, #tpu.memory_space<vmem>>, vector<64x16xf32>
    %cst = arith.constant 4.000000e+00 : f32
    %1 = vector.broadcast %cst : f32 to vector<64x16xf32>
    %2 = arith.mulf %0, %1 : vector<64x16xf32>
    %c0_1 = arith.constant 0 : index
    %c0_2 = arith.constant 0 : index
    %3 = vector.load %arg1[%c0_1, %c0_2] : memref<64x16xf32, #tpu.memory_space<vmem>>, vector<64x16xf32>
    %4 = arith.addf %2, %3 : vector<64x16xf32>
    %c0_3 = arith.constant 0 : index
    %c0_4 = arith.constant 0 : index
    %c0_5 = arith.constant 0 : index
    %5 = vector.load %arg2[%c0_3, %c0_4, %c0_5] : memref<8x1x8xf32, #tpu.memory_space<vmem>>, vector<8x1x8xf32>
    %c0_6 = arith.constant 0 : index
    %c0_7 = arith.constant 0 : index
    %6 = vector.load %arg3[%c0_6, %c0_7] : memref<8x16xf32, #tpu.memory_space<vmem>>, vector<8x16xf32>
    %c0_8 = arith.constant 0 : index
    %c0_9 = arith.constant 0 : index
    %c0_10 = arith.constant 0 : index
    %7 = vector.load %arg4[%c0_8, %c0_9, %c0_10] : memref<2x16x16xf32, #tpu.memory_space<vmem>>, vector<1x16x16xf32>
    %8 = vector.shape_cast %7 : vector<1x16x16xf32> to vector<16x16xf32>
    %cst_11 = arith.constant dense<0.000000e+00> : vector<64x16xf32>
    %9 = tpu.matmul %4, %8, %cst_11 {dimension_numbers = #tpu.dot_dimension_numbers<[1], [0], [0], [1], [0, 0, 1, 1], [], []>} : vector<64x16xf32>, vector<16x16xf32>, vector<64x16xf32> -> vector<64x16xf32>
    %c0_12 = arith.constant 0 : index
    %c0_13 = arith.constant 0 : index
    %c0_14 = arith.constant 0 : index
    %10 = vector.load %arg7[%c0_12, %c0_13, %c0_14] : memref<2x1x16xf32, #tpu.memory_space<vmem>>, vector<1x1x16xf32>
    %11 = vector.shape_cast %10 : vector<1x1x16xf32> to vector<1x16xf32>
    %12 = vector.broadcast %11 : vector<1x16xf32> to vector<64x16xf32>
    %13 = arith.addf %9, %12 : vector<64x16xf32>
    %c0_15 = arith.constant 0 : index
    %c0_16 = arith.constant 0 : index
    %c0_17 = arith.constant 0 : index
    %14 = vector.load %arg5[%c0_15, %c0_16, %c0_17] : memref<2x16x16xf32, #tpu.memory_space<vmem>>, vector<1x16x16xf32>
    %15 = vector.shape_cast %14 : vector<1x16x16xf32> to vector<16x16xf32>
    %cst_18 = arith.constant dense<0.000000e+00> : vector<64x16xf32>
    %16 = tpu.matmul %4, %15, %cst_18 {dimension_numbers = #tpu.dot_dimension_numbers<[1], [0], [0], [1], [0, 0, 1, 1], [], []>} : vector<64x16xf32>, vector<16x16xf32>, vector<64x16xf32> -> vector<64x16xf32>
    %c0_19 = arith.constant 0 : index
    %c0_20 = arith.constant 0 : index
    %c0_21 = arith.constant 0 : index
    %17 = vector.load %arg8[%c0_19, %c0_20, %c0_21] : memref<2x1x16xf32, #tpu.memory_space<vmem>>, vector<1x1x16xf32>
    %18 = vector.shape_cast %17 : vector<1x1x16xf32> to vector<1x16xf32>
    %19 = vector.broadcast %18 : vector<1x16xf32> to vector<64x16xf32>
    %20 = arith.addf %16, %19 : vector<64x16xf32>
    %c0_22 = arith.constant 0 : index
    %c0_23 = arith.constant 0 : index
    %c0_24 = arith.constant 0 : index
    %21 = vector.load %arg6[%c0_22, %c0_23, %c0_24] : memref<2x16x16xf32, #tpu.memory_space<vmem>>, vector<1x16x16xf32>
    %22 = vector.shape_cast %21 : vector<1x16x16xf32> to vector<16x16xf32>
    %cst_25 = arith.constant dense<0.000000e+00> : vector<64x16xf32>
    %23 = tpu.matmul %4, %22, %cst_25 {dimension_numbers = #tpu.dot_dimension_numbers<[1], [0], [0], [1], [0, 0, 1, 1], [], []>} : vector<64x16xf32>, vector<16x16xf32>, vector<64x16xf32> -> vector<64x16xf32>
    %c0_26 = arith.constant 0 : index
    %c0_27 = arith.constant 0 : index
    %c0_28 = arith.constant 0 : index
    %24 = vector.load %arg9[%c0_26, %c0_27, %c0_28] : memref<2x1x16xf32, #tpu.memory_space<vmem>>, vector<1x1x16xf32>
    %25 = vector.shape_cast %24 : vector<1x1x16xf32> to vector<1x16xf32>
    %26 = vector.broadcast %25 : vector<1x16xf32> to vector<64x16xf32>
    %27 = arith.addf %23, %26 : vector<64x16xf32>
    %28 = vector.shape_cast %13 : vector<64x16xf32> to vector<8x8x16xf32>
    %29 = vector.shape_cast %20 : vector<64x16xf32> to vector<8x8x16xf32>
    %30 = vector.shape_cast %27 : vector<64x16xf32> to vector<8x8x16xf32>
    %31 = vector.shape_cast %28 : vector<8x8x16xf32> to vector<8x1x8x16xf32>
    %32 = vector.shape_cast %6 : vector<8x16xf32> to vector<1x8x1x16xf32>
    %33 = vector.broadcast %31 : vector<8x1x8x16xf32> to vector<8x8x8x16xf32>
    %34 = vector.broadcast %32 : vector<1x8x1x16xf32> to vector<8x8x8x16xf32>
    %35 = arith.mulf %33, %34 : vector<8x8x8x16xf32>
    %36 = vector.shape_cast %35 : vector<8x8x8x16xf32> to vector<8x64x16xf32>
    "tpu.trace_start"() <{level = 10 : i32, message = "bme,bke->bmk"}> : () -> ()
    %cst_29 = arith.constant dense<0.000000e+00> : vector<8x64x8xf32>
    %37 = tpu.matmul %36, %29, %cst_29 {dimension_numbers = #tpu.dot_dimension_numbers<[2], [2], [1], [1], [0, 0, 0, 1, 1, 1], [0], [0]>} : vector<8x64x16xf32>, vector<8x8x16xf32>, vector<8x64x8xf32> -> vector<8x64x8xf32>
    "tpu.trace_stop"() : () -> ()
    %cst_30 = arith.constant 0.707106769 : f32
    %38 = vector.broadcast %cst_30 : f32 to vector<8x64x8xf32>
    %39 = arith.mulf %37, %38 : vector<8x64x8xf32>
    %40 = vector.broadcast %5 : vector<8x1x8xf32> to vector<8x64x8xf32>
    %41 = arith.addf %39, %40 : vector<8x64x8xf32>
    %cst_31 = arith.constant dense<0xFF800000> : vector<8x64xf32>
    %42 = vector.multi_reduction <maximumf>, %41, %cst_31 [2] : vector<8x64x8xf32> to vector<8x64xf32>
    %43 = vector.shape_cast %42 : vector<8x64xf32> to vector<8x64x1xf32>
    %44 = vector.broadcast %43 : vector<8x64x1xf32> to vector<8x64x8xf32>
    %45 = arith.subf %41, %44 : vector<8x64x8xf32>
    %46 = math.exp %45 : vector<8x64x8xf32>
    %cst_32 = arith.constant dense<0.000000e+00> : vector<8x64xf32>
    %47 = vector.multi_reduction <add>, %46, %cst_32 [2] : vector<8x64x8xf32> to vector<8x64xf32>
    %48 = vector.shape_cast %47 : vector<8x64xf32> to vector<8x64x1xf32>
    %49 = tpu.reciprocal %48 {approx = true} : vector<8x64x1xf32> -> vector<8x64x1xf32>
    %50 = vector.broadcast %49 : vector<8x64x1xf32> to vector<8x64x8xf32>
    %51 = arith.mulf %46, %50 : vector<8x64x8xf32>
    "tpu.trace_start"() <{level = 10 : i32, message = "bmk,bke->bme"}> : () -> ()
    %cst_33 = arith.constant dense<0.000000e+00> : vector<8x64x16xf32>
    %52 = tpu.matmul %51, %30, %cst_33 {dimension_numbers = #tpu.dot_dimension_numbers<[2], [1], [1], [2], [0, 0, 0, 1, 1, 2], [0], [0]>} : vector<8x64x8xf32>, vector<8x8x16xf32>, vector<8x64x16xf32> -> vector<8x64x16xf32>
    "tpu.trace_stop"() : () -> ()
    %53 = vector.shape_cast %52 : vector<8x64x16xf32> to vector<8x8x8x16xf32>
    %54 = vector.shape_cast %6 : vector<8x16xf32> to vector<1x8x1x16xf32>
    %55 = vector.broadcast %54 : vector<1x8x1x16xf32> to vector<8x8x8x16xf32>
    %56 = arith.mulf %53, %55 : vector<8x8x8x16xf32>
    %cst_34 = arith.constant dense<0.000000e+00> : vector<8x8x16xf32>
    %57 = vector.multi_reduction <add>, %56, %cst_34 [1] : vector<8x8x8x16xf32> to vector<8x8x16xf32>
    %58 = vector.shape_cast %57 : vector<8x8x16xf32> to vector<64x16xf32>
    %c0_35 = arith.constant 0 : index
    %c0_36 = arith.constant 0 : index
    %c0_37 = arith.constant 0 : index
    %59 = vector.load %arg10[%c0_35, %c0_36, %c0_37] : memref<2x16x16xf32, #tpu.memory_space<vmem>>, vector<1x16x16xf32>
    %60 = vector.shape_cast %59 : vector<1x16x16xf32> to vector<16x16xf32>
    %cst_38 = arith.constant dense<0.000000e+00> : vector<64x16xf32>
    %61 = tpu.matmul %58, %60, %cst_38 {dimension_numbers = #tpu.dot_dimension_numbers<[1], [0], [0], [1], [0, 0, 1, 1], [], []>} : vector<64x16xf32>, vector<16x16xf32>, vector<64x16xf32> -> vector<64x16xf32>
    %c0_39 = arith.constant 0 : index
    %c0_40 = arith.constant 0 : index
    %c0_41 = arith.constant 0 : index
    %62 = vector.load %arg11[%c0_39, %c0_40, %c0_41] : memref<2x1x16xf32, #tpu.memory_space<vmem>>, vector<1x1x16xf32>
    %63 = vector.shape_cast %62 : vector<1x1x16xf32> to vector<1x16xf32>
    %64 = vector.broadcast %63 : vector<1x16xf32> to vector<64x16xf32>
    %65 = arith.addf %61, %64 : vector<64x16xf32>
    %66 = arith.addf %4, %65 : vector<64x16xf32>
    %c0_42 = arith.constant 0 : index
    %c0_43 = arith.constant 0 : index
    %c0_44 = arith.constant 0 : index
    %67 = vector.load %arg12[%c0_42, %c0_43, %c0_44] : memref<2x1x16xf32, #tpu.memory_space<vmem>>, vector<1x1x16xf32>
    %68 = vector.shape_cast %67 : vector<1x1x16xf32> to vector<1x16xf32>
    %c0_45 = arith.constant 0 : index
    %c0_46 = arith.constant 0 : index
    %c0_47 = arith.constant 0 : index
    %69 = vector.load %arg13[%c0_45, %c0_46, %c0_47] : memref<2x1x16xf32, #tpu.memory_space<vmem>>, vector<1x1x16xf32>
    %70 = vector.shape_cast %69 : vector<1x1x16xf32> to vector<1x16xf32>
    %cst_48 = arith.constant dense<0.000000e+00> : vector<64xf32>
    %71 = vector.multi_reduction <add>, %66, %cst_48 [1] : vector<64x16xf32> to vector<64xf32>
    %72 = vector.shape_cast %71 : vector<64xf32> to vector<64x1xf32>
    %cst_49 = arith.constant 1.600000e+01 : f32
    %73 = vector.broadcast %cst_49 : f32 to vector<64x1xf32>
    %74 = arith.divf %72, %73 : vector<64x1xf32>
    %75 = vector.broadcast %74 : vector<64x1xf32> to vector<64x16xf32>
    %76 = arith.subf %66, %75 : vector<64x16xf32>
    %77 = arith.mulf %76, %76 : vector<64x16xf32>
    %cst_50 = arith.constant dense<0.000000e+00> : vector<64xf32>
    %78 = vector.multi_reduction <add>, %77, %cst_50 [1] : vector<64x16xf32> to vector<64xf32>
    %79 = vector.shape_cast %78 : vector<64xf32> to vector<64x1xf32>
    %cst_51 = arith.constant 1.600000e+01 : f32
    %80 = vector.broadcast %cst_51 : f32 to vector<64x1xf32>
    %81 = arith.divf %79, %80 : vector<64x1xf32>
    %cst_52 = arith.constant 9.99999974E-6 : f32
    %82 = vector.broadcast %cst_52 : f32 to vector<64x1xf32>
    %83 = arith.addf %81, %82 : vector<64x1xf32>
    %84 = math.rsqrt %83 : vector<64x1xf32>
    %85 = vector.broadcast %84 : vector<64x1xf32> to vector<64x16xf32>
    %86 = arith.mulf %76, %85 : vector<64x16xf32>
    %87 = vector.broadcast %68 : vector<1x16xf32> to vector<64x16xf32>
    %88 = arith.mulf %86, %87 : vector<64x16xf32>
    %89 = vector.broadcast %70 : vector<1x16xf32> to vector<64x16xf32>
    %90 = arith.addf %88, %89 : vector<64x16xf32>
    %c0_53 = arith.constant 0 : index
    %c0_54 = arith.constant 0 : index
    %c0_55 = arith.constant 0 : index
    %91 = vector.load %arg14[%c0_53, %c0_54, %c0_55] : memref<2x16x256xf32, #tpu.memory_space<vmem>>, vector<1x16x256xf32>
    %92 = vector.shape_cast %91 : vector<1x16x256xf32> to vector<16x256xf32>
    %cst_56 = arith.constant dense<0.000000e+00> : vector<64x256xf32>
    %93 = tpu.matmul %90, %92, %cst_56 {dimension_numbers = #tpu.dot_dimension_numbers<[1], [0], [0], [1], [0, 0, 1, 1], [], []>} : vector<64x16xf32>, vector<16x256xf32>, vector<64x256xf32> -> vector<64x256xf32>
    %c0_57 = arith.constant 0 : index
    %c0_58 = arith.constant 0 : index
    %c0_59 = arith.constant 0 : index
    %94 = vector.load %arg15[%c0_57, %c0_58, %c0_59] : memref<2x1x256xf32, #tpu.memory_space<vmem>>, vector<1x1x256xf32>
    %95 = vector.shape_cast %94 : vector<1x1x256xf32> to vector<1x256xf32>
    %96 = vector.broadcast %95 : vector<1x256xf32> to vector<64x256xf32>
    %97 = arith.addf %93, %96 : vector<64x256xf32>
    %cst_60 = arith.constant 0.000000e+00 : f32
    %98 = vector.broadcast %cst_60 : f32 to vector<64x256xf32>
    %99 = arith.maximumf %97, %98 : vector<64x256xf32>
    %c0_61 = arith.constant 0 : index
    %c0_62 = arith.constant 0 : index
    %c0_63 = arith.constant 0 : index
    %100 = vector.load %arg16[%c0_61, %c0_62, %c0_63] : memref<2x256x16xf32, #tpu.memory_space<vmem>>, vector<1x256x16xf32>
    %101 = vector.shape_cast %100 : vector<1x256x16xf32> to vector<256x16xf32>
    %cst_64 = arith.constant dense<0.000000e+00> : vector<64x16xf32>
    %102 = tpu.matmul %99, %101, %cst_64 {dimension_numbers = #tpu.dot_dimension_numbers<[1], [0], [0], [1], [0, 0, 1, 1], [], []>} : vector<64x256xf32>, vector<256x16xf32>, vector<64x16xf32> -> vector<64x16xf32>
    %c0_65 = arith.constant 0 : index
    %c0_66 = arith.constant 0 : index
    %c0_67 = arith.constant 0 : index
    %103 = vector.load %arg17[%c0_65, %c0_66, %c0_67] : memref<2x1x16xf32, #tpu.memory_space<vmem>>, vector<1x1x16xf32>
    %104 = vector.shape_cast %103 : vector<1x1x16xf32> to vector<1x16xf32>
    %105 = vector.broadcast %104 : vector<1x16xf32> to vector<64x16xf32>
    %106 = arith.addf %102, %105 : vector<64x16xf32>
    %107 = arith.addf %90, %106 : vector<64x16xf32>
    %c0_68 = arith.constant 0 : index
    %c0_69 = arith.constant 0 : index
    %c0_70 = arith.constant 0 : index
    %108 = vector.load %arg18[%c0_68, %c0_69, %c0_70] : memref<2x1x16xf32, #tpu.memory_space<vmem>>, vector<1x1x16xf32>
    %109 = vector.shape_cast %108 : vector<1x1x16xf32> to vector<1x16xf32>
    %c0_71 = arith.constant 0 : index
    %c0_72 = arith.constant 0 : index
    %c0_73 = arith.constant 0 : index
    %110 = vector.load %arg19[%c0_71, %c0_72, %c0_73] : memref<2x1x16xf32, #tpu.memory_space<vmem>>, vector<1x1x16xf32>
    %111 = vector.shape_cast %110 : vector<1x1x16xf32> to vector<1x16xf32>
    %cst_74 = arith.constant dense<0.000000e+00> : vector<64xf32>
    %112 = vector.multi_reduction <add>, %107, %cst_74 [1] : vector<64x16xf32> to vector<64xf32>
    %113 = vector.shape_cast %112 : vector<64xf32> to vector<64x1xf32>
    %cst_75 = arith.constant 1.600000e+01 : f32
    %114 = vector.broadcast %cst_75 : f32 to vector<64x1xf32>
    %115 = arith.divf %113, %114 : vector<64x1xf32>
    %116 = vector.broadcast %115 : vector<64x1xf32> to vector<64x16xf32>
    %117 = arith.subf %107, %116 : vector<64x16xf32>
    %118 = arith.mulf %117, %117 : vector<64x16xf32>
    %cst_76 = arith.constant dense<0.000000e+00> : vector<64xf32>
    %119 = vector.multi_reduction <add>, %118, %cst_76 [1] : vector<64x16xf32> to vector<64xf32>
    %120 = vector.shape_cast %119 : vector<64xf32> to vector<64x1xf32>
    %cst_77 = arith.constant 1.600000e+01 : f32
    %121 = vector.broadcast %cst_77 : f32 to vector<64x1xf32>
    %122 = arith.divf %120, %121 : vector<64x1xf32>
    %cst_78 = arith.constant 9.99999974E-6 : f32
    %123 = vector.broadcast %cst_78 : f32 to vector<64x1xf32>
    %124 = arith.addf %122, %123 : vector<64x1xf32>
    %125 = math.rsqrt %124 : vector<64x1xf32>
    %126 = vector.broadcast %125 : vector<64x1xf32> to vector<64x16xf32>
    %127 = arith.mulf %117, %126 : vector<64x16xf32>
    %128 = vector.broadcast %109 : vector<1x16xf32> to vector<64x16xf32>
    %129 = arith.mulf %127, %128 : vector<64x16xf32>
    %130 = vector.broadcast %111 : vector<1x16xf32> to vector<64x16xf32>
    %131 = arith.addf %129, %130 : vector<64x16xf32>
    %c1 = arith.constant 1 : index
    %c0_79 = arith.constant 0 : index
    %c0_80 = arith.constant 0 : index
    %132 = vector.load %arg4[%c1, %c0_79, %c0_80] : memref<2x16x16xf32, #tpu.memory_space<vmem>>, vector<1x16x16xf32>
    %133 = vector.shape_cast %132 : vector<1x16x16xf32> to vector<16x16xf32>
    %cst_81 = arith.constant dense<0.000000e+00> : vector<64x16xf32>
    %134 = tpu.matmul %131, %133, %cst_81 {dimension_numbers = #tpu.dot_dimension_numbers<[1], [0], [0], [1], [0, 0, 1, 1], [], []>} : vector<64x16xf32>, vector<16x16xf32>, vector<64x16xf32> -> vector<64x16xf32>
    %c1_82 = arith.constant 1 : index
    %c0_83 = arith.constant 0 : index
    %c0_84 = arith.constant 0 : index
    %135 = vector.load %arg7[%c1_82, %c0_83, %c0_84] : memref<2x1x16xf32, #tpu.memory_space<vmem>>, vector<1x1x16xf32>
    %136 = vector.shape_cast %135 : vector<1x1x16xf32> to vector<1x16xf32>
    %137 = vector.broadcast %136 : vector<1x16xf32> to vector<64x16xf32>
    %138 = arith.addf %134, %137 : vector<64x16xf32>
    %c1_85 = arith.constant 1 : index
    %c0_86 = arith.constant 0 : index
    %c0_87 = arith.constant 0 : index
    %139 = vector.load %arg5[%c1_85, %c0_86, %c0_87] : memref<2x16x16xf32, #tpu.memory_space<vmem>>, vector<1x16x16xf32>
    %140 = vector.shape_cast %139 : vector<1x16x16xf32> to vector<16x16xf32>
    %cst_88 = arith.constant dense<0.000000e+00> : vector<64x16xf32>
    %141 = tpu.matmul %131, %140, %cst_88 {dimension_numbers = #tpu.dot_dimension_numbers<[1], [0], [0], [1], [0, 0, 1, 1], [], []>} : vector<64x16xf32>, vector<16x16xf32>, vector<64x16xf32> -> vector<64x16xf32>
    %c1_89 = arith.constant 1 : index
    %c0_90 = arith.constant 0 : index
    %c0_91 = arith.constant 0 : index
    %142 = vector.load %arg8[%c1_89, %c0_90, %c0_91] : memref<2x1x16xf32, #tpu.memory_space<vmem>>, vector<1x1x16xf32>
    %143 = vector.shape_cast %142 : vector<1x1x16xf32> to vector<1x16xf32>
    %144 = vector.broadcast %143 : vector<1x16xf32> to vector<64x16xf32>
    %145 = arith.addf %141, %144 : vector<64x16xf32>
    %c1_92 = arith.constant 1 : index
    %c0_93 = arith.constant 0 : index
    %c0_94 = arith.constant 0 : index
    %146 = vector.load %arg6[%c1_92, %c0_93, %c0_94] : memref<2x16x16xf32, #tpu.memory_space<vmem>>, vector<1x16x16xf32>
    %147 = vector.shape_cast %146 : vector<1x16x16xf32> to vector<16x16xf32>
    %cst_95 = arith.constant dense<0.000000e+00> : vector<64x16xf32>
    %148 = tpu.matmul %131, %147, %cst_95 {dimension_numbers = #tpu.dot_dimension_numbers<[1], [0], [0], [1], [0, 0, 1, 1], [], []>} : vector<64x16xf32>, vector<16x16xf32>, vector<64x16xf32> -> vector<64x16xf32>
    %c1_96 = arith.constant 1 : index
    %c0_97 = arith.constant 0 : index
    %c0_98 = arith.constant 0 : index
    %149 = vector.load %arg9[%c1_96, %c0_97, %c0_98] : memref<2x1x16xf32, #tpu.memory_space<vmem>>, vector<1x1x16xf32>
    %150 = vector.shape_cast %149 : vector<1x1x16xf32> to vector<1x16xf32>
    %151 = vector.broadcast %150 : vector<1x16xf32> to vector<64x16xf32>
    %152 = arith.addf %148, %151 : vector<64x16xf32>
    %153 = vector.shape_cast %138 : vector<64x16xf32> to vector<8x8x16xf32>
    %154 = vector.shape_cast %145 : vector<64x16xf32> to vector<8x8x16xf32>
    %155 = vector.shape_cast %152 : vector<64x16xf32> to vector<8x8x16xf32>
    %156 = vector.shape_cast %153 : vector<8x8x16xf32> to vector<8x1x8x16xf32>
    %157 = vector.shape_cast %6 : vector<8x16xf32> to vector<1x8x1x16xf32>
    %158 = vector.broadcast %156 : vector<8x1x8x16xf32> to vector<8x8x8x16xf32>
    %159 = vector.broadcast %157 : vector<1x8x1x16xf32> to vector<8x8x8x16xf32>
    %160 = arith.mulf %158, %159 : vector<8x8x8x16xf32>
    %161 = vector.shape_cast %160 : vector<8x8x8x16xf32> to vector<8x64x16xf32>
    "tpu.trace_start"() <{level = 10 : i32, message = "bme,bke->bmk"}> : () -> ()
    %cst_99 = arith.constant dense<0.000000e+00> : vector<8x64x8xf32>
    %162 = tpu.matmul %161, %154, %cst_99 {dimension_numbers = #tpu.dot_dimension_numbers<[2], [2], [1], [1], [0, 0, 0, 1, 1, 1], [0], [0]>} : vector<8x64x16xf32>, vector<8x8x16xf32>, vector<8x64x8xf32> -> vector<8x64x8xf32>
    "tpu.trace_stop"() : () -> ()
    %cst_100 = arith.constant 0.707106769 : f32
    %163 = vector.broadcast %cst_100 : f32 to vector<8x64x8xf32>
    %164 = arith.mulf %162, %163 : vector<8x64x8xf32>
    %165 = vector.broadcast %5 : vector<8x1x8xf32> to vector<8x64x8xf32>
    %166 = arith.addf %164, %165 : vector<8x64x8xf32>
    %cst_101 = arith.constant dense<0xFF800000> : vector<8x64xf32>
    %167 = vector.multi_reduction <maximumf>, %166, %cst_101 [2] : vector<8x64x8xf32> to vector<8x64xf32>
    %168 = vector.shape_cast %167 : vector<8x64xf32> to vector<8x64x1xf32>
    %169 = vector.broadcast %168 : vector<8x64x1xf32> to vector<8x64x8xf32>
    %170 = arith.subf %166, %169 : vector<8x64x8xf32>
    %171 = math.exp %170 : vector<8x64x8xf32>
    %cst_102 = arith.constant dense<0.000000e+00> : vector<8x64xf32>
    %172 = vector.multi_reduction <add>, %171, %cst_102 [2] : vector<8x64x8xf32> to vector<8x64xf32>
    %173 = vector.shape_cast %172 : vector<8x64xf32> to vector<8x64x1xf32>
    %174 = tpu.reciprocal %173 {approx = true} : vector<8x64x1xf32> -> vector<8x64x1xf32>
    %175 = vector.broadcast %174 : vector<8x64x1xf32> to vector<8x64x8xf32>
    %176 = arith.mulf %171, %175 : vector<8x64x8xf32>
    "tpu.trace_start"() <{level = 10 : i32, message = "bmk,bke->bme"}> : () -> ()
    %cst_103 = arith.constant dense<0.000000e+00> : vector<8x64x16xf32>
    %177 = tpu.matmul %176, %155, %cst_103 {dimension_numbers = #tpu.dot_dimension_numbers<[2], [1], [1], [2], [0, 0, 0, 1, 1, 2], [0], [0]>} : vector<8x64x8xf32>, vector<8x8x16xf32>, vector<8x64x16xf32> -> vector<8x64x16xf32>
    "tpu.trace_stop"() : () -> ()
    %178 = vector.shape_cast %177 : vector<8x64x16xf32> to vector<8x8x8x16xf32>
    %179 = vector.shape_cast %6 : vector<8x16xf32> to vector<1x8x1x16xf32>
    %180 = vector.broadcast %179 : vector<1x8x1x16xf32> to vector<8x8x8x16xf32>
    %181 = arith.mulf %178, %180 : vector<8x8x8x16xf32>
    %cst_104 = arith.constant dense<0.000000e+00> : vector<8x8x16xf32>
    %182 = vector.multi_reduction <add>, %181, %cst_104 [1] : vector<8x8x8x16xf32> to vector<8x8x16xf32>
    %183 = vector.shape_cast %182 : vector<8x8x16xf32> to vector<64x16xf32>
    %c1_105 = arith.constant 1 : index
    %c0_106 = arith.constant 0 : index
    %c0_107 = arith.constant 0 : index
    %184 = vector.load %arg10[%c1_105, %c0_106, %c0_107] : memref<2x16x16xf32, #tpu.memory_space<vmem>>, vector<1x16x16xf32>
    %185 = vector.shape_cast %184 : vector<1x16x16xf32> to vector<16x16xf32>
    %cst_108 = arith.constant dense<0.000000e+00> : vector<64x16xf32>
    %186 = tpu.matmul %183, %185, %cst_108 {dimension_numbers = #tpu.dot_dimension_numbers<[1], [0], [0], [1], [0, 0, 1, 1], [], []>} : vector<64x16xf32>, vector<16x16xf32>, vector<64x16xf32> -> vector<64x16xf32>
    %c1_109 = arith.constant 1 : index
    %c0_110 = arith.constant 0 : index
    %c0_111 = arith.constant 0 : index
    %187 = vector.load %arg11[%c1_109, %c0_110, %c0_111] : memref<2x1x16xf32, #tpu.memory_space<vmem>>, vector<1x1x16xf32>
    %188 = vector.shape_cast %187 : vector<1x1x16xf32> to vector<1x16xf32>
    %189 = vector.broadcast %188 : vector<1x16xf32> to vector<64x16xf32>
    %190 = arith.addf %186, %189 : vector<64x16xf32>
    %191 = arith.addf %131, %190 : vector<64x16xf32>
    %c1_112 = arith.constant 1 : index
    %c0_113 = arith.constant 0 : index
    %c0_114 = arith.constant 0 : index
    %192 = vector.load %arg12[%c1_112, %c0_113, %c0_114] : memref<2x1x16xf32, #tpu.memory_space<vmem>>, vector<1x1x16xf32>
    %193 = vector.shape_cast %192 : vector<1x1x16xf32> to vector<1x16xf32>
    %c1_115 = arith.constant 1 : index
    %c0_116 = arith.constant 0 : index
    %c0_117 = arith.constant 0 : index
    %194 = vector.load %arg13[%c1_115, %c0_116, %c0_117] : memref<2x1x16xf32, #tpu.memory_space<vmem>>, vector<1x1x16xf32>
    %195 = vector.shape_cast %194 : vector<1x1x16xf32> to vector<1x16xf32>
    %cst_118 = arith.constant dense<0.000000e+00> : vector<64xf32>
    %196 = vector.multi_reduction <add>, %191, %cst_118 [1] : vector<64x16xf32> to vector<64xf32>
    %197 = vector.shape_cast %196 : vector<64xf32> to vector<64x1xf32>
    %cst_119 = arith.constant 1.600000e+01 : f32
    %198 = vector.broadcast %cst_119 : f32 to vector<64x1xf32>
    %199 = arith.divf %197, %198 : vector<64x1xf32>
    %200 = vector.broadcast %199 : vector<64x1xf32> to vector<64x16xf32>
    %201 = arith.subf %191, %200 : vector<64x16xf32>
    %202 = arith.mulf %201, %201 : vector<64x16xf32>
    %cst_120 = arith.constant dense<0.000000e+00> : vector<64xf32>
    %203 = vector.multi_reduction <add>, %202, %cst_120 [1] : vector<64x16xf32> to vector<64xf32>
    %204 = vector.shape_cast %203 : vector<64xf32> to vector<64x1xf32>
    %cst_121 = arith.constant 1.600000e+01 : f32
    %205 = vector.broadcast %cst_121 : f32 to vector<64x1xf32>
    %206 = arith.divf %204, %205 : vector<64x1xf32>
    %cst_122 = arith.constant 9.99999974E-6 : f32
    %207 = vector.broadcast %cst_122 : f32 to vector<64x1xf32>
    %208 = arith.addf %206, %207 : vector<64x1xf32>
    %209 = math.rsqrt %208 : vector<64x1xf32>
    %210 = vector.broadcast %209 : vector<64x1xf32> to vector<64x16xf32>
    %211 = arith.mulf %201, %210 : vector<64x16xf32>
    %212 = vector.broadcast %193 : vector<1x16xf32> to vector<64x16xf32>
    %213 = arith.mulf %211, %212 : vector<64x16xf32>
    %214 = vector.broadcast %195 : vector<1x16xf32> to vector<64x16xf32>
    %215 = arith.addf %213, %214 : vector<64x16xf32>
    %c1_123 = arith.constant 1 : index
    %c0_124 = arith.constant 0 : index
    %c0_125 = arith.constant 0 : index
    %216 = vector.load %arg14[%c1_123, %c0_124, %c0_125] : memref<2x16x256xf32, #tpu.memory_space<vmem>>, vector<1x16x256xf32>
    %217 = vector.shape_cast %216 : vector<1x16x256xf32> to vector<16x256xf32>
    %cst_126 = arith.constant dense<0.000000e+00> : vector<64x256xf32>
    %218 = tpu.matmul %215, %217, %cst_126 {dimension_numbers = #tpu.dot_dimension_numbers<[1], [0], [0], [1], [0, 0, 1, 1], [], []>} : vector<64x16xf32>, vector<16x256xf32>, vector<64x256xf32> -> vector<64x256xf32>
    %c1_127 = arith.constant 1 : index
    %c0_128 = arith.constant 0 : index
    %c0_129 = arith.constant 0 : index
    %219 = vector.load %arg15[%c1_127, %c0_128, %c0_129] : memref<2x1x256xf32, #tpu.memory_space<vmem>>, vector<1x1x256xf32>
    %220 = vector.shape_cast %219 : vector<1x1x256xf32> to vector<1x256xf32>
    %221 = vector.broadcast %220 : vector<1x256xf32> to vector<64x256xf32>
    %222 = arith.addf %218, %221 : vector<64x256xf32>
    %cst_130 = arith.constant 0.000000e+00 : f32
    %223 = vector.broadcast %cst_130 : f32 to vector<64x256xf32>
    %224 = arith.maximumf %222, %223 : vector<64x256xf32>
    %c1_131 = arith.constant 1 : index
    %c0_132 = arith.constant 0 : index
    %c0_133 = arith.constant 0 : index
    %225 = vector.load %arg16[%c1_131, %c0_132, %c0_133] : memref<2x256x16xf32, #tpu.memory_space<vmem>>, vector<1x256x16xf32>
    %226 = vector.shape_cast %225 : vector<1x256x16xf32> to vector<256x16xf32>
    %cst_134 = arith.constant dense<0.000000e+00> : vector<64x16xf32>
    %227 = tpu.matmul %224, %226, %cst_134 {dimension_numbers = #tpu.dot_dimension_numbers<[1], [0], [0], [1], [0, 0, 1, 1], [], []>} : vector<64x256xf32>, vector<256x16xf32>, vector<64x16xf32> -> vector<64x16xf32>
    %c1_135 = arith.constant 1 : index
    %c0_136 = arith.constant 0 : index
    %c0_137 = arith.constant 0 : index
    %228 = vector.load %arg17[%c1_135, %c0_136, %c0_137] : memref<2x1x16xf32, #tpu.memory_space<vmem>>, vector<1x1x16xf32>
    %229 = vector.shape_cast %228 : vector<1x1x16xf32> to vector<1x16xf32>
    %230 = vector.broadcast %229 : vector<1x16xf32> to vector<64x16xf32>
    %231 = arith.addf %227, %230 : vector<64x16xf32>
    %232 = arith.addf %215, %231 : vector<64x16xf32>
    %c1_138 = arith.constant 1 : index
    %c0_139 = arith.constant 0 : index
    %c0_140 = arith.constant 0 : index
    %233 = vector.load %arg18[%c1_138, %c0_139, %c0_140] : memref<2x1x16xf32, #tpu.memory_space<vmem>>, vector<1x1x16xf32>
    %234 = vector.shape_cast %233 : vector<1x1x16xf32> to vector<1x16xf32>
    %c1_141 = arith.constant 1 : index
    %c0_142 = arith.constant 0 : index
    %c0_143 = arith.constant 0 : index
    %235 = vector.load %arg19[%c1_141, %c0_142, %c0_143] : memref<2x1x16xf32, #tpu.memory_space<vmem>>, vector<1x1x16xf32>
    %236 = vector.shape_cast %235 : vector<1x1x16xf32> to vector<1x16xf32>
    %cst_144 = arith.constant dense<0.000000e+00> : vector<64xf32>
    %237 = vector.multi_reduction <add>, %232, %cst_144 [1] : vector<64x16xf32> to vector<64xf32>
    %238 = vector.shape_cast %237 : vector<64xf32> to vector<64x1xf32>
    %cst_145 = arith.constant 1.600000e+01 : f32
    %239 = vector.broadcast %cst_145 : f32 to vector<64x1xf32>
    %240 = arith.divf %238, %239 : vector<64x1xf32>
    %241 = vector.broadcast %240 : vector<64x1xf32> to vector<64x16xf32>
    %242 = arith.subf %232, %241 : vector<64x16xf32>
    %243 = arith.mulf %242, %242 : vector<64x16xf32>
    %cst_146 = arith.constant dense<0.000000e+00> : vector<64xf32>
    %244 = vector.multi_reduction <add>, %243, %cst_146 [1] : vector<64x16xf32> to vector<64xf32>
    %245 = vector.shape_cast %244 : vector<64xf32> to vector<64x1xf32>
    %cst_147 = arith.constant 1.600000e+01 : f32
    %246 = vector.broadcast %cst_147 : f32 to vector<64x1xf32>
    %247 = arith.divf %245, %246 : vector<64x1xf32>
    %cst_148 = arith.constant 9.99999974E-6 : f32
    %248 = vector.broadcast %cst_148 : f32 to vector<64x1xf32>
    %249 = arith.addf %247, %248 : vector<64x1xf32>
    %250 = math.rsqrt %249 : vector<64x1xf32>
    %251 = vector.broadcast %250 : vector<64x1xf32> to vector<64x16xf32>
    %252 = arith.mulf %242, %251 : vector<64x16xf32>
    %253 = vector.broadcast %234 : vector<1x16xf32> to vector<64x16xf32>
    %254 = arith.mulf %252, %253 : vector<64x16xf32>
    %255 = vector.broadcast %236 : vector<1x16xf32> to vector<64x16xf32>
    %256 = arith.addf %254, %255 : vector<64x16xf32>
    %257 = vector.shape_cast %256 : vector<64x16xf32> to vector<8x8x16xf32>
    %cst_149 = arith.constant dense<0.000000e+00> : vector<8x16xf32>
    %258 = vector.multi_reduction <add>, %257, %cst_149 [1] : vector<8x8x16xf32> to vector<8x16xf32>
    %cst_150 = arith.constant 8.000000e+00 : f32
    %259 = vector.broadcast %cst_150 : f32 to vector<8x16xf32>
    %260 = arith.divf %258, %259 : vector<8x16xf32>
    %c0_151 = arith.constant 0 : index
    %c0_152 = arith.constant 0 : index
    %261 = vector.load %arg20[%c0_151, %c0_152] : memref<16x2xf32, #tpu.memory_space<vmem>>, vector<16x2xf32>
    %cst_153 = arith.constant dense<0.000000e+00> : vector<8x2xf32>
    %262 = tpu.matmul %260, %261, %cst_153 {dimension_numbers = #tpu.dot_dimension_numbers<[1], [0], [0], [1], [0, 0, 1, 1], [], []>} : vector<8x16xf32>, vector<16x2xf32>, vector<8x2xf32> -> vector<8x2xf32>
    %c0_154 = arith.constant 0 : index
    %c0_155 = arith.constant 0 : index
    %263 = vector.load %arg21[%c0_154, %c0_155] : memref<1x2xf32, #tpu.memory_space<vmem>>, vector<1x2xf32>
    %264 = vector.broadcast %263 : vector<1x2xf32> to vector<8x2xf32>
    %265 = arith.addf %262, %264 : vector<8x2xf32>
    %c0_156 = arith.constant 0 : index
    %c0_157 = arith.constant 0 : index
    %266 = vector.load %arg22[%c0_156, %c0_157] : memref<8x2xf32, #tpu.memory_space<vmem>>, vector<8x2xf32>
    tpu.vector_store %arg22[%c0_156, %c0_157], %265 {strides = array<i32>} : memref<8x2xf32, #tpu.memory_space<vmem>>, vector<8x2xf32>,
    return
  }
}

</mosaic_0001>

<llo_original>
// kernel: model_tr_forward.1
$region0: #{model_tr_forward.1}
  #allocation0 [shape = 'u32[]', space=smem, size = 0x4, offset = 0x4, fixed_abs, tag = 'smem constant byte address 0x4 - core index']
  #allocation1 [shape = 'u32[144,128]{1,0:T(1,128)}', space=vmem, size = 0x12000, scoped, tag = 'internal scratch']
  %s0 = inlined_call_operand.vmem [shape: f32[64,16], index: 0, kind: input, shape index: {}]
  %s1 = inlined_call_operand.vmem [shape: f32[64,16], index: 1, kind: input, shape index: {}]
  %s2 = inlined_call_operand.vmem [shape: f32[8,1,8], index: 2, kind: input, shape index: {}]
  %s3 = inlined_call_operand.vmem [shape: f32[8,16], index: 3, kind: input, shape index: {}]
  %s4 = inlined_call_operand.vmem [shape: f32[2,16,16], index: 4, kind: input, shape index: {}]
  %s5 = inlined_call_operand.vmem [shape: f32[2,16,16], index: 5, kind: input, shape index: {}]
  %s6 = inlined_call_operand.vmem [shape: f32[2,16,16], index: 6, kind: input, shape index: {}]
  %s7 = inlined_call_operand.vmem [shape: f32[2,1,16], index: 7, kind: input, shape index: {}]
  %s8 = inlined_call_operand.vmem [shape: f32[2,1,16], index: 8, kind: input, shape index: {}]
  %s9 = inlined_call_operand.vmem [shape: f32[2,1,16], index: 9, kind: input, shape index: {}]
  %s10 = inlined_call_operand.vmem [shape: f32[2,16,16], index: 10, kind: input, shape index: {}]
  %s11 = inlined_call_operand.vmem [shape: f32[2,1,16], index: 11, kind: input, shape index: {}]
  %s12 = inlined_call_operand.vmem [shape: f32[2,1,16], index: 12, kind: input, shape index: {}]
  %s13 = inlined_call_operand.vmem [shape: f32[2,1,16], index: 13, kind: input, shape index: {}]
  %s14 = inlined_call_operand.vmem [shape: f32[2,16,256], index: 14, kind: input, shape index: {}]
  %s15 = inlined_call_operand.vmem [shape: f32[2,1,256], index: 15, kind: input, shape index: {}]
  %s16 = inlined_call_operand.vmem [shape: f32[2,256,16], index: 16, kind: input, shape index: {}]
  %s17 = inlined_call_operand.vmem [shape: f32[2,1,16], index: 17, kind: input, shape index: {}]
  %s18 = inlined_call_operand.vmem [shape: f32[2,1,16], index: 18, kind: input, shape index: {}]
  %s19 = inlined_call_operand.vmem [shape: f32[2,1,16], index: 19, kind: input, shape index: {}]
  %s20 = inlined_call_operand.vmem [shape: f32[16,2], index: 20, kind: input, shape index: {}]
  %s21 = inlined_call_operand.vmem [shape: f32[1,2], index: 21, kind: input, shape index: {}]
  %s22 = inlined_call_operand.vmem [shape: f32[8,2], index: 22, kind: output, shape index: {}]
  %s23 = sld [smem:[#allocation0]]
  $region98: #{model_tr_forward.1} parent=0
    _
  %s25 = ssub.s32 1, %s23
  %s26 = scalar_select 0, %s25, %s23
  // Predicated region
  $region2: #{model_tr_forward.1} parent=0 // pred_check
    _
  $region3: #{model_tr_forward.1} parent=0 // pred_check_branch
    %28 = sbr.rel (0) target = $region5
  $region4: #{model_tr_forward.1} parent=0 // pred_region
    _
  $region5: #{model_tr_forward.1} parent=0 // pred_fallthru
    _
  // Predicated region
  $region6: #{model_tr_forward.1} parent=0 // pred_check
    _
  $region7: #{model_tr_forward.1} parent=0 // pred_check_branch
    %30 = sbr.rel (0) target = $region9
  $region8: #{model_tr_forward.1} parent=0 // pred_region
    _
  $region9: #{model_tr_forward.1} parent=0 // pred_fallthru
    _
  // Predicated region
  $region10: #{model_tr_forward.1} parent=0 // pred_check
    _
  $region11: #{model_tr_forward.1} parent=0 // pred_check_branch
    %32 = sbr.rel (0) target = $region13
  $region12: #{model_tr_forward.1} parent=0 // pred_region
    _
  $region13: #{model_tr_forward.1} parent=0 // pred_fallthru
    _
  // Predicated region
  $region14: #{model_tr_forward.1} parent=0 // pred_check
    _
  $region15: #{model_tr_forward.1} parent=0 // pred_check_branch
    %34 = sbr.rel (0) target = $region17
  $region16: #{model_tr_forward.1} parent=0 // pred_region
    _
  $region17: #{model_tr_forward.1} parent=0 // pred_fallthru
    _
  // Predicated region
  $region18: #{model_tr_forward.1} parent=0 // pred_check
    _
  $region19: #{model_tr_forward.1} parent=0 // pred_check_branch
    %36 = sbr.rel (0) target = $region21
  $region20: #{model_tr_forward.1} parent=0 // pred_region
    _
  $region21: #{model_tr_forward.1} parent=0 // pred_fallthru
    _
  // Predicated region
  $region22: #{model_tr_forward.1} parent=0 // pred_check
    _
  $region23: #{model_tr_forward.1} parent=0 // pred_check_branch
    %38 = sbr.rel (0) target = $region25
  $region24: #{model_tr_forward.1} parent=0 // pred_region
    _
  $region25: #{model_tr_forward.1} parent=0 // pred_fallthru
    _
  // Predicated region
  $region26: #{model_tr_forward.1} parent=0 // pred_check
    _
  $region27: #{model_tr_forward.1} parent=0 // pred_check_branch
    %40 = sbr.rel (0) target = $region29
  $region28: #{model_tr_forward.1} parent=0 // pred_region
    _
  $region29: #{model_tr_forward.1} parent=0 // pred_fallthru
    _
  // Predicated region
  $region30: #{model_tr_forward.1} parent=0 // pred_check
    _
  $region31: #{model_tr_forward.1} parent=0 // pred_check_branch
    %42 = sbr.rel (0) target = $region33
  $region32: #{model_tr_forward.1} parent=0 // pred_region
    _
  $region33: #{model_tr_forward.1} parent=0 // pred_fallthru
    _
  // Predicated region
  $region34: #{model_tr_forward.1} parent=0 // pred_check
    _
  $region35: #{model_tr_forward.1} parent=0 // pred_check_branch
    %44 = sbr.rel (0) target = $region37
  $region36: #{model_tr_forward.1} parent=0 // pred_region
    _
  $region37: #{model_tr_forward.1} parent=0 // pred_fallthru
    _
  // Predicated region
  $region38: #{model_tr_forward.1} parent=0 // pred_check
    _
  $region39: #{model_tr_forward.1} parent=0 // pred_check_branch
    %46 = sbr.rel (0) target = $region41
  $region40: #{model_tr_forward.1} parent=0 // pred_region
    _
  $region41: #{model_tr_forward.1} parent=0 // pred_fallthru
    _
  // Predicated region
  $region42: #{model_tr_forward.1} parent=0 // pred_check
    _
  $region43: #{model_tr_forward.1} parent=0 // pred_check_branch
    %48 = sbr.rel (0) target = $region45
  $region44: #{model_tr_forward.1} parent=0 // pred_region
    _
  $region45: #{model_tr_forward.1} parent=0 // pred_fallthru
    _
  // Predicated region
  $region46: #{model_tr_forward.1} parent=0 // pred_check
    _
  $region47: #{model_tr_forward.1} parent=0 // pred_check_branch
    %50 = sbr.rel (0) target = $region49
  $region48: #{model_tr_forward.1} parent=0 // pred_region
    _
  $region49: #{model_tr_forward.1} parent=0 // pred_fallthru
    _
  // Predicated region
  $region50: #{model_tr_forward.1} parent=0 // pred_check
    _
  $region51: #{model_tr_forward.1} parent=0 // pred_check_branch
    %52 = sbr.rel (0) target = $region53
  $region52: #{model_tr_forward.1} parent=0 // pred_region
    _
  $region53: #{model_tr_forward.1} parent=0 // pred_fallthru
    _
  // Predicated region
  $region54: #{model_tr_forward.1} parent=0 // pred_check
    _
  $region55: #{model_tr_forward.1} parent=0 // pred_check_branch
    %54 = sbr.rel (0) target = $region57
  $region56: #{model_tr_forward.1} parent=0 // pred_region
    _
  $region57: #{model_tr_forward.1} parent=0 // pred_fallthru
    _
  // Predicated region
  $region58: #{model_tr_forward.1} parent=0 // pred_check
    _
  $region59: #{model_tr_forward.1} parent=0 // pred_check_branch
    %56 = sbr.rel (0) target = $region61
  $region60: #{model_tr_forward.1} parent=0 // pred_region
    _
  $region61: #{model_tr_forward.1} parent=0 // pred_fallthru
    _
  // Predicated region
  $region62: #{model_tr_forward.1} parent=0 // pred_check
    _
  $region63: #{model_tr_forward.1} parent=0 // pred_check_branch
    %58 = sbr.rel (0) target = $region65
  $region64: #{model_tr_forward.1} parent=0 // pred_region
    _
  $region65: #{model_tr_forward.1} parent=0 // pred_fallthru
    _
  // Predicated region
  $region66: #{model_tr_forward.1} parent=0 // pred_check
    _
  $region67: #{model_tr_forward.1} parent=0 // pred_check_branch
    %60 = sbr.rel (0) target = $region69
  $region68: #{model_tr_forward.1} parent=0 // pred_region
    _
  $region69: #{model_tr_forward.1} parent=0 // pred_fallthru
    _
  // Predicated region
  $region70: #{model_tr_forward.1} parent=0 // pred_check
    _
  $region71: #{model_tr_forward.1} parent=0 // pred_check_branch
    %62 = sbr.rel (0) target = $region73
  $region72: #{model_tr_forward.1} parent=0 // pred_region
    _
  $region73: #{model_tr_forward.1} parent=0 // pred_fallthru
    _
  // Predicated region
  $region74: #{model_tr_forward.1} parent=0 // pred_check
    _
  $region75: #{model_tr_forward.1} parent=0 // pred_check_branch
    %64 = sbr.rel (0) target = $region77
  $region76: #{model_tr_forward.1} parent=0 // pred_region
    _
  $region77: #{model_tr_forward.1} parent=0 // pred_fallthru
    _
  // Predicated region
  $region78: #{model_tr_forward.1} parent=0 // pred_check
    _
  $region79: #{model_tr_forward.1} parent=0 // pred_check_branch
    %66 = sbr.rel (0) target = $region81
  $region80: #{model_tr_forward.1} parent=0 // pred_region
    _
  $region81: #{model_tr_forward.1} parent=0 // pred_fallthru
    _
  // Predicated region
  $region82: #{model_tr_forward.1} parent=0 // pred_check
    _
  $region83: #{model_tr_forward.1} parent=0 // pred_check_branch
    %68 = sbr.rel (0) target = $region85
  $region84: #{model_tr_forward.1} parent=0 // pred_region
    _
  $region85: #{model_tr_forward.1} parent=0 // pred_fallthru
    _
  // Predicated region
  $region86: #{model_tr_forward.1} parent=0 // pred_check
    _
  $region87: #{model_tr_forward.1} parent=0 // pred_check_branch
    %70 = sbr.rel (0) target = $region89
  $region88: #{model_tr_forward.1} parent=0 // pred_region
    _
  $region89: #{model_tr_forward.1} parent=0 // pred_fallthru
    _
  %v71 = vld [vmem:[%s0] sm:$0xff]
  %v72 = vld [vmem:[%s0 + $0x8] sm:$0xff]
  %v73 = vld [vmem:[%s0 + $0x10] sm:$0xff]
  %v74 = vld [vmem:[%s0 + $0x18] sm:$0xff]
  %v75 = vld [vmem:[%s0 + $0x20] sm:$0xff]
  %v76 = vld [vmem:[%s0 + $0x28] sm:$0xff]
  %v77 = vld [vmem:[%s0 + $0x30] sm:$0xff]
  %v78 = vld [vmem:[%s0 + $0x38] sm:$0xff]
  %v79 = vmul.f32 %v71, 4.0
  %v80 = vmul.f32 %v72, 4.0
  %v81 = vmul.f32 %v73, 4.0
  %v82 = vmul.f32 %v74, 4.0
  %v83 = vmul.f32 %v75, 4.0
  %v84 = vmul.f32 %v76, 4.0
  %v85 = vmul.f32 %v77, 4.0
  %v86 = vmul.f32 %v78, 4.0
  %v87 = vld [vmem:[%s1] sm:$0xff]
  %v88 = vld [vmem:[%s1 + $0x8] sm:$0xff]
  %v89 = vld [vmem:[%s1 + $0x10] sm:$0xff]
  %v90 = vld [vmem:[%s1 + $0x18] sm:$0xff]
  %v91 = vld [vmem:[%s1 + $0x20] sm:$0xff]
  %v92 = vld [vmem:[%s1 + $0x28] sm:$0xff]
  %v93 = vld [vmem:[%s1 + $0x30] sm:$0xff]
  %v94 = vld [vmem:[%s1 + $0x38] sm:$0xff]
  %v95 = vadd.f32 %v79, %v87
  %v96 = vadd.f32 %v80, %v88
  %v97 = vadd.f32 %v81, %v89
  %v98 = vadd.f32 %v82, %v90
  %v99 = vadd.f32 %v83, %v91
  %v100 = vadd.f32 %v84, %v92
  %v101 = vadd.f32 %v85, %v93
  %v102 = vadd.f32 %v86, %v94
  %v103 = vld [vmem:[%s2] sm:$0x1]
  %v104 = vld [vmem:[%s2 + $0x1] sm:$0x1]
  %v105 = vld [vmem:[%s2 + $0x2] sm:$0x1]
  %v106 = vld [vmem:[%s2 + $0x3] sm:$0x1]
  %v107 = vld [vmem:[%s2 + $0x4] sm:$0x1]
  %v108 = vld [vmem:[%s2 + $0x5] sm:$0x1]
  %v109 = vld [vmem:[%s2 + $0x6] sm:$0x1]
  %v110 = vld [vmem:[%s2 + $0x7] sm:$0x1]
  %v111 = vld [vmem:[%s3] sm:$0xff]
  %v112 = vld [vmem:[%s4] sm:$0xff]
  %v113 = vld [vmem:[%s4 + $0x8] sm:$0xff]
  %v114 = vld [vmem:[%s7] sm:$0x1]
  %v116 = vlaneseq
  %v117 = vshrl.u32 %v116, 7
  %v118 = vsub.s32 0, %v117
  %v119 = vrot.slane %v114, %v118
  %vm121 = vcmask 130048
  %v123 = vsel %vm121, %v95, 0
  %v126 = vsel %vm121, %v96, 0
  %v129 = vsel %vm121, %v97, 0
  %v132 = vsel %vm121, %v98, 0
  %v135 = vsel %vm121, %v99, 0
  %v138 = vsel %vm121, %v100, 0
  %v141 = vsel %vm121, %v101, 0
  %v144 = vsel %vm121, %v102, 0
  %146 = vmatprep.subr.mxu0 0.0
  %147 = vmatpush1.msra.mxu0 %v112
  %148 = vmatprep.subr.mxu0 0.0
  %149 = vmatpush1.msra.mxu0 %v113
  %150 = vmatprep.subr.mxu0 0.0
  %151 = vmatpush1.msra.mxu0 0.0
  %152 = vmatprep.subr.mxu0 0.0
  %153 = vmatpush1.msra.mxu0 0.0
  %154 = vmatprep.subr.mxu0 0.0
  %155 = vmatpush1.msra.mxu0 0.0
  %156 = vmatprep.subr.mxu0 0.0
  %157 = vmatpush1.msra.mxu0 0.0
  %158 = vmatprep.subr.mxu0 0.0
  %159 = vmatpush1.msra.mxu0 0.0
  %160 = vmatprep.subr.mxu0 0.0
  %161 = vmatpush1.msra.mxu0 0.0
  %162 = vmatprep.subr.mxu0 0.0
  %163 = vmatpush1.msra.mxu0 0.0
  %164 = vmatprep.subr.mxu0 0.0
  %165 = vmatpush1.msra.mxu0 0.0
  %166 = vmatprep.subr.mxu0 0.0
  %167 = vmatpush1.msra.mxu0 0.0
  %168 = vmatprep.subr.mxu0 0.0
  %169 = vmatpush1.msra.mxu0 0.0
  %170 = vmatprep.subr.mxu0 0.0
  %171 = vmatpush1.msra.mxu0 0.0
  %172 = vmatprep.subr.mxu0 0.0
  %173 = vmatpush1.msra.mxu0 0.0
  %174 = vmatprep.subr.mxu0 0.0
  %175 = vmatpush1.msra.mxu0 0.0
  %176 = vmatprep.subr.mxu0 0.0
  %177 = vmatpush1.msra.mxu0 0.0
  %178 = vmatprep.subr.mxu0 0.0
  %179 = vmatpush1.msra.mxu0 0.0
  %180 = vmatprep.subr.mxu0 0.0
  %181 = vmatpush1.msra.mxu0 0.0
  %182 = vmatprep.subr.mxu0 0.0
  %183 = vmatpush1.msra.mxu0 0.0
  %184 = vmatprep.subr.mxu0 0.0
  %185 = vmatpush1.msra.mxu0 0.0
  %186 = vmatprep.subr.mxu0 0.0
  %187 = vmatpush1.msra.mxu0 0.0
  %188 = vmatprep.subr.mxu0 0.0
  %189 = vmatpush1.msra.mxu0 0.0
  %190 = vmatprep.subr.mxu0 0.0
  %191 = vmatpush1.msra.mxu0 0.0
  %192 = vmatprep.subr.mxu0 0.0
  %193 = vmatpush1.msra.mxu0 0.0
  %194 = vmatprep.subr.mxu0 0.0
  %195 = vmatpush1.msra.mxu0 0.0
  %196 = vmatprep.subr.mxu0 0.0
  %197 = vmatpush1.msra.mxu0 0.0
  %198 = vmatprep.subr.mxu0 0.0
  %199 = vmatpush1.msra.mxu0 0.0
  %200 = vmatprep.subr.mxu0 0.0
  %201 = vmatpush1.msra.mxu0 0.0
  %202 = vmatprep.subr.mxu0 0.0
  %203 = vmatpush1.msra.mxu0 0.0
  %204 = vmatprep.subr.mxu0 0.0
  %205 = vmatpush1.msra.mxu0 0.0
  %206 = vmatprep.subr.mxu0 0.0
  %207 = vmatpush1.msra.mxu0 0.0
  %208 = vmatprep.subr.mxu0 0.0
  %209 = vmatpush1.msra.mxu0 0.0
  %210 = vmatprep.mubr.f32.mxu0 0.0
  %211 = vmatmul.mubr.f32.gmra.mrb[0].mxu0 %v123
  %v212 = vpop.f32.mrb[0].mxu0
  %v213 = vadd.f32 %v119, %v212
  %v214 = vpop.f32.mrb[0].mxu0
  %215 = vmatprep.mubr.f32.mxu0 0.0
  %216 = vmatmul.mubr.f32.gmra.mrb[0].mxu0 %v126
  %v217 = vpop.f32.mrb[0].mxu0
  %v218 = vadd.f32 %v119, %v217
  %v219 = vpop.f32.mrb[0].mxu0
  %220 = vmatprep.mubr.f32.mxu0 0.0
  %221 = vmatmul.mubr.f32.gmra.mrb[0].mxu0 %v129
  %v222 = vpop.f32.mrb[0].mxu0
  %v223 = vadd.f32 %v119, %v222
  %v224 = vpop.f32.mrb[0].mxu0
  %225 = vmatprep.mubr.f32.mxu0 0.0
  %226 = vmatmul.mubr.f32.gmra.mrb[0].mxu0 %v132
  %v227 = vpop.f32.mrb[0].mxu0
  %v228 = vadd.f32 %v119, %v227
  %v229 = vpop.f32.mrb[0].mxu0
  %230 = vmatprep.mubr.f32.mxu0 0.0
  %231 = vmatmul.mubr.f32.gmra.mrb[0].mxu0 %v135
  %v232 = vpop.f32.mrb[0].mxu0
  %v233 = vadd.f32 %v119, %v232
  %v234 = vpop.f32.mrb[0].mxu0
  %235 = vmatprep.mubr.f32.mxu0 0.0
  %236 = vmatmul.mubr.f32.gmra.mrb[0].mxu0 %v138
  %v237 = vpop.f32.mrb[0].mxu0
  %v238 = vadd.f32 %v119, %v237
  %v239 = vpop.f32.mrb[0].mxu0
  %240 = vmatprep.mubr.f32.mxu0 0.0
  %241 = vmatmul.mubr.f32.gmra.mrb[0].mxu0 %v141
  %v242 = vpop.f32.mrb[0].mxu0
  %v243 = vadd.f32 %v119, %v242
  %v244 = vpop.f32.mrb[0].mxu0
  %245 = vmatprep.mubr.f32.mxu0 0.0
  %246 = vmatmul.mubr.f32.gmra.mrb[0].mxu0 %v144
  %v247 = vpop.f32.mrb[0].mxu0
  %v248 = vadd.f32 %v119, %v247
  %v249 = vpop.f32.mrb[0].mxu0
  %250 = vdwg.mxu0
  %v251 = vld [vmem:[%s5] sm:$0xff]
  %v252 = vld [vmem:[%s5 + $0x8] sm:$0xff]
  %v253 = vld [vmem:[%s8] sm:$0x1]
  %v255 = vlaneseq
  %v256 = vshrl.u32 %v255, 7
  %v257 = vsub.s32 0, %v256
  %v258 = vrot.slane %v253, %v257
  %260 = vmatprep.subr.mxu0 0.0
  %261 = vmatpush1.msra.mxu0 %v251
  %262 = vmatprep.subr.mxu0 0.0
  %263 = vmatpush1.msra.mxu0 %v252
  %264 = vmatprep.subr.mxu0 0.0
  %265 = vmatpush1.msra.mxu0 0.0
  %266 = vmatprep.subr.mxu0 0.0
  %267 = vmatpush1.msra.mxu0 0.0
  %268 = vmatprep.subr.mxu0 0.0
  %269 = vmatpush1.msra.mxu0 0.0
  %270 = vmatprep.subr.mxu0 0.0
  %271 = vmatpush1.msra.mxu0 0.0
  %272 = vmatprep.subr.mxu0 0.0
  %273 = vmatpush1.msra.mxu0 0.0
  %274 = vmatprep.subr.mxu0 0.0
  %275 = vmatpush1.msra.mxu0 0.0
  %276 = vmatprep.subr.mxu0 0.0
  %277 = vmatpush1.msra.mxu0 0.0
  %278 = vmatprep.subr.mxu0 0.0
  %279 = vmatpush1.msra.mxu0 0.0
  %280 = vmatprep.subr.mxu0 0.0
  %281 = vmatpush1.msra.mxu0 0.0
  %282 = vmatprep.subr.mxu0 0.0
  %283 = vmatpush1.msra.mxu0 0.0
  %284 = vmatprep.subr.mxu0 0.0
  %285 = vmatpush1.msra.mxu0 0.0
  %286 = vmatprep.subr.mxu0 0.0
  %287 = vmatpush1.msra.mxu0 0.0
  %288 = vmatprep.subr.mxu0 0.0
  %289 = vmatpush1.msra.mxu0 0.0
  %290 = vmatprep.subr.mxu0 0.0
  %291 = vmatpush1.msra.mxu0 0.0
  %292 = vmatprep.subr.mxu0 0.0
  %293 = vmatpush1.msra.mxu0 0.0
  %294 = vmatprep.subr.mxu0 0.0
  %295 = vmatpush1.msra.mxu0 0.0
  %296 = vmatprep.subr.mxu0 0.0
  %297 = vmatpush1.msra.mxu0 0.0
  %298 = vmatprep.subr.mxu0 0.0
  %299 = vmatpush1.msra.mxu0 0.0
  %300 = vmatprep.subr.mxu0 0.0
  %301 = vmatpush1.msra.mxu0 0.0
  %302 = vmatprep.subr.mxu0 0.0
  %303 = vmatpush1.msra.mxu0 0.0
  %304 = vmatprep.subr.mxu0 0.0
  %305 = vmatpush1.msra.mxu0 0.0
  %306 = vmatprep.subr.mxu0 0.0
  %307 = vmatpush1.msra.mxu0 0.0
  %308 = vmatprep.subr.mxu0 0.0
  %309 = vmatpush1.msra.mxu0 0.0
  %310 = vmatprep.subr.mxu0 0.0
  %311 = vmatpush1.msra.mxu0 0.0
  %312 = vmatprep.subr.mxu0 0.0
  %313 = vmatpush1.msra.mxu0 0.0
  %314 = vmatprep.subr.mxu0 0.0
  %315 = vmatpush1.msra.mxu0 0.0
  %316 = vmatprep.subr.mxu0 0.0
  %317 = vmatpush1.msra.mxu0 0.0
  %318 = vmatprep.subr.mxu0 0.0
  %319 = vmatpush1.msra.mxu0 0.0
  %320 = vmatprep.subr.mxu0 0.0
  %321 = vmatpush1.msra.mxu0 0.0
  %322 = vmatprep.subr.mxu0 0.0
  %323 = vmatpush1.msra.mxu0 0.0
  %324 = vmatprep.mubr.f32.mxu0 0.0
  %325 = vmatmul.mubr.f32.gmra.mrb[0].mxu0 %v123
  %v326 = vpop.f32.mrb[0].mxu0
  %v327 = vadd.f32 %v258, %v326
  %v328 = vpop.f32.mrb[0].mxu0
  %329 = vmatprep.mubr.f32.mxu0 0.0
  %330 = vmatmul.mubr.f32.gmra.mrb[0].mxu0 %v126
  %v331 = vpop.f32.mrb[0].mxu0
  %v332 = vadd.f32 %v258, %v331
  %v333 = vpop.f32.mrb[0].mxu0
  %334 = vmatprep.mubr.f32.mxu0 0.0
  %335 = vmatmul.mubr.f32.gmra.mrb[0].mxu0 %v129
  %v336 = vpop.f32.mrb[0].mxu0
  %v337 = vadd.f32 %v258, %v336
  %v338 = vpop.f32.mrb[0].mxu0
  %339 = vmatprep.mubr.f32.mxu0 0.0
  %340 = vmatmul.mubr.f32.gmra.mrb[0].mxu0 %v132
  %v341 = vpop.f32.mrb[0].mxu0
  %v342 = vadd.f32 %v258, %v341
  %v343 = vpop.f32.mrb[0].mxu0
  %344 = vmatprep.mubr.f32.mxu0 0.0
  %345 = vmatmul.mubr.f32.gmra.mrb[0].mxu0 %v135
  %v346 = vpop.f32.mrb[0].mxu0
  %v347 = vadd.f32 %v258, %v346
  %v348 = vpop.f32.mrb[0].mxu0
  %349 = vmatprep.mubr.f32.mxu0 0.0
  %350 = vmatmul.mubr.f32.gmra.mrb[0].mxu0 %v138
  %v351 = vpop.f32.mrb[0].mxu0
  %v352 = vadd.f32 %v258, %v351
  %v353 = vpop.f32.mrb[0].mxu0
  %354 = vmatprep.mubr.f32.mxu0 0.0
  %355 = vmatmul.mubr.f32.gmra.mrb[0].mxu0 %v141
  %v356 = vpop.f32.mrb[0].mxu0
  %v357 = vadd.f32 %v258, %v356
  %v358 = vpop.f32.mrb[0].mxu0
  %359 = vmatprep.mubr.f32.mxu0 0.0
  %360 = vmatmul.mubr.f32.gmra.mrb[0].mxu0 %v144
  %v361 = vpop.f32.mrb[0].mxu0
  %v362 = vadd.f32 %v258, %v361
  %v363 = vpop.f32.mrb[0].mxu0
  %364 = vdwg.mxu0
  %v365 = vld [vmem:[%s6] sm:$0xff]
  %v366 = vld [vmem:[%s6 + $0x8] sm:$0xff]
  %v367 = vld [vmem:[%s9] sm:$0x1]
  %v369 = vlaneseq
  %v370 = vshrl.u32 %v369, 7
  %v371 = vsub.s32 0, %v370
  %v372 = vrot.slane %v367, %v371
  %374 = vmatprep.subr.mxu0 0.0
  %375 = vmatpush1.msra.mxu0 %v365
  %376 = vmatprep.subr.mxu0 0.0
  %377 = vmatpush1.msra.mxu0 %v366
  %378 = vmatprep.subr.mxu0 0.0
  %379 = vmatpush1.msra.mxu0 0.0
  %380 = vmatprep.subr.mxu0 0.0
  %381 = vmatpush1.msra.mxu0 0.0
  %382 = vmatprep.subr.mxu0 0.0
  %383 = vmatpush1.msra.mxu0 0.0
  %384 = vmatprep.subr.mxu0 0.0
  %385 = vmatpush1.msra.mxu0 0.0
  %386 = vmatprep.subr.mxu0 0.0
  %387 = vmatpush1.msra.mxu0 0.0
  %388 = vmatprep.subr.mxu0 0.0
  %389 = vmatpush1.msra.mxu0 0.0
  %390 = vmatprep.subr.mxu0 0.0
  %391 = vmatpush1.msra.mxu0 0.0
  %392 = vmatprep.subr.mxu0 0.0
  %393 = vmatpush1.msra.mxu0 0.0
  %394 = vmatprep.subr.mxu0 0.0
  %395 = vmatpush1.msra.mxu0 0.0
  %396 = vmatprep.subr.mxu0 0.0
  %397 = vmatpush1.msra.mxu0 0.0
  %398 = vmatprep.subr.mxu0 0.0
  %399 = vmatpush1.msra.mxu0 0.0
  %400 = vmatprep.subr.mxu0 0.0
  %401 = vmatpush1.msra.mxu0 0.0
  %402 = vmatprep.subr.mxu0 0.0
  %403 = vmatpush1.msra.mxu0 0.0
  %404 = vmatprep.subr.mxu0 0.0
  %405 = vmatpush1.msra.mxu0 0.0
  %406 = vmatprep.subr.mxu0 0.0
  %407 = vmatpush1.msra.mxu0 0.0
  %408 = vmatprep.subr.mxu0 0.0
  %409 = vmatpush1.msra.mxu0 0.0
  %410 = vmatprep.subr.mxu0 0.0
  %411 = vmatpush1.msra.mxu0 0.0
  %412 = vmatprep.subr.mxu0 0.0
  %413 = vmatpush1.msra.mxu0 0.0
  %414 = vmatprep.subr.mxu0 0.0
  %415 = vmatpush1.msra.mxu0 0.0
  %416 = vmatprep.subr.mxu0 0.0
  %417 = vmatpush1.msra.mxu0 0.0
  %418 = vmatprep.subr.mxu0 0.0
  %419 = vmatpush1.msra.mxu0 0.0
  %420 = vmatprep.subr.mxu0 0.0
  %421 = vmatpush1.msra.mxu0 0.0
  %422 = vmatprep.subr.mxu0 0.0
  %423 = vmatpush1.msra.mxu0 0.0
  %424 = vmatprep.subr.mxu0 0.0
  %425 = vmatpush1.msra.mxu0 0.0
  %426 = vmatprep.subr.mxu0 0.0
  %427 = vmatpush1.msra.mxu0 0.0
  %428 = vmatprep.subr.mxu0 0.0
  %429 = vmatpush1.msra.mxu0 0.0
  %430 = vmatprep.subr.mxu0 0.0
  %431 = vmatpush1.msra.mxu0 0.0
  %432 = vmatprep.subr.mxu0 0.0
  %433 = vmatpush1.msra.mxu0 0.0
  %434 = vmatprep.subr.mxu0 0.0
  %435 = vmatpush1.msra.mxu0 0.0
  %436 = vmatprep.subr.mxu0 0.0
  %437 = vmatpush1.msra.mxu0 0.0
  %438 = vmatprep.mubr.f32.mxu0 0.0
  %439 = vmatmul.mubr.f32.gmra.mrb[0].mxu0 %v123
  %v440 = vpop.f32.mrb[0].mxu0
  %v441 = vadd.f32 %v372, %v440
  %v442 = vpop.f32.mrb[0].mxu0
  %443 = vmatprep.mubr.f32.mxu0 0.0
  %444 = vmatmul.mubr.f32.gmra.mrb[0].mxu0 %v126
  %v445 = vpop.f32.mrb[0].mxu0
  %v446 = vadd.f32 %v372, %v445
  %v447 = vpop.f32.mrb[0].mxu0
  %448 = vmatprep.mubr.f32.mxu0 0.0
  %449 = vmatmul.mubr.f32.gmra.mrb[0].mxu0 %v129
  %v450 = vpop.f32.mrb[0].mxu0
  %v451 = vadd.f32 %v372, %v450
  %v452 = vpop.f32.mrb[0].mxu0
  %453 = vmatprep.mubr.f32.mxu0 0.0
  %454 = vmatmul.mubr.f32.gmra.mrb[0].mxu0 %v132
  %v455 = vpop.f32.mrb[0].mxu0
  %v456 = vadd.f32 %v372, %v455
  %v457 = vpop.f32.mrb[0].mxu0
  %458 = vmatprep.mubr.f32.mxu0 0.0
  %459 = vmatmul.mubr.f32.gmra.mrb[0].mxu0 %v135
  %v460 = vpop.f32.mrb[0].mxu0
  %v461 = vadd.f32 %v372, %v460
  %v462 = vpop.f32.mrb[0].mxu0
  %463 = vmatprep.mubr.f32.mxu0 0.0
  %464 = vmatmul.mubr.f32.gmra.mrb[0].mxu0 %v138
  %v465 = vpop.f32.mrb[0].mxu0
  %v466 = vadd.f32 %v372, %v465
  %v467 = vpop.f32.mrb[0].mxu0
  %468 = vmatprep.mubr.f32.mxu0 0.0
  %469 = vmatmul.mubr.f32.gmra.mrb[0].mxu0 %v141
  %v470 = vpop.f32.mrb[0].mxu0
  %v471 = vadd.f32 %v372, %v470
  %v472 = vpop.f32.mrb[0].mxu0
  %473 = vmatprep.mubr.f32.mxu0 0.0
  %474 = vmatmul.mubr.f32.gmra.mrb[0].mxu0 %v144
  %v475 = vpop.f32.mrb[0].mxu0
  %v476 = vadd.f32 %v372, %v475
  %v477 = vpop.f32.mrb[0].mxu0
  %478 = vdwg.mxu0
  %v480 = vcombine.high %v111, %v111
  %v482 = vunpack.c.l.s4 1966171168
  %v483 = vunpack.c.0.s8 %v482
  %v484 = vlaneseq
  %v485 = vshrl.u32 %v484, 7
  %v486 = vsub.s32 %v483, %v485
  %v487 = vrot.slane %v111, %v486
  %v489 = vunpack.c.l.s4 1966171168
  %v490 = vunpack.c.0.s8 %v489
  %v491 = vlaneseq
  %v492 = vshrl.u32 %v491, 7
  %v493 = vsub.s32 %v490, %v492
  %v494 = vrot.slane %v480, %v493
  %v495 = vcombine.high %v487, %v487
  %v496 = vcombine.high %v494, %v494
  %v498 = vunpack.c.l.s4 1966171168
  %v499 = vunpack.c.0.s8 %v498
  %v500 = vlaneseq
  %v501 = vshrl.u32 %v500, 7
  %v502 = vsub.s32 %v499, %v501
  %v503 = vrot.slane %v487, %v502
  %v505 = vunpack.c.l.s4 1966171168
  %v506 = vunpack.c.0.s8 %v505
  %v507 = vlaneseq
  %v508 = vshrl.u32 %v507, 7
  %v509 = vsub.s32 %v506, %v508
  %v510 = vrot.slane %v494, %v509
  %v512 = vunpack.c.l.s4 1966171168
  %v513 = vunpack.c.0.s8 %v512
  %v514 = vlaneseq
  %v515 = vshrl.u32 %v514, 7
  %v516 = vsub.s32 %v513, %v515
  %v517 = vrot.slane %v495, %v516
  %v519 = vunpack.c.l.s4 1966171168
  %v520 = vunpack.c.0.s8 %v519
  %v521 = vlaneseq
  %v522 = vshrl.u32 %v521, 7
  %v523 = vsub.s32 %v520, %v522
  %v524 = vrot.slane %v496, %v523
  %v525 = vcombine.high %v503, %v503
  %v526 = vcombine.high %v510, %v510
  %v527 = vcombine.high %v517, %v517
  %v528 = vcombine.high %v524, %v524
  %v529 = vlaneseq
  %v530 = vshrl.u32 %v529, 7
  %v531 = vsub.s32 0, %v530
  %v532 = vrot.slane %v503, %v531
  %v533 = vlaneseq
  %v534 = vshrl.u32 %v533, 7
  %v535 = vsub.s32 0, %v534
  %v536 = vrot.slane %v517, %v535
  %v537 = vlaneseq
  %v538 = vshrl.u32 %v537, 7
  %v539 = vsub.s32 0, %v538
  %v540 = vrot.slane %v525, %v539
  %v541 = vlaneseq
  %v542 = vshrl.u32 %v541, 7
  %v543 = vsub.s32 0, %v542
  %v544 = vrot.slane %v527, %v543
  %v545 = vlaneseq
  %v546 = vshrl.u32 %v545, 7
  %v547 = vsub.s32 0, %v546
  %v548 = vrot.slane %v510, %v547
  %v549 = vlaneseq
  %v550 = vshrl.u32 %v549, 7
  %v551 = vsub.s32 0, %v550
  %v552 = vrot.slane %v524, %v551
  %v553 = vlaneseq
  %v554 = vshrl.u32 %v553, 7
  %v555 = vsub.s32 0, %v554
  %v556 = vrot.slane %v526, %v555
  %v557 = vlaneseq
  %v558 = vshrl.u32 %v557, 7
  %v559 = vsub.s32 0, %v558
  %v560 = vrot.slane %v528, %v559
  %v569 = vmul.f32 %v213, %v532
  %v570 = vmul.f32 %v213, %v536
  %v571 = vmul.f32 %v213, %v540
  %v572 = vmul.f32 %v213, %v544
  %v573 = vmul.f32 %v213, %v548
  %v574 = vmul.f32 %v213, %v552
  %v575 = vmul.f32 %v213, %v556
  %v576 = vmul.f32 %v213, %v560
  %v577 = vmul.f32 %v218, %v532
  %v578 = vmul.f32 %v218, %v536
  %v579 = vmul.f32 %v218, %v540
  %v580 = vmul.f32 %v218, %v544
  %v581 = vmul.f32 %v218, %v548
  %v582 = vmul.f32 %v218, %v552
  %v583 = vmul.f32 %v218, %v556
  %v584 = vmul.f32 %v218, %v560
  %v585 = vmul.f32 %v223, %v532
  %v586 = vmul.f32 %v223, %v536
  %v587 = vmul.f32 %v223, %v540
  %v588 = vmul.f32 %v223, %v544
  %v589 = vmul.f32 %v223, %v548
  %v590 = vmul.f32 %v223, %v552
  %v591 = vmul.f32 %v223, %v556
  %v592 = vmul.f32 %v223, %v560
  %v593 = vmul.f32 %v228, %v532
  %v594 = vmul.f32 %v228, %v536
  %v595 = vmul.f32 %v228, %v540
  %v596 = vmul.f32 %v228, %v544
  %v597 = vmul.f32 %v228, %v548
  %v598 = vmul.f32 %v228, %v552
  %v599 = vmul.f32 %v228, %v556
  %v600 = vmul.f32 %v228, %v560
  %v601 = vmul.f32 %v233, %v532
  %v602 = vmul.f32 %v233, %v536
  %v603 = vmul.f32 %v233, %v540
  %v604 = vmul.f32 %v233, %v544
  %v605 = vmul.f32 %v233, %v548
  %v606 = vmul.f32 %v233, %v552
  %v607 = vmul.f32 %v233, %v556
  %v608 = vmul.f32 %v233, %v560
  %v609 = vmul.f32 %v238, %v532
  %v610 = vmul.f32 %v238, %v536
  %v611 = vmul.f32 %v238, %v540
  %v612 = vmul.f32 %v238, %v544
  %v613 = vmul.f32 %v238, %v548
  %v614 = vmul.f32 %v238, %v552
  %v615 = vmul.f32 %v238, %v556
  %v616 = vmul.f32 %v238, %v560
  %v617 = vmul.f32 %v243, %v532
  %v618 = vmul.f32 %v243, %v536
  %v619 = vmul.f32 %v243, %v540
  %v620 = vmul.f32 %v243, %v544
  %v621 = vmul.f32 %v243, %v548
  %v622 = vmul.f32 %v243, %v552
  %v623 = vmul.f32 %v243, %v556
  %v624 = vmul.f32 %v243, %v560
  %v625 = vmul.f32 %v248, %v532
  %v626 = vmul.f32 %v248, %v536
  %v627 = vmul.f32 %v248, %v540
  %v628 = vmul.f32 %v248, %v544
  %v629 = vmul.f32 %v248, %v548
  %v630 = vmul.f32 %v248, %v552
  %v631 = vmul.f32 %v248, %v556
  %v632 = vmul.f32 %v248, %v560
  %v634 = vsel %vm121, %v569, 0
  %v637 = vsel %vm121, %v570, 0
  %v640 = vsel %vm121, %v571, 0
  %v643 = vsel %vm121, %v572, 0
  %v646 = vsel %vm121, %v573, 0
  %v649 = vsel %vm121, %v574, 0
  %v652 = vsel %vm121, %v575, 0
  %v655 = vsel %vm121, %v576, 0
  %v658 = vsel %vm121, %v327, 0
  %660 = vmatprep.subr.mxu0 0.0
  %661 = vmatpush1.xpose.msra.mxu0 %v658
  %662 = vmatprep.subr.mxu0 0.0
  %663 = vmatpush1.xpose.msra.mxu0 0.0
  %664 = vmatprep.subr.mxu0 0.0
  %665 = vmatpush1.xpose.msra.mxu0 0.0
  %666 = vmatprep.subr.mxu0 0.0
  %667 = vmatpush1.xpose.msra.mxu0 0.0
  %668 = vmatprep.subr.mxu0 0.0
  %669 = vmatpush1.xpose.msra.mxu0 0.0
  %670 = vmatprep.subr.mxu0 0.0
  %671 = vmatpush1.xpose.msra.mxu0 0.0
  %672 = vmatprep.subr.mxu0 0.0
  %673 = vmatpush1.xpose.msra.mxu0 0.0
  %674 = vmatprep.subr.mxu0 0.0
  %675 = vmatpush1.xpose.msra.mxu0 0.0
  %676 = vmatprep.subr.mxu0 0.0
  %677 = vmatpush1.xpose.msra.mxu0 0.0
  %678 = vmatprep.subr.mxu0 0.0
  %679 = vmatpush1.xpose.msra.mxu0 0.0
  %680 = vmatprep.subr.mxu0 0.0
  %681 = vmatpush1.xpose.msra.mxu0 0.0
  %682 = vmatprep.subr.mxu0 0.0
  %683 = vmatpush1.xpose.msra.mxu0 0.0
  %684 = vmatprep.subr.mxu0 0.0
  %685 = vmatpush1.xpose.msra.mxu0 0.0
  %686 = vmatprep.subr.mxu0 0.0
  %687 = vmatpush1.xpose.msra.mxu0 0.0
  %688 = vmatprep.subr.mxu0 0.0
  %689 = vmatpush1.xpose.msra.mxu0 0.0
  %690 = vmatprep.subr.mxu0 0.0
  %691 = vmatpush1.xpose.msra.mxu0 0.0
  %692 = vmatprep.subr.mxu0 0.0
  %693 = vmatpush1.xpose.msra.mxu0 0.0
  %694 = vmatprep.subr.mxu0 0.0
  %695 = vmatpush1.xpose.msra.mxu0 0.0
  %696 = vmatprep.subr.mxu0 0.0
  %697 = vmatpush1.xpose.msra.mxu0 0.0
  %698 = vmatprep.subr.mxu0 0.0
  %699 = vmatpush1.xpose.msra.mxu0 0.0
  %700 = vmatprep.subr.mxu0 0.0
  %701 = vmatpush1.xpose.msra.mxu0 0.0
  %702 = vmatprep.subr.mxu0 0.0
  %703 = vmatpush1.xpose.msra.mxu0 0.0
  %704 = vmatprep.subr.mxu0 0.0
  %705 = vmatpush1.xpose.msra.mxu0 0.0
  %706 = vmatprep.subr.mxu0 0.0
  %707 = vmatpush1.xpose.msra.mxu0 0.0
  %708 = vmatprep.subr.mxu0 0.0
  %709 = vmatpush1.xpose.msra.mxu0 0.0
  %710 = vmatprep.subr.mxu0 0.0
  %711 = vmatpush1.xpose.msra.mxu0 0.0
  %712 = vmatprep.subr.mxu0 0.0
  %713 = vmatpush1.xpose.msra.mxu0 0.0
  %714 = vmatprep.subr.mxu0 0.0
  %715 = vmatpush1.xpose.msra.mxu0 0.0
  %716 = vmatprep.subr.mxu0 0.0
  %717 = vmatpush1.xpose.msra.mxu0 0.0
  %718 = vmatprep.subr.mxu0 0.0
  %719 = vmatpush1.xpose.msra.mxu0 0.0
  %720 = vmatprep.subr.mxu0 0.0
  %721 = vmatpush1.xpose.msra.mxu0 0.0
  %722 = vmatprep.subr.mxu0 0.0
  %723 = vmatpush1.xpose.msra.mxu0 0.0
  %724 = vmatprep.mubr.f32.mxu0 0.0
  %725 = vmatmul.mubr.f32.gmra.mrb[0].mxu0 %v634
  %v726 = vpop.f32.mrb[0].mxu0
  %v727 = vadd.f32 0.0, %v726
  %v728 = vpop.f32.mrb[0].mxu0
  %729 = vmatprep.mubr.f32.mxu0 0.0
  %730 = vmatmul.mubr.f32.gmra.mrb[0].mxu0 %v637
  %v731 = vpop.f32.mrb[0].mxu0
  %v732 = vadd.f32 0.0, %v731
  %v733 = vpop.f32.mrb[0].mxu0
  %734 = vmatprep.mubr.f32.mxu0 0.0
  %735 = vmatmul.mubr.f32.gmra.mrb[0].mxu0 %v640
  %v736 = vpop.f32.mrb[0].mxu0
  %v737 = vadd.f32 0.0, %v736
  %v738 = vpop.f32.mrb[0].mxu0
  %739 = vmatprep.mubr.f32.mxu0 0.0
  %740 = vmatmul.mubr.f32.gmra.mrb[0].mxu0 %v643
  %v741 = vpop.f32.mrb[0].mxu0
  %v742 = vadd.f32 0.0, %v741
  %v743 = vpop.f32.mrb[0].mxu0
  %744 = vmatprep.mubr.f32.mxu0 0.0
  %745 = vmatmul.mubr.f32.gmra.mrb[0].mxu0 %v646
  %v746 = vpop.f32.mrb[0].mxu0
  %v747 = vadd.f32 0.0, %v746
  %v748 = vpop.f32.mrb[0].mxu0
  %749 = vmatprep.mubr.f32.mxu0 0.0
  %750 = vmatmul.mubr.f32.gmra.mrb[0].mxu0 %v649
  %v751 = vpop.f32.mrb[0].mxu0
  %v752 = vadd.f32 0.0, %v751
  %v753 = vpop.f32.mrb[0].mxu0
  %754 = vmatprep.mubr.f32.mxu0 0.0
  %755 = vmatmul.mubr.f32.gmra.mrb[0].mxu0 %v652
  %v756 = vpop.f32.mrb[0].mxu0
  %v757 = vadd.f32 0.0, %v756
  %v758 = vpop.f32.mrb[0].mxu0
  %759 = vmatprep.mubr.f32.mxu0 0.0
  %760 = vmatmul.mubr.f32.gmra.mrb[0].mxu0 %v655
  %v761 = vpop.f32.mrb[0].mxu0
  %v762 = vadd.f32 0.0, %v761
  %v763 = vpop.f32.mrb[0].mxu0
  %764 = vdwg.mxu0
  %v766 = vsel %vm121, %v577, 0
  %v769 = vsel %vm121, %v578, 0
  %v772 = vsel %vm121, %v579, 0
  %v775 = vsel %vm121, %v580, 0
  %v778 = vsel %vm121, %v581, 0
  %v781 = vsel %vm121, %v582, 0
  %v784 = vsel %vm121, %v583, 0
  %v787 = vsel %vm121, %v584, 0
  %v790 = vsel %vm121, %v332, 0
  %792 = vmatprep.subr.mxu0 0.0
  %793 = vmatpush1.xpose.msra.mxu0 %v790
  %794 = vmatprep.subr.mxu0 0.0
  %795 = vmatpush1.xpose.msra.mxu0 0.0
  %796 = vmatprep.subr.mxu0 0.0
  %797 = vmatpush1.xpose.msra.mxu0 0.0
  %798 = vmatprep.subr.mxu0 0.0
  %799 = vmatpush1.xpose.msra.mxu0 0.0
  %800 = vmatprep.subr.mxu0 0.0
  %801 = vmatpush1.xpose.msra.mxu0 0.0
  %802 = vmatprep.subr.mxu0 0.0
  %803 = vmatpush1.xpose.msra.mxu0 0.0
  %804 = vmatprep.subr.mxu0 0.0
  %805 = vmatpush1.xpose.msra.mxu0 0.0
  %806 = vmatprep.subr.mxu0 0.0
  %807 = vmatpush1.xpose.msra.mxu0 0.0
  %808 = vmatprep.subr.mxu0 0.0
  %809 = vmatpush1.xpose.msra.mxu0 0.0
  %810 = vmatprep.subr.mxu0 0.0
  %811 = vmatpush1.xpose.msra.mxu0 0.0
  %812 = vmatprep.subr.mxu0 0.0
  %813 = vmatpush1.xpose.msra.mxu0 0.0
  %814 = vmatprep.subr.mxu0 0.0
  %815 = vmatpush1.xpose.msra.mxu0 0.0
  %816 = vmatprep.subr.mxu0 0.0
  %817 = vmatpush1.xpose.msra.mxu0 0.0
  %818 = vmatprep.subr.mxu0 0.0
  %819 = vmatpush1.xpose.msra.mxu0 0.0
  %820 = vmatprep.subr.mxu0 0.0
  %821 = vmatpush1.xpose.msra.mxu0 0.0
  %822 = vmatprep.subr.mxu0 0.0
  %823 = vmatpush1.xpose.msra.mxu0 0.0
  %824 = vmatprep.subr.mxu0 0.0
  %825 = vmatpush1.xpose.msra.mxu0 0.0
  %826 = vmatprep.subr.mxu0 0.0
  %827 = vmatpush1.xpose.msra.mxu0 0.0
  %828 = vmatprep.subr.mxu0 0.0
  %829 = vmatpush1.xpose.msra.mxu0 0.0
  %830 = vmatprep.subr.mxu0 0.0
  %831 = vmatpush1.xpose.msra.mxu0 0.0
  %832 = vmatprep.subr.mxu0 0.0
  %833 = vmatpush1.xpose.msra.mxu0 0.0
  %834 = vmatprep.subr.mxu0 0.0
  %835 = vmatpush1.xpose.msra.mxu0 0.0
  %836 = vmatprep.subr.mxu0 0.0
  %837 = vmatpush1.xpose.msra.mxu0 0.0
  %838 = vmatprep.subr.mxu0 0.0
  %839 = vmatpush1.xpose.msra.mxu0 0.0
  %840 = vmatprep.subr.mxu0 0.0
  %841 = vmatpush1.xpose.msra.mxu0 0.0
  %842 = vmatprep.subr.mxu0 0.0
  %843 = vmatpush1.xpose.msra.mxu0 0.0
  %844 = vmatprep.subr.mxu0 0.0
  %845 = vmatpush1.xpose.msra.mxu0 0.0
  %846 = vmatprep.subr.mxu0 0.0
  %847 = vmatpush1.xpose.msra.mxu0 0.0
  %848 = vmatprep.subr.mxu0 0.0
  %849 = vmatpush1.xpose.msra.mxu0 0.0
  %850 = vmatprep.subr.mxu0 0.0
  %851 = vmatpush1.xpose.msra.mxu0 0.0
  %852 = vmatprep.subr.mxu0 0.0
  %853 = vmatpush1.xpose.msra.mxu0 0.0
  %854 = vmatprep.subr.mxu0 0.0
  %855 = vmatpush1.xpose.msra.mxu0 0.0
  %856 = vmatprep.mubr.f32.mxu0 0.0
  %857 = vmatmul.mubr.f32.gmra.mrb[0].mxu0 %v766
  %v858 = vpop.f32.mrb[0].mxu0
  %v859 = vadd.f32 0.0, %v858
  %v860 = vpop.f32.mrb[0].mxu0
  %861 = vmatprep.mubr.f32.mxu0 0.0
  %862 = vmatmul.mubr.f32.gmra.mrb[0].mxu0 %v769
  %v863 = vpop.f32.mrb[0].mxu0
  %v864 = vadd.f32 0.0, %v863
  %v865 = vpop.f32.mrb[0].mxu0
  %866 = vmatprep.mubr.f32.mxu0 0.0
  %867 = vmatmul.mubr.f32.gmra.mrb[0].mxu0 %v772
  %v868 = vpop.f32.mrb[0].mxu0
  %v869 = vadd.f32 0.0, %v868
  %v870 = vpop.f32.mrb[0].mxu0
  %871 = vmatprep.mubr.f32.mxu0 0.0
  %872 = vmatmul.mubr.f32.gmra.mrb[0].mxu0 %v775
  %v873 = vpop.f32.mrb[0].mxu0
  %v874 = vadd.f32 0.0, %v873
  %v875 = vpop.f32.mrb[0].mxu0
  %876 = vmatprep.mubr.f32.mxu0 0.0
  %877 = vmatmul.mubr.f32.gmra.mrb[0].mxu0 %v778
  %v878 = vpop.f32.mrb[0].mxu0
  %v879 = vadd.f32 0.0, %v878
  %v880 = vpop.f32.mrb[0].mxu0
  %881 = vmatprep.mubr.f32.mxu0 0.0
  %882 = vmatmul.mubr.f32.gmra.mrb[0].mxu0 %v781
  %v883 = vpop.f32.mrb[0].mxu0
  %v884 = vadd.f32 0.0, %v883
  %v885 = vpop.f32.mrb[0].mxu0
  %886 = vmatprep.mubr.f32.mxu0 0.0
  %887 = vmatmul.mubr.f32.gmra.mrb[0].mxu0 %v784
  %v888 = vpop.f32.mrb[0].mxu0
  %v889 = vadd.f32 0.0, %v888
  %v890 = vpop.f32.mrb[0].mxu0
  %891 = vmatprep.mubr.f32.mxu0 0.0
  %892 = vmatmul.mubr.f32.gmra.mrb[0].mxu0 %v787
  %v893 = vpop.f32.mrb[0].mxu0
  %v894 = vadd.f32 0.0, %v893
  %v895 = vpop.f32.mrb[0].mxu0
  %896 = vdwg.mxu0
  %v898 = vsel %vm121, %v585, 0
  %v901 = vsel %vm121, %v586, 0
  %v904 = vsel %vm121, %v587, 0
  %v907 = vsel %vm121, %v588, 0
  %v910 = vsel %vm121, %v589, 0
  %v913 = vsel %vm121, %v590, 0
  %v916 = vsel %vm121, %v591, 0
  %v919 = vsel %vm121, %v592, 0
  %v922 = vsel %vm121, %v337, 0
  %924 = vmatprep.subr.mxu0 0.0
  %925 = vmatpush1.xpose.msra.mxu0 %v922
  %926 = vmatprep.subr.mxu0 0.0
  %927 = vmatpush1.xpose.msra.mxu0 0.0
  %928 = vmatprep.subr.mxu0 0.0
  %929 = vmatpush1.xpose.msra.mxu0 0.0
  %930 = vmatprep.subr.mxu0 0.0
  %931 = vmatpush1.xpose.msra.mxu0 0.0
  %932 = vmatprep.subr.mxu0 0.0
  %933 = vmatpush1.xpose.msra.mxu0 0.0
  %934 = vmatprep.subr.mxu0 0.0
  %935 = vmatpush1.xpose.msra.mxu0 0.0
  %936 = vmatprep.subr.mxu0 0.0
  %937 = vmatpush1.xpose.msra.mxu0 0.0
  %938 = vmatprep.subr.mxu0 0.0
  %939 = vmatpush1.xpose.msra.mxu0 0.0
  %940 = vmatprep.subr.mxu0 0.0
  %941 = vmatpush1.xpose.msra.mxu0 0.0
  %942 = vmatprep.subr.mxu0 0.0
  %943 = vmatpush1.xpose.msra.mxu0 0.0
  %944 = vmatprep.subr.mxu0 0.0
  %945 = vmatpush1.xpose.msra.mxu0 0.0
  %946 = vmatprep.subr.mxu0 0.0
  %947 = vmatpush1.xpose.msra.mxu0 0.0
  %948 = vmatprep.subr.mxu0 0.0
  %949 = vmatpush1.xpose.msra.mxu0 0.0
  %950 = vmatprep.subr.mxu0 0.0
  %951 = vmatpush1.xpose.msra.mxu0 0.0
  %952 = vmatprep.subr.mxu0 0.0
  %953 = vmatpush1.xpose.msra.mxu0 0.0
  %954 = vmatprep.subr.mxu0 0.0
  %955 = vmatpush1.xpose.msra.mxu0 0.0
  %956 = vmatprep.subr.mxu0 0.0
  %957 = vmatpush1.xpose.msra.mxu0 0.0
  %958 = vmatprep.subr.mxu0 0.0
  %959 = vmatpush1.xpose.msra.mxu0 0.0
  %960 = vmatprep.subr.mxu0 0.0
  %961 = vmatpush1.xpose.msra.mxu0 0.0
  %962 = vmatprep.subr.mxu0 0.0
  %963 = vmatpush1.xpose.msra.mxu0 0.0
  %964 = vmatprep.subr.mxu0 0.0
  %965 = vmatpush1.xpose.msra.mxu0 0.0
  %966 = vmatprep.subr.mxu0 0.0
  %967 = vmatpush1.xpose.msra.mxu0 0.0
  %968 = vmatprep.subr.mxu0 0.0
  %969 = vmatpush1.xpose.msra.mxu0 0.0
  %970 = vmatprep.subr.mxu0 0.0
  %971 = vmatpush1.xpose.msra.mxu0 0.0
  %972 = vmatprep.subr.mxu0 0.0
  %973 = vmatpush1.xpose.msra.mxu0 0.0
  %974 = vmatprep.subr.mxu0 0.0
  %975 = vmatpush1.xpose.msra.mxu0 0.0
  %976 = vmatprep.subr.mxu0 0.0
  %977 = vmatpush1.xpose.msra.mxu0 0.0
  %978 = vmatprep.subr.mxu0 0.0
  %979 = vmatpush1.xpose.msra.mxu0 0.0
  %980 = vmatprep.subr.mxu0 0.0
  %981 = vmatpush1.xpose.msra.mxu0 0.0
  %982 = vmatprep.subr.mxu0 0.0
  %983 = vmatpush1.xpose.msra.mxu0 0.0
  %984 = vmatprep.subr.mxu0 0.0
  %985 = vmatpush1.xpose.msra.mxu0 0.0
  %986 = vmatprep.subr.mxu0 0.0
  %987 = vmatpush1.xpose.msra.mxu0 0.0
  %988 = vmatprep.mubr.f32.mxu0 0.0
  %989 = vmatmul.mubr.f32.gmra.mrb[0].mxu0 %v898
  %v990 = vpop.f32.mrb[0].mxu0
  %v991 = vadd.f32 0.0, %v990
  %v992 = vpop.f32.mrb[0].mxu0
  %993 = vmatprep.mubr.f32.mxu0 0.0
  %994 = vmatmul.mubr.f32.gmra.mrb[0].mxu0 %v901
  %v995 = vpop.f32.mrb[0].mxu0
  %v996 = vadd.f32 0.0, %v995
  %v997 = vpop.f32.mrb[0].mxu0
  %998 = vmatprep.mubr.f32.mxu0 0.0
  %999 = vmatmul.mubr.f32.gmra.mrb[0].mxu0 %v904
  %v1000 = vpop.f32.mrb[0].mxu0
  %v1001 = vadd.f32 0.0, %v1000
  %v1002 = vpop.f32.mrb[0].mxu0
  %1003 = vmatprep.mubr.f32.mxu0 0.0
  %1004 = vmatmul.mubr.f32.gmra.mrb[0].mxu0 %v907
  %v1005 = vpop.f32.mrb[0].mxu0
  %v1006 = vadd.f32 0.0, %v1005
  %v1007 = vpop.f32.mrb[0].mxu0
  %1008 = vmatprep.mubr.f32.mxu0 0.0
  %1009 = vmatmul.mubr.f32.gmra.mrb[0].mxu0 %v910
  %v1010 = vpop.f32.mrb[0].mxu0
  %v1011 = vadd.f32 0.0, %v1010
  %v1012 = vpop.f32.mrb[0].mxu0
  %1013 = vmatprep.mubr.f32.mxu0 0.0
  %1014 = vmatmul.mubr.f32.gmra.mrb[0].mxu0 %v913
  %v1015 = vpop.f32.mrb[0].mxu0
  %v1016 = vadd.f32 0.0, %v1015
  %v1017 = vpop.f32.mrb[0].mxu0
  %1018 = vmatprep.mubr.f32.mxu0 0.0
  %1019 = vmatmul.mubr.f32.gmra.mrb[0].mxu0 %v916
  %v1020 = vpop.f32.mrb[0].mxu0
  %v1021 = vadd.f32 0.0, %v1020
  %v1022 = vpop.f32.mrb[0].mxu0
  %1023 = vmatprep.mubr.f32.mxu0 0.0
  %1024 = vmatmul.mubr.f32.gmra.mrb[0].mxu0 %v919
  %v1025 = vpop.f32.mrb[0].mxu0
  %v1026 = vadd.f32 0.0, %v1025
  %v1027 = vpop.f32.mrb[0].mxu0
  %1028 = vdwg.mxu0
  %v1030 = vsel %vm121, %v593, 0
  %v1033 = vsel %vm121, %v594, 0
  %v1036 = vsel %vm121, %v595, 0
  %v1039 = vsel %vm121, %v596, 0
  %v1042 = vsel %vm121, %v597, 0
  %v1045 = vsel %vm121, %v598, 0
  %v1048 = vsel %vm121, %v599, 0
  %v1051 = vsel %vm121, %v600, 0
  %v1054 = vsel %vm121, %v342, 0
  %1056 = vmatprep.subr.mxu0 0.0
  %1057 = vmatpush1.xpose.msra.mxu0 %v1054
  %1058 = vmatprep.subr.mxu0 0.0
  %1059 = vmatpush1.xpose.msra.mxu0 0.0
  %1060 = vmatprep.subr.mxu0 0.0
  %1061 = vmatpush1.xpose.msra.mxu0 0.0
  %1062 = vmatprep.subr.mxu0 0.0
  %1063 = vmatpush1.xpose.msra.mxu0 0.0
  %1064 = vmatprep.subr.mxu0 0.0
  %1065 = vmatpush1.xpose.msra.mxu0 0.0
  %1066 = vmatprep.subr.mxu0 0.0
  %1067 = vmatpush1.xpose.msra.mxu0 0.0
  %1068 = vmatprep.subr.mxu0 0.0
  %1069 = vmatpush1.xpose.msra.mxu0 0.0
  %1070 = vmatprep.subr.mxu0 0.0
  %1071 = vmatpush1.xpose.msra.mxu0 0.0
  %1072 = vmatprep.subr.mxu0 0.0
  %1073 = vmatpush1.xpose.msra.mxu0 0.0
  %1074 = vmatprep.subr.mxu0 0.0
  %1075 = vmatpush1.xpose.msra.mxu0 0.0
  %1076 = vmatprep.subr.mxu0 0.0
  %1077 = vmatpush1.xpose.msra.mxu0 0.0
  %1078 = vmatprep.subr.mxu0 0.0
  %1079 = vmatpush1.xpose.msra.mxu0 0.0
  %1080 = vmatprep.subr.mxu0 0.0
  %1081 = vmatpush1.xpose.msra.mxu0 0.0
  %1082 = vmatprep.subr.mxu0 0.0
  %1083 = vmatpush1.xpose.msra.mxu0 0.0
  %1084 = vmatprep.subr.mxu0 0.0
  %1085 = vmatpush1.xpose.msra.mxu0 0.0
  %1086 = vmatprep.subr.mxu0 0.0
  %1087 = vmatpush1.xpose.msra.mxu0 0.0
  %1088 = vmatprep.subr.mxu0 0.0
  %1089 = vmatpush1.xpose.msra.mxu0 0.0
  %1090 = vmatprep.subr.mxu0 0.0
  %1091 = vmatpush1.xpose.msra.mxu0 0.0
  %1092 = vmatprep.subr.mxu0 0.0
  %1093 = vmatpush1.xpose.msra.mxu0 0.0
  %1094 = vmatprep.subr.mxu0 0.0
  %1095 = vmatpush1.xpose.msra.mxu0 0.0
  %1096 = vmatprep.subr.mxu0 0.0
  %1097 = vmatpush1.xpose.msra.mxu0 0.0
  %1098 = vmatprep.subr.mxu0 0.0
  %1099 = vmatpush1.xpose.msra.mxu0 0.0
  %1100 = vmatprep.subr.mxu0 0.0
  %1101 = vmatpush1.xpose.msra.mxu0 0.0
  %1102 = vmatprep.subr.mxu0 0.0
  %1103 = vmatpush1.xpose.msra.mxu0 0.0
  %1104 = vmatprep.subr.mxu0 0.0
  %1105 = vmatpush1.xpose.msra.mxu0 0.0
  %1106 = vmatprep.subr.mxu0 0.0
  %1107 = vmatpush1.xpose.msra.mxu0 0.0
  %1108 = vmatprep.subr.mxu0 0.0
  %1109 = vmatpush1.xpose.msra.mxu0 0.0
  %1110 = vmatprep.subr.mxu0 0.0
  %1111 = vmatpush1.xpose.msra.mxu0 0.0
  %1112 = vmatprep.subr.mxu0 0.0
  %1113 = vmatpush1.xpose.msra.mxu0 0.0
  %1114 = vmatprep.subr.mxu0 0.0
  %1115 = vmatpush1.xpose.msra.mxu0 0.0
  %1116 = vmatprep.subr.mxu0 0.0
  %1117 = vmatpush1.xpose.msra.mxu0 0.0
  %1118 = vmatprep.subr.mxu0 0.0
  %1119 = vmatpush1.xpose.msra.mxu0 0.0
  %1120 = vmatprep.mubr.f32.mxu0 0.0
  %1121 = vmatmul.mubr.f32.gmra.mrb[0].mxu0 %v1030
  %v1122 = vpop.f32.mrb[0].mxu0
  %v1123 = vadd.f32 0.0, %v1122
  %v1124 = vpop.f32.mrb[0].mxu0
  %1125 = vmatprep.mubr.f32.mxu0 0.0
  %1126 = vmatmul.mubr.f32.gmra.mrb[0].mxu0 %v1033
  %v1127 = vpop.f32.mrb[0].mxu0
  %v1128 = vadd.f32 0.0, %v1127
  %v1129 = vpop.f32.mrb[0].mxu0
  %1130 = vmatprep.mubr.f32.mxu0 0.0
  %1131 = vmatmul.mubr.f32.gmra.mrb[0].mxu0 %v1036
  %v1132 = vpop.f32.mrb[0].mxu0
  %v1133 = vadd.f32 0.0, %v1132
  %v1134 = vpop.f32.mrb[0].mxu0
  %1135 = vmatprep.mubr.f32.mxu0 0.0
  %1136 = vmatmul.mubr.f32.gmra.mrb[0].mxu0 %v1039
  %v1137 = vpop.f32.mrb[0].mxu0
  %v1138 = vadd.f32 0.0, %v1137
  %v1139 = vpop.f32.mrb[0].mxu0
  %1140 = vmatprep.mubr.f32.mxu0 0.0
  %1141 = vmatmul.mubr.f32.gmra.mrb[0].mxu0 %v1042
  %v1142 = vpop.f32.mrb[0].mxu0
  %v1143 = vadd.f32 0.0, %v1142
  %v1144 = vpop.f32.mrb[0].mxu0
  %1145 = vmatprep.mubr.f32.mxu0 0.0
  %1146 = vmatmul.mubr.f32.gmra.mrb[0].mxu0 %v1045
  %v1147 = vpop.f32.mrb[0].mxu0
  %v1148 = vadd.f32 0.0, %v1147
  %v1149 = vpop.f32.mrb[0].mxu0
  %1150 = vmatprep.mubr.f32.mxu0 0.0
  %1151 = vmatmul.mubr.f32.gmra.mrb[0].mxu0 %v1048
  %v1152 = vpop.f32.mrb[0].mxu0
  %v1153 = vadd.f32 0.0, %v1152
  %v1154 = vpop.f32.mrb[0].mxu0
  %1155 = vmatprep.mubr.f32.mxu0 0.0
  %1156 = vmatmul.mubr.f32.gmra.mrb[0].mxu0 %v1051
  %v1157 = vpop.f32.mrb[0].mxu0
  %v1158 = vadd.f32 0.0, %v1157
  %v1159 = vpop.f32.mrb[0].mxu0
  %1160 = vdwg.mxu0
  %v1162 = vsel %vm121, %v601, 0
  %v1165 = vsel %vm121, %v602, 0
  %v1168 = vsel %vm121, %v603, 0
  %v1171 = vsel %vm121, %v604, 0
  %v1174 = vsel %vm121, %v605, 0
  %v1177 = vsel %vm121, %v606, 0
  %v1180 = vsel %vm121, %v607, 0
  %v1183 = vsel %vm121, %v608, 0
  %v1186 = vsel %vm121, %v347, 0
  %1188 = vmatprep.subr.mxu0 0.0
  %1189 = vmatpush1.xpose.msra.mxu0 %v1186
  %1190 = vmatprep.subr.mxu0 0.0
  %1191 = vmatpush1.xpose.msra.mxu0 0.0
  %1192 = vmatprep.subr.mxu0 0.0
  %1193 = vmatpush1.xpose.msra.mxu0 0.0
  %1194 = vmatprep.subr.mxu0 0.0
  %1195 = vmatpush1.xpose.msra.mxu0 0.0
  %1196 = vmatprep.subr.mxu0 0.0
  %1197 = vmatpush1.xpose.msra.mxu0 0.0
  %1198 = vmatprep.subr.mxu0 0.0
  %1199 = vmatpush1.xpose.msra.mxu0 0.0
  %1200 = vmatprep.subr.mxu0 0.0
  %1201 = vmatpush1.xpose.msra.mxu0 0.0
  %1202 = vmatprep.subr.mxu0 0.0
  %1203 = vmatpush1.xpose.msra.mxu0 0.0
  %1204 = vmatprep.subr.mxu0 0.0
  %1205 = vmatpush1.xpose.msra.mxu0 0.0
  %1206 = vmatprep.subr.mxu0 0.0
  %1207 = vmatpush1.xpose.msra.mxu0 0.0
  %1208 = vmatprep.subr.mxu0 0.0
  %1209 = vmatpush1.xpose.msra.mxu0 0.0
  %1210 = vmatprep.subr.mxu0 0.0
  %1211 = vmatpush1.xpose.msra.mxu0 0.0
  %1212 = vmatprep.subr.mxu0 0.0
  %1213 = vmatpush1.xpose.msra.mxu0 0.0
  %1214 = vmatprep.subr.mxu0 0.0
  %1215 = vmatpush1.xpose.msra.mxu0 0.0
  %1216 = vmatprep.subr.mxu0 0.0
  %1217 = vmatpush1.xpose.msra.mxu0 0.0
  %1218 = vmatprep.subr.mxu0 0.0
  %1219 = vmatpush1.xpose.msra.mxu0 0.0
  %1220 = vmatprep.subr.mxu0 0.0
  %1221 = vmatpush1.xpose.msra.mxu0 0.0
  %1222 = vmatprep.subr.mxu0 0.0
  %1223 = vmatpush1.xpose.msra.mxu0 0.0
  %1224 = vmatprep.subr.mxu0 0.0
  %1225 = vmatpush1.xpose.msra.mxu0 0.0
  %1226 = vmatprep.subr.mxu0 0.0
  %1227 = vmatpush1.xpose.msra.mxu0 0.0
  %1228 = vmatprep.subr.mxu0 0.0
  %1229 = vmatpush1.xpose.msra.mxu0 0.0
  %1230 = vmatprep.subr.mxu0 0.0
  %1231 = vmatpush1.xpose.msra.mxu0 0.0
  %1232 = vmatprep.subr.mxu0 0.0
  %1233 = vmatpush1.xpose.msra.mxu0 0.0
  %1234 = vmatprep.subr.mxu0 0.0
  %1235 = vmatpush1.xpose.msra.mxu0 0.0
  %1236 = vmatprep.subr.mxu0 0.0
  %1237 = vmatpush1.xpose.msra.mxu0 0.0
  %1238 = vmatprep.subr.mxu0 0.0
  %1239 = vmatpush1.xpose.msra.mxu0 0.0
  %1240 = vmatprep.subr.mxu0 0.0
  %1241 = vmatpush1.xpose.msra.mxu0 0.0
  %1242 = vmatprep.subr.mxu0 0.0
  %1243 = vmatpush1.xpose.msra.mxu0 0.0
  %1244 = vmatprep.subr.mxu0 0.0
  %1245 = vmatpush1.xpose.msra.mxu0 0.0
  %1246 = vmatprep.subr.mxu0 0.0
  %1247 = vmatpush1.xpose.msra.mxu0 0.0
  %1248 = vmatprep.subr.mxu0 0.0
  %1249 = vmatpush1.xpose.msra.mxu0 0.0
  %1250 = vmatprep.subr.mxu0 0.0
  %1251 = vmatpush1.xpose.msra.mxu0 0.0
  %1252 = vmatprep.mubr.f32.mxu0 0.0
  %1253 = vmatmul.mubr.f32.gmra.mrb[0].mxu0 %v1162
  %v1254 = vpop.f32.mrb[0].mxu0
  %v1255 = vadd.f32 0.0, %v1254
  %v1256 = vpop.f32.mrb[0].mxu0
  %1257 = vmatprep.mubr.f32.mxu0 0.0
  %1258 = vmatmul.mubr.f32.gmra.mrb[0].mxu0 %v1165
  %v1259 = vpop.f32.mrb[0].mxu0
  %v1260 = vadd.f32 0.0, %v1259
  %v1261 = vpop.f32.mrb[0].mxu0
  %1262 = vmatprep.mubr.f32.mxu0 0.0
  %1263 = vmatmul.mubr.f32.gmra.mrb[0].mxu0 %v1168
  %v1264 = vpop.f32.mrb[0].mxu0
  %v1265 = vadd.f32 0.0, %v1264
  %v1266 = vpop.f32.mrb[0].mxu0
  %1267 = vmatprep.mubr.f32.mxu0 0.0
  %1268 = vmatmul.mubr.f32.gmra.mrb[0].mxu0 %v1171
  %v1269 = vpop.f32.mrb[0].mxu0
  %v1270 = vadd.f32 0.0, %v1269
  %v1271 = vpop.f32.mrb[0].mxu0
  %1272 = vmatprep.mubr.f32.mxu0 0.0
  %1273 = vmatmul.mubr.f32.gmra.mrb[0].mxu0 %v1174
  %v1274 = vpop.f32.mrb[0].mxu0
  %v1275 = vadd.f32 0.0, %v1274
  %v1276 = vpop.f32.mrb[0].mxu0
  %1277 = vmatprep.mubr.f32.mxu0 0.0
  %1278 = vmatmul.mubr.f32.gmra.mrb[0].mxu0 %v1177
  %v1279 = vpop.f32.mrb[0].mxu0
  %v1280 = vadd.f32 0.0, %v1279
  %v1281 = vpop.f32.mrb[0].mxu0
  %1282 = vmatprep.mubr.f32.mxu0 0.0
  %1283 = vmatmul.mubr.f32.gmra.mrb[0].mxu0 %v1180
  %v1284 = vpop.f32.mrb[0].mxu0
  %v1285 = vadd.f32 0.0, %v1284
  %v1286 = vpop.f32.mrb[0].mxu0
  %1287 = vmatprep.mubr.f32.mxu0 0.0
  %1288 = vmatmul.mubr.f32.gmra.mrb[0].mxu0 %v1183
  %v1289 = vpop.f32.mrb[0].mxu0
  %v1290 = vadd.f32 0.0, %v1289
  %v1291 = vpop.f32.mrb[0].mxu0
  %1292 = vdwg.mxu0
  %v1294 = vsel %vm121, %v609, 0
  %v1297 = vsel %vm121, %v610, 0
  %v1300 = vsel %vm121, %v611, 0
  %v1303 = vsel %vm121, %v612, 0
  %v1306 = vsel %vm121, %v613, 0
  %v1309 = vsel %vm121, %v614, 0
  %v1312 = vsel %vm121, %v615, 0
  %v1315 = vsel %vm121, %v616, 0
  %v1318 = vsel %vm121, %v352, 0
  %1320 = vmatprep.subr.mxu0 0.0
  %1321 = vmatpush1.xpose.msra.mxu0 %v1318
  %1322 = vmatprep.subr.mxu0 0.0
  %1323 = vmatpush1.xpose.msra.mxu0 0.0
  %1324 = vmatprep.subr.mxu0 0.0
  %1325 = vmatpush1.xpose.msra.mxu0 0.0
  %1326 = vmatprep.subr.mxu0 0.0
  %1327 = vmatpush1.xpose.msra.mxu0 0.0
  %1328 = vmatprep.subr.mxu0 0.0
  %1329 = vmatpush1.xpose.msra.mxu0 0.0
  %1330 = vmatprep.subr.mxu0 0.0
  %1331 = vmatpush1.xpose.msra.mxu0 0.0
  %1332 = vmatprep.subr.mxu0 0.0
  %1333 = vmatpush1.xpose.msra.mxu0 0.0
  %1334 = vmatprep.subr.mxu0 0.0
  %1335 = vmatpush1.xpose.msra.mxu0 0.0
  %1336 = vmatprep.subr.mxu0 0.0
  %1337 = vmatpush1.xpose.msra.mxu0 0.0
  %1338 = vmatprep.subr.mxu0 0.0
  %1339 = vmatpush1.xpose.msra.mxu0 0.0
  %1340 = vmatprep.subr.mxu0 0.0
  %1341 = vmatpush1.xpose.msra.mxu0 0.0
  %1342 = vmatprep.subr.mxu0 0.0
  %1343 = vmatpush1.xpose.msra.mxu0 0.0
  %1344 = vmatprep.subr.mxu0 0.0
  %1345 = vmatpush1.xpose.msra.mxu0 0.0
  %1346 = vmatprep.subr.mxu0 0.0
  %1347 = vmatpush1.xpose.msra.mxu0 0.0
  %1348 = vmatprep.subr.mxu0 0.0
  %1349 = vmatpush1.xpose.msra.mxu0 0.0
  %1350 = vmatprep.subr.mxu0 0.0
  %1351 = vmatpush1.xpose.msra.mxu0 0.0
  %1352 = vmatprep.subr.mxu0 0.0
  %1353 = vmatpush1.xpose.msra.mxu0 0.0
  %1354 = vmatprep.subr.mxu0 0.0
  %1355 = vmatpush1.xpose.msra.mxu0 0.0
  %1356 = vmatprep.subr.mxu0 0.0
  %1357 = vmatpush1.xpose.msra.mxu0 0.0
  %1358 = vmatprep.subr.mxu0 0.0
  %1359 = vmatpush1.xpose.msra.mxu0 0.0
  %1360 = vmatprep.subr.mxu0 0.0
  %1361 = vmatpush1.xpose.msra.mxu0 0.0
  %1362 = vmatprep.subr.mxu0 0.0
  %1363 = vmatpush1.xpose.msra.mxu0 0.0
  %1364 = vmatprep.subr.mxu0 0.0
  %1365 = vmatpush1.xpose.msra.mxu0 0.0
  %1366 = vmatprep.subr.mxu0 0.0
  %1367 = vmatpush1.xpose.msra.mxu0 0.0
  %1368 = vmatprep.subr.mxu0 0.0
  %1369 = vmatpush1.xpose.msra.mxu0 0.0
  %1370 = vmatprep.subr.mxu0 0.0
  %1371 = vmatpush1.xpose.msra.mxu0 0.0
  %1372 = vmatprep.subr.mxu0 0.0
  %1373 = vmatpush1.xpose.msra.mxu0 0.0
  %1374 = vmatprep.subr.mxu0 0.0
  %1375 = vmatpush1.xpose.msra.mxu0 0.0
  %1376 = vmatprep.subr.mxu0 0.0
  %1377 = vmatpush1.xpose.msra.mxu0 0.0
  %1378 = vmatprep.subr.mxu0 0.0
  %1379 = vmatpush1.xpose.msra.mxu0 0.0
  %1380 = vmatprep.subr.mxu0 0.0
  %1381 = vmatpush1.xpose.msra.mxu0 0.0
  %1382 = vmatprep.subr.mxu0 0.0
  %1383 = vmatpush1.xpose.msra.mxu0 0.0
  %1384 = vmatprep.mubr.f32.mxu0 0.0
  %1385 = vmatmul.mubr.f32.gmra.mrb[0].mxu0 %v1294
  %v1386 = vpop.f32.mrb[0].mxu0
  %v1387 = vadd.f32 0.0, %v1386
  %v1388 = vpop.f32.mrb[0].mxu0
  %1389 = vmatprep.mubr.f32.mxu0 0.0
  %1390 = vmatmul.mubr.f32.gmra.mrb[0].mxu0 %v1297
  %v1391 = vpop.f32.mrb[0].mxu0
  %v1392 = vadd.f32 0.0, %v1391
  %v1393 = vpop.f32.mrb[0].mxu0
  %1394 = vmatprep.mubr.f32.mxu0 0.0
  %1395 = vmatmul.mubr.f32.gmra.mrb[0].mxu0 %v1300
  %v1396 = vpop.f32.mrb[0].mxu0
  %v1397 = vadd.f32 0.0, %v1396
  %v1398 = vpop.f32.mrb[0].mxu0
  %1399 = vmatprep.mubr.f32.mxu0 0.0
  %1400 = vmatmul.mubr.f32.gmra.mrb[0].mxu0 %v1303
  %v1401 = vpop.f32.mrb[0].mxu0
  %v1402 = vadd.f32 0.0, %v1401
  %v1403 = vpop.f32.mrb[0].mxu0
  %1404 = vmatprep.mubr.f32.mxu0 0.0
  %1405 = vmatmul.mubr.f32.gmra.mrb[0].mxu0 %v1306
  %v1406 = vpop.f32.mrb[0].mxu0
  %v1407 = vadd.f32 0.0, %v1406
  %v1408 = vpop.f32.mrb[0].mxu0
  %1409 = vmatprep.mubr.f32.mxu0 0.0
  %1410 = vmatmul.mubr.f32.gmra.mrb[0].mxu0 %v1309
  %v1411 = vpop.f32.mrb[0].mxu0
  %v1412 = vadd.f32 0.0, %v1411
  %v1413 = vpop.f32.mrb[0].mxu0
  %1414 = vmatprep.mubr.f32.mxu0 0.0
  %1415 = vmatmul.mubr.f32.gmra.mrb[0].mxu0 %v1312
  %v1416 = vpop.f32.mrb[0].mxu0
  %v1417 = vadd.f32 0.0, %v1416
  %v1418 = vpop.f32.mrb[0].mxu0
  %1419 = vmatprep.mubr.f32.mxu0 0.0
  %1420 = vmatmul.mubr.f32.gmra.mrb[0].mxu0 %v1315
  %v1421 = vpop.f32.mrb[0].mxu0
  %v1422 = vadd.f32 0.0, %v1421
  %v1423 = vpop.f32.mrb[0].mxu0
  %1424 = vdwg.mxu0
  %v1426 = vsel %vm121, %v617, 0
  %v1429 = vsel %vm121, %v618, 0
  %v1432 = vsel %vm121, %v619, 0
  %v1435 = vsel %vm121, %v620, 0
  %v1438 = vsel %vm121, %v621, 0
  %v1441 = vsel %vm121, %v622, 0
  %v1444 = vsel %vm121, %v623, 0
  %v1447 = vsel %vm121, %v624, 0
  %v1450 = vsel %vm121, %v357, 0
  %1452 = vmatprep.subr.mxu0 0.0
  %1453 = vmatpush1.xpose.msra.mxu0 %v1450
  %1454 = vmatprep.subr.mxu0 0.0
  %1455 = vmatpush1.xpose.msra.mxu0 0.0
  %1456 = vmatprep.subr.mxu0 0.0
  %1457 = vmatpush1.xpose.msra.mxu0 0.0
  %1458 = vmatprep.subr.mxu0 0.0
  %1459 = vmatpush1.xpose.msra.mxu0 0.0
  %1460 = vmatprep.subr.mxu0 0.0
  %1461 = vmatpush1.xpose.msra.mxu0 0.0
  %1462 = vmatprep.subr.mxu0 0.0
  %1463 = vmatpush1.xpose.msra.mxu0 0.0
  %1464 = vmatprep.subr.mxu0 0.0
  %1465 = vmatpush1.xpose.msra.mxu0 0.0
  %1466 = vmatprep.subr.mxu0 0.0
  %1467 = vmatpush1.xpose.msra.mxu0 0.0
  %1468 = vmatprep.subr.mxu0 0.0
  %1469 = vmatpush1.xpose.msra.mxu0 0.0
  %1470 = vmatprep.subr.mxu0 0.0
  %1471 = vmatpush1.xpose.msra.mxu0 0.0
  %1472 = vmatprep.subr.mxu0 0.0
  %1473 = vmatpush1.xpose.msra.mxu0 0.0
  %1474 = vmatprep.subr.mxu0 0.0
  %1475 = vmatpush1.xpose.msra.mxu0 0.0
  %1476 = vmatprep.subr.mxu0 0.0
  %1477 = vmatpush1.xpose.msra.mxu0 0.0
  %1478 = vmatprep.subr.mxu0 0.0
  %1479 = vmatpush1.xpose.msra.mxu0 0.0
  %1480 = vmatprep.subr.mxu0 0.0
  %1481 = vmatpush1.xpose.msra.mxu0 0.0
  %1482 = vmatprep.subr.mxu0 0.0
  %1483 = vmatpush1.xpose.msra.mxu0 0.0
  %1484 = vmatprep.subr.mxu0 0.0
  %1485 = vmatpush1.xpose.msra.mxu0 0.0
  %1486 = vmatprep.subr.mxu0 0.0
  %1487 = vmatpush1.xpose.msra.mxu0 0.0
  %1488 = vmatprep.subr.mxu0 0.0
  %1489 = vmatpush1.xpose.msra.mxu0 0.0
  %1490 = vmatprep.subr.mxu0 0.0
  %1491 = vmatpush1.xpose.msra.mxu0 0.0
  %1492 = vmatprep.subr.mxu0 0.0
  %1493 = vmatpush1.xpose.msra.mxu0 0.0
  %1494 = vmatprep.subr.mxu0 0.0
  %1495 = vmatpush1.xpose.msra.mxu0 0.0
  %1496 = vmatprep.subr.mxu0 0.0
  %1497 = vmatpush1.xpose.msra.mxu0 0.0
  %1498 = vmatprep.subr.mxu0 0.0
  %1499 = vmatpush1.xpose.msra.mxu0 0.0
  %1500 = vmatprep.subr.mxu0 0.0
  %1501 = vmatpush1.xpose.msra.mxu0 0.0
  %1502 = vmatprep.subr.mxu0 0.0
  %1503 = vmatpush1.xpose.msra.mxu0 0.0
  %1504 = vmatprep.subr.mxu0 0.0
  %1505 = vmatpush1.xpose.msra.mxu0 0.0
  %1506 = vmatprep.subr.mxu0 0.0
  %1507 = vmatpush1.xpose.msra.mxu0 0.0
  %1508 = vmatprep.subr.mxu0 0.0
  %1509 = vmatpush1.xpose.msra.mxu0 0.0
  %1510 = vmatprep.subr.mxu0 0.0
  %1511 = vmatpush1.xpose.msra.mxu0 0.0
  %1512 = vmatprep.subr.mxu0 0.0
  %1513 = vmatpush1.xpose.msra.mxu0 0.0
  %1514 = vmatprep.subr.mxu0 0.0
  %1515 = vmatpush1.xpose.msra.mxu0 0.0
  %1516 = vmatprep.mubr.f32.mxu0 0.0
  %1517 = vmatmul.mubr.f32.gmra.mrb[0].mxu0 %v1426
  %v1518 = vpop.f32.mrb[0].mxu0
  %v1519 = vadd.f32 0.0, %v1518
  %v1520 = vpop.f32.mrb[0].mxu0
  %1521 = vmatprep.mubr.f32.mxu0 0.0
  %1522 = vmatmul.mubr.f32.gmra.mrb[0].mxu0 %v1429
  %v1523 = vpop.f32.mrb[0].mxu0
  %v1524 = vadd.f32 0.0, %v1523
  %v1525 = vpop.f32.mrb[0].mxu0
  %1526 = vmatprep.mubr.f32.mxu0 0.0
  %1527 = vmatmul.mubr.f32.gmra.mrb[0].mxu0 %v1432
  %v1528 = vpop.f32.mrb[0].mxu0
  %v1529 = vadd.f32 0.0, %v1528
  %v1530 = vpop.f32.mrb[0].mxu0
  %1531 = vmatprep.mubr.f32.mxu0 0.0
  %1532 = vmatmul.mubr.f32.gmra.mrb[0].mxu0 %v1435
  %v1533 = vpop.f32.mrb[0].mxu0
  %v1534 = vadd.f32 0.0, %v1533
  %v1535 = vpop.f32.mrb[0].mxu0
  %1536 = vmatprep.mubr.f32.mxu0 0.0
  %1537 = vmatmul.mubr.f32.gmra.mrb[0].mxu0 %v1438
  %v1538 = vpop.f32.mrb[0].mxu0
  %v1539 = vadd.f32 0.0, %v1538
  %v1540 = vpop.f32.mrb[0].mxu0
  %1541 = vmatprep.mubr.f32.mxu0 0.0
  %1542 = vmatmul.mubr.f32.gmra.mrb[0].mxu0 %v1441
  %v1543 = vpop.f32.mrb[0].mxu0
  %v1544 = vadd.f32 0.0, %v1543
  %v1545 = vpop.f32.mrb[0].mxu0
  %1546 = vmatprep.mubr.f32.mxu0 0.0
  %1547 = vmatmul.mubr.f32.gmra.mrb[0].mxu0 %v1444
  %v1548 = vpop.f32.mrb[0].mxu0
  %v1549 = vadd.f32 0.0, %v1548
  %v1550 = vpop.f32.mrb[0].mxu0
  %1551 = vmatprep.mubr.f32.mxu0 0.0
  %1552 = vmatmul.mubr.f32.gmra.mrb[0].mxu0 %v1447
  %v1553 = vpop.f32.mrb[0].mxu0
  %v1554 = vadd.f32 0.0, %v1553
  %v1555 = vpop.f32.mrb[0].mxu0
  %1556 = vdwg.mxu0
  %v1558 = vsel %vm121, %v625, 0
  %v1561 = vsel %vm121, %v626, 0
  %v1564 = vsel %vm121, %v627, 0
  %v1567 = vsel %vm121, %v628, 0
  %v1570 = vsel %vm121, %v629, 0
  %v1573 = vsel %vm121, %v630, 0
  %v1576 = vsel %vm121, %v631, 0
  %v1579 = vsel %vm121, %v632, 0
  %v1582 = vsel %vm121, %v362, 0
  %1584 = vmatprep.subr.mxu0 0.0
  %1585 = vmatpush1.xpose.msra.mxu0 %v1582
  %1586 = vmatprep.subr.mxu0 0.0
  %1587 = vmatpush1.xpose.msra.mxu0 0.0
  %1588 = vmatprep.subr.mxu0 0.0
  %1589 = vmatpush1.xpose.msra.mxu0 0.0
  %1590 = vmatprep.subr.mxu0 0.0
  %1591 = vmatpush1.xpose.msra.mxu0 0.0
  %1592 = vmatprep.subr.mxu0 0.0
  %1593 = vmatpush1.xpose.msra.mxu0 0.0
  %1594 = vmatprep.subr.mxu0 0.0
  %1595 = vmatpush1.xpose.msra.mxu0 0.0
  %1596 = vmatprep.subr.mxu0 0.0
  %1597 = vmatpush1.xpose.msra.mxu0 0.0
  %1598 = vmatprep.subr.mxu0 0.0
  %1599 = vmatpush1.xpose.msra.mxu0 0.0
  %1600 = vmatprep.subr.mxu0 0.0
  %1601 = vmatpush1.xpose.msra.mxu0 0.0
  %1602 = vmatprep.subr.mxu0 0.0
  %1603 = vmatpush1.xpose.msra.mxu0 0.0
  %1604 = vmatprep.subr.mxu0 0.0
  %1605 = vmatpush1.xpose.msra.mxu0 0.0
  %1606 = vmatprep.subr.mxu0 0.0
  %1607 = vmatpush1.xpose.msra.mxu0 0.0
  %1608 = vmatprep.subr.mxu0 0.0
  %1609 = vmatpush1.xpose.msra.mxu0 0.0
  %1610 = vmatprep.subr.mxu0 0.0
  %1611 = vmatpush1.xpose.msra.mxu0 0.0
  %1612 = vmatprep.subr.mxu0 0.0
  %1613 = vmatpush1.xpose.msra.mxu0 0.0
  %1614 = vmatprep.subr.mxu0 0.0
  %1615 = vmatpush1.xpose.msra.mxu0 0.0
  %1616 = vmatprep.subr.mxu0 0.0
  %1617 = vmatpush1.xpose.msra.mxu0 0.0
  %1618 = vmatprep.subr.mxu0 0.0
  %1619 = vmatpush1.xpose.msra.mxu0 0.0
  %1620 = vmatprep.subr.mxu0 0.0
  %1621 = vmatpush1.xpose.msra.mxu0 0.0
  %1622 = vmatprep.subr.mxu0 0.0
  %1623 = vmatpush1.xpose.msra.mxu0 0.0
  %1624 = vmatprep.subr.mxu0 0.0
  %1625 = vmatpush1.xpose.msra.mxu0 0.0
  %1626 = vmatprep.subr.mxu0 0.0
  %1627 = vmatpush1.xpose.msra.mxu0 0.0
  %1628 = vmatprep.subr.mxu0 0.0
  %1629 = vmatpush1.xpose.msra.mxu0 0.0
  %1630 = vmatprep.subr.mxu0 0.0
  %1631 = vmatpush1.xpose.msra.mxu0 0.0
  %1632 = vmatprep.subr.mxu0 0.0
  %1633 = vmatpush1.xpose.msra.mxu0 0.0
  %1634 = vmatprep.subr.mxu0 0.0
  %1635 = vmatpush1.xpose.msra.mxu0 0.0
  %1636 = vmatprep.subr.mxu0 0.0
  %1637 = vmatpush1.xpose.msra.mxu0 0.0
  %1638 = vmatprep.subr.mxu0 0.0
  %1639 = vmatpush1.xpose.msra.mxu0 0.0
  %1640 = vmatprep.subr.mxu0 0.0
  %1641 = vmatpush1.xpose.msra.mxu0 0.0
  %1642 = vmatprep.subr.mxu0 0.0
  %1643 = vmatpush1.xpose.msra.mxu0 0.0
  %1644 = vmatprep.subr.mxu0 0.0
  %1645 = vmatpush1.xpose.msra.mxu0 0.0
  %1646 = vmatprep.subr.mxu0 0.0
  %1647 = vmatpush1.xpose.msra.mxu0 0.0
  %1648 = vmatprep.mubr.f32.mxu0 0.0
  %1649 = vmatmul.mubr.f32.gmra.mrb[0].mxu0 %v1558
  %v1650 = vpop.f32.mrb[0].mxu0
  %v1651 = vadd.f32 0.0, %v1650
  %v1652 = vpop.f32.mrb[0].mxu0
  %1653 = vmatprep.mubr.f32.mxu0 0.0
  %1654 = vmatmul.mubr.f32.gmra.mrb[0].mxu0 %v1561
  %v1655 = vpop.f32.mrb[0].mxu0
  %v1656 = vadd.f32 0.0, %v1655
  %v1657 = vpop.f32.mrb[0].mxu0
  %1658 = vmatprep.mubr.f32.mxu0 0.0
  %1659 = vmatmul.mubr.f32.gmra.mrb[0].mxu0 %v1564
  %v1660 = vpop.f32.mrb[0].mxu0
  %v1661 = vadd.f32 0.0, %v1660
  %v1662 = vpop.f32.mrb[0].mxu0
  %1663 = vmatprep.mubr.f32.mxu0 0.0
  %1664 = vmatmul.mubr.f32.gmra.mrb[0].mxu0 %v1567
  %v1665 = vpop.f32.mrb[0].mxu0
  %v1666 = vadd.f32 0.0, %v1665
  %v1667 = vpop.f32.mrb[0].mxu0
  %1668 = vmatprep.mubr.f32.mxu0 0.0
  %1669 = vmatmul.mubr.f32.gmra.mrb[0].mxu0 %v1570
  %v1670 = vpop.f32.mrb[0].mxu0
  %v1671 = vadd.f32 0.0, %v1670
  %v1672 = vpop.f32.mrb[0].mxu0
  %1673 = vmatprep.mubr.f32.mxu0 0.0
  %1674 = vmatmul.mubr.f32.gmra.mrb[0].mxu0 %v1573
  %v1675 = vpop.f32.mrb[0].mxu0
  %v1676 = vadd.f32 0.0, %v1675
  %v1677 = vpop.f32.mrb[0].mxu0
  %1678 = vmatprep.mubr.f32.mxu0 0.0
  %1679 = vmatmul.mubr.f32.gmra.mrb[0].mxu0 %v1576
  %v1680 = vpop.f32.mrb[0].mxu0
  %v1681 = vadd.f32 0.0, %v1680
  %v1682 = vpop.f32.mrb[0].mxu0
  %1683 = vmatprep.mubr.f32.mxu0 0.0
  %1684 = vmatmul.mubr.f32.gmra.mrb[0].mxu0 %v1579
  %v1685 = vpop.f32.mrb[0].mxu0
  %v1686 = vadd.f32 0.0, %v1685
  %v1687 = vpop.f32.mrb[0].mxu0
  %1688 = vdwg.mxu0
  %v1689 = vmul.f32 %v727, 0.70710677
  %v1690 = vmul.f32 %v732, 0.70710677
  %v1691 = vmul.f32 %v737, 0.70710677
  %v1692 = vmul.f32 %v742, 0.70710677
  %v1693 = vmul.f32 %v747, 0.70710677
  %v1694 = vmul.f32 %v752, 0.70710677
  %v1695 = vmul.f32 %v757, 0.70710677
  %v1696 = vmul.f32 %v762, 0.70710677
  %v1697 = vmul.f32 %v859, 0.70710677
  %v1698 = vmul.f32 %v864, 0.70710677
  %v1699 = vmul.f32 %v869, 0.70710677
  %v1700 = vmul.f32 %v874, 0.70710677
  %v1701 = vmul.f32 %v879, 0.70710677
  %v1702 = vmul.f32 %v884, 0.70710677
  %v1703 = vmul.f32 %v889, 0.70710677
  %v1704 = vmul.f32 %v894, 0.70710677
  %v1705 = vmul.f32 %v991, 0.70710677
  %v1706 = vmul.f32 %v996, 0.70710677
  %v1707 = vmul.f32 %v1001, 0.70710677
  %v1708 = vmul.f32 %v1006, 0.70710677
  %v1709 = vmul.f32 %v1011, 0.70710677
  %v1710 = vmul.f32 %v1016, 0.70710677
  %v1711 = vmul.f32 %v1021, 0.70710677
  %v1712 = vmul.f32 %v1026, 0.70710677
  %v1713 = vmul.f32 %v1123, 0.70710677
  %v1714 = vmul.f32 %v1128, 0.70710677
  %v1715 = vmul.f32 %v1133, 0.70710677
  %v1716 = vmul.f32 %v1138, 0.70710677
  %v1717 = vmul.f32 %v1143, 0.70710677
  %v1718 = vmul.f32 %v1148, 0.70710677
  %v1719 = vmul.f32 %v1153, 0.70710677
  %v1720 = vmul.f32 %v1158, 0.70710677
  %v1721 = vmul.f32 %v1255, 0.70710677
  %v1722 = vmul.f32 %v1260, 0.70710677
  %v1723 = vmul.f32 %v1265, 0.70710677
  %v1724 = vmul.f32 %v1270, 0.70710677
  %v1725 = vmul.f32 %v1275, 0.70710677
  %v1726 = vmul.f32 %v1280, 0.70710677
  %v1727 = vmul.f32 %v1285, 0.70710677
  %v1728 = vmul.f32 %v1290, 0.70710677
  %v1729 = vmul.f32 %v1387, 0.70710677
  %v1730 = vmul.f32 %v1392, 0.70710677
  %v1731 = vmul.f32 %v1397, 0.70710677
  %v1732 = vmul.f32 %v1402, 0.70710677
  %v1733 = vmul.f32 %v1407, 0.70710677
  %v1734 = vmul.f32 %v1412, 0.70710677
  %v1735 = vmul.f32 %v1417, 0.70710677
  %v1736 = vmul.f32 %v1422, 0.70710677
  %v1737 = vmul.f32 %v1519, 0.70710677
  %v1738 = vmul.f32 %v1524, 0.70710677
  %v1739 = vmul.f32 %v1529, 0.70710677
  %v1740 = vmul.f32 %v1534, 0.70710677
  %v1741 = vmul.f32 %v1539, 0.70710677
  %v1742 = vmul.f32 %v1544, 0.70710677
  %v1743 = vmul.f32 %v1549, 0.70710677
  %v1744 = vmul.f32 %v1554, 0.70710677
  %v1745 = vmul.f32 %v1651, 0.70710677
  %v1746 = vmul.f32 %v1656, 0.70710677
  %v1747 = vmul.f32 %v1661, 0.70710677
  %v1748 = vmul.f32 %v1666, 0.70710677
  %v1749 = vmul.f32 %v1671, 0.70710677
  %v1750 = vmul.f32 %v1676, 0.70710677
  %v1751 = vmul.f32 %v1681, 0.70710677
  %v1752 = vmul.f32 %v1686, 0.70710677
  %v1761 = vlaneseq
  %v1762 = vshrl.u32 %v1761, 7
  %v1763 = vsub.s32 0, %v1762
  %v1764 = vrot.slane %v103, %v1763
  %v1765 = vlaneseq
  %v1766 = vshrl.u32 %v1765, 7
  %v1767 = vsub.s32 0, %v1766
  %v1768 = vrot.slane %v104, %v1767
  %v1769 = vlaneseq
  %v1770 = vshrl.u32 %v1769, 7
  %v1771 = vsub.s32 0, %v1770
  %v1772 = vrot.slane %v105, %v1771
  %v1773 = vlaneseq
  %v1774 = vshrl.u32 %v1773, 7
  %v1775 = vsub.s32 0, %v1774
  %v1776 = vrot.slane %v106, %v1775
  %v1777 = vlaneseq
  %v1778 = vshrl.u32 %v1777, 7
  %v1779 = vsub.s32 0, %v1778
  %v1780 = vrot.slane %v107, %v1779
  %v1781 = vlaneseq
  %v1782 = vshrl.u32 %v1781, 7
  %v1783 = vsub.s32 0, %v1782
  %v1784 = vrot.slane %v108, %v1783
  %v1785 = vlaneseq
  %v1786 = vshrl.u32 %v1785, 7
  %v1787 = vsub.s32 0, %v1786
  %v1788 = vrot.slane %v109, %v1787
  %v1789 = vlaneseq
  %v1790 = vshrl.u32 %v1789, 7
  %v1791 = vsub.s32 0, %v1790
  %v1792 = vrot.slane %v110, %v1791
  %v1801 = vadd.f32 %v1689, %v1764
  %v1802 = vadd.f32 %v1690, %v1764
  %v1803 = vadd.f32 %v1691, %v1764
  %v1804 = vadd.f32 %v1692, %v1764
  %v1805 = vadd.f32 %v1693, %v1764
  %v1806 = vadd.f32 %v1694, %v1764
  %v1807 = vadd.f32 %v1695, %v1764
  %v1808 = vadd.f32 %v1696, %v1764
  %v1809 = vadd.f32 %v1697, %v1768
  %v1810 = vadd.f32 %v1698, %v1768
  %v1811 = vadd.f32 %v1699, %v1768
  %v1812 = vadd.f32 %v1700, %v1768
  %v1813 = vadd.f32 %v1701, %v1768
  %v1814 = vadd.f32 %v1702, %v1768
  %v1815 = vadd.f32 %v1703, %v1768
  %v1816 = vadd.f32 %v1704, %v1768
  %v1817 = vadd.f32 %v1705, %v1772
  %v1818 = vadd.f32 %v1706, %v1772
  %v1819 = vadd.f32 %v1707, %v1772
  %v1820 = vadd.f32 %v1708, %v1772
  %v1821 = vadd.f32 %v1709, %v1772
  %v1822 = vadd.f32 %v1710, %v1772
  %v1823 = vadd.f32 %v1711, %v1772
  %v1824 = vadd.f32 %v1712, %v1772
  %v1825 = vadd.f32 %v1713, %v1776
  %v1826 = vadd.f32 %v1714, %v1776
  %v1827 = vadd.f32 %v1715, %v1776
  %v1828 = vadd.f32 %v1716, %v1776
  %v1829 = vadd.f32 %v1717, %v1776
  %v1830 = vadd.f32 %v1718, %v1776
  %v1831 = vadd.f32 %v1719, %v1776
  %v1832 = vadd.f32 %v1720, %v1776
  %v1833 = vadd.f32 %v1721, %v1780
  %v1834 = vadd.f32 %v1722, %v1780
  %v1835 = vadd.f32 %v1723, %v1780
  %v1836 = vadd.f32 %v1724, %v1780
  %v1837 = vadd.f32 %v1725, %v1780
  %v1838 = vadd.f32 %v1726, %v1780
  %v1839 = vadd.f32 %v1727, %v1780
  %v1840 = vadd.f32 %v1728, %v1780
  %v1841 = vadd.f32 %v1729, %v1784
  %v1842 = vadd.f32 %v1730, %v1784
  %v1843 = vadd.f32 %v1731, %v1784
  %v1844 = vadd.f32 %v1732, %v1784
  %v1845 = vadd.f32 %v1733, %v1784
  %v1846 = vadd.f32 %v1734, %v1784
  %v1847 = vadd.f32 %v1735, %v1784
  %v1848 = vadd.f32 %v1736, %v1784
  %v1849 = vadd.f32 %v1737, %v1788
  %v1850 = vadd.f32 %v1738, %v1788
  %v1851 = vadd.f32 %v1739, %v1788
  %v1852 = vadd.f32 %v1740, %v1788
  %v1853 = vadd.f32 %v1741, %v1788
  %v1854 = vadd.f32 %v1742, %v1788
  %v1855 = vadd.f32 %v1743, %v1788
  %v1856 = vadd.f32 %v1744, %v1788
  %v1857 = vadd.f32 %v1745, %v1792
  %v1858 = vadd.f32 %v1746, %v1792
  %v1859 = vadd.f32 %v1747, %v1792
  %v1860 = vadd.f32 %v1748, %v1792
  %v1861 = vadd.f32 %v1749, %v1792
  %v1862 = vadd.f32 %v1750, %v1792
  %v1863 = vadd.f32 %v1751, %v1792
  %v1864 = vadd.f32 %v1752, %v1792
  %vm1865 = vcmask 64512
  %v1866 = vsel %vm1865, %v1801, -inf
  %1867 = vmax.xlane.f32.xlu0 %v1866
  %v1868 = vpop.xlane.xlu0 %1867
  %v1869 = vsel %vm1865, %v1802, -inf
  %1870 = vmax.xlane.f32.xlu0 %v1869
  %v1871 = vpop.xlane.xlu0 %1870
  %v1872 = vsel %vm1865, %v1803, -inf
  %1873 = vmax.xlane.f32.xlu0 %v1872
  %v1874 = vpop.xlane.xlu0 %1873
  %v1875 = vsel %vm1865, %v1804, -inf
  %1876 = vmax.xlane.f32.xlu0 %v1875
  %v1877 = vpop.xlane.xlu0 %1876
  %v1878 = vsel %vm1865, %v1805, -inf
  %1879 = vmax.xlane.f32.xlu0 %v1878
  %v1880 = vpop.xlane.xlu0 %1879
  %v1881 = vsel %vm1865, %v1806, -inf
  %1882 = vmax.xlane.f32.xlu0 %v1881
  %v1883 = vpop.xlane.xlu0 %1882
  %v1884 = vsel %vm1865, %v1807, -inf
  %1885 = vmax.xlane.f32.xlu0 %v1884
  %v1886 = vpop.xlane.xlu0 %1885
  %v1887 = vsel %vm1865, %v1808, -inf
  %1888 = vmax.xlane.f32.xlu0 %v1887
  %v1889 = vpop.xlane.xlu0 %1888
  %v1890 = vsel %vm1865, %v1809, -inf
  %1891 = vmax.xlane.f32.xlu0 %v1890
  %v1892 = vpop.xlane.xlu0 %1891
  %v1893 = vsel %vm1865, %v1810, -inf
  %1894 = vmax.xlane.f32.xlu0 %v1893
  %v1895 = vpop.xlane.xlu0 %1894
  %v1896 = vsel %vm1865, %v1811, -inf
  %1897 = vmax.xlane.f32.xlu0 %v1896
  %v1898 = vpop.xlane.xlu0 %1897
  %v1899 = vsel %vm1865, %v1812, -inf
  %1900 = vmax.xlane.f32.xlu0 %v1899
  %v1901 = vpop.xlane.xlu0 %1900
  %v1902 = vsel %vm1865, %v1813, -inf
  %1903 = vmax.xlane.f32.xlu0 %v1902
  %v1904 = vpop.xlane.xlu0 %1903
  %v1905 = vsel %vm1865, %v1814, -inf
  %1906 = vmax.xlane.f32.xlu0 %v1905
  %v1907 = vpop.xlane.xlu0 %1906
  %v1908 = vsel %vm1865, %v1815, -inf
  %1909 = vmax.xlane.f32.xlu0 %v1908
  %v1910 = vpop.xlane.xlu0 %1909
  %v1911 = vsel %vm1865, %v1816, -inf
  %1912 = vmax.xlane.f32.xlu0 %v1911
  %v1913 = vpop.xlane.xlu0 %1912
  %v1914 = vsel %vm1865, %v1817, -inf
  %1915 = vmax.xlane.f32.xlu0 %v1914
  %v1916 = vpop.xlane.xlu0 %1915
  %v1917 = vsel %vm1865, %v1818, -inf
  %1918 = vmax.xlane.f32.xlu0 %v1917
  %v1919 = vpop.xlane.xlu0 %1918
  %v1920 = vsel %vm1865, %v1819, -inf
  %1921 = vmax.xlane.f32.xlu0 %v1920
  %v1922 = vpop.xlane.xlu0 %1921
  %v1923 = vsel %vm1865, %v1820, -inf
  %1924 = vmax.xlane.f32.xlu0 %v1923
  %v1925 = vpop.xlane.xlu0 %1924
  %v1926 = vsel %vm1865, %v1821, -inf
  %1927 = vmax.xlane.f32.xlu0 %v1926
  %v1928 = vpop.xlane.xlu0 %1927
  %v1929 = vsel %vm1865, %v1822, -inf
  %1930 = vmax.xlane.f32.xlu0 %v1929
  %v1931 = vpop.xlane.xlu0 %1930
  %v1932 = vsel %vm1865, %v1823, -inf
  %1933 = vmax.xlane.f32.xlu0 %v1932
  %v1934 = vpop.xlane.xlu0 %1933
  %v1935 = vsel %vm1865, %v1824, -inf
  %1936 = vmax.xlane.f32.xlu0 %v1935
  %v1937 = vpop.xlane.xlu0 %1936
  %v1938 = vsel %vm1865, %v1825, -inf
  %1939 = vmax.xlane.f32.xlu0 %v1938
  %v1940 = vpop.xlane.xlu0 %1939
  %v1941 = vsel %vm1865, %v1826, -inf
  %1942 = vmax.xlane.f32.xlu0 %v1941
  %v1943 = vpop.xlane.xlu0 %1942
  %v1944 = vsel %vm1865, %v1827, -inf
  %1945 = vmax.xlane.f32.xlu0 %v1944
  %v1946 = vpop.xlane.xlu0 %1945
  %v1947 = vsel %vm1865, %v1828, -inf
  %1948 = vmax.xlane.f32.xlu0 %v1947
  %v1949 = vpop.xlane.xlu0 %1948
  %v1950 = vsel %vm1865, %v1829, -inf
  %1951 = vmax.xlane.f32.xlu0 %v1950
  %v1952 = vpop.xlane.xlu0 %1951
  %v1953 = vsel %vm1865, %v1830, -inf
  %1954 = vmax.xlane.f32.xlu0 %v1953
  %v1955 = vpop.xlane.xlu0 %1954
  %v1956 = vsel %vm1865, %v1831, -inf
  %1957 = vmax.xlane.f32.xlu0 %v1956
  %v1958 = vpop.xlane.xlu0 %1957
  %v1959 = vsel %vm1865, %v1832, -inf
  %1960 = vmax.xlane.f32.xlu0 %v1959
  %v1961 = vpop.xlane.xlu0 %1960
  %v1962 = vsel %vm1865, %v1833, -inf
  %1963 = vmax.xlane.f32.xlu0 %v1962
  %v1964 = vpop.xlane.xlu0 %1963
  %v1965 = vsel %vm1865, %v1834, -inf
  %1966 = vmax.xlane.f32.xlu0 %v1965
  %v1967 = vpop.xlane.xlu0 %1966
  %v1968 = vsel %vm1865, %v1835, -inf
  %1969 = vmax.xlane.f32.xlu0 %v1968
  %v1970 = vpop.xlane.xlu0 %1969
  %v1971 = vsel %vm1865, %v1836, -inf
  %1972 = vmax.xlane.f32.xlu0 %v1971
  %v1973 = vpop.xlane.xlu0 %1972
  %v1974 = vsel %vm1865, %v1837, -inf
  %1975 = vmax.xlane.f32.xlu0 %v1974
  %v1976 = vpop.xlane.xlu0 %1975
  %v1977 = vsel %vm1865, %v1838, -inf
  %1978 = vmax.xlane.f32.xlu0 %v1977
  %v1979 = vpop.xlane.xlu0 %1978
  %v1980 = vsel %vm1865, %v1839, -inf
  %1981 = vmax.xlane.f32.xlu0 %v1980
  %v1982 = vpop.xlane.xlu0 %1981
  %v1983 = vsel %vm1865, %v1840, -inf
  %1984 = vmax.xlane.f32.xlu0 %v1983
  %v1985 = vpop.xlane.xlu0 %1984
  %v1986 = vsel %vm1865, %v1841, -inf
  %1987 = vmax.xlane.f32.xlu0 %v1986
  %v1988 = vpop.xlane.xlu0 %1987
  %v1989 = vsel %vm1865, %v1842, -inf
  %1990 = vmax.xlane.f32.xlu0 %v1989
  %v1991 = vpop.xlane.xlu0 %1990
  %v1992 = vsel %vm1865, %v1843, -inf
  %1993 = vmax.xlane.f32.xlu0 %v1992
  %v1994 = vpop.xlane.xlu0 %1993
  %v1995 = vsel %vm1865, %v1844, -inf
  %1996 = vmax.xlane.f32.xlu0 %v1995
  %v1997 = vpop.xlane.xlu0 %1996
  %v1998 = vsel %vm1865, %v1845, -inf
  %1999 = vmax.xlane.f32.xlu0 %v1998
  %v2000 = vpop.xlane.xlu0 %1999
  %v2001 = vsel %vm1865, %v1846, -inf
  %2002 = vmax.xlane.f32.xlu0 %v2001
  %v2003 = vpop.xlane.xlu0 %2002
  %v2004 = vsel %vm1865, %v1847, -inf
  %2005 = vmax.xlane.f32.xlu0 %v2004
  %v2006 = vpop.xlane.xlu0 %2005
  %v2007 = vsel %vm1865, %v1848, -inf
  %2008 = vmax.xlane.f32.xlu0 %v2007
  %v2009 = vpop.xlane.xlu0 %2008
  %v2010 = vsel %vm1865, %v1849, -inf
  %2011 = vmax.xlane.f32.xlu0 %v2010
  %v2012 = vpop.xlane.xlu0 %2011
  %v2013 = vsel %vm1865, %v1850, -inf
  %2014 = vmax.xlane.f32.xlu0 %v2013
  %v2015 = vpop.xlane.xlu0 %2014
  %v2016 = vsel %vm1865, %v1851, -inf
  %2017 = vmax.xlane.f32.xlu0 %v2016
  %v2018 = vpop.xlane.xlu0 %2017
  %v2019 = vsel %vm1865, %v1852, -inf
  %2020 = vmax.xlane.f32.xlu0 %v2019
  %v2021 = vpop.xlane.xlu0 %2020
  %v2022 = vsel %vm1865, %v1853, -inf
  %2023 = vmax.xlane.f32.xlu0 %v2022
  %v2024 = vpop.xlane.xlu0 %2023
  %v2025 = vsel %vm1865, %v1854, -inf
  %2026 = vmax.xlane.f32.xlu0 %v2025
  %v2027 = vpop.xlane.xlu0 %2026
  %v2028 = vsel %vm1865, %v1855, -inf
  %2029 = vmax.xlane.f32.xlu0 %v2028
  %v2030 = vpop.xlane.xlu0 %2029
  %v2031 = vsel %vm1865, %v1856, -inf
  %2032 = vmax.xlane.f32.xlu0 %v2031
  %v2033 = vpop.xlane.xlu0 %2032
  %v2034 = vsel %vm1865, %v1857, -inf
  %2035 = vmax.xlane.f32.xlu0 %v2034
  %v2036 = vpop.xlane.xlu0 %2035
  %v2037 = vsel %vm1865, %v1858, -inf
  %2038 = vmax.xlane.f32.xlu0 %v2037
  %v2039 = vpop.xlane.xlu0 %2038
  %v2040 = vsel %vm1865, %v1859, -inf
  %2041 = vmax.xlane.f32.xlu0 %v2040
  %v2042 = vpop.xlane.xlu0 %2041
  %v2043 = vsel %vm1865, %v1860, -inf
  %2044 = vmax.xlane.f32.xlu0 %v2043
  %v2045 = vpop.xlane.xlu0 %2044
  %v2046 = vsel %vm1865, %v1861, -inf
  %2047 = vmax.xlane.f32.xlu0 %v2046
  %v2048 = vpop.xlane.xlu0 %2047
  %v2049 = vsel %vm1865, %v1862, -inf
  %2050 = vmax.xlane.f32.xlu0 %v2049
  %v2051 = vpop.xlane.xlu0 %2050
  %v2052 = vsel %vm1865, %v1863, -inf
  %2053 = vmax.xlane.f32.xlu0 %v2052
  %v2054 = vpop.xlane.xlu0 %2053
  %v2055 = vsel %vm1865, %v1864, -inf
  %2056 = vmax.xlane.f32.xlu0 %v2055
  %v2057 = vpop.xlane.xlu0 %2056
  %v2058 = vsub.f32 %v1801, %v1868
  %v2059 = vsub.f32 %v1802, %v1871
  %v2060 = vsub.f32 %v1803, %v1874
  %v2061 = vsub.f32 %v1804, %v1877
  %v2062 = vsub.f32 %v1805, %v1880
  %v2063 = vsub.f32 %v1806, %v1883
  %v2064 = vsub.f32 %v1807, %v1886
  %v2065 = vsub.f32 %v1808, %v1889
  %v2066 = vsub.f32 %v1809, %v1892
  %v2067 = vsub.f32 %v1810, %v1895
  %v2068 = vsub.f32 %v1811, %v1898
  %v2069 = vsub.f32 %v1812, %v1901
  %v2070 = vsub.f32 %v1813, %v1904
  %v2071 = vsub.f32 %v1814, %v1907
  %v2072 = vsub.f32 %v1815, %v1910
  %v2073 = vsub.f32 %v1816, %v1913
  %v2074 = vsub.f32 %v1817, %v1916
  %v2075 = vsub.f32 %v1818, %v1919
  %v2076 = vsub.f32 %v1819, %v1922
  %v2077 = vsub.f32 %v1820, %v1925
  %v2078 = vsub.f32 %v1821, %v1928
  %v2079 = vsub.f32 %v1822, %v1931
  %v2080 = vsub.f32 %v1823, %v1934
  %v2081 = vsub.f32 %v1824, %v1937
  %v2082 = vsub.f32 %v1825, %v1940
  %v2083 = vsub.f32 %v1826, %v1943
  %v2084 = vsub.f32 %v1827, %v1946
  %v2085 = vsub.f32 %v1828, %v1949
  %v2086 = vsub.f32 %v1829, %v1952
  %v2087 = vsub.f32 %v1830, %v1955
  %v2088 = vsub.f32 %v1831, %v1958
  %v2089 = vsub.f32 %v1832, %v1961
  %v2090 = vsub.f32 %v1833, %v1964
  %v2091 = vsub.f32 %v1834, %v1967
  %v2092 = vsub.f32 %v1835, %v1970
  %v2093 = vsub.f32 %v1836, %v1973
  %v2094 = vsub.f32 %v1837, %v1976
  %v2095 = vsub.f32 %v1838, %v1979
  %v2096 = vsub.f32 %v1839, %v1982
  %v2097 = vsub.f32 %v1840, %v1985
  %v2098 = vsub.f32 %v1841, %v1988
  %v2099 = vsub.f32 %v1842, %v1991
  %v2100 = vsub.f32 %v1843, %v1994
  %v2101 = vsub.f32 %v1844, %v1997
  %v2102 = vsub.f32 %v1845, %v2000
  %v2103 = vsub.f32 %v1846, %v2003
  %v2104 = vsub.f32 %v1847, %v2006
  %v2105 = vsub.f32 %v1848, %v2009
  %v2106 = vsub.f32 %v1849, %v2012
  %v2107 = vsub.f32 %v1850, %v2015
  %v2108 = vsub.f32 %v1851, %v2018
  %v2109 = vsub.f32 %v1852, %v2021
  %v2110 = vsub.f32 %v1853, %v2024
  %v2111 = vsub.f32 %v1854, %v2027
  %v2112 = vsub.f32 %v1855, %v2030
  %v2113 = vsub.f32 %v1856, %v2033
  %v2114 = vsub.f32 %v1857, %v2036
  %v2115 = vsub.f32 %v1858, %v2039
  %v2116 = vsub.f32 %v1859, %v2042
  %v2117 = vsub.f32 %v1860, %v2045
  %v2118 = vsub.f32 %v1861, %v2048
  %v2119 = vsub.f32 %v1862, %v2051
  %v2120 = vsub.f32 %v1863, %v2054
  %v2121 = vsub.f32 %v1864, %v2057
  %v2122 = vmul.f32 %v2058, 1.442695
  %v2123 = vpow.pop %v2122
  %v2124 = vmul.f32 %v2059, 1.442695
  %v2125 = vpow.pop %v2124
  %v2126 = vmul.f32 %v2060, 1.442695
  %v2127 = vpow.pop %v2126
  %v2128 = vmul.f32 %v2061, 1.442695
  %v2129 = vpow.pop %v2128
  %v2130 = vmul.f32 %v2062, 1.442695
  %v2131 = vpow.pop %v2130
  %v2132 = vmul.f32 %v2063, 1.442695
  %v2133 = vpow.pop %v2132
  %v2134 = vmul.f32 %v2064, 1.442695
  %v2135 = vpow.pop %v2134
  %v2136 = vmul.f32 %v2065, 1.442695
  %v2137 = vpow.pop %v2136
  %v2138 = vmul.f32 %v2066, 1.442695
  %v2139 = vpow.pop %v2138
  %v2140 = vmul.f32 %v2067, 1.442695
  %v2141 = vpow.pop %v2140
  %v2142 = vmul.f32 %v2068, 1.442695
  %v2143 = vpow.pop %v2142
  %v2144 = vmul.f32 %v2069, 1.442695
  %v2145 = vpow.pop %v2144
  %v2146 = vmul.f32 %v2070, 1.442695
  %v2147 = vpow.pop %v2146
  %v2148 = vmul.f32 %v2071, 1.442695
  %v2149 = vpow.pop %v2148
  %v2150 = vmul.f32 %v2072, 1.442695
  %v2151 = vpow.pop %v2150
  %v2152 = vmul.f32 %v2073, 1.442695
  %v2153 = vpow.pop %v2152
  %v2154 = vmul.f32 %v2074, 1.442695
  %v2155 = vpow.pop %v2154
  %v2156 = vmul.f32 %v2075, 1.442695
  %v2157 = vpow.pop %v2156
  %v2158 = vmul.f32 %v2076, 1.442695
  %v2159 = vpow.pop %v2158
  %v2160 = vmul.f32 %v2077, 1.442695
  %v2161 = vpow.pop %v2160
  %v2162 = vmul.f32 %v2078, 1.442695
  %v2163 = vpow.pop %v2162
  %v2164 = vmul.f32 %v2079, 1.442695
  %v2165 = vpow.pop %v2164
  %v2166 = vmul.f32 %v2080, 1.442695
  %v2167 = vpow.pop %v2166
  %v2168 = vmul.f32 %v2081, 1.442695
  %v2169 = vpow.pop %v2168
  %v2170 = vmul.f32 %v2082, 1.442695
  %v2171 = vpow.pop %v2170
  %v2172 = vmul.f32 %v2083, 1.442695
  %v2173 = vpow.pop %v2172
  %v2174 = vmul.f32 %v2084, 1.442695
  %v2175 = vpow.pop %v2174
  %v2176 = vmul.f32 %v2085, 1.442695
  %v2177 = vpow.pop %v2176
  %v2178 = vmul.f32 %v2086, 1.442695
  %v2179 = vpow.pop %v2178
  %v2180 = vmul.f32 %v2087, 1.442695
  %v2181 = vpow.pop %v2180
  %v2182 = vmul.f32 %v2088, 1.442695
  %v2183 = vpow.pop %v2182
  %v2184 = vmul.f32 %v2089, 1.442695
  %v2185 = vpow.pop %v2184
  %v2186 = vmul.f32 %v2090, 1.442695
  %v2187 = vpow.pop %v2186
  %v2188 = vmul.f32 %v2091, 1.442695
  %v2189 = vpow.pop %v2188
  %v2190 = vmul.f32 %v2092, 1.442695
  %v2191 = vpow.pop %v2190
  %v2192 = vmul.f32 %v2093, 1.442695
  %v2193 = vpow.pop %v2192
  %v2194 = vmul.f32 %v2094, 1.442695
  %v2195 = vpow.pop %v2194
  %v2196 = vmul.f32 %v2095, 1.442695
  %v2197 = vpow.pop %v2196
  %v2198 = vmul.f32 %v2096, 1.442695
  %v2199 = vpow.pop %v2198
  %v2200 = vmul.f32 %v2097, 1.442695
  %v2201 = vpow.pop %v2200
  %v2202 = vmul.f32 %v2098, 1.442695
  %v2203 = vpow.pop %v2202
  %v2204 = vmul.f32 %v2099, 1.442695
  %v2205 = vpow.pop %v2204
  %v2206 = vmul.f32 %v2100, 1.442695
  %v2207 = vpow.pop %v2206
  %v2208 = vmul.f32 %v2101, 1.442695
  %v2209 = vpow.pop %v2208
  %v2210 = vmul.f32 %v2102, 1.442695
  %v2211 = vpow.pop %v2210
  %v2212 = vmul.f32 %v2103, 1.442695
  %v2213 = vpow.pop %v2212
  %v2214 = vmul.f32 %v2104, 1.442695
  %v2215 = vpow.pop %v2214
  %v2216 = vmul.f32 %v2105, 1.442695
  %v2217 = vpow.pop %v2216
  %v2218 = vmul.f32 %v2106, 1.442695
  %v2219 = vpow.pop %v2218
  %v2220 = vmul.f32 %v2107, 1.442695
  %v2221 = vpow.pop %v2220
  %v2222 = vmul.f32 %v2108, 1.442695
  %v2223 = vpow.pop %v2222
  %v2224 = vmul.f32 %v2109, 1.442695
  %v2225 = vpow.pop %v2224
  %v2226 = vmul.f32 %v2110, 1.442695
  %v2227 = vpow.pop %v2226
  %v2228 = vmul.f32 %v2111, 1.442695
  %v2229 = vpow.pop %v2228
  %v2230 = vmul.f32 %v2112, 1.442695
  %v2231 = vpow.pop %v2230
  %v2232 = vmul.f32 %v2113, 1.442695
  %v2233 = vpow.pop %v2232
  %v2234 = vmul.f32 %v2114, 1.442695
  %v2235 = vpow.pop %v2234
  %v2236 = vmul.f32 %v2115, 1.442695
  %v2237 = vpow.pop %v2236
  %v2238 = vmul.f32 %v2116, 1.442695
  %v2239 = vpow.pop %v2238
  %v2240 = vmul.f32 %v2117, 1.442695
  %v2241 = vpow.pop %v2240
  %v2242 = vmul.f32 %v2118, 1.442695
  %v2243 = vpow.pop %v2242
  %v2244 = vmul.f32 %v2119, 1.442695
  %v2245 = vpow.pop %v2244
  %v2246 = vmul.f32 %v2120, 1.442695
  %v2247 = vpow.pop %v2246
  %v2248 = vmul.f32 %v2121, 1.442695
  %v2249 = vpow.pop %v2248
  %v2250 = vsel %vm1865, %v2123, 0.0
  %2251 = vadd.xlane.f32.xlu0 %v2250
  %v2252 = vpop.xlane.xlu0 %2251
  %v2253 = vsel %vm1865, %v2125, 0.0
  %2254 = vadd.xlane.f32.xlu0 %v2253
  %v2255 = vpop.xlane.xlu0 %2254
  %v2256 = vsel %vm1865, %v2127, 0.0
  %2257 = vadd.xlane.f32.xlu0 %v2256
  %v2258 = vpop.xlane.xlu0 %2257
  %v2259 = vsel %vm1865, %v2129, 0.0
  %2260 = vadd.xlane.f32.xlu0 %v2259
  %v2261 = vpop.xlane.xlu0 %2260
  %v2262 = vsel %vm1865, %v2131, 0.0
  %2263 = vadd.xlane.f32.xlu0 %v2262
  %v2264 = vpop.xlane.xlu0 %2263
  %v2265 = vsel %vm1865, %v2133, 0.0
  %2266 = vadd.xlane.f32.xlu0 %v2265
  %v2267 = vpop.xlane.xlu0 %2266
  %v2268 = vsel %vm1865, %v2135, 0.0
  %2269 = vadd.xlane.f32.xlu0 %v2268
  %v2270 = vpop.xlane.xlu0 %2269
  %v2271 = vsel %vm1865, %v2137, 0.0
  %2272 = vadd.xlane.f32.xlu0 %v2271
  %v2273 = vpop.xlane.xlu0 %2272
  %v2274 = vsel %vm1865, %v2139, 0.0
  %2275 = vadd.xlane.f32.xlu0 %v2274
  %v2276 = vpop.xlane.xlu0 %2275
  %v2277 = vsel %vm1865, %v2141, 0.0
  %2278 = vadd.xlane.f32.xlu0 %v2277
  %v2279 = vpop.xlane.xlu0 %2278
  %v2280 = vsel %vm1865, %v2143, 0.0
  %2281 = vadd.xlane.f32.xlu0 %v2280
  %v2282 = vpop.xlane.xlu0 %2281
  %v2283 = vsel %vm1865, %v2145, 0.0
  %2284 = vadd.xlane.f32.xlu0 %v2283
  %v2285 = vpop.xlane.xlu0 %2284
  %v2286 = vsel %vm1865, %v2147, 0.0
  %2287 = vadd.xlane.f32.xlu0 %v2286
  %v2288 = vpop.xlane.xlu0 %2287
  %v2289 = vsel %vm1865, %v2149, 0.0
  %2290 = vadd.xlane.f32.xlu0 %v2289
  %v2291 = vpop.xlane.xlu0 %2290
  %v2292 = vsel %vm1865, %v2151, 0.0
  %2293 = vadd.xlane.f32.xlu0 %v2292
  %v2294 = vpop.xlane.xlu0 %2293
  %v2295 = vsel %vm1865, %v2153, 0.0
  %2296 = vadd.xlane.f32.xlu0 %v2295
  %v2297 = vpop.xlane.xlu0 %2296
  %v2298 = vsel %vm1865, %v2155, 0.0
  %2299 = vadd.xlane.f32.xlu0 %v2298
  %v2300 = vpop.xlane.xlu0 %2299
  %v2301 = vsel %vm1865, %v2157, 0.0
  %2302 = vadd.xlane.f32.xlu0 %v2301
  %v2303 = vpop.xlane.xlu0 %2302
  %v2304 = vsel %vm1865, %v2159, 0.0
  %2305 = vadd.xlane.f32.xlu0 %v2304
  %v2306 = vpop.xlane.xlu0 %2305
  %v2307 = vsel %vm1865, %v2161, 0.0
  %2308 = vadd.xlane.f32.xlu0 %v2307
  %v2309 = vpop.xlane.xlu0 %2308
  %v2310 = vsel %vm1865, %v2163, 0.0
  %2311 = vadd.xlane.f32.xlu0 %v2310
  %v2312 = vpop.xlane.xlu0 %2311
  %v2313 = vsel %vm1865, %v2165, 0.0
  %2314 = vadd.xlane.f32.xlu0 %v2313
  %v2315 = vpop.xlane.xlu0 %2314
  %v2316 = vsel %vm1865, %v2167, 0.0
  %2317 = vadd.xlane.f32.xlu0 %v2316
  %v2318 = vpop.xlane.xlu0 %2317
  %v2319 = vsel %vm1865, %v2169, 0.0
  %2320 = vadd.xlane.f32.xlu0 %v2319
  %v2321 = vpop.xlane.xlu0 %2320
  %v2322 = vsel %vm1865, %v2171, 0.0
  %2323 = vadd.xlane.f32.xlu0 %v2322
  %v2324 = vpop.xlane.xlu0 %2323
  %v2325 = vsel %vm1865, %v2173, 0.0
  %2326 = vadd.xlane.f32.xlu0 %v2325
  %v2327 = vpop.xlane.xlu0 %2326
  %v2328 = vsel %vm1865, %v2175, 0.0
  %2329 = vadd.xlane.f32.xlu0 %v2328
  %v2330 = vpop.xlane.xlu0 %2329
  %v2331 = vsel %vm1865, %v2177, 0.0
  %2332 = vadd.xlane.f32.xlu0 %v2331
  %v2333 = vpop.xlane.xlu0 %2332
  %v2334 = vsel %vm1865, %v2179, 0.0
  %2335 = vadd.xlane.f32.xlu0 %v2334
  %v2336 = vpop.xlane.xlu0 %2335
  %v2337 = vsel %vm1865, %v2181, 0.0
  %2338 = vadd.xlane.f32.xlu0 %v2337
  %v2339 = vpop.xlane.xlu0 %2338
  %v2340 = vsel %vm1865, %v2183, 0.0
  %2341 = vadd.xlane.f32.xlu0 %v2340
  %v2342 = vpop.xlane.xlu0 %2341
  %v2343 = vsel %vm1865, %v2185, 0.0
  %2344 = vadd.xlane.f32.xlu0 %v2343
  %v2345 = vpop.xlane.xlu0 %2344
  %v2346 = vsel %vm1865, %v2187, 0.0
  %2347 = vadd.xlane.f32.xlu0 %v2346
  %v2348 = vpop.xlane.xlu0 %2347
  %v2349 = vsel %vm1865, %v2189, 0.0
  %2350 = vadd.xlane.f32.xlu0 %v2349
  %v2351 = vpop.xlane.xlu0 %2350
  %v2352 = vsel %vm1865, %v2191, 0.0
  %2353 = vadd.xlane.f32.xlu0 %v2352
  %v2354 = vpop.xlane.xlu0 %2353
  %v2355 = vsel %vm1865, %v2193, 0.0
  %2356 = vadd.xlane.f32.xlu0 %v2355
  %v2357 = vpop.xlane.xlu0 %2356
  %v2358 = vsel %vm1865, %v2195, 0.0
  %2359 = vadd.xlane.f32.xlu0 %v2358
  %v2360 = vpop.xlane.xlu0 %2359
  %v2361 = vsel %vm1865, %v2197, 0.0
  %2362 = vadd.xlane.f32.xlu0 %v2361
  %v2363 = vpop.xlane.xlu0 %2362
  %v2364 = vsel %vm1865, %v2199, 0.0
  %2365 = vadd.xlane.f32.xlu0 %v2364
  %v2366 = vpop.xlane.xlu0 %2365
  %v2367 = vsel %vm1865, %v2201, 0.0
  %2368 = vadd.xlane.f32.xlu0 %v2367
  %v2369 = vpop.xlane.xlu0 %2368
  %v2370 = vsel %vm1865, %v2203, 0.0
  %2371 = vadd.xlane.f32.xlu0 %v2370
  %v2372 = vpop.xlane.xlu0 %2371
  %v2373 = vsel %vm1865, %v2205, 0.0
  %2374 = vadd.xlane.f32.xlu0 %v2373
  %v2375 = vpop.xlane.xlu0 %2374
  %v2376 = vsel %vm1865, %v2207, 0.0
  %2377 = vadd.xlane.f32.xlu0 %v2376
  %v2378 = vpop.xlane.xlu0 %2377
  %v2379 = vsel %vm1865, %v2209, 0.0
  %2380 = vadd.xlane.f32.xlu0 %v2379
  %v2381 = vpop.xlane.xlu0 %2380
  %v2382 = vsel %vm1865, %v2211, 0.0
  %2383 = vadd.xlane.f32.xlu0 %v2382
  %v2384 = vpop.xlane.xlu0 %2383
  %v2385 = vsel %vm1865, %v2213, 0.0
  %2386 = vadd.xlane.f32.xlu0 %v2385
  %v2387 = vpop.xlane.xlu0 %2386
  %v2388 = vsel %vm1865, %v2215, 0.0
  %2389 = vadd.xlane.f32.xlu0 %v2388
  %v2390 = vpop.xlane.xlu0 %2389
  %v2391 = vsel %vm1865, %v2217, 0.0
  %2392 = vadd.xlane.f32.xlu0 %v2391
  %v2393 = vpop.xlane.xlu0 %2392
  %v2394 = vsel %vm1865, %v2219, 0.0
  %2395 = vadd.xlane.f32.xlu0 %v2394
  %v2396 = vpop.xlane.xlu0 %2395
  %v2397 = vsel %vm1865, %v2221, 0.0
  %2398 = vadd.xlane.f32.xlu0 %v2397
  %v2399 = vpop.xlane.xlu0 %2398
  %v2400 = vsel %vm1865, %v2223, 0.0
  %2401 = vadd.xlane.f32.xlu0 %v2400
  %v2402 = vpop.xlane.xlu0 %2401
  %v2403 = vsel %vm1865, %v2225, 0.0
  %2404 = vadd.xlane.f32.xlu0 %v2403
  %v2405 = vpop.xlane.xlu0 %2404
  %v2406 = vsel %vm1865, %v2227, 0.0
  %2407 = vadd.xlane.f32.xlu0 %v2406
  %v2408 = vpop.xlane.xlu0 %2407
  %v2409 = vsel %vm1865, %v2229, 0.0
  %2410 = vadd.xlane.f32.xlu0 %v2409
  %v2411 = vpop.xlane.xlu0 %2410
  %v2412 = vsel %vm1865, %v2231, 0.0
  %2413 = vadd.xlane.f32.xlu0 %v2412
  %v2414 = vpop.xlane.xlu0 %2413
  %v2415 = vsel %vm1865, %v2233, 0.0
  %2416 = vadd.xlane.f32.xlu0 %v2415
  %v2417 = vpop.xlane.xlu0 %2416
  %v2418 = vsel %vm1865, %v2235, 0.0
  %2419 = vadd.xlane.f32.xlu0 %v2418
  %v2420 = vpop.xlane.xlu0 %2419
  %v2421 = vsel %vm1865, %v2237, 0.0
  %2422 = vadd.xlane.f32.xlu0 %v2421
  %v2423 = vpop.xlane.xlu0 %2422
  %v2424 = vsel %vm1865, %v2239, 0.0
  %2425 = vadd.xlane.f32.xlu0 %v2424
  %v2426 = vpop.xlane.xlu0 %2425
  %v2427 = vsel %vm1865, %v2241, 0.0
  %2428 = vadd.xlane.f32.xlu0 %v2427
  %v2429 = vpop.xlane.xlu0 %2428
  %v2430 = vsel %vm1865, %v2243, 0.0
  %2431 = vadd.xlane.f32.xlu0 %v2430
  %v2432 = vpop.xlane.xlu0 %2431
  %v2433 = vsel %vm1865, %v2245, 0.0
  %2434 = vadd.xlane.f32.xlu0 %v2433
  %v2435 = vpop.xlane.xlu0 %2434
  %v2436 = vsel %vm1865, %v2247, 0.0
  %2437 = vadd.xlane.f32.xlu0 %v2436
  %v2438 = vpop.xlane.xlu0 %2437
  %v2439 = vsel %vm1865, %v2249, 0.0
  %2440 = vadd.xlane.f32.xlu0 %v2439
  %v2441 = vpop.xlane.xlu0 %2440
  %v2442 = vrcp.pop %v2252
  %v2443 = vrcp.pop %v2255
  %v2444 = vrcp.pop %v2258
  %v2445 = vrcp.pop %v2261
  %v2446 = vrcp.pop %v2264
  %v2447 = vrcp.pop %v2267
  %v2448 = vrcp.pop %v2270
  %v2449 = vrcp.pop %v2273
  %v2450 = vrcp.pop %v2276
  %v2451 = vrcp.pop %v2279
  %v2452 = vrcp.pop %v2282
  %v2453 = vrcp.pop %v2285
  %v2454 = vrcp.pop %v2288
  %v2455 = vrcp.pop %v2291
  %v2456 = vrcp.pop %v2294
  %v2457 = vrcp.pop %v2297
  %v2458 = vrcp.pop %v2300
  %v2459 = vrcp.pop %v2303
  %v2460 = vrcp.pop %v2306
  %v2461 = vrcp.pop %v2309
  %v2462 = vrcp.pop %v2312
  %v2463 = vrcp.pop %v2315
  %v2464 = vrcp.pop %v2318
  %v2465 = vrcp.pop %v2321
  %v2466 = vrcp.pop %v2324
  %v2467 = vrcp.pop %v2327
  %v2468 = vrcp.pop %v2330
  %v2469 = vrcp.pop %v2333
  %v2470 = vrcp.pop %v2336
  %v2471 = vrcp.pop %v2339
  %v2472 = vrcp.pop %v2342
  %v2473 = vrcp.pop %v2345
  %v2474 = vrcp.pop %v2348
  %v2475 = vrcp.pop %v2351
  %v2476 = vrcp.pop %v2354
  %v2477 = vrcp.pop %v2357
  %v2478 = vrcp.pop %v2360
  %v2479 = vrcp.pop %v2363
  %v2480 = vrcp.pop %v2366
  %v2481 = vrcp.pop %v2369
  %v2482 = vrcp.pop %v2372
  %v2483 = vrcp.pop %v2375
  %v2484 = vrcp.pop %v2378
  %v2485 = vrcp.pop %v2381
  %v2486 = vrcp.pop %v2384
  %v2487 = vrcp.pop %v2387
  %v2488 = vrcp.pop %v2390
  %v2489 = vrcp.pop %v2393
  %v2490 = vrcp.pop %v2396
  %v2491 = vrcp.pop %v2399
  %v2492 = vrcp.pop %v2402
  %v2493 = vrcp.pop %v2405
  %v2494 = vrcp.pop %v2408
  %v2495 = vrcp.pop %v2411
  %v2496 = vrcp.pop %v2414
  %v2497 = vrcp.pop %v2417
  %v2498 = vrcp.pop %v2420
  %v2499 = vrcp.pop %v2423
  %v2500 = vrcp.pop %v2426
  %v2501 = vrcp.pop %v2429
  %v2502 = vrcp.pop %v2432
  %v2503 = vrcp.pop %v2435
  %v2504 = vrcp.pop %v2438
  %v2505 = vrcp.pop %v2441
  %v2506 = vmul.f32 %v2123, %v2442
  %v2507 = vmul.f32 %v2125, %v2443
  %v2508 = vmul.f32 %v2127, %v2444
  %v2509 = vmul.f32 %v2129, %v2445
  %v2510 = vmul.f32 %v2131, %v2446
  %v2511 = vmul.f32 %v2133, %v2447
  %v2512 = vmul.f32 %v2135, %v2448
  %v2513 = vmul.f32 %v2137, %v2449
  %v2514 = vmul.f32 %v2139, %v2450
  %v2515 = vmul.f32 %v2141, %v2451
  %v2516 = vmul.f32 %v2143, %v2452
  %v2517 = vmul.f32 %v2145, %v2453
  %v2518 = vmul.f32 %v2147, %v2454
  %v2519 = vmul.f32 %v2149, %v2455
  %v2520 = vmul.f32 %v2151, %v2456
  %v2521 = vmul.f32 %v2153, %v2457
  %v2522 = vmul.f32 %v2155, %v2458
  %v2523 = vmul.f32 %v2157, %v2459
  %v2524 = vmul.f32 %v2159, %v2460
  %v2525 = vmul.f32 %v2161, %v2461
  %v2526 = vmul.f32 %v2163, %v2462
  %v2527 = vmul.f32 %v2165, %v2463
  %v2528 = vmul.f32 %v2167, %v2464
  %v2529 = vmul.f32 %v2169, %v2465
  %v2530 = vmul.f32 %v2171, %v2466
  %v2531 = vmul.f32 %v2173, %v2467
  %v2532 = vmul.f32 %v2175, %v2468
  %v2533 = vmul.f32 %v2177, %v2469
  %v2534 = vmul.f32 %v2179, %v2470
  %v2535 = vmul.f32 %v2181, %v2471
  %v2536 = vmul.f32 %v2183, %v2472
  %v2537 = vmul.f32 %v2185, %v2473
  %v2538 = vmul.f32 %v2187, %v2474
  %v2539 = vmul.f32 %v2189, %v2475
  %v2540 = vmul.f32 %v2191, %v2476
  %v2541 = vmul.f32 %v2193, %v2477
  %v2542 = vmul.f32 %v2195, %v2478
  %v2543 = vmul.f32 %v2197, %v2479
  %v2544 = vmul.f32 %v2199, %v2480
  %v2545 = vmul.f32 %v2201, %v2481
  %v2546 = vmul.f32 %v2203, %v2482
  %v2547 = vmul.f32 %v2205, %v2483
  %v2548 = vmul.f32 %v2207, %v2484
  %v2549 = vmul.f32 %v2209, %v2485
  %v2550 = vmul.f32 %v2211, %v2486
  %v2551 = vmul.f32 %v2213, %v2487
  %v2552 = vmul.f32 %v2215, %v2488
  %v2553 = vmul.f32 %v2217, %v2489
  %v2554 = vmul.f32 %v2219, %v2490
  %v2555 = vmul.f32 %v2221, %v2491
  %v2556 = vmul.f32 %v2223, %v2492
  %v2557 = vmul.f32 %v2225, %v2493
  %v2558 = vmul.f32 %v2227, %v2494
  %v2559 = vmul.f32 %v2229, %v2495
  %v2560 = vmul.f32 %v2231, %v2496
  %v2561 = vmul.f32 %v2233, %v2497
  %v2562 = vmul.f32 %v2235, %v2498
  %v2563 = vmul.f32 %v2237, %v2499
  %v2564 = vmul.f32 %v2239, %v2500
  %v2565 = vmul.f32 %v2241, %v2501
  %v2566 = vmul.f32 %v2243, %v2502
  %v2567 = vmul.f32 %v2245, %v2503
  %v2568 = vmul.f32 %v2247, %v2504
  %v2569 = vmul.f32 %v2249, %v2505
  %v2571 = vsel %vm1865, %v2506, 0
  %v2574 = vsel %vm1865, %v2507, 0
  %v2577 = vsel %vm1865, %v2508, 0
  %v2580 = vsel %vm1865, %v2509, 0
  %v2583 = vsel %vm1865, %v2510, 0
  %v2586 = vsel %vm1865, %v2511, 0
  %v2589 = vsel %vm1865, %v2512, 0
  %v2592 = vsel %vm1865, %v2513, 0
  %2594 = vmatprep.subr.mxu0 0.0
  %2595 = vmatpush1.msra.mxu0 %v441
  %2596 = vmatprep.subr.mxu0 0.0
  %2597 = vmatpush1.msra.mxu0 0.0
  %2598 = vmatprep.subr.mxu0 0.0
  %2599 = vmatpush1.msra.mxu0 0.0
  %2600 = vmatprep.subr.mxu0 0.0
  %2601 = vmatpush1.msra.mxu0 0.0
  %2602 = vmatprep.subr.mxu0 0.0
  %2603 = vmatpush1.msra.mxu0 0.0
  %2604 = vmatprep.subr.mxu0 0.0
  %2605 = vmatpush1.msra.mxu0 0.0
  %2606 = vmatprep.subr.mxu0 0.0
  %2607 = vmatpush1.msra.mxu0 0.0
  %2608 = vmatprep.subr.mxu0 0.0
  %2609 = vmatpush1.msra.mxu0 0.0
  %2610 = vmatprep.subr.mxu0 0.0
  %2611 = vmatpush1.msra.mxu0 0.0
  %2612 = vmatprep.subr.mxu0 0.0
  %2613 = vmatpush1.msra.mxu0 0.0
  %2614 = vmatprep.subr.mxu0 0.0
  %2615 = vmatpush1.msra.mxu0 0.0
  %2616 = vmatprep.subr.mxu0 0.0
  %2617 = vmatpush1.msra.mxu0 0.0
  %2618 = vmatprep.subr.mxu0 0.0
  %2619 = vmatpush1.msra.mxu0 0.0
  %2620 = vmatprep.subr.mxu0 0.0
  %2621 = vmatpush1.msra.mxu0 0.0
  %2622 = vmatprep.subr.mxu0 0.0
  %2623 = vmatpush1.msra.mxu0 0.0
  %2624 = vmatprep.subr.mxu0 0.0
  %2625 = vmatpush1.msra.mxu0 0.0
  %2626 = vmatprep.subr.mxu0 0.0
  %2627 = vmatpush1.msra.mxu0 0.0
  %2628 = vmatprep.subr.mxu0 0.0
  %2629 = vmatpush1.msra.mxu0 0.0
  %2630 = vmatprep.subr.mxu0 0.0
  %2631 = vmatpush1.msra.mxu0 0.0
  %2632 = vmatprep.subr.mxu0 0.0
  %2633 = vmatpush1.msra.mxu0 0.0
  %2634 = vmatprep.subr.mxu0 0.0
  %2635 = vmatpush1.msra.mxu0 0.0
  %2636 = vmatprep.subr.mxu0 0.0
  %2637 = vmatpush1.msra.mxu0 0.0
  %2638 = vmatprep.subr.mxu0 0.0
  %2639 = vmatpush1.msra.mxu0 0.0
  %2640 = vmatprep.subr.mxu0 0.0
  %2641 = vmatpush1.msra.mxu0 0.0
  %2642 = vmatprep.subr.mxu0 0.0
  %2643 = vmatpush1.msra.mxu0 0.0
  %2644 = vmatprep.subr.mxu0 0.0
  %2645 = vmatpush1.msra.mxu0 0.0
  %2646 = vmatprep.subr.mxu0 0.0
  %2647 = vmatpush1.msra.mxu0 0.0
  %2648 = vmatprep.subr.mxu0 0.0
  %2649 = vmatpush1.msra.mxu0 0.0
  %2650 = vmatprep.subr.mxu0 0.0
  %2651 = vmatpush1.msra.mxu0 0.0
  %2652 = vmatprep.subr.mxu0 0.0
  %2653 = vmatpush1.msra.mxu0 0.0
  %2654 = vmatprep.subr.mxu0 0.0
  %2655 = vmatpush1.msra.mxu0 0.0
  %2656 = vmatprep.subr.mxu0 0.0
  %2657 = vmatpush1.msra.mxu0 0.0
  %2658 = vmatprep.mubr.f32.mxu0 0.0
  %2659 = vmatmul.mubr.f32.gmra.mrb[0].mxu0 %v2571
  %v2660 = vpop.f32.mrb[0].mxu0
  %v2661 = vadd.f32 0.0, %v2660
  %v2662 = vpop.f32.mrb[0].mxu0
  %2663 = vmatprep.mubr.f32.mxu0 0.0
  %2664 = vmatmul.mubr.f32.gmra.mrb[0].mxu0 %v2574
  %v2665 = vpop.f32.mrb[0].mxu0
  %v2666 = vadd.f32 0.0, %v2665
  %v2667 = vpop.f32.mrb[0].mxu0
  %2668 = vmatprep.mubr.f32.mxu0 0.0
  %2669 = vmatmul.mubr.f32.gmra.mrb[0].mxu0 %v2577
  %v2670 = vpop.f32.mrb[0].mxu0
  %v2671 = vadd.f32 0.0, %v2670
  %v2672 = vpop.f32.mrb[0].mxu0
  %2673 = vmatprep.mubr.f32.mxu0 0.0
  %2674 = vmatmul.mubr.f32.gmra.mrb[0].mxu0 %v2580
  %v2675 = vpop.f32.mrb[0].mxu0
  %v2676 = vadd.f32 0.0, %v2675
  %v2677 = vpop.f32.mrb[0].mxu0
  %2678 = vmatprep.mubr.f32.mxu0 0.0
  %2679 = vmatmul.mubr.f32.gmra.mrb[0].mxu0 %v2583
  %v2680 = vpop.f32.mrb[0].mxu0
  %v2681 = vadd.f32 0.0, %v2680
  %v2682 = vpop.f32.mrb[0].mxu0
  %2683 = vmatprep.mubr.f32.mxu0 0.0
  %2684 = vmatmul.mubr.f32.gmra.mrb[0].mxu0 %v2586
  %v2685 = vpop.f32.mrb[0].mxu0
  %v2686 = vadd.f32 0.0, %v2685
  %v2687 = vpop.f32.mrb[0].mxu0
  %2688 = vmatprep.mubr.f32.mxu0 0.0
  %2689 = vmatmul.mubr.f32.gmra.mrb[0].mxu0 %v2589
  %v2690 = vpop.f32.mrb[0].mxu0
  %v2691 = vadd.f32 0.0, %v2690
  %v2692 = vpop.f32.mrb[0].mxu0
  %2693 = vmatprep.mubr.f32.mxu0 0.0
  %2694 = vmatmul.mubr.f32.gmra.mrb[0].mxu0 %v2592
  %v2695 = vpop.f32.mrb[0].mxu0
  %v2696 = vadd.f32 0.0, %v2695
  %v2697 = vpop.f32.mrb[0].mxu0
  %2698 = vdwg.mxu0
  %v2700 = vsel %vm1865, %v2514, 0
  %v2703 = vsel %vm1865, %v2515, 0
  %v2706 = vsel %vm1865, %v2516, 0
  %v2709 = vsel %vm1865, %v2517, 0
  %v2712 = vsel %vm1865, %v2518, 0
  %v2715 = vsel %vm1865, %v2519, 0
  %v2718 = vsel %vm1865, %v2520, 0
  %v2721 = vsel %vm1865, %v2521, 0
  %2723 = vmatprep.subr.mxu0 0.0
  %2724 = vmatpush1.msra.mxu0 %v446
  %2725 = vmatprep.subr.mxu0 0.0
  %2726 = vmatpush1.msra.mxu0 0.0
  %2727 = vmatprep.subr.mxu0 0.0
  %2728 = vmatpush1.msra.mxu0 0.0
  %2729 = vmatprep.subr.mxu0 0.0
  %2730 = vmatpush1.msra.mxu0 0.0
  %2731 = vmatprep.subr.mxu0 0.0
  %2732 = vmatpush1.msra.mxu0 0.0
  %2733 = vmatprep.subr.mxu0 0.0
  %2734 = vmatpush1.msra.mxu0 0.0
  %2735 = vmatprep.subr.mxu0 0.0
  %2736 = vmatpush1.msra.mxu0 0.0
  %2737 = vmatprep.subr.mxu0 0.0
  %2738 = vmatpush1.msra.mxu0 0.0
  %2739 = vmatprep.subr.mxu0 0.0
  %2740 = vmatpush1.msra.mxu0 0.0
  %2741 = vmatprep.subr.mxu0 0.0
  %2742 = vmatpush1.msra.mxu0 0.0
  %2743 = vmatprep.subr.mxu0 0.0
  %2744 = vmatpush1.msra.mxu0 0.0
  %2745 = vmatprep.subr.mxu0 0.0
  %2746 = vmatpush1.msra.mxu0 0.0
  %2747 = vmatprep.subr.mxu0 0.0
  %2748 = vmatpush1.msra.mxu0 0.0
  %2749 = vmatprep.subr.mxu0 0.0
  %2750 = vmatpush1.msra.mxu0 0.0
  %2751 = vmatprep.subr.mxu0 0.0
  %2752 = vmatpush1.msra.mxu0 0.0
  %2753 = vmatprep.subr.mxu0 0.0
  %2754 = vmatpush1.msra.mxu0 0.0
  %2755 = vmatprep.subr.mxu0 0.0
  %2756 = vmatpush1.msra.mxu0 0.0
  %2757 = vmatprep.subr.mxu0 0.0
  %2758 = vmatpush1.msra.mxu0 0.0
  %2759 = vmatprep.subr.mxu0 0.0
  %2760 = vmatpush1.msra.mxu0 0.0
  %2761 = vmatprep.subr.mxu0 0.0
  %2762 = vmatpush1.msra.mxu0 0.0
  %2763 = vmatprep.subr.mxu0 0.0
  %2764 = vmatpush1.msra.mxu0 0.0
  %2765 = vmatprep.subr.mxu0 0.0
  %2766 = vmatpush1.msra.mxu0 0.0
  %2767 = vmatprep.subr.mxu0 0.0
  %2768 = vmatpush1.msra.mxu0 0.0
  %2769 = vmatprep.subr.mxu0 0.0
  %2770 = vmatpush1.msra.mxu0 0.0
  %2771 = vmatprep.subr.mxu0 0.0
  %2772 = vmatpush1.msra.mxu0 0.0
  %2773 = vmatprep.subr.mxu0 0.0
  %2774 = vmatpush1.msra.mxu0 0.0
  %2775 = vmatprep.subr.mxu0 0.0
  %2776 = vmatpush1.msra.mxu0 0.0
  %2777 = vmatprep.subr.mxu0 0.0
  %2778 = vmatpush1.msra.mxu0 0.0
  %2779 = vmatprep.subr.mxu0 0.0
  %2780 = vmatpush1.msra.mxu0 0.0
  %2781 = vmatprep.subr.mxu0 0.0
  %2782 = vmatpush1.msra.mxu0 0.0
  %2783 = vmatprep.subr.mxu0 0.0
  %2784 = vmatpush1.msra.mxu0 0.0
  %2785 = vmatprep.subr.mxu0 0.0
  %2786 = vmatpush1.msra.mxu0 0.0
  %2787 = vmatprep.mubr.f32.mxu0 0.0
  %2788 = vmatmul.mubr.f32.gmra.mrb[0].mxu0 %v2700
  %v2789 = vpop.f32.mrb[0].mxu0
  %v2790 = vadd.f32 0.0, %v2789
  %v2791 = vpop.f32.mrb[0].mxu0
  %2792 = vmatprep.mubr.f32.mxu0 0.0
  %2793 = vmatmul.mubr.f32.gmra.mrb[0].mxu0 %v2703
  %v2794 = vpop.f32.mrb[0].mxu0
  %v2795 = vadd.f32 0.0, %v2794
  %v2796 = vpop.f32.mrb[0].mxu0
  %2797 = vmatprep.mubr.f32.mxu0 0.0
  %2798 = vmatmul.mubr.f32.gmra.mrb[0].mxu0 %v2706
  %v2799 = vpop.f32.mrb[0].mxu0
  %v2800 = vadd.f32 0.0, %v2799
  %v2801 = vpop.f32.mrb[0].mxu0
  %2802 = vmatprep.mubr.f32.mxu0 0.0
  %2803 = vmatmul.mubr.f32.gmra.mrb[0].mxu0 %v2709
  %v2804 = vpop.f32.mrb[0].mxu0
  %v2805 = vadd.f32 0.0, %v2804
  %v2806 = vpop.f32.mrb[0].mxu0
  %2807 = vmatprep.mubr.f32.mxu0 0.0
  %2808 = vmatmul.mubr.f32.gmra.mrb[0].mxu0 %v2712
  %v2809 = vpop.f32.mrb[0].mxu0
  %v2810 = vadd.f32 0.0, %v2809
  %v2811 = vpop.f32.mrb[0].mxu0
  %2812 = vmatprep.mubr.f32.mxu0 0.0
  %2813 = vmatmul.mubr.f32.gmra.mrb[0].mxu0 %v2715
  %v2814 = vpop.f32.mrb[0].mxu0
  %v2815 = vadd.f32 0.0, %v2814
  %v2816 = vpop.f32.mrb[0].mxu0
  %2817 = vmatprep.mubr.f32.mxu0 0.0
  %2818 = vmatmul.mubr.f32.gmra.mrb[0].mxu0 %v2718
  %v2819 = vpop.f32.mrb[0].mxu0
  %v2820 = vadd.f32 0.0, %v2819
  %v2821 = vpop.f32.mrb[0].mxu0
  %2822 = vmatprep.mubr.f32.mxu0 0.0
  %2823 = vmatmul.mubr.f32.gmra.mrb[0].mxu0 %v2721
  %v2824 = vpop.f32.mrb[0].mxu0
  %v2825 = vadd.f32 0.0, %v2824
  %v2826 = vpop.f32.mrb[0].mxu0
  %2827 = vdwg.mxu0
  %v2829 = vsel %vm1865, %v2522, 0
  %v2832 = vsel %vm1865, %v2523, 0
  %v2835 = vsel %vm1865, %v2524, 0
  %v2838 = vsel %vm1865, %v2525, 0
  %v2841 = vsel %vm1865, %v2526, 0
  %v2844 = vsel %vm1865, %v2527, 0
  %v2847 = vsel %vm1865, %v2528, 0
  %v2850 = vsel %vm1865, %v2529, 0
  %2852 = vmatprep.subr.mxu0 0.0
  %2853 = vmatpush1.msra.mxu0 %v451
  %2854 = vmatprep.subr.mxu0 0.0
  %2855 = vmatpush1.msra.mxu0 0.0
  %2856 = vmatprep.subr.mxu0 0.0
  %2857 = vmatpush1.msra.mxu0 0.0
  %2858 = vmatprep.subr.mxu0 0.0
  %2859 = vmatpush1.msra.mxu0 0.0
  %2860 = vmatprep.subr.mxu0 0.0
  %2861 = vmatpush1.msra.mxu0 0.0
  %2862 = vmatprep.subr.mxu0 0.0
  %2863 = vmatpush1.msra.mxu0 0.0
  %2864 = vmatprep.subr.mxu0 0.0
  %2865 = vmatpush1.msra.mxu0 0.0
  %2866 = vmatprep.subr.mxu0 0.0
  %2867 = vmatpush1.msra.mxu0 0.0
  %2868 = vmatprep.subr.mxu0 0.0
  %2869 = vmatpush1.msra.mxu0 0.0
  %2870 = vmatprep.subr.mxu0 0.0
  %2871 = vmatpush1.msra.mxu0 0.0
  %2872 = vmatprep.subr.mxu0 0.0
  %2873 = vmatpush1.msra.mxu0 0.0
  %2874 = vmatprep.subr.mxu0 0.0
  %2875 = vmatpush1.msra.mxu0 0.0
  %2876 = vmatprep.subr.mxu0 0.0
  %2877 = vmatpush1.msra.mxu0 0.0
  %2878 = vmatprep.subr.mxu0 0.0
  %2879 = vmatpush1.msra.mxu0 0.0
  %2880 = vmatprep.subr.mxu0 0.0
  %2881 = vmatpush1.msra.mxu0 0.0
  %2882 = vmatprep.subr.mxu0 0.0
  %2883 = vmatpush1.msra.mxu0 0.0
  %2884 = vmatprep.subr.mxu0 0.0
  %2885 = vmatpush1.msra.mxu0 0.0
  %2886 = vmatprep.subr.mxu0 0.0
  %2887 = vmatpush1.msra.mxu0 0.0
  %2888 = vmatprep.subr.mxu0 0.0
  %2889 = vmatpush1.msra.mxu0 0.0
  %2890 = vmatprep.subr.mxu0 0.0
  %2891 = vmatpush1.msra.mxu0 0.0
  %2892 = vmatprep.subr.mxu0 0.0
  %2893 = vmatpush1.msra.mxu0 0.0
  %2894 = vmatprep.subr.mxu0 0.0
  %2895 = vmatpush1.msra.mxu0 0.0
  %2896 = vmatprep.subr.mxu0 0.0
  %2897 = vmatpush1.msra.mxu0 0.0
  %2898 = vmatprep.subr.mxu0 0.0
  %2899 = vmatpush1.msra.mxu0 0.0
  %2900 = vmatprep.subr.mxu0 0.0
  %2901 = vmatpush1.msra.mxu0 0.0
  %2902 = vmatprep.subr.mxu0 0.0
  %2903 = vmatpush1.msra.mxu0 0.0
  %2904 = vmatprep.subr.mxu0 0.0
  %2905 = vmatpush1.msra.mxu0 0.0
  %2906 = vmatprep.subr.mxu0 0.0
  %2907 = vmatpush1.msra.mxu0 0.0
  %2908 = vmatprep.subr.mxu0 0.0
  %2909 = vmatpush1.msra.mxu0 0.0
  %2910 = vmatprep.subr.mxu0 0.0
  %2911 = vmatpush1.msra.mxu0 0.0
  %2912 = vmatprep.subr.mxu0 0.0
  %2913 = vmatpush1.msra.mxu0 0.0
  %2914 = vmatprep.subr.mxu0 0.0
  %2915 = vmatpush1.msra.mxu0 0.0
  %2916 = vmatprep.mubr.f32.mxu0 0.0
  %2917 = vmatmul.mubr.f32.gmra.mrb[0].mxu0 %v2829
  %v2918 = vpop.f32.mrb[0].mxu0
  %v2919 = vadd.f32 0.0, %v2918
  %v2920 = vpop.f32.mrb[0].mxu0
  %2921 = vmatprep.mubr.f32.mxu0 0.0
  %2922 = vmatmul.mubr.f32.gmra.mrb[0].mxu0 %v2832
  %v2923 = vpop.f32.mrb[0].mxu0
  %v2924 = vadd.f32 0.0, %v2923
  %v2925 = vpop.f32.mrb[0].mxu0
  %2926 = vmatprep.mubr.f32.mxu0 0.0
  %2927 = vmatmul.mubr.f32.gmra.mrb[0].mxu0 %v2835
  %v2928 = vpop.f32.mrb[0].mxu0
  %v2929 = vadd.f32 0.0, %v2928
  %v2930 = vpop.f32.mrb[0].mxu0
  %2931 = vmatprep.mubr.f32.mxu0 0.0
  %2932 = vmatmul.mubr.f32.gmra.mrb[0].mxu0 %v2838
  %v2933 = vpop.f32.mrb[0].mxu0
  %v2934 = vadd.f32 0.0, %v2933
  %v2935 = vpop.f32.mrb[0].mxu0
  %2936 = vmatprep.mubr.f32.mxu0 0.0
  %2937 = vmatmul.mubr.f32.gmra.mrb[0].mxu0 %v2841
  %v2938 = vpop.f32.mrb[0].mxu0
  %v2939 = vadd.f32 0.0, %v2938
  %v2940 = vpop.f32.mrb[0].mxu0
  %2941 = vmatprep.mubr.f32.mxu0 0.0
  %2942 = vmatmul.mubr.f32.gmra.mrb[0].mxu0 %v2844
  %v2943 = vpop.f32.mrb[0].mxu0
  %v2944 = vadd.f32 0.0, %v2943
  %v2945 = vpop.f32.mrb[0].mxu0
  %2946 = vmatprep.mubr.f32.mxu0 0.0
  %2947 = vmatmul.mubr.f32.gmra.mrb[0].mxu0 %v2847
  %v2948 = vpop.f32.mrb[0].mxu0
  %v2949 = vadd.f32 0.0, %v2948
  %v2950 = vpop.f32.mrb[0].mxu0
  %2951 = vmatprep.mubr.f32.mxu0 0.0
  %2952 = vmatmul.mubr.f32.gmra.mrb[0].mxu0 %v2850
  %v2953 = vpop.f32.mrb[0].mxu0
  %v2954 = vadd.f32 0.0, %v2953
  %v2955 = vpop.f32.mrb[0].mxu0
  %2956 = vdwg.mxu0
  %v2958 = vsel %vm1865, %v2530, 0
  %v2961 = vsel %vm1865, %v2531, 0
  %v2964 = vsel %vm1865, %v2532, 0
  %v2967 = vsel %vm1865, %v2533, 0
  %v2970 = vsel %vm1865, %v2534, 0
  %v2973 = vsel %vm1865, %v2535, 0
  %v2976 = vsel %vm1865, %v2536, 0
  %v2979 = vsel %vm1865, %v2537, 0
  %2981 = vmatprep.subr.mxu0 0.0
  %2982 = vmatpush1.msra.mxu0 %v456
  %2983 = vmatprep.subr.mxu0 0.0
  %2984 = vmatpush1.msra.mxu0 0.0
  %2985 = vmatprep.subr.mxu0 0.0
  %2986 = vmatpush1.msra.mxu0 0.0
  %2987 = vmatprep.subr.mxu0 0.0
  %2988 = vmatpush1.msra.mxu0 0.0
  %2989 = vmatprep.subr.mxu0 0.0
  %2990 = vmatpush1.msra.mxu0 0.0
  %2991 = vmatprep.subr.mxu0 0.0
  %2992 = vmatpush1.msra.mxu0 0.0
  %2993 = vmatprep.subr.mxu0 0.0
  %2994 = vmatpush1.msra.mxu0 0.0
  %2995 = vmatprep.subr.mxu0 0.0
  %2996 = vmatpush1.msra.mxu0 0.0
  %2997 = vmatprep.subr.mxu0 0.0
  %2998 = vmatpush1.msra.mxu0 0.0
  %2999 = vmatprep.subr.mxu0 0.0
  %3000 = vmatpush1.msra.mxu0 0.0
  %3001 = vmatprep.subr.mxu0 0.0
  %3002 = vmatpush1.msra.mxu0 0.0
  %3003 = vmatprep.subr.mxu0 0.0
  %3004 = vmatpush1.msra.mxu0 0.0
  %3005 = vmatprep.subr.mxu0 0.0
  %3006 = vmatpush1.msra.mxu0 0.0
  %3007 = vmatprep.subr.mxu0 0.0
  %3008 = vmatpush1.msra.mxu0 0.0
  %3009 = vmatprep.subr.mxu0 0.0
  %3010 = vmatpush1.msra.mxu0 0.0
  %3011 = vmatprep.subr.mxu0 0.0
  %3012 = vmatpush1.msra.mxu0 0.0
  %3013 = vmatprep.subr.mxu0 0.0
  %3014 = vmatpush1.msra.mxu0 0.0
  %3015 = vmatprep.subr.mxu0 0.0
  %3016 = vmatpush1.msra.mxu0 0.0
  %3017 = vmatprep.subr.mxu0 0.0
  %3018 = vmatpush1.msra.mxu0 0.0
  %3019 = vmatprep.subr.mxu0 0.0
  %3020 = vmatpush1.msra.mxu0 0.0
  %3021 = vmatprep.subr.mxu0 0.0
  %3022 = vmatpush1.msra.mxu0 0.0
  %3023 = vmatprep.subr.mxu0 0.0
  %3024 = vmatpush1.msra.mxu0 0.0
  %3025 = vmatprep.subr.mxu0 0.0
  %3026 = vmatpush1.msra.mxu0 0.0
  %3027 = vmatprep.subr.mxu0 0.0
  %3028 = vmatpush1.msra.mxu0 0.0
  %3029 = vmatprep.subr.mxu0 0.0
  %3030 = vmatpush1.msra.mxu0 0.0
  %3031 = vmatprep.subr.mxu0 0.0
  %3032 = vmatpush1.msra.mxu0 0.0
  %3033 = vmatprep.subr.mxu0 0.0
  %3034 = vmatpush1.msra.mxu0 0.0
  %3035 = vmatprep.subr.mxu0 0.0
  %3036 = vmatpush1.msra.mxu0 0.0
  %3037 = vmatprep.subr.mxu0 0.0
  %3038 = vmatpush1.msra.mxu0 0.0
  %3039 = vmatprep.subr.mxu0 0.0
  %3040 = vmatpush1.msra.mxu0 0.0
  %3041 = vmatprep.subr.mxu0 0.0
  %3042 = vmatpush1.msra.mxu0 0.0
  %3043 = vmatprep.subr.mxu0 0.0
  %3044 = vmatpush1.msra.mxu0 0.0
  %3045 = vmatprep.mubr.f32.mxu0 0.0
  %3046 = vmatmul.mubr.f32.gmra.mrb[0].mxu0 %v2958
  %v3047 = vpop.f32.mrb[0].mxu0
  %v3048 = vadd.f32 0.0, %v3047
  %v3049 = vpop.f32.mrb[0].mxu0
  %3050 = vmatprep.mubr.f32.mxu0 0.0
  %3051 = vmatmul.mubr.f32.gmra.mrb[0].mxu0 %v2961
  %v3052 = vpop.f32.mrb[0].mxu0
  %v3053 = vadd.f32 0.0, %v3052
  %v3054 = vpop.f32.mrb[0].mxu0
  %3055 = vmatprep.mubr.f32.mxu0 0.0
  %3056 = vmatmul.mubr.f32.gmra.mrb[0].mxu0 %v2964
  %v3057 = vpop.f32.mrb[0].mxu0
  %v3058 = vadd.f32 0.0, %v3057
  %v3059 = vpop.f32.mrb[0].mxu0
  %3060 = vmatprep.mubr.f32.mxu0 0.0
  %3061 = vmatmul.mubr.f32.gmra.mrb[0].mxu0 %v2967
  %v3062 = vpop.f32.mrb[0].mxu0
  %v3063 = vadd.f32 0.0, %v3062
  %v3064 = vpop.f32.mrb[0].mxu0
  %3065 = vmatprep.mubr.f32.mxu0 0.0
  %3066 = vmatmul.mubr.f32.gmra.mrb[0].mxu0 %v2970
  %v3067 = vpop.f32.mrb[0].mxu0
  %v3068 = vadd.f32 0.0, %v3067
  %v3069 = vpop.f32.mrb[0].mxu0
  %3070 = vmatprep.mubr.f32.mxu0 0.0
  %3071 = vmatmul.mubr.f32.gmra.mrb[0].mxu0 %v2973
  %v3072 = vpop.f32.mrb[0].mxu0
  %v3073 = vadd.f32 0.0, %v3072
  %v3074 = vpop.f32.mrb[0].mxu0
  %3075 = vmatprep.mubr.f32.mxu0 0.0
  %3076 = vmatmul.mubr.f32.gmra.mrb[0].mxu0 %v2976
  %v3077 = vpop.f32.mrb[0].mxu0
  %v3078 = vadd.f32 0.0, %v3077
  %v3079 = vpop.f32.mrb[0].mxu0
  %3080 = vmatprep.mubr.f32.mxu0 0.0
  %3081 = vmatmul.mubr.f32.gmra.mrb[0].mxu0 %v2979
  %v3082 = vpop.f32.mrb[0].mxu0
  %v3083 = vadd.f32 0.0, %v3082
  %v3084 = vpop.f32.mrb[0].mxu0
  %3085 = vdwg.mxu0
  %v3087 = vsel %vm1865, %v2538, 0
  %v3090 = vsel %vm1865, %v2539, 0
  %v3093 = vsel %vm1865, %v2540, 0
  %v3096 = vsel %vm1865, %v2541, 0
  %v3099 = vsel %vm1865, %v2542, 0
  %v3102 = vsel %vm1865, %v2543, 0
  %v3105 = vsel %vm1865, %v2544, 0
  %v3108 = vsel %vm1865, %v2545, 0
  %3110 = vmatprep.subr.mxu0 0.0
  %3111 = vmatpush1.msra.mxu0 %v461
  %3112 = vmatprep.subr.mxu0 0.0
  %3113 = vmatpush1.msra.mxu0 0.0
  %3114 = vmatprep.subr.mxu0 0.0
  %3115 = vmatpush1.msra.mxu0 0.0
  %3116 = vmatprep.subr.mxu0 0.0
  %3117 = vmatpush1.msra.mxu0 0.0
  %3118 = vmatprep.subr.mxu0 0.0
  %3119 = vmatpush1.msra.mxu0 0.0
  %3120 = vmatprep.subr.mxu0 0.0
  %3121 = vmatpush1.msra.mxu0 0.0
  %3122 = vmatprep.subr.mxu0 0.0
  %3123 = vmatpush1.msra.mxu0 0.0
  %3124 = vmatprep.subr.mxu0 0.0
  %3125 = vmatpush1.msra.mxu0 0.0
  %3126 = vmatprep.subr.mxu0 0.0
  %3127 = vmatpush1.msra.mxu0 0.0
  %3128 = vmatprep.subr.mxu0 0.0
  %3129 = vmatpush1.msra.mxu0 0.0
  %3130 = vmatprep.subr.mxu0 0.0
  %3131 = vmatpush1.msra.mxu0 0.0
  %3132 = vmatprep.subr.mxu0 0.0
  %3133 = vmatpush1.msra.mxu0 0.0
  %3134 = vmatprep.subr.mxu0 0.0
  %3135 = vmatpush1.msra.mxu0 0.0
  %3136 = vmatprep.subr.mxu0 0.0
  %3137 = vmatpush1.msra.mxu0 0.0
  %3138 = vmatprep.subr.mxu0 0.0
  %3139 = vmatpush1.msra.mxu0 0.0
  %3140 = vmatprep.subr.mxu0 0.0
  %3141 = vmatpush1.msra.mxu0 0.0
  %3142 = vmatprep.subr.mxu0 0.0
  %3143 = vmatpush1.msra.mxu0 0.0
  %3144 = vmatprep.subr.mxu0 0.0
  %3145 = vmatpush1.msra.mxu0 0.0
  %3146 = vmatprep.subr.mxu0 0.0
  %3147 = vmatpush1.msra.mxu0 0.0
  %3148 = vmatprep.subr.mxu0 0.0
  %3149 = vmatpush1.msra.mxu0 0.0
  %3150 = vmatprep.subr.mxu0 0.0
  %3151 = vmatpush1.msra.mxu0 0.0
  %3152 = vmatprep.subr.mxu0 0.0
  %3153 = vmatpush1.msra.mxu0 0.0
  %3154 = vmatprep.subr.mxu0 0.0
  %3155 = vmatpush1.msra.mxu0 0.0
  %3156 = vmatprep.subr.mxu0 0.0
  %3157 = vmatpush1.msra.mxu0 0.0
  %3158 = vmatprep.subr.mxu0 0.0
  %3159 = vmatpush1.msra.mxu0 0.0
  %3160 = vmatprep.subr.mxu0 0.0
  %3161 = vmatpush1.msra.mxu0 0.0
  %3162 = vmatprep.subr.mxu0 0.0
  %3163 = vmatpush1.msra.mxu0 0.0
  %3164 = vmatprep.subr.mxu0 0.0
  %3165 = vmatpush1.msra.mxu0 0.0
  %3166 = vmatprep.subr.mxu0 0.0
  %3167 = vmatpush1.msra.mxu0 0.0
  %3168 = vmatprep.subr.mxu0 0.0
  %3169 = vmatpush1.msra.mxu0 0.0
  %3170 = vmatprep.subr.mxu0 0.0
  %3171 = vmatpush1.msra.mxu0 0.0
  %3172 = vmatprep.subr.mxu0 0.0
  %3173 = vmatpush1.msra.mxu0 0.0
  %3174 = vmatprep.mubr.f32.mxu0 0.0
  %3175 = vmatmul.mubr.f32.gmra.mrb[0].mxu0 %v3087
  %v3176 = vpop.f32.mrb[0].mxu0
  %v3177 = vadd.f32 0.0, %v3176
  %v3178 = vpop.f32.mrb[0].mxu0
  %3179 = vmatprep.mubr.f32.mxu0 0.0
  %3180 = vmatmul.mubr.f32.gmra.mrb[0].mxu0 %v3090
  %v3181 = vpop.f32.mrb[0].mxu0
  %v3182 = vadd.f32 0.0, %v3181
  %v3183 = vpop.f32.mrb[0].mxu0
  %3184 = vmatprep.mubr.f32.mxu0 0.0
  %3185 = vmatmul.mubr.f32.gmra.mrb[0].mxu0 %v3093
  %v3186 = vpop.f32.mrb[0].mxu0
  %v3187 = vadd.f32 0.0, %v3186
  %v3188 = vpop.f32.mrb[0].mxu0
  %3189 = vmatprep.mubr.f32.mxu0 0.0
  %3190 = vmatmul.mubr.f32.gmra.mrb[0].mxu0 %v3096
  %v3191 = vpop.f32.mrb[0].mxu0
  %v3192 = vadd.f32 0.0, %v3191
  %v3193 = vpop.f32.mrb[0].mxu0
  %3194 = vmatprep.mubr.f32.mxu0 0.0
  %3195 = vmatmul.mubr.f32.gmra.mrb[0].mxu0 %v3099
  %v3196 = vpop.f32.mrb[0].mxu0
  %v3197 = vadd.f32 0.0, %v3196
  %v3198 = vpop.f32.mrb[0].mxu0
  %3199 = vmatprep.mubr.f32.mxu0 0.0
  %3200 = vmatmul.mubr.f32.gmra.mrb[0].mxu0 %v3102
  %v3201 = vpop.f32.mrb[0].mxu0
  %v3202 = vadd.f32 0.0, %v3201
  %v3203 = vpop.f32.mrb[0].mxu0
  %3204 = vmatprep.mubr.f32.mxu0 0.0
  %3205 = vmatmul.mubr.f32.gmra.mrb[0].mxu0 %v3105
  %v3206 = vpop.f32.mrb[0].mxu0
  %v3207 = vadd.f32 0.0, %v3206
  %v3208 = vpop.f32.mrb[0].mxu0
  %3209 = vmatprep.mubr.f32.mxu0 0.0
  %3210 = vmatmul.mubr.f32.gmra.mrb[0].mxu0 %v3108
  %v3211 = vpop.f32.mrb[0].mxu0
  %v3212 = vadd.f32 0.0, %v3211
  %v3213 = vpop.f32.mrb[0].mxu0
  %3214 = vdwg.mxu0
  %v3216 = vsel %vm1865, %v2546, 0
  %v3219 = vsel %vm1865, %v2547, 0
  %v3222 = vsel %vm1865, %v2548, 0
  %v3225 = vsel %vm1865, %v2549, 0
  %v3228 = vsel %vm1865, %v2550, 0
  %v3231 = vsel %vm1865, %v2551, 0
  %v3234 = vsel %vm1865, %v2552, 0
  %v3237 = vsel %vm1865, %v2553, 0
  %3239 = vmatprep.subr.mxu0 0.0
  %3240 = vmatpush1.msra.mxu0 %v466
  %3241 = vmatprep.subr.mxu0 0.0
  %3242 = vmatpush1.msra.mxu0 0.0
  %3243 = vmatprep.subr.mxu0 0.0
  %3244 = vmatpush1.msra.mxu0 0.0
  %3245 = vmatprep.subr.mxu0 0.0
  %3246 = vmatpush1.msra.mxu0 0.0
  %3247 = vmatprep.subr.mxu0 0.0
  %3248 = vmatpush1.msra.mxu0 0.0
  %3249 = vmatprep.subr.mxu0 0.0
  %3250 = vmatpush1.msra.mxu0 0.0
  %3251 = vmatprep.subr.mxu0 0.0
  %3252 = vmatpush1.msra.mxu0 0.0
  %3253 = vmatprep.subr.mxu0 0.0
  %3254 = vmatpush1.msra.mxu0 0.0
  %3255 = vmatprep.subr.mxu0 0.0
  %3256 = vmatpush1.msra.mxu0 0.0
  %3257 = vmatprep.subr.mxu0 0.0
  %3258 = vmatpush1.msra.mxu0 0.0
  %3259 = vmatprep.subr.mxu0 0.0
  %3260 = vmatpush1.msra.mxu0 0.0
  %3261 = vmatprep.subr.mxu0 0.0
  %3262 = vmatpush1.msra.mxu0 0.0
  %3263 = vmatprep.subr.mxu0 0.0
  %3264 = vmatpush1.msra.mxu0 0.0
  %3265 = vmatprep.subr.mxu0 0.0
  %3266 = vmatpush1.msra.mxu0 0.0
  %3267 = vmatprep.subr.mxu0 0.0
  %3268 = vmatpush1.msra.mxu0 0.0
  %3269 = vmatprep.subr.mxu0 0.0
  %3270 = vmatpush1.msra.mxu0 0.0
  %3271 = vmatprep.subr.mxu0 0.0
  %3272 = vmatpush1.msra.mxu0 0.0
  %3273 = vmatprep.subr.mxu0 0.0
  %3274 = vmatpush1.msra.mxu0 0.0
  %3275 = vmatprep.subr.mxu0 0.0
  %3276 = vmatpush1.msra.mxu0 0.0
  %3277 = vmatprep.subr.mxu0 0.0
  %3278 = vmatpush1.msra.mxu0 0.0
  %3279 = vmatprep.subr.mxu0 0.0
  %3280 = vmatpush1.msra.mxu0 0.0
  %3281 = vmatprep.subr.mxu0 0.0
  %3282 = vmatpush1.msra.mxu0 0.0
  %3283 = vmatprep.subr.mxu0 0.0
  %3284 = vmatpush1.msra.mxu0 0.0
  %3285 = vmatprep.subr.mxu0 0.0
  %3286 = vmatpush1.msra.mxu0 0.0
  %3287 = vmatprep.subr.mxu0 0.0
  %3288 = vmatpush1.msra.mxu0 0.0
  %3289 = vmatprep.subr.mxu0 0.0
  %3290 = vmatpush1.msra.mxu0 0.0
  %3291 = vmatprep.subr.mxu0 0.0
  %3292 = vmatpush1.msra.mxu0 0.0
  %3293 = vmatprep.subr.mxu0 0.0
  %3294 = vmatpush1.msra.mxu0 0.0
  %3295 = vmatprep.subr.mxu0 0.0
  %3296 = vmatpush1.msra.mxu0 0.0
  %3297 = vmatprep.subr.mxu0 0.0
  %3298 = vmatpush1.msra.mxu0 0.0
  %3299 = vmatprep.subr.mxu0 0.0
  %3300 = vmatpush1.msra.mxu0 0.0
  %3301 = vmatprep.subr.mxu0 0.0
  %3302 = vmatpush1.msra.mxu0 0.0
  %3303 = vmatprep.mubr.f32.mxu0 0.0
  %3304 = vmatmul.mubr.f32.gmra.mrb[0].mxu0 %v3216
  %v3305 = vpop.f32.mrb[0].mxu0
  %v3306 = vadd.f32 0.0, %v3305
  %v3307 = vpop.f32.mrb[0].mxu0
  %3308 = vmatprep.mubr.f32.mxu0 0.0
  %3309 = vmatmul.mubr.f32.gmra.mrb[0].mxu0 %v3219
  %v3310 = vpop.f32.mrb[0].mxu0
  %v3311 = vadd.f32 0.0, %v3310
  %v3312 = vpop.f32.mrb[0].mxu0
  %3313 = vmatprep.mubr.f32.mxu0 0.0
  %3314 = vmatmul.mubr.f32.gmra.mrb[0].mxu0 %v3222
  %v3315 = vpop.f32.mrb[0].mxu0
  %v3316 = vadd.f32 0.0, %v3315
  %v3317 = vpop.f32.mrb[0].mxu0
  %3318 = vmatprep.mubr.f32.mxu0 0.0
  %3319 = vmatmul.mubr.f32.gmra.mrb[0].mxu0 %v3225
  %v3320 = vpop.f32.mrb[0].mxu0
  %v3321 = vadd.f32 0.0, %v3320
  %v3322 = vpop.f32.mrb[0].mxu0
  %3323 = vmatprep.mubr.f32.mxu0 0.0
  %3324 = vmatmul.mubr.f32.gmra.mrb[0].mxu0 %v3228
  %v3325 = vpop.f32.mrb[0].mxu0
  %v3326 = vadd.f32 0.0, %v3325
  %v3327 = vpop.f32.mrb[0].mxu0
  %3328 = vmatprep.mubr.f32.mxu0 0.0
  %3329 = vmatmul.mubr.f32.gmra.mrb[0].mxu0 %v3231
  %v3330 = vpop.f32.mrb[0].mxu0
  %v3331 = vadd.f32 0.0, %v3330
  %v3332 = vpop.f32.mrb[0].mxu0
  %3333 = vmatprep.mubr.f32.mxu0 0.0
  %3334 = vmatmul.mubr.f32.gmra.mrb[0].mxu0 %v3234
  %v3335 = vpop.f32.mrb[0].mxu0
  %v3336 = vadd.f32 0.0, %v3335
  %v3337 = vpop.f32.mrb[0].mxu0
  %3338 = vmatprep.mubr.f32.mxu0 0.0
  %3339 = vmatmul.mubr.f32.gmra.mrb[0].mxu0 %v3237
  %v3340 = vpop.f32.mrb[0].mxu0
  %v3341 = vadd.f32 0.0, %v3340
  %v3342 = vpop.f32.mrb[0].mxu0
  %3343 = vdwg.mxu0
  %v3345 = vsel %vm1865, %v2554, 0
  %v3348 = vsel %vm1865, %v2555, 0
  %v3351 = vsel %vm1865, %v2556, 0
  %v3354 = vsel %vm1865, %v2557, 0
  %v3357 = vsel %vm1865, %v2558, 0
  %v3360 = vsel %vm1865, %v2559, 0
  %v3363 = vsel %vm1865, %v2560, 0
  %v3366 = vsel %vm1865, %v2561, 0
  %3368 = vmatprep.subr.mxu0 0.0
  %3369 = vmatpush1.msra.mxu0 %v471
  %3370 = vmatprep.subr.mxu0 0.0
  %3371 = vmatpush1.msra.mxu0 0.0
  %3372 = vmatprep.subr.mxu0 0.0
  %3373 = vmatpush1.msra.mxu0 0.0
  %3374 = vmatprep.subr.mxu0 0.0
  %3375 = vmatpush1.msra.mxu0 0.0
  %3376 = vmatprep.subr.mxu0 0.0
  %3377 = vmatpush1.msra.mxu0 0.0
  %3378 = vmatprep.subr.mxu0 0.0
  %3379 = vmatpush1.msra.mxu0 0.0
  %3380 = vmatprep.subr.mxu0 0.0
  %3381 = vmatpush1.msra.mxu0 0.0
  %3382 = vmatprep.subr.mxu0 0.0
  %3383 = vmatpush1.msra.mxu0 0.0
  %3384 = vmatprep.subr.mxu0 0.0
  %3385 = vmatpush1.msra.mxu0 0.0
  %3386 = vmatprep.subr.mxu0 0.0
  %3387 = vmatpush1.msra.mxu0 0.0
  %3388 = vmatprep.subr.mxu0 0.0
  %3389 = vmatpush1.msra.mxu0 0.0
  %3390 = vmatprep.subr.mxu0 0.0
  %3391 = vmatpush1.msra.mxu0 0.0
  %3392 = vmatprep.subr.mxu0 0.0
  %3393 = vmatpush1.msra.mxu0 0.0
  %3394 = vmatprep.subr.mxu0 0.0
  %3395 = vmatpush1.msra.mxu0 0.0
  %3396 = vmatprep.subr.mxu0 0.0
  %3397 = vmatpush1.msra.mxu0 0.0
  %3398 = vmatprep.subr.mxu0 0.0
  %3399 = vmatpush1.msra.mxu0 0.0
  %3400 = vmatprep.subr.mxu0 0.0
  %3401 = vmatpush1.msra.mxu0 0.0
  %3402 = vmatprep.subr.mxu0 0.0
  %3403 = vmatpush1.msra.mxu0 0.0
  %3404 = vmatprep.subr.mxu0 0.0
  %3405 = vmatpush1.msra.mxu0 0.0
  %3406 = vmatprep.subr.mxu0 0.0
  %3407 = vmatpush1.msra.mxu0 0.0
  %3408 = vmatprep.subr.mxu0 0.0
  %3409 = vmatpush1.msra.mxu0 0.0
  %3410 = vmatprep.subr.mxu0 0.0
  %3411 = vmatpush1.msra.mxu0 0.0
  %3412 = vmatprep.subr.mxu0 0.0
  %3413 = vmatpush1.msra.mxu0 0.0
  %3414 = vmatprep.subr.mxu0 0.0
  %3415 = vmatpush1.msra.mxu0 0.0
  %3416 = vmatprep.subr.mxu0 0.0
  %3417 = vmatpush1.msra.mxu0 0.0
  %3418 = vmatprep.subr.mxu0 0.0
  %3419 = vmatpush1.msra.mxu0 0.0
  %3420 = vmatprep.subr.mxu0 0.0
  %3421 = vmatpush1.msra.mxu0 0.0
  %3422 = vmatprep.subr.mxu0 0.0
  %3423 = vmatpush1.msra.mxu0 0.0
  %3424 = vmatprep.subr.mxu0 0.0
  %3425 = vmatpush1.msra.mxu0 0.0
  %3426 = vmatprep.subr.mxu0 0.0
  %3427 = vmatpush1.msra.mxu0 0.0
  %3428 = vmatprep.subr.mxu0 0.0
  %3429 = vmatpush1.msra.mxu0 0.0
  %3430 = vmatprep.subr.mxu0 0.0
  %3431 = vmatpush1.msra.mxu0 0.0
  %3432 = vmatprep.mubr.f32.mxu0 0.0
  %3433 = vmatmul.mubr.f32.gmra.mrb[0].mxu0 %v3345
  %v3434 = vpop.f32.mrb[0].mxu0
  %v3435 = vadd.f32 0.0, %v3434
  %v3436 = vpop.f32.mrb[0].mxu0
  %3437 = vmatprep.mubr.f32.mxu0 0.0
  %3438 = vmatmul.mubr.f32.gmra.mrb[0].mxu0 %v3348
  %v3439 = vpop.f32.mrb[0].mxu0
  %v3440 = vadd.f32 0.0, %v3439
  %v3441 = vpop.f32.mrb[0].mxu0
  %3442 = vmatprep.mubr.f32.mxu0 0.0
  %3443 = vmatmul.mubr.f32.gmra.mrb[0].mxu0 %v3351
  %v3444 = vpop.f32.mrb[0].mxu0
  %v3445 = vadd.f32 0.0, %v3444
  %v3446 = vpop.f32.mrb[0].mxu0
  %3447 = vmatprep.mubr.f32.mxu0 0.0
  %3448 = vmatmul.mubr.f32.gmra.mrb[0].mxu0 %v3354
  %v3449 = vpop.f32.mrb[0].mxu0
  %v3450 = vadd.f32 0.0, %v3449
  %v3451 = vpop.f32.mrb[0].mxu0
  %3452 = vmatprep.mubr.f32.mxu0 0.0
  %3453 = vmatmul.mubr.f32.gmra.mrb[0].mxu0 %v3357
  %v3454 = vpop.f32.mrb[0].mxu0
  %v3455 = vadd.f32 0.0, %v3454
  %v3456 = vpop.f32.mrb[0].mxu0
  %3457 = vmatprep.mubr.f32.mxu0 0.0
  %3458 = vmatmul.mubr.f32.gmra.mrb[0].mxu0 %v3360
  %v3459 = vpop.f32.mrb[0].mxu0
  %v3460 = vadd.f32 0.0, %v3459
  %v3461 = vpop.f32.mrb[0].mxu0
  %3462 = vmatprep.mubr.f32.mxu0 0.0
  %3463 = vmatmul.mubr.f32.gmra.mrb[0].mxu0 %v3363
  %v3464 = vpop.f32.mrb[0].mxu0
  %v3465 = vadd.f32 0.0, %v3464
  %v3466 = vpop.f32.mrb[0].mxu0
  %3467 = vmatprep.mubr.f32.mxu0 0.0
  %3468 = vmatmul.mubr.f32.gmra.mrb[0].mxu0 %v3366
  %v3469 = vpop.f32.mrb[0].mxu0
  %v3470 = vadd.f32 0.0, %v3469
  %v3471 = vpop.f32.mrb[0].mxu0
  %3472 = vdwg.mxu0
  %v3474 = vsel %vm1865, %v2562, 0
  %v3477 = vsel %vm1865, %v2563, 0
  %v3480 = vsel %vm1865, %v2564, 0
  %v3483 = vsel %vm1865, %v2565, 0
  %v3486 = vsel %vm1865, %v2566, 0
  %v3489 = vsel %vm1865, %v2567, 0
  %v3492 = vsel %vm1865, %v2568, 0
  %v3495 = vsel %vm1865, %v2569, 0
  %3497 = vmatprep.subr.mxu0 0.0
  %3498 = vmatpush1.msra.mxu0 %v476
  %3499 = vmatprep.subr.mxu0 0.0
  %3500 = vmatpush1.msra.mxu0 0.0
  %3501 = vmatprep.subr.mxu0 0.0
  %3502 = vmatpush1.msra.mxu0 0.0
  %3503 = vmatprep.subr.mxu0 0.0
  %3504 = vmatpush1.msra.mxu0 0.0
  %3505 = vmatprep.subr.mxu0 0.0
  %3506 = vmatpush1.msra.mxu0 0.0
  %3507 = vmatprep.subr.mxu0 0.0
  %3508 = vmatpush1.msra.mxu0 0.0
  %3509 = vmatprep.subr.mxu0 0.0
  %3510 = vmatpush1.msra.mxu0 0.0
  %3511 = vmatprep.subr.mxu0 0.0
  %3512 = vmatpush1.msra.mxu0 0.0
  %3513 = vmatprep.subr.mxu0 0.0
  %3514 = vmatpush1.msra.mxu0 0.0
  %3515 = vmatprep.subr.mxu0 0.0
  %3516 = vmatpush1.msra.mxu0 0.0
  %3517 = vmatprep.subr.mxu0 0.0
  %3518 = vmatpush1.msra.mxu0 0.0
  %3519 = vmatprep.subr.mxu0 0.0
  %3520 = vmatpush1.msra.mxu0 0.0
  %3521 = vmatprep.subr.mxu0 0.0
  %3522 = vmatpush1.msra.mxu0 0.0
  %3523 = vmatprep.subr.mxu0 0.0
  %3524 = vmatpush1.msra.mxu0 0.0
  %3525 = vmatprep.subr.mxu0 0.0
  %3526 = vmatpush1.msra.mxu0 0.0
  %3527 = vmatprep.subr.mxu0 0.0
  %3528 = vmatpush1.msra.mxu0 0.0
  %3529 = vmatprep.subr.mxu0 0.0
  %3530 = vmatpush1.msra.mxu0 0.0
  %3531 = vmatprep.subr.mxu0 0.0
  %3532 = vmatpush1.msra.mxu0 0.0
  %3533 = vmatprep.subr.mxu0 0.0
  %3534 = vmatpush1.msra.mxu0 0.0
  %3535 = vmatprep.subr.mxu0 0.0
  %3536 = vmatpush1.msra.mxu0 0.0
  %3537 = vmatprep.subr.mxu0 0.0
  %3538 = vmatpush1.msra.mxu0 0.0
  %3539 = vmatprep.subr.mxu0 0.0
  %3540 = vmatpush1.msra.mxu0 0.0
  %3541 = vmatprep.subr.mxu0 0.0
  %3542 = vmatpush1.msra.mxu0 0.0
  %3543 = vmatprep.subr.mxu0 0.0
  %3544 = vmatpush1.msra.mxu0 0.0
  %3545 = vmatprep.subr.mxu0 0.0
  %3546 = vmatpush1.msra.mxu0 0.0
  %3547 = vmatprep.subr.mxu0 0.0
  %3548 = vmatpush1.msra.mxu0 0.0
  %3549 = vmatprep.subr.mxu0 0.0
  %3550 = vmatpush1.msra.mxu0 0.0
  %3551 = vmatprep.subr.mxu0 0.0
  %3552 = vmatpush1.msra.mxu0 0.0
  %3553 = vmatprep.subr.mxu0 0.0
  %3554 = vmatpush1.msra.mxu0 0.0
  %3555 = vmatprep.subr.mxu0 0.0
  %3556 = vmatpush1.msra.mxu0 0.0
  %3557 = vmatprep.subr.mxu0 0.0
  %3558 = vmatpush1.msra.mxu0 0.0
  %3559 = vmatprep.subr.mxu0 0.0
  %3560 = vmatpush1.msra.mxu0 0.0
  %3561 = vmatprep.mubr.f32.mxu0 0.0
  %3562 = vmatmul.mubr.f32.gmra.mrb[0].mxu0 %v3474
  %v3563 = vpop.f32.mrb[0].mxu0
  %v3564 = vadd.f32 0.0, %v3563
  %v3565 = vpop.f32.mrb[0].mxu0
  %3566 = vmatprep.mubr.f32.mxu0 0.0
  %3567 = vmatmul.mubr.f32.gmra.mrb[0].mxu0 %v3477
  %v3568 = vpop.f32.mrb[0].mxu0
  %v3569 = vadd.f32 0.0, %v3568
  %v3570 = vpop.f32.mrb[0].mxu0
  %3571 = vmatprep.mubr.f32.mxu0 0.0
  %3572 = vmatmul.mubr.f32.gmra.mrb[0].mxu0 %v3480
  %v3573 = vpop.f32.mrb[0].mxu0
  %v3574 = vadd.f32 0.0, %v3573
  %v3575 = vpop.f32.mrb[0].mxu0
  %3576 = vmatprep.mubr.f32.mxu0 0.0
  %3577 = vmatmul.mubr.f32.gmra.mrb[0].mxu0 %v3483
  %v3578 = vpop.f32.mrb[0].mxu0
  %v3579 = vadd.f32 0.0, %v3578
  %v3580 = vpop.f32.mrb[0].mxu0
  %3581 = vmatprep.mubr.f32.mxu0 0.0
  %3582 = vmatmul.mubr.f32.gmra.mrb[0].mxu0 %v3486
  %v3583 = vpop.f32.mrb[0].mxu0
  %v3584 = vadd.f32 0.0, %v3583
  %v3585 = vpop.f32.mrb[0].mxu0
  %3586 = vmatprep.mubr.f32.mxu0 0.0
  %3587 = vmatmul.mubr.f32.gmra.mrb[0].mxu0 %v3489
  %v3588 = vpop.f32.mrb[0].mxu0
  %v3589 = vadd.f32 0.0, %v3588
  %v3590 = vpop.f32.mrb[0].mxu0
  %3591 = vmatprep.mubr.f32.mxu0 0.0
  %3592 = vmatmul.mubr.f32.gmra.mrb[0].mxu0 %v3492
  %v3593 = vpop.f32.mrb[0].mxu0
  %v3594 = vadd.f32 0.0, %v3593
  %v3595 = vpop.f32.mrb[0].mxu0
  %3596 = vmatprep.mubr.f32.mxu0 0.0
  %3597 = vmatmul.mubr.f32.gmra.mrb[0].mxu0 %v3495
  %v3598 = vpop.f32.mrb[0].mxu0
  %v3599 = vadd.f32 0.0, %v3598
  %v3600 = vpop.f32.mrb[0].mxu0
  %3601 = vdwg.mxu0
  %v3602 = vmul.f32 %v2661, %v532
  %v3603 = vmul.f32 %v2666, %v536
  %v3604 = vmul.f32 %v2671, %v540
  %v3605 = vmul.f32 %v2676, %v544
  %v3606 = vmul.f32 %v2681, %v548
  %v3607 = vmul.f32 %v2686, %v552
  %v3608 = vmul.f32 %v2691, %v556
  %v3609 = vmul.f32 %v2696, %v560
  %v3610 = vmul.f32 %v2790, %v532
  %v3611 = vmul.f32 %v2795, %v536
  %v3612 = vmul.f32 %v2800, %v540
  %v3613 = vmul.f32 %v2805, %v544
  %v3614 = vmul.f32 %v2810, %v548
  %v3615 = vmul.f32 %v2815, %v552
  %v3616 = vmul.f32 %v2820, %v556
  %v3617 = vmul.f32 %v2825, %v560
  %v3618 = vmul.f32 %v2919, %v532
  %v3619 = vmul.f32 %v2924, %v536
  %v3620 = vmul.f32 %v2929, %v540
  %v3621 = vmul.f32 %v2934, %v544
  %v3622 = vmul.f32 %v2939, %v548
  %v3623 = vmul.f32 %v2944, %v552
  %v3624 = vmul.f32 %v2949, %v556
  %v3625 = vmul.f32 %v2954, %v560
  %v3626 = vmul.f32 %v3048, %v532
  %v3627 = vmul.f32 %v3053, %v536
  %v3628 = vmul.f32 %v3058, %v540
  %v3629 = vmul.f32 %v3063, %v544
  %v3630 = vmul.f32 %v3068, %v548
  %v3631 = vmul.f32 %v3073, %v552
  %v3632 = vmul.f32 %v3078, %v556
  %v3633 = vmul.f32 %v3083, %v560
  %v3634 = vmul.f32 %v3177, %v532
  %v3635 = vmul.f32 %v3182, %v536
  %v3636 = vmul.f32 %v3187, %v540
  %v3637 = vmul.f32 %v3192, %v544
  %v3638 = vmul.f32 %v3197, %v548
  %v3639 = vmul.f32 %v3202, %v552
  %v3640 = vmul.f32 %v3207, %v556
  %v3641 = vmul.f32 %v3212, %v560
  %v3642 = vmul.f32 %v3306, %v532
  %v3643 = vmul.f32 %v3311, %v536
  %v3644 = vmul.f32 %v3316, %v540
  %v3645 = vmul.f32 %v3321, %v544
  %v3646 = vmul.f32 %v3326, %v548
  %v3647 = vmul.f32 %v3331, %v552
  %v3648 = vmul.f32 %v3336, %v556
  %v3649 = vmul.f32 %v3341, %v560
  %v3650 = vmul.f32 %v3435, %v532
  %v3651 = vmul.f32 %v3440, %v536
  %v3652 = vmul.f32 %v3445, %v540
  %v3653 = vmul.f32 %v3450, %v544
  %v3654 = vmul.f32 %v3455, %v548
  %v3655 = vmul.f32 %v3460, %v552
  %v3656 = vmul.f32 %v3465, %v556
  %v3657 = vmul.f32 %v3470, %v560
  %v3658 = vmul.f32 %v3564, %v532
  %v3659 = vmul.f32 %v3569, %v536
  %v3660 = vmul.f32 %v3574, %v540
  %v3661 = vmul.f32 %v3579, %v544
  %v3662 = vmul.f32 %v3584, %v548
  %v3663 = vmul.f32 %v3589, %v552
  %v3664 = vmul.f32 %v3594, %v556
  %v3665 = vmul.f32 %v3599, %v560
  %v3666 = vsel %vm121, %v3602, 0.0
  %v3667 = vsel %vm121, %v3603, 0.0
  %v3668 = vadd.f32 %v3666, %v3667
  %v3669 = vsel %vm121, %v3604, 0.0
  %v3670 = vadd.f32 %v3668, %v3669
  %v3671 = vsel %vm121, %v3605, 0.0
  %v3672 = vadd.f32 %v3670, %v3671
  %v3673 = vsel %vm121, %v3606, 0.0
  %v3674 = vadd.f32 %v3672, %v3673
  %v3675 = vsel %vm121, %v3607, 0.0
  %v3676 = vadd.f32 %v3674, %v3675
  %v3677 = vsel %vm121, %v3608, 0.0
  %v3678 = vadd.f32 %v3676, %v3677
  %v3679 = vsel %vm121, %v3609, 0.0
  %v3680 = vadd.f32 %v3678, %v3679
  %v3681 = vsel %vm121, %v3610, 0.0
  %v3682 = vsel %vm121, %v3611, 0.0
  %v3683 = vadd.f32 %v3681, %v3682
  %v3684 = vsel %vm121, %v3612, 0.0
  %v3685 = vadd.f32 %v3683, %v3684
  %v3686 = vsel %vm121, %v3613, 0.0
  %v3687 = vadd.f32 %v3685, %v3686
  %v3688 = vsel %vm121, %v3614, 0.0
  %v3689 = vadd.f32 %v3687, %v3688
  %v3690 = vsel %vm121, %v3615, 0.0
  %v3691 = vadd.f32 %v3689, %v3690
  %v3692 = vsel %vm121, %v3616, 0.0
  %v3693 = vadd.f32 %v3691, %v3692
  %v3694 = vsel %vm121, %v3617, 0.0
  %v3695 = vadd.f32 %v3693, %v3694
  %v3696 = vsel %vm121, %v3618, 0.0
  %v3697 = vsel %vm121, %v3619, 0.0
  %v3698 = vadd.f32 %v3696, %v3697
  %v3699 = vsel %vm121, %v3620, 0.0
  %v3700 = vadd.f32 %v3698, %v3699
  %v3701 = vsel %vm121, %v3621, 0.0
  %v3702 = vadd.f32 %v3700, %v3701
  %v3703 = vsel %vm121, %v3622, 0.0
  %v3704 = vadd.f32 %v3702, %v3703
  %v3705 = vsel %vm121, %v3623, 0.0
  %v3706 = vadd.f32 %v3704, %v3705
  %v3707 = vsel %vm121, %v3624, 0.0
  %v3708 = vadd.f32 %v3706, %v3707
  %v3709 = vsel %vm121, %v3625, 0.0
  %v3710 = vadd.f32 %v3708, %v3709
  %v3711 = vsel %vm121, %v3626, 0.0
  %v3712 = vsel %vm121, %v3627, 0.0
  %v3713 = vadd.f32 %v3711, %v3712
  %v3714 = vsel %vm121, %v3628, 0.0
  %v3715 = vadd.f32 %v3713, %v3714
  %v3716 = vsel %vm121, %v3629, 0.0
  %v3717 = vadd.f32 %v3715, %v3716
  %v3718 = vsel %vm121, %v3630, 0.0
  %v3719 = vadd.f32 %v3717, %v3718
  %v3720 = vsel %vm121, %v3631, 0.0
  %v3721 = vadd.f32 %v3719, %v3720
  %v3722 = vsel %vm121, %v3632, 0.0
  %v3723 = vadd.f32 %v3721, %v3722
  %v3724 = vsel %vm121, %v3633, 0.0
  %v3725 = vadd.f32 %v3723, %v3724
  %v3726 = vsel %vm121, %v3634, 0.0
  %v3727 = vsel %vm121, %v3635, 0.0
  %v3728 = vadd.f32 %v3726, %v3727
  %v3729 = vsel %vm121, %v3636, 0.0
  %v3730 = vadd.f32 %v3728, %v3729
  %v3731 = vsel %vm121, %v3637, 0.0
  %v3732 = vadd.f32 %v3730, %v3731
  %v3733 = vsel %vm121, %v3638, 0.0
  %v3734 = vadd.f32 %v3732, %v3733
  %v3735 = vsel %vm121, %v3639, 0.0
  %v3736 = vadd.f32 %v3734, %v3735
  %v3737 = vsel %vm121, %v3640, 0.0
  %v3738 = vadd.f32 %v3736, %v3737
  %v3739 = vsel %vm121, %v3641, 0.0
  %v3740 = vadd.f32 %v3738, %v3739
  %v3741 = vsel %vm121, %v3642, 0.0
  %v3742 = vsel %vm121, %v3643, 0.0
  %v3743 = vadd.f32 %v3741, %v3742
  %v3744 = vsel %vm121, %v3644, 0.0
  %v3745 = vadd.f32 %v3743, %v3744
  %v3746 = vsel %vm121, %v3645, 0.0
  %v3747 = vadd.f32 %v3745, %v3746
  %v3748 = vsel %vm121, %v3646, 0.0
  %v3749 = vadd.f32 %v3747, %v3748
  %v3750 = vsel %vm121, %v3647, 0.0
  %v3751 = vadd.f32 %v3749, %v3750
  %v3752 = vsel %vm121, %v3648, 0.0
  %v3753 = vadd.f32 %v3751, %v3752
  %v3754 = vsel %vm121, %v3649, 0.0
  %v3755 = vadd.f32 %v3753, %v3754
  %v3756 = vsel %vm121, %v3650, 0.0
  %v3757 = vsel %vm121, %v3651, 0.0
  %v3758 = vadd.f32 %v3756, %v3757
  %v3759 = vsel %vm121, %v3652, 0.0
  %v3760 = vadd.f32 %v3758, %v3759
  %v3761 = vsel %vm121, %v3653, 0.0
  %v3762 = vadd.f32 %v3760, %v3761
  %v3763 = vsel %vm121, %v3654, 0.0
  %v3764 = vadd.f32 %v3762, %v3763
  %v3765 = vsel %vm121, %v3655, 0.0
  %v3766 = vadd.f32 %v3764, %v3765
  %v3767 = vsel %vm121, %v3656, 0.0
  %v3768 = vadd.f32 %v3766, %v3767
  %v3769 = vsel %vm121, %v3657, 0.0
  %v3770 = vadd.f32 %v3768, %v3769
  %v3771 = vsel %vm121, %v3658, 0.0
  %v3772 = vsel %vm121, %v3659, 0.0
  %v3773 = vadd.f32 %v3771, %v3772
  %v3774 = vsel %vm121, %v3660, 0.0
  %v3775 = vadd.f32 %v3773, %v3774
  %v3776 = vsel %vm121, %v3661, 0.0
  %v3777 = vadd.f32 %v3775, %v3776
  %v3778 = vsel %vm121, %v3662, 0.0
  %v3779 = vadd.f32 %v3777, %v3778
  %v3780 = vsel %vm121, %v3663, 0.0
  %v3781 = vadd.f32 %v3779, %v3780
  %v3782 = vsel %vm121, %v3664, 0.0
  %v3783 = vadd.f32 %v3781, %v3782
  %v3784 = vsel %vm121, %v3665, 0.0
  %v3785 = vadd.f32 %v3783, %v3784
  %v3786 = vld [vmem:[%s10] sm:$0xff]
  %v3787 = vld [vmem:[%s10 + $0x8] sm:$0xff]
  %v3788 = vld [vmem:[%s11] sm:$0x1]
  %v3790 = vlaneseq
  %v3791 = vshrl.u32 %v3790, 7
  %v3792 = vsub.s32 0, %v3791
  %v3793 = vrot.slane %v3788, %v3792
  %v3796 = vsel %vm121, %v3680, 0
  %v3799 = vsel %vm121, %v3695, 0
  %v3802 = vsel %vm121, %v3710, 0
  %v3805 = vsel %vm121, %v3725, 0
  %v3808 = vsel %vm121, %v3740, 0
  %v3811 = vsel %vm121, %v3755, 0
  %v3814 = vsel %vm121, %v3770, 0
  %v3817 = vsel %vm121, %v3785, 0
  %3819 = vmatprep.subr.mxu0 0.0
  %3820 = vmatpush1.msra.mxu0 %v3786
  %3821 = vmatprep.subr.mxu0 0.0
  %3822 = vmatpush1.msra.mxu0 %v3787
  %3823 = vmatprep.subr.mxu0 0.0
  %3824 = vmatpush1.msra.mxu0 0.0
  %3825 = vmatprep.subr.mxu0 0.0
  %3826 = vmatpush1.msra.mxu0 0.0
  %3827 = vmatprep.subr.mxu0 0.0
  %3828 = vmatpush1.msra.mxu0 0.0
  %3829 = vmatprep.subr.mxu0 0.0
  %3830 = vmatpush1.msra.mxu0 0.0
  %3831 = vmatprep.subr.mxu0 0.0
  %3832 = vmatpush1.msra.mxu0 0.0
  %3833 = vmatprep.subr.mxu0 0.0
  %3834 = vmatpush1.msra.mxu0 0.0
  %3835 = vmatprep.subr.mxu0 0.0
  %3836 = vmatpush1.msra.mxu0 0.0
  %3837 = vmatprep.subr.mxu0 0.0
  %3838 = vmatpush1.msra.mxu0 0.0
  %3839 = vmatprep.subr.mxu0 0.0
  %3840 = vmatpush1.msra.mxu0 0.0
  %3841 = vmatprep.subr.mxu0 0.0
  %3842 = vmatpush1.msra.mxu0 0.0
  %3843 = vmatprep.subr.mxu0 0.0
  %3844 = vmatpush1.msra.mxu0 0.0
  %3845 = vmatprep.subr.mxu0 0.0
  %3846 = vmatpush1.msra.mxu0 0.0
  %3847 = vmatprep.subr.mxu0 0.0
  %3848 = vmatpush1.msra.mxu0 0.0
  %3849 = vmatprep.subr.mxu0 0.0
  %3850 = vmatpush1.msra.mxu0 0.0
  %3851 = vmatprep.subr.mxu0 0.0
  %3852 = vmatpush1.msra.mxu0 0.0
  %3853 = vmatprep.subr.mxu0 0.0
  %3854 = vmatpush1.msra.mxu0 0.0
  %3855 = vmatprep.subr.mxu0 0.0
  %3856 = vmatpush1.msra.mxu0 0.0
  %3857 = vmatprep.subr.mxu0 0.0
  %3858 = vmatpush1.msra.mxu0 0.0
  %3859 = vmatprep.subr.mxu0 0.0
  %3860 = vmatpush1.msra.mxu0 0.0
  %3861 = vmatprep.subr.mxu0 0.0
  %3862 = vmatpush1.msra.mxu0 0.0
  %3863 = vmatprep.subr.mxu0 0.0
  %3864 = vmatpush1.msra.mxu0 0.0
  %3865 = vmatprep.subr.mxu0 0.0
  %3866 = vmatpush1.msra.mxu0 0.0
  %3867 = vmatprep.subr.mxu0 0.0
  %3868 = vmatpush1.msra.mxu0 0.0
  %3869 = vmatprep.subr.mxu0 0.0
  %3870 = vmatpush1.msra.mxu0 0.0
  %3871 = vmatprep.subr.mxu0 0.0
  %3872 = vmatpush1.msra.mxu0 0.0
  %3873 = vmatprep.subr.mxu0 0.0
  %3874 = vmatpush1.msra.mxu0 0.0
  %3875 = vmatprep.subr.mxu0 0.0
  %3876 = vmatpush1.msra.mxu0 0.0
  %3877 = vmatprep.subr.mxu0 0.0
  %3878 = vmatpush1.msra.mxu0 0.0
  %3879 = vmatprep.subr.mxu0 0.0
  %3880 = vmatpush1.msra.mxu0 0.0
  %3881 = vmatprep.subr.mxu0 0.0
  %3882 = vmatpush1.msra.mxu0 0.0
  %3883 = vmatprep.mubr.f32.mxu0 0.0
  %3884 = vmatmul.mubr.f32.gmra.mrb[0].mxu0 %v3796
  %v3885 = vpop.f32.mrb[0].mxu0
  %v3886 = vadd.f32 %v3793, %v3885
  %v3887 = vpop.f32.mrb[0].mxu0
  %3888 = vmatprep.mubr.f32.mxu0 0.0
  %3889 = vmatmul.mubr.f32.gmra.mrb[0].mxu0 %v3799
  %v3890 = vpop.f32.mrb[0].mxu0
  %v3891 = vadd.f32 %v3793, %v3890
  %v3892 = vpop.f32.mrb[0].mxu0
  %3893 = vmatprep.mubr.f32.mxu0 0.0
  %3894 = vmatmul.mubr.f32.gmra.mrb[0].mxu0 %v3802
  %v3895 = vpop.f32.mrb[0].mxu0
  %v3896 = vadd.f32 %v3793, %v3895
  %v3897 = vpop.f32.mrb[0].mxu0
  %3898 = vmatprep.mubr.f32.mxu0 0.0
  %3899 = vmatmul.mubr.f32.gmra.mrb[0].mxu0 %v3805
  %v3900 = vpop.f32.mrb[0].mxu0
  %v3901 = vadd.f32 %v3793, %v3900
  %v3902 = vpop.f32.mrb[0].mxu0
  %3903 = vmatprep.mubr.f32.mxu0 0.0
  %3904 = vmatmul.mubr.f32.gmra.mrb[0].mxu0 %v3808
  %v3905 = vpop.f32.mrb[0].mxu0
  %v3906 = vadd.f32 %v3793, %v3905
  %v3907 = vpop.f32.mrb[0].mxu0
  %3908 = vmatprep.mubr.f32.mxu0 0.0
  %3909 = vmatmul.mubr.f32.gmra.mrb[0].mxu0 %v3811
  %v3910 = vpop.f32.mrb[0].mxu0
  %v3911 = vadd.f32 %v3793, %v3910
  %v3912 = vpop.f32.mrb[0].mxu0
  %3913 = vmatprep.mubr.f32.mxu0 0.0
  %3914 = vmatmul.mubr.f32.gmra.mrb[0].mxu0 %v3814
  %v3915 = vpop.f32.mrb[0].mxu0
  %v3916 = vadd.f32 %v3793, %v3915
  %v3917 = vpop.f32.mrb[0].mxu0
  %3918 = vmatprep.mubr.f32.mxu0 0.0
  %3919 = vmatmul.mubr.f32.gmra.mrb[0].mxu0 %v3817
  %v3920 = vpop.f32.mrb[0].mxu0
  %v3921 = vadd.f32 %v3793, %v3920
  %v3922 = vpop.f32.mrb[0].mxu0
  %3923 = vdwg.mxu0
  %v3924 = vadd.f32 %v95, %v3886
  %v3925 = vadd.f32 %v96, %v3891
  %v3926 = vadd.f32 %v97, %v3896
  %v3927 = vadd.f32 %v98, %v3901
  %v3928 = vadd.f32 %v99, %v3906
  %v3929 = vadd.f32 %v100, %v3911
  %v3930 = vadd.f32 %v101, %v3916
  %v3931 = vadd.f32 %v102, %v3921
  %v3932 = vld [vmem:[%s12] sm:$0x1]
  %v3933 = vld [vmem:[%s13] sm:$0x1]
  %v3934 = vsel %vm121, %v3924, 0.0
  %3935 = vadd.xlane.f32.xlu0 %v3934
  %v3936 = vpop.xlane.xlu0 %3935
  %v3937 = vsel %vm121, %v3925, 0.0
  %3938 = vadd.xlane.f32.xlu0 %v3937
  %v3939 = vpop.xlane.xlu0 %3938
  %v3940 = vsel %vm121, %v3926, 0.0
  %3941 = vadd.xlane.f32.xlu0 %v3940
  %v3942 = vpop.xlane.xlu0 %3941
  %v3943 = vsel %vm121, %v3927, 0.0
  %3944 = vadd.xlane.f32.xlu0 %v3943
  %v3945 = vpop.xlane.xlu0 %3944
  %v3946 = vsel %vm121, %v3928, 0.0
  %3947 = vadd.xlane.f32.xlu0 %v3946
  %v3948 = vpop.xlane.xlu0 %3947
  %v3949 = vsel %vm121, %v3929, 0.0
  %3950 = vadd.xlane.f32.xlu0 %v3949
  %v3951 = vpop.xlane.xlu0 %3950
  %v3952 = vsel %vm121, %v3930, 0.0
  %3953 = vadd.xlane.f32.xlu0 %v3952
  %v3954 = vpop.xlane.xlu0 %3953
  %v3955 = vsel %vm121, %v3931, 0.0
  %3956 = vadd.xlane.f32.xlu0 %v3955
  %v3957 = vpop.xlane.xlu0 %3956
  %v3958 = vrcp.pop 16.0
  %v3959 = vmul.f32 %v3936, %v3958
  %v3960 = vmul.f32 %v3939, %v3958
  %v3961 = vmul.f32 %v3942, %v3958
  %v3962 = vmul.f32 %v3945, %v3958
  %v3963 = vmul.f32 %v3948, %v3958
  %v3964 = vmul.f32 %v3951, %v3958
  %v3965 = vmul.f32 %v3954, %v3958
  %v3966 = vmul.f32 %v3957, %v3958
  %v3967 = vsub.f32 %v3924, %v3959
  %v3968 = vsub.f32 %v3925, %v3960
  %v3969 = vsub.f32 %v3926, %v3961
  %v3970 = vsub.f32 %v3927, %v3962
  %v3971 = vsub.f32 %v3928, %v3963
  %v3972 = vsub.f32 %v3929, %v3964
  %v3973 = vsub.f32 %v3930, %v3965
  %v3974 = vsub.f32 %v3931, %v3966
  %v3975 = vmul.f32 %v3967, %v3967
  %v3976 = vmul.f32 %v3968, %v3968
  %v3977 = vmul.f32 %v3969, %v3969
  %v3978 = vmul.f32 %v3970, %v3970
  %v3979 = vmul.f32 %v3971, %v3971
  %v3980 = vmul.f32 %v3972, %v3972
  %v3981 = vmul.f32 %v3973, %v3973
  %v3982 = vmul.f32 %v3974, %v3974
  %v3983 = vsel %vm121, %v3975, 0.0
  %3984 = vadd.xlane.f32.xlu0 %v3983
  %v3985 = vpop.xlane.xlu0 %3984
  %v3986 = vsel %vm121, %v3976, 0.0
  %3987 = vadd.xlane.f32.xlu0 %v3986
  %v3988 = vpop.xlane.xlu0 %3987
  %v3989 = vsel %vm121, %v3977, 0.0
  %3990 = vadd.xlane.f32.xlu0 %v3989
  %v3991 = vpop.xlane.xlu0 %3990
  %v3992 = vsel %vm121, %v3978, 0.0
  %3993 = vadd.xlane.f32.xlu0 %v3992
  %v3994 = vpop.xlane.xlu0 %3993
  %v3995 = vsel %vm121, %v3979, 0.0
  %3996 = vadd.xlane.f32.xlu0 %v3995
  %v3997 = vpop.xlane.xlu0 %3996
  %v3998 = vsel %vm121, %v3980, 0.0
  %3999 = vadd.xlane.f32.xlu0 %v3998
  %v4000 = vpop.xlane.xlu0 %3999
  %v4001 = vsel %vm121, %v3981, 0.0
  %4002 = vadd.xlane.f32.xlu0 %v4001
  %v4003 = vpop.xlane.xlu0 %4002
  %v4004 = vsel %vm121, %v3982, 0.0
  %4005 = vadd.xlane.f32.xlu0 %v4004
  %v4006 = vpop.xlane.xlu0 %4005
  %v4007 = vmul.f32 %v3985, %v3958
  %v4008 = vmul.f32 %v3988, %v3958
  %v4009 = vmul.f32 %v3991, %v3958
  %v4010 = vmul.f32 %v3994, %v3958
  %v4011 = vmul.f32 %v3997, %v3958
  %v4012 = vmul.f32 %v4000, %v3958
  %v4013 = vmul.f32 %v4003, %v3958
  %v4014 = vmul.f32 %v4006, %v3958
  %v4015 = vadd.f32 %v4007, 1e-05
  %v4016 = vadd.f32 %v4008, 1e-05
  %v4017 = vadd.f32 %v4009, 1e-05
  %v4018 = vadd.f32 %v4010, 1e-05
  %v4019 = vadd.f32 %v4011, 1e-05
  %v4020 = vadd.f32 %v4012, 1e-05
  %v4021 = vadd.f32 %v4013, 1e-05
  %v4022 = vadd.f32 %v4014, 1e-05
  %v4023 = vrsqrt.pop %v4015
  %v4024 = vrsqrt.pop %v4016
  %v4025 = vrsqrt.pop %v4017
  %v4026 = vrsqrt.pop %v4018
  %v4027 = vrsqrt.pop %v4019
  %v4028 = vrsqrt.pop %v4020
  %v4029 = vrsqrt.pop %v4021
  %v4030 = vrsqrt.pop %v4022
  %v4031 = vmul.f32 %v3967, %v4023
  %v4032 = vmul.f32 %v3968, %v4024
  %v4033 = vmul.f32 %v3969, %v4025
  %v4034 = vmul.f32 %v3970, %v4026
  %v4035 = vmul.f32 %v3971, %v4027
  %v4036 = vmul.f32 %v3972, %v4028
  %v4037 = vmul.f32 %v3973, %v4029
  %v4038 = vmul.f32 %v3974, %v4030
  %v4040 = vlaneseq
  %v4041 = vshrl.u32 %v4040, 7
  %v4042 = vsub.s32 0, %v4041
  %v4043 = vrot.slane %v3932, %v4042
  %v4045 = vmul.f32 %v4031, %v4043
  %v4046 = vmul.f32 %v4032, %v4043
  %v4047 = vmul.f32 %v4033, %v4043
  %v4048 = vmul.f32 %v4034, %v4043
  %v4049 = vmul.f32 %v4035, %v4043
  %v4050 = vmul.f32 %v4036, %v4043
  %v4051 = vmul.f32 %v4037, %v4043
  %v4052 = vmul.f32 %v4038, %v4043
  %v4054 = vlaneseq
  %v4055 = vshrl.u32 %v4054, 7
  %v4056 = vsub.s32 0, %v4055
  %v4057 = vrot.slane %v3933, %v4056
  %v4059 = vadd.f32 %v4045, %v4057
  %v4060 = vadd.f32 %v4046, %v4057
  %v4061 = vadd.f32 %v4047, %v4057
  %v4062 = vadd.f32 %v4048, %v4057
  %v4063 = vadd.f32 %v4049, %v4057
  %v4064 = vadd.f32 %v4050, %v4057
  %v4065 = vadd.f32 %v4051, %v4057
  %v4066 = vadd.f32 %v4052, %v4057
  %v4067 = vld [vmem:[%s14] sm:$0xff]
  %v4068 = vld [vmem:[%s14 + $0x8] sm:$0xff]
  %v4069 = vld [vmem:[%s14 + $0x10] sm:$0xff]
  %v4070 = vld [vmem:[%s14 + $0x18] sm:$0xff]
  %v4071 = vld [vmem:[%s15] sm:$0x3]
  %v4073 = vlaneseq
  %v4074 = vshrl.u32 %v4073, 7
  %v4075 = vsub.s32 0, %v4074
  %v4076 = vrot.slane %v4071, %v4075
  %v4077 = vlaneseq
  %v4078 = vshrl.u32 %v4077, 7
  %v4079 = vsub.s32 1, %v4078
  %v4080 = vrot.slane %v4071, %v4079
  %v4084 = vsel %vm121, %v4059, 0
  %v4087 = vsel %vm121, %v4060, 0
  %v4090 = vsel %vm121, %v4061, 0
  %v4093 = vsel %vm121, %v4062, 0
  %v4096 = vsel %vm121, %v4063, 0
  %v4099 = vsel %vm121, %v4064, 0
  %v4102 = vsel %vm121, %v4065, 0
  %v4105 = vsel %vm121, %v4066, 0
  %4107 = vmatprep.subr.mxu0 %v4068
  %4108 = vmatpush1.msra.mxu0 %v4067
  %4109 = vmatprep.subr.mxu0 %v4070
  %4110 = vmatpush1.msra.mxu0 %v4069
  %4111 = vmatprep.subr.mxu0 0.0
  %4112 = vmatpush1.msra.mxu0 0.0
  %4113 = vmatprep.subr.mxu0 0.0
  %4114 = vmatpush1.msra.mxu0 0.0
  %4115 = vmatprep.subr.mxu0 0.0
  %4116 = vmatpush1.msra.mxu0 0.0
  %4117 = vmatprep.subr.mxu0 0.0
  %4118 = vmatpush1.msra.mxu0 0.0
  %4119 = vmatprep.subr.mxu0 0.0
  %4120 = vmatpush1.msra.mxu0 0.0
  %4121 = vmatprep.subr.mxu0 0.0
  %4122 = vmatpush1.msra.mxu0 0.0
  %4123 = vmatprep.subr.mxu0 0.0
  %4124 = vmatpush1.msra.mxu0 0.0
  %4125 = vmatprep.subr.mxu0 0.0
  %4126 = vmatpush1.msra.mxu0 0.0
  %4127 = vmatprep.subr.mxu0 0.0
  %4128 = vmatpush1.msra.mxu0 0.0
  %4129 = vmatprep.subr.mxu0 0.0
  %4130 = vmatpush1.msra.mxu0 0.0
  %4131 = vmatprep.subr.mxu0 0.0
  %4132 = vmatpush1.msra.mxu0 0.0
  %4133 = vmatprep.subr.mxu0 0.0
  %4134 = vmatpush1.msra.mxu0 0.0
  %4135 = vmatprep.subr.mxu0 0.0
  %4136 = vmatpush1.msra.mxu0 0.0
  %4137 = vmatprep.subr.mxu0 0.0
  %4138 = vmatpush1.msra.mxu0 0.0
  %4139 = vmatprep.subr.mxu0 0.0
  %4140 = vmatpush1.msra.mxu0 0.0
  %4141 = vmatprep.subr.mxu0 0.0
  %4142 = vmatpush1.msra.mxu0 0.0
  %4143 = vmatprep.subr.mxu0 0.0
  %4144 = vmatpush1.msra.mxu0 0.0
  %4145 = vmatprep.subr.mxu0 0.0
  %4146 = vmatpush1.msra.mxu0 0.0
  %4147 = vmatprep.subr.mxu0 0.0
  %4148 = vmatpush1.msra.mxu0 0.0
  %4149 = vmatprep.subr.mxu0 0.0
  %4150 = vmatpush1.msra.mxu0 0.0
  %4151 = vmatprep.subr.mxu0 0.0
  %4152 = vmatpush1.msra.mxu0 0.0
  %4153 = vmatprep.subr.mxu0 0.0
  %4154 = vmatpush1.msra.mxu0 0.0
  %4155 = vmatprep.subr.mxu0 0.0
  %4156 = vmatpush1.msra.mxu0 0.0
  %4157 = vmatprep.subr.mxu0 0.0
  %4158 = vmatpush1.msra.mxu0 0.0
  %4159 = vmatprep.subr.mxu0 0.0
  %4160 = vmatpush1.msra.mxu0 0.0
  %4161 = vmatprep.subr.mxu0 0.0
  %4162 = vmatpush1.msra.mxu0 0.0
  %4163 = vmatprep.subr.mxu0 0.0
  %4164 = vmatpush1.msra.mxu0 0.0
  %4165 = vmatprep.subr.mxu0 0.0
  %4166 = vmatpush1.msra.mxu0 0.0
  %4167 = vmatprep.subr.mxu0 0.0
  %4168 = vmatpush1.msra.mxu0 0.0
  %4169 = vmatprep.subr.mxu0 0.0
  %4170 = vmatpush1.msra.mxu0 0.0
  %4171 = vmatprep.mubr.f32.mxu0 0.0
  %4172 = vmatmul.mubr.f32.gmra.mrb[0].mxu0 %v4084
  %v4173 = vpop.f32.mrb[0].mxu0
  %v4174 = vadd.f32 %v4076, %v4173
  %v4175 = vpop.f32.mrb[0].mxu0
  %v4176 = vadd.f32 %v4080, %v4175
  %4177 = vmatprep.mubr.f32.mxu0 0.0
  %4178 = vmatmul.mubr.f32.gmra.mrb[0].mxu0 %v4087
  %v4179 = vpop.f32.mrb[0].mxu0
  %v4180 = vadd.f32 %v4076, %v4179
  %v4181 = vpop.f32.mrb[0].mxu0
  %v4182 = vadd.f32 %v4080, %v4181
  %4183 = vmatprep.mubr.f32.mxu0 0.0
  %4184 = vmatmul.mubr.f32.gmra.mrb[0].mxu0 %v4090
  %v4185 = vpop.f32.mrb[0].mxu0
  %v4186 = vadd.f32 %v4076, %v4185
  %v4187 = vpop.f32.mrb[0].mxu0
  %v4188 = vadd.f32 %v4080, %v4187
  %4189 = vmatprep.mubr.f32.mxu0 0.0
  %4190 = vmatmul.mubr.f32.gmra.mrb[0].mxu0 %v4093
  %v4191 = vpop.f32.mrb[0].mxu0
  %v4192 = vadd.f32 %v4076, %v4191
  %v4193 = vpop.f32.mrb[0].mxu0
  %v4194 = vadd.f32 %v4080, %v4193
  %4195 = vmatprep.mubr.f32.mxu0 0.0
  %4196 = vmatmul.mubr.f32.gmra.mrb[0].mxu0 %v4096
  %v4197 = vpop.f32.mrb[0].mxu0
  %v4198 = vadd.f32 %v4076, %v4197
  %v4199 = vpop.f32.mrb[0].mxu0
  %v4200 = vadd.f32 %v4080, %v4199
  %4201 = vmatprep.mubr.f32.mxu0 0.0
  %4202 = vmatmul.mubr.f32.gmra.mrb[0].mxu0 %v4099
  %v4203 = vpop.f32.mrb[0].mxu0
  %v4204 = vadd.f32 %v4076, %v4203
  %v4205 = vpop.f32.mrb[0].mxu0
  %v4206 = vadd.f32 %v4080, %v4205
  %4207 = vmatprep.mubr.f32.mxu0 0.0
  %4208 = vmatmul.mubr.f32.gmra.mrb[0].mxu0 %v4102
  %v4209 = vpop.f32.mrb[0].mxu0
  %v4210 = vadd.f32 %v4076, %v4209
  %v4211 = vpop.f32.mrb[0].mxu0
  %v4212 = vadd.f32 %v4080, %v4211
  %4213 = vmatprep.mubr.f32.mxu0 0.0
  %4214 = vmatmul.mubr.f32.gmra.mrb[0].mxu0 %v4105
  %v4215 = vpop.f32.mrb[0].mxu0
  %v4216 = vadd.f32 %v4076, %v4215
  %v4217 = vpop.f32.mrb[0].mxu0
  %v4218 = vadd.f32 %v4080, %v4217
  %4219 = vdwg.mxu0
  %v4220 = vmax.f32 %v4174, 0.0
  %v4221 = vmax.f32 %v4176, 0.0
  %v4222 = vmax.f32 %v4180, 0.0
  %v4223 = vmax.f32 %v4182, 0.0
  %v4224 = vmax.f32 %v4186, 0.0
  %v4225 = vmax.f32 %v4188, 0.0
  %v4226 = vmax.f32 %v4192, 0.0
  %v4227 = vmax.f32 %v4194, 0.0
  %v4228 = vmax.f32 %v4198, 0.0
  %v4229 = vmax.f32 %v4200, 0.0
  %v4230 = vmax.f32 %v4204, 0.0
  %v4231 = vmax.f32 %v4206, 0.0
  %v4232 = vmax.f32 %v4210, 0.0
  %v4233 = vmax.f32 %v4212, 0.0
  %v4234 = vmax.f32 %v4216, 0.0
  %v4235 = vmax.f32 %v4218, 0.0
  %v4236 = vld [vmem:[%s16] sm:$0xff]
  %v4237 = vld [vmem:[%s16 + $0x8] sm:$0xff]
  %v4238 = vld [vmem:[%s16 + $0x10] sm:$0xff]
  %v4239 = vld [vmem:[%s16 + $0x18] sm:$0xff]
  %v4240 = vld [vmem:[%s16 + $0x20] sm:$0xff]
  %v4241 = vld [vmem:[%s16 + $0x28] sm:$0xff]
  %v4242 = vld [vmem:[%s16 + $0x30] sm:$0xff]
  %v4243 = vld [vmem:[%s16 + $0x38] sm:$0xff]
  %v4244 = vld [vmem:[%s16 + $0x40] sm:$0xff]
  %v4245 = vld [vmem:[%s16 + $0x48] sm:$0xff]
  %v4246 = vld [vmem:[%s16 + $0x50] sm:$0xff]
  %v4247 = vld [vmem:[%s16 + $0x58] sm:$0xff]
  %v4248 = vld [vmem:[%s16 + $0x60] sm:$0xff]
  %v4249 = vld [vmem:[%s16 + $0x68] sm:$0xff]
  %v4250 = vld [vmem:[%s16 + $0x70] sm:$0xff]
  %v4251 = vld [vmem:[%s16 + $0x78] sm:$0xff]
  %v4252 = vld [vmem:[%s16 + $0x80] sm:$0xff]
  %v4253 = vld [vmem:[%s16 + $0x88] sm:$0xff]
  %v4254 = vld [vmem:[%s16 + $0x90] sm:$0xff]
  %v4255 = vld [vmem:[%s16 + $0x98] sm:$0xff]
  %v4256 = vld [vmem:[%s16 + $0xa0] sm:$0xff]
  %v4257 = vld [vmem:[%s16 + $0xa8] sm:$0xff]
  %v4258 = vld [vmem:[%s16 + $0xb0] sm:$0xff]
  %v4259 = vld [vmem:[%s16 + $0xb8] sm:$0xff]
  %v4260 = vld [vmem:[%s16 + $0xc0] sm:$0xff]
  %v4261 = vld [vmem:[%s16 + $0xc8] sm:$0xff]
  %v4262 = vld [vmem:[%s16 + $0xd0] sm:$0xff]
  %v4263 = vld [vmem:[%s16 + $0xd8] sm:$0xff]
  %v4264 = vld [vmem:[%s16 + $0xe0] sm:$0xff]
  %v4265 = vld [vmem:[%s16 + $0xe8] sm:$0xff]
  %v4266 = vld [vmem:[%s16 + $0xf0] sm:$0xff]
  %v4267 = vld [vmem:[%s16 + $0xf8] sm:$0xff]
  %v4268 = vld [vmem:[%s17] sm:$0x1]
  %v4270 = vlaneseq
  %v4271 = vshrl.u32 %v4270, 7
  %v4272 = vsub.s32 0, %v4271
  %v4273 = vrot.slane %v4268, %v4272
  %4275 = vmatprep.subr.mxu0 0.0
  %4276 = vmatpush1.msra.mxu0 %v4236
  %4277 = vmatprep.subr.mxu0 0.0
  %4278 = vmatpush1.msra.mxu0 %v4237
  %4279 = vmatprep.subr.mxu0 0.0
  %4280 = vmatpush1.msra.mxu0 %v4238
  %4281 = vmatprep.subr.mxu0 0.0
  %4282 = vmatpush1.msra.mxu0 %v4239
  %4283 = vmatprep.subr.mxu0 0.0
  %4284 = vmatpush1.msra.mxu0 %v4240
  %4285 = vmatprep.subr.mxu0 0.0
  %4286 = vmatpush1.msra.mxu0 %v4241
  %4287 = vmatprep.subr.mxu0 0.0
  %4288 = vmatpush1.msra.mxu0 %v4242
  %4289 = vmatprep.subr.mxu0 0.0
  %4290 = vmatpush1.msra.mxu0 %v4243
  %4291 = vmatprep.subr.mxu0 0.0
  %4292 = vmatpush1.msra.mxu0 %v4244
  %4293 = vmatprep.subr.mxu0 0.0
  %4294 = vmatpush1.msra.mxu0 %v4245
  %4295 = vmatprep.subr.mxu0 0.0
  %4296 = vmatpush1.msra.mxu0 %v4246
  %4297 = vmatprep.subr.mxu0 0.0
  %4298 = vmatpush1.msra.mxu0 %v4247
  %4299 = vmatprep.subr.mxu0 0.0
  %4300 = vmatpush1.msra.mxu0 %v4248
  %4301 = vmatprep.subr.mxu0 0.0
  %4302 = vmatpush1.msra.mxu0 %v4249
  %4303 = vmatprep.subr.mxu0 0.0
  %4304 = vmatpush1.msra.mxu0 %v4250
  %4305 = vmatprep.subr.mxu0 0.0
  %4306 = vmatpush1.msra.mxu0 %v4251
  %4307 = vmatprep.subr.mxu0 0.0
  %4308 = vmatpush1.msra.mxu0 %v4252
  %4309 = vmatprep.subr.mxu0 0.0
  %4310 = vmatpush1.msra.mxu0 %v4253
  %4311 = vmatprep.subr.mxu0 0.0
  %4312 = vmatpush1.msra.mxu0 %v4254
  %4313 = vmatprep.subr.mxu0 0.0
  %4314 = vmatpush1.msra.mxu0 %v4255
  %4315 = vmatprep.subr.mxu0 0.0
  %4316 = vmatpush1.msra.mxu0 %v4256
  %4317 = vmatprep.subr.mxu0 0.0
  %4318 = vmatpush1.msra.mxu0 %v4257
  %4319 = vmatprep.subr.mxu0 0.0
  %4320 = vmatpush1.msra.mxu0 %v4258
  %4321 = vmatprep.subr.mxu0 0.0
  %4322 = vmatpush1.msra.mxu0 %v4259
  %4323 = vmatprep.subr.mxu0 0.0
  %4324 = vmatpush1.msra.mxu0 %v4260
  %4325 = vmatprep.subr.mxu0 0.0
  %4326 = vmatpush1.msra.mxu0 %v4261
  %4327 = vmatprep.subr.mxu0 0.0
  %4328 = vmatpush1.msra.mxu0 %v4262
  %4329 = vmatprep.subr.mxu0 0.0
  %4330 = vmatpush1.msra.mxu0 %v4263
  %4331 = vmatprep.subr.mxu0 0.0
  %4332 = vmatpush1.msra.mxu0 %v4264
  %4333 = vmatprep.subr.mxu0 0.0
  %4334 = vmatpush1.msra.mxu0 %v4265
  %4335 = vmatprep.subr.mxu0 0.0
  %4336 = vmatpush1.msra.mxu0 %v4266
  %4337 = vmatprep.subr.mxu0 0.0
  %4338 = vmatpush1.msra.mxu0 %v4267
  %4339 = vmatprep.mubr.f32.mxu0 %v4221
  %4340 = vmatmul.mubr.f32.gmra.mrb[0].mxu0 %v4220
  %v4341 = vpop.f32.mrb[0].mxu0
  %v4342 = vadd.f32 %v4273, %v4341
  %v4343 = vpop.f32.mrb[0].mxu0
  %4344 = vmatprep.mubr.f32.mxu0 %v4223
  %4345 = vmatmul.mubr.f32.gmra.mrb[0].mxu0 %v4222
  %v4346 = vpop.f32.mrb[0].mxu0
  %v4347 = vadd.f32 %v4273, %v4346
  %v4348 = vpop.f32.mrb[0].mxu0
  %4349 = vmatprep.mubr.f32.mxu0 %v4225
  %4350 = vmatmul.mubr.f32.gmra.mrb[0].mxu0 %v4224
  %v4351 = vpop.f32.mrb[0].mxu0
  %v4352 = vadd.f32 %v4273, %v4351
  %v4353 = vpop.f32.mrb[0].mxu0
  %4354 = vmatprep.mubr.f32.mxu0 %v4227
  %4355 = vmatmul.mubr.f32.gmra.mrb[0].mxu0 %v4226
  %v4356 = vpop.f32.mrb[0].mxu0
  %v4357 = vadd.f32 %v4273, %v4356
  %v4358 = vpop.f32.mrb[0].mxu0
  %4359 = vmatprep.mubr.f32.mxu0 %v4229
  %4360 = vmatmul.mubr.f32.gmra.mrb[0].mxu0 %v4228
  %v4361 = vpop.f32.mrb[0].mxu0
  %v4362 = vadd.f32 %v4273, %v4361
  %v4363 = vpop.f32.mrb[0].mxu0
  %4364 = vmatprep.mubr.f32.mxu0 %v4231
  %4365 = vmatmul.mubr.f32.gmra.mrb[0].mxu0 %v4230
  %v4366 = vpop.f32.mrb[0].mxu0
  %v4367 = vadd.f32 %v4273, %v4366
  %v4368 = vpop.f32.mrb[0].mxu0
  %4369 = vmatprep.mubr.f32.mxu0 %v4233
  %4370 = vmatmul.mubr.f32.gmra.mrb[0].mxu0 %v4232
  %v4371 = vpop.f32.mrb[0].mxu0
  %v4372 = vadd.f32 %v4273, %v4371
  %v4373 = vpop.f32.mrb[0].mxu0
  %4374 = vmatprep.mubr.f32.mxu0 %v4235
  %4375 = vmatmul.mubr.f32.gmra.mrb[0].mxu0 %v4234
  %v4376 = vpop.f32.mrb[0].mxu0
  %v4377 = vadd.f32 %v4273, %v4376
  %v4378 = vpop.f32.mrb[0].mxu0
  %4379 = vdwg.mxu0
  %v4380 = vadd.f32 %v4059, %v4342
  %v4381 = vadd.f32 %v4060, %v4347
  %v4382 = vadd.f32 %v4061, %v4352
  %v4383 = vadd.f32 %v4062, %v4357
  %v4384 = vadd.f32 %v4063, %v4362
  %v4385 = vadd.f32 %v4064, %v4367
  %v4386 = vadd.f32 %v4065, %v4372
  %v4387 = vadd.f32 %v4066, %v4377
  %v4388 = vld [vmem:[%s18] sm:$0x1]
  %v4389 = vld [vmem:[%s19] sm:$0x1]
  %v4390 = vsel %vm121, %v4380, 0.0
  %4391 = vadd.xlane.f32.xlu0 %v4390
  %v4392 = vpop.xlane.xlu0 %4391
  %v4393 = vsel %vm121, %v4381, 0.0
  %4394 = vadd.xlane.f32.xlu0 %v4393
  %v4395 = vpop.xlane.xlu0 %4394
  %v4396 = vsel %vm121, %v4382, 0.0
  %4397 = vadd.xlane.f32.xlu0 %v4396
  %v4398 = vpop.xlane.xlu0 %4397
  %v4399 = vsel %vm121, %v4383, 0.0
  %4400 = vadd.xlane.f32.xlu0 %v4399
  %v4401 = vpop.xlane.xlu0 %4400
  %v4402 = vsel %vm121, %v4384, 0.0
  %4403 = vadd.xlane.f32.xlu0 %v4402
  %v4404 = vpop.xlane.xlu0 %4403
  %v4405 = vsel %vm121, %v4385, 0.0
  %4406 = vadd.xlane.f32.xlu0 %v4405
  %v4407 = vpop.xlane.xlu0 %4406
  %v4408 = vsel %vm121, %v4386, 0.0
  %4409 = vadd.xlane.f32.xlu0 %v4408
  %v4410 = vpop.xlane.xlu0 %4409
  %v4411 = vsel %vm121, %v4387, 0.0
  %4412 = vadd.xlane.f32.xlu0 %v4411
  %v4413 = vpop.xlane.xlu0 %4412
  %v4414 = vmul.f32 %v4392, %v3958
  %v4415 = vmul.f32 %v4395, %v3958
  %v4416 = vmul.f32 %v4398, %v3958
  %v4417 = vmul.f32 %v4401, %v3958
  %v4418 = vmul.f32 %v4404, %v3958
  %v4419 = vmul.f32 %v4407, %v3958
  %v4420 = vmul.f32 %v4410, %v3958
  %v4421 = vmul.f32 %v4413, %v3958
  %v4422 = vsub.f32 %v4380, %v4414
  %v4423 = vsub.f32 %v4381, %v4415
  %v4424 = vsub.f32 %v4382, %v4416
  %v4425 = vsub.f32 %v4383, %v4417
  %v4426 = vsub.f32 %v4384, %v4418
  %v4427 = vsub.f32 %v4385, %v4419
  %v4428 = vsub.f32 %v4386, %v4420
  %v4429 = vsub.f32 %v4387, %v4421
  %v4430 = vmul.f32 %v4422, %v4422
  %v4431 = vmul.f32 %v4423, %v4423
  %v4432 = vmul.f32 %v4424, %v4424
  %v4433 = vmul.f32 %v4425, %v4425
  %v4434 = vmul.f32 %v4426, %v4426
  %v4435 = vmul.f32 %v4427, %v4427
  %v4436 = vmul.f32 %v4428, %v4428
  %v4437 = vmul.f32 %v4429, %v4429
  %v4438 = vsel %vm121, %v4430, 0.0
  %4439 = vadd.xlane.f32.xlu0 %v4438
  %v4440 = vpop.xlane.xlu0 %4439
  %v4441 = vsel %vm121, %v4431, 0.0
  %4442 = vadd.xlane.f32.xlu0 %v4441
  %v4443 = vpop.xlane.xlu0 %4442
  %v4444 = vsel %vm121, %v4432, 0.0
  %4445 = vadd.xlane.f32.xlu0 %v4444
  %v4446 = vpop.xlane.xlu0 %4445
  %v4447 = vsel %vm121, %v4433, 0.0
  %4448 = vadd.xlane.f32.xlu0 %v4447
  %v4449 = vpop.xlane.xlu0 %4448
  %v4450 = vsel %vm121, %v4434, 0.0
  %4451 = vadd.xlane.f32.xlu0 %v4450
  %v4452 = vpop.xlane.xlu0 %4451
  %v4453 = vsel %vm121, %v4435, 0.0
  %4454 = vadd.xlane.f32.xlu0 %v4453
  %v4455 = vpop.xlane.xlu0 %4454
  %v4456 = vsel %vm121, %v4436, 0.0
  %4457 = vadd.xlane.f32.xlu0 %v4456
  %v4458 = vpop.xlane.xlu0 %4457
  %v4459 = vsel %vm121, %v4437, 0.0
  %4460 = vadd.xlane.f32.xlu0 %v4459
  %v4461 = vpop.xlane.xlu0 %4460
  %v4462 = vmul.f32 %v4440, %v3958
  %v4463 = vmul.f32 %v4443, %v3958
  %v4464 = vmul.f32 %v4446, %v3958
  %v4465 = vmul.f32 %v4449, %v3958
  %v4466 = vmul.f32 %v4452, %v3958
  %v4467 = vmul.f32 %v4455, %v3958
  %v4468 = vmul.f32 %v4458, %v3958
  %v4469 = vmul.f32 %v4461, %v3958
  %v4470 = vadd.f32 %v4462, 1e-05
  %v4471 = vadd.f32 %v4463, 1e-05
  %v4472 = vadd.f32 %v4464, 1e-05
  %v4473 = vadd.f32 %v4465, 1e-05
  %v4474 = vadd.f32 %v4466, 1e-05
  %v4475 = vadd.f32 %v4467, 1e-05
  %v4476 = vadd.f32 %v4468, 1e-05
  %v4477 = vadd.f32 %v4469, 1e-05
  %v4478 = vrsqrt.pop %v4470
  %v4479 = vrsqrt.pop %v4471
  %v4480 = vrsqrt.pop %v4472
  %v4481 = vrsqrt.pop %v4473
  %v4482 = vrsqrt.pop %v4474
  %v4483 = vrsqrt.pop %v4475
  %v4484 = vrsqrt.pop %v4476
  %v4485 = vrsqrt.pop %v4477
  %v4486 = vmul.f32 %v4422, %v4478
  %v4487 = vmul.f32 %v4423, %v4479
  %v4488 = vmul.f32 %v4424, %v4480
  %v4489 = vmul.f32 %v4425, %v4481
  %v4490 = vmul.f32 %v4426, %v4482
  %v4491 = vmul.f32 %v4427, %v4483
  %v4492 = vmul.f32 %v4428, %v4484
  %v4493 = vmul.f32 %v4429, %v4485
  %v4495 = vlaneseq
  %v4496 = vshrl.u32 %v4495, 7
  %v4497 = vsub.s32 0, %v4496
  %v4498 = vrot.slane %v4388, %v4497
  %v4500 = vmul.f32 %v4486, %v4498
  %v4501 = vmul.f32 %v4487, %v4498
  %v4502 = vmul.f32 %v4488, %v4498
  %v4503 = vmul.f32 %v4489, %v4498
  %v4504 = vmul.f32 %v4490, %v4498
  %v4505 = vmul.f32 %v4491, %v4498
  %v4506 = vmul.f32 %v4492, %v4498
  %v4507 = vmul.f32 %v4493, %v4498
  %v4509 = vlaneseq
  %v4510 = vshrl.u32 %v4509, 7
  %v4511 = vsub.s32 0, %v4510
  %v4512 = vrot.slane %v4389, %v4511
  %v4514 = vadd.f32 %v4500, %v4512
  %v4515 = vadd.f32 %v4501, %v4512
  %v4516 = vadd.f32 %v4502, %v4512
  %v4517 = vadd.f32 %v4503, %v4512
  %v4518 = vadd.f32 %v4504, %v4512
  %v4519 = vadd.f32 %v4505, %v4512
  %v4520 = vadd.f32 %v4506, %v4512
  %v4521 = vadd.f32 %v4507, %v4512
  %s4522 = scalar_lea.vmem %s4, 16
  %v4523 = vld [vmem:[%s4522] sm:$0xff]
  %v4524 = vld [vmem:[%s4522 + $0x8] sm:$0xff]
  %s4525 = scalar_lea.vmem %s7, 1
  %v4526 = vld [vmem:[%s4525] sm:$0x1]
  %v4528 = vlaneseq
  %v4529 = vshrl.u32 %v4528, 7
  %v4530 = vsub.s32 0, %v4529
  %v4531 = vrot.slane %v4526, %v4530
  %v4534 = vsel %vm121, %v4514, 0
  %v4537 = vsel %vm121, %v4515, 0
  %v4540 = vsel %vm121, %v4516, 0
  %v4543 = vsel %vm121, %v4517, 0
  %v4546 = vsel %vm121, %v4518, 0
  %v4549 = vsel %vm121, %v4519, 0
  %v4552 = vsel %vm121, %v4520, 0
  %v4555 = vsel %vm121, %v4521, 0
  %4557 = vmatprep.subr.mxu0 0.0
  %4558 = vmatpush1.msra.mxu0 %v4523
  %4559 = vmatprep.subr.mxu0 0.0
  %4560 = vmatpush1.msra.mxu0 %v4524
  %4561 = vmatprep.subr.mxu0 0.0
  %4562 = vmatpush1.msra.mxu0 0.0
  %4563 = vmatprep.subr.mxu0 0.0
  %4564 = vmatpush1.msra.mxu0 0.0
  %4565 = vmatprep.subr.mxu0 0.0
  %4566 = vmatpush1.msra.mxu0 0.0
  %4567 = vmatprep.subr.mxu0 0.0
  %4568 = vmatpush1.msra.mxu0 0.0
  %4569 = vmatprep.subr.mxu0 0.0
  %4570 = vmatpush1.msra.mxu0 0.0
  %4571 = vmatprep.subr.mxu0 0.0
  %4572 = vmatpush1.msra.mxu0 0.0
  %4573 = vmatprep.subr.mxu0 0.0
  %4574 = vmatpush1.msra.mxu0 0.0
  %4575 = vmatprep.subr.mxu0 0.0
  %4576 = vmatpush1.msra.mxu0 0.0
  %4577 = vmatprep.subr.mxu0 0.0
  %4578 = vmatpush1.msra.mxu0 0.0
  %4579 = vmatprep.subr.mxu0 0.0
  %4580 = vmatpush1.msra.mxu0 0.0
  %4581 = vmatprep.subr.mxu0 0.0
  %4582 = vmatpush1.msra.mxu0 0.0
  %4583 = vmatprep.subr.mxu0 0.0
  %4584 = vmatpush1.msra.mxu0 0.0
  %4585 = vmatprep.subr.mxu0 0.0
  %4586 = vmatpush1.msra.mxu0 0.0
  %4587 = vmatprep.subr.mxu0 0.0
  %4588 = vmatpush1.msra.mxu0 0.0
  %4589 = vmatprep.subr.mxu0 0.0
  %4590 = vmatpush1.msra.mxu0 0.0
  %4591 = vmatprep.subr.mxu0 0.0
  %4592 = vmatpush1.msra.mxu0 0.0
  %4593 = vmatprep.subr.mxu0 0.0
  %4594 = vmatpush1.msra.mxu0 0.0
  %4595 = vmatprep.subr.mxu0 0.0
  %4596 = vmatpush1.msra.mxu0 0.0
  %4597 = vmatprep.subr.mxu0 0.0
  %4598 = vmatpush1.msra.mxu0 0.0
  %4599 = vmatprep.subr.mxu0 0.0
  %4600 = vmatpush1.msra.mxu0 0.0
  %4601 = vmatprep.subr.mxu0 0.0
  %4602 = vmatpush1.msra.mxu0 0.0
  %4603 = vmatprep.subr.mxu0 0.0
  %4604 = vmatpush1.msra.mxu0 0.0
  %4605 = vmatprep.subr.mxu0 0.0
  %4606 = vmatpush1.msra.mxu0 0.0
  %4607 = vmatprep.subr.mxu0 0.0
  %4608 = vmatpush1.msra.mxu0 0.0
  %4609 = vmatprep.subr.mxu0 0.0
  %4610 = vmatpush1.msra.mxu0 0.0
  %4611 = vmatprep.subr.mxu0 0.0
  %4612 = vmatpush1.msra.mxu0 0.0
  %4613 = vmatprep.subr.mxu0 0.0
  %4614 = vmatpush1.msra.mxu0 0.0
  %4615 = vmatprep.subr.mxu0 0.0
  %4616 = vmatpush1.msra.mxu0 0.0
  %4617 = vmatprep.subr.mxu0 0.0
  %4618 = vmatpush1.msra.mxu0 0.0
  %4619 = vmatprep.subr.mxu0 0.0
  %4620 = vmatpush1.msra.mxu0 0.0
  %4621 = vmatprep.mubr.f32.mxu0 0.0
  %4622 = vmatmul.mubr.f32.gmra.mrb[0].mxu0 %v4534
  %v4623 = vpop.f32.mrb[0].mxu0
  %v4624 = vadd.f32 %v4531, %v4623
  %v4625 = vpop.f32.mrb[0].mxu0
  %4626 = vmatprep.mubr.f32.mxu0 0.0
  %4627 = vmatmul.mubr.f32.gmra.mrb[0].mxu0 %v4537
  %v4628 = vpop.f32.mrb[0].mxu0
  %v4629 = vadd.f32 %v4531, %v4628
  %v4630 = vpop.f32.mrb[0].mxu0
  %4631 = vmatprep.mubr.f32.mxu0 0.0
  %4632 = vmatmul.mubr.f32.gmra.mrb[0].mxu0 %v4540
  %v4633 = vpop.f32.mrb[0].mxu0
  %v4634 = vadd.f32 %v4531, %v4633
  %v4635 = vpop.f32.mrb[0].mxu0
  %4636 = vmatprep.mubr.f32.mxu0 0.0
  %4637 = vmatmul.mubr.f32.gmra.mrb[0].mxu0 %v4543
  %v4638 = vpop.f32.mrb[0].mxu0
  %v4639 = vadd.f32 %v4531, %v4638
  %v4640 = vpop.f32.mrb[0].mxu0
  %4641 = vmatprep.mubr.f32.mxu0 0.0
  %4642 = vmatmul.mubr.f32.gmra.mrb[0].mxu0 %v4546
  %v4643 = vpop.f32.mrb[0].mxu0
  %v4644 = vadd.f32 %v4531, %v4643
  %v4645 = vpop.f32.mrb[0].mxu0
  %4646 = vmatprep.mubr.f32.mxu0 0.0
  %4647 = vmatmul.mubr.f32.gmra.mrb[0].mxu0 %v4549
  %v4648 = vpop.f32.mrb[0].mxu0
  %v4649 = vadd.f32 %v4531, %v4648
  %v4650 = vpop.f32.mrb[0].mxu0
  %4651 = vmatprep.mubr.f32.mxu0 0.0
  %4652 = vmatmul.mubr.f32.gmra.mrb[0].mxu0 %v4552
  %v4653 = vpop.f32.mrb[0].mxu0
  %v4654 = vadd.f32 %v4531, %v4653
  %v4655 = vpop.f32.mrb[0].mxu0
  %4656 = vmatprep.mubr.f32.mxu0 0.0
  %4657 = vmatmul.mubr.f32.gmra.mrb[0].mxu0 %v4555
  %v4658 = vpop.f32.mrb[0].mxu0
  %v4659 = vadd.f32 %v4531, %v4658
  %v4660 = vpop.f32.mrb[0].mxu0
  %4661 = vdwg.mxu0
  %s4662 = scalar_lea.vmem %s5, 16
  %v4663 = vld [vmem:[%s4662] sm:$0xff]
  %v4664 = vld [vmem:[%s4662 + $0x8] sm:$0xff]
  %s4665 = scalar_lea.vmem %s8, 1
  %v4666 = vld [vmem:[%s4665] sm:$0x1]
  %v4668 = vlaneseq
  %v4669 = vshrl.u32 %v4668, 7
  %v4670 = vsub.s32 0, %v4669
  %v4671 = vrot.slane %v4666, %v4670
  %4673 = vmatprep.subr.mxu0 0.0
  %4674 = vmatpush1.msra.mxu0 %v4663
  %4675 = vmatprep.subr.mxu0 0.0
  %4676 = vmatpush1.msra.mxu0 %v4664
  %4677 = vmatprep.subr.mxu0 0.0
  %4678 = vmatpush1.msra.mxu0 0.0
  %4679 = vmatprep.subr.mxu0 0.0
  %4680 = vmatpush1.msra.mxu0 0.0
  %4681 = vmatprep.subr.mxu0 0.0
  %4682 = vmatpush1.msra.mxu0 0.0
  %4683 = vmatprep.subr.mxu0 0.0
  %4684 = vmatpush1.msra.mxu0 0.0
  %4685 = vmatprep.subr.mxu0 0.0
  %4686 = vmatpush1.msra.mxu0 0.0
  %4687 = vmatprep.subr.mxu0 0.0
  %4688 = vmatpush1.msra.mxu0 0.0
  %4689 = vmatprep.subr.mxu0 0.0
  %4690 = vmatpush1.msra.mxu0 0.0
  %4691 = vmatprep.subr.mxu0 0.0
  %4692 = vmatpush1.msra.mxu0 0.0
  %4693 = vmatprep.subr.mxu0 0.0
  %4694 = vmatpush1.msra.mxu0 0.0
  %4695 = vmatprep.subr.mxu0 0.0
  %4696 = vmatpush1.msra.mxu0 0.0
  %4697 = vmatprep.subr.mxu0 0.0
  %4698 = vmatpush1.msra.mxu0 0.0
  %4699 = vmatprep.subr.mxu0 0.0
  %4700 = vmatpush1.msra.mxu0 0.0
  %4701 = vmatprep.subr.mxu0 0.0
  %4702 = vmatpush1.msra.mxu0 0.0
  %4703 = vmatprep.subr.mxu0 0.0
  %4704 = vmatpush1.msra.mxu0 0.0
  %4705 = vmatprep.subr.mxu0 0.0
  %4706 = vmatpush1.msra.mxu0 0.0
  %4707 = vmatprep.subr.mxu0 0.0
  %4708 = vmatpush1.msra.mxu0 0.0
  %4709 = vmatprep.subr.mxu0 0.0
  %4710 = vmatpush1.msra.mxu0 0.0
  %4711 = vmatprep.subr.mxu0 0.0
  %4712 = vmatpush1.msra.mxu0 0.0
  %4713 = vmatprep.subr.mxu0 0.0
  %4714 = vmatpush1.msra.mxu0 0.0
  %4715 = vmatprep.subr.mxu0 0.0
  %4716 = vmatpush1.msra.mxu0 0.0
  %4717 = vmatprep.subr.mxu0 0.0
  %4718 = vmatpush1.msra.mxu0 0.0
  %4719 = vmatprep.subr.mxu0 0.0
  %4720 = vmatpush1.msra.mxu0 0.0
  %4721 = vmatprep.subr.mxu0 0.0
  %4722 = vmatpush1.msra.mxu0 0.0
  %4723 = vmatprep.subr.mxu0 0.0
  %4724 = vmatpush1.msra.mxu0 0.0
  %4725 = vmatprep.subr.mxu0 0.0
  %4726 = vmatpush1.msra.mxu0 0.0
  %4727 = vmatprep.subr.mxu0 0.0
  %4728 = vmatpush1.msra.mxu0 0.0
  %4729 = vmatprep.subr.mxu0 0.0
  %4730 = vmatpush1.msra.mxu0 0.0
  %4731 = vmatprep.subr.mxu0 0.0
  %4732 = vmatpush1.msra.mxu0 0.0
  %4733 = vmatprep.subr.mxu0 0.0
  %4734 = vmatpush1.msra.mxu0 0.0
  %4735 = vmatprep.subr.mxu0 0.0
  %4736 = vmatpush1.msra.mxu0 0.0
  %4737 = vmatprep.mubr.f32.mxu0 0.0
  %4738 = vmatmul.mubr.f32.gmra.mrb[0].mxu0 %v4534
  %v4739 = vpop.f32.mrb[0].mxu0
  %v4740 = vadd.f32 %v4671, %v4739
  %v4741 = vpop.f32.mrb[0].mxu0
  %4742 = vmatprep.mubr.f32.mxu0 0.0
  %4743 = vmatmul.mubr.f32.gmra.mrb[0].mxu0 %v4537
  %v4744 = vpop.f32.mrb[0].mxu0
  %v4745 = vadd.f32 %v4671, %v4744
  %v4746 = vpop.f32.mrb[0].mxu0
  %4747 = vmatprep.mubr.f32.mxu0 0.0
  %4748 = vmatmul.mubr.f32.gmra.mrb[0].mxu0 %v4540
  %v4749 = vpop.f32.mrb[0].mxu0
  %v4750 = vadd.f32 %v4671, %v4749
  %v4751 = vpop.f32.mrb[0].mxu0
  %4752 = vmatprep.mubr.f32.mxu0 0.0
  %4753 = vmatmul.mubr.f32.gmra.mrb[0].mxu0 %v4543
  %v4754 = vpop.f32.mrb[0].mxu0
  %v4755 = vadd.f32 %v4671, %v4754
  %v4756 = vpop.f32.mrb[0].mxu0
  %4757 = vmatprep.mubr.f32.mxu0 0.0
  %4758 = vmatmul.mubr.f32.gmra.mrb[0].mxu0 %v4546
  %v4759 = vpop.f32.mrb[0].mxu0
  %v4760 = vadd.f32 %v4671, %v4759
  %v4761 = vpop.f32.mrb[0].mxu0
  %4762 = vmatprep.mubr.f32.mxu0 0.0
  %4763 = vmatmul.mubr.f32.gmra.mrb[0].mxu0 %v4549
  %v4764 = vpop.f32.mrb[0].mxu0
  %v4765 = vadd.f32 %v4671, %v4764
  %v4766 = vpop.f32.mrb[0].mxu0
  %4767 = vmatprep.mubr.f32.mxu0 0.0
  %4768 = vmatmul.mubr.f32.gmra.mrb[0].mxu0 %v4552
  %v4769 = vpop.f32.mrb[0].mxu0
  %v4770 = vadd.f32 %v4671, %v4769
  %v4771 = vpop.f32.mrb[0].mxu0
  %4772 = vmatprep.mubr.f32.mxu0 0.0
  %4773 = vmatmul.mubr.f32.gmra.mrb[0].mxu0 %v4555
  %v4774 = vpop.f32.mrb[0].mxu0
  %v4775 = vadd.f32 %v4671, %v4774
  %v4776 = vpop.f32.mrb[0].mxu0
  %4777 = vdwg.mxu0
  %s4778 = scalar_lea.vmem %s6, 16
  %v4779 = vld [vmem:[%s4778] sm:$0xff]
  %v4780 = vld [vmem:[%s4778 + $0x8] sm:$0xff]
  %s4781 = scalar_lea.vmem %s9, 1
  %v4782 = vld [vmem:[%s4781] sm:$0x1]
  %v4784 = vlaneseq
  %v4785 = vshrl.u32 %v4784, 7
  %v4786 = vsub.s32 0, %v4785
  %v4787 = vrot.slane %v4782, %v4786
  %4789 = vmatprep.subr.mxu0 0.0
  %4790 = vmatpush1.msra.mxu0 %v4779
  %4791 = vmatprep.subr.mxu0 0.0
  %4792 = vmatpush1.msra.mxu0 %v4780
  %4793 = vmatprep.subr.mxu0 0.0
  %4794 = vmatpush1.msra.mxu0 0.0
  %4795 = vmatprep.subr.mxu0 0.0
  %4796 = vmatpush1.msra.mxu0 0.0
  %4797 = vmatprep.subr.mxu0 0.0
  %4798 = vmatpush1.msra.mxu0 0.0
  %4799 = vmatprep.subr.mxu0 0.0
  %4800 = vmatpush1.msra.mxu0 0.0
  %4801 = vmatprep.subr.mxu0 0.0
  %4802 = vmatpush1.msra.mxu0 0.0
  %4803 = vmatprep.subr.mxu0 0.0
  %4804 = vmatpush1.msra.mxu0 0.0
  %4805 = vmatprep.subr.mxu0 0.0
  %4806 = vmatpush1.msra.mxu0 0.0
  %4807 = vmatprep.subr.mxu0 0.0
  %4808 = vmatpush1.msra.mxu0 0.0
  %4809 = vmatprep.subr.mxu0 0.0
  %4810 = vmatpush1.msra.mxu0 0.0
  %4811 = vmatprep.subr.mxu0 0.0
  %4812 = vmatpush1.msra.mxu0 0.0
  %4813 = vmatprep.subr.mxu0 0.0
  %4814 = vmatpush1.msra.mxu0 0.0
  %4815 = vmatprep.subr.mxu0 0.0
  %4816 = vmatpush1.msra.mxu0 0.0
  %4817 = vmatprep.subr.mxu0 0.0
  %4818 = vmatpush1.msra.mxu0 0.0
  %4819 = vmatprep.subr.mxu0 0.0
  %4820 = vmatpush1.msra.mxu0 0.0
  %4821 = vmatprep.subr.mxu0 0.0
  %4822 = vmatpush1.msra.mxu0 0.0
  %4823 = vmatprep.subr.mxu0 0.0
  %4824 = vmatpush1.msra.mxu0 0.0
  %4825 = vmatprep.subr.mxu0 0.0
  %4826 = vmatpush1.msra.mxu0 0.0
  %4827 = vmatprep.subr.mxu0 0.0
  %4828 = vmatpush1.msra.mxu0 0.0
  %4829 = vmatprep.subr.mxu0 0.0
  %4830 = vmatpush1.msra.mxu0 0.0
  %4831 = vmatprep.subr.mxu0 0.0
  %4832 = vmatpush1.msra.mxu0 0.0
  %4833 = vmatprep.subr.mxu0 0.0
  %4834 = vmatpush1.msra.mxu0 0.0
  %4835 = vmatprep.subr.mxu0 0.0
  %4836 = vmatpush1.msra.mxu0 0.0
  %4837 = vmatprep.subr.mxu0 0.0
  %4838 = vmatpush1.msra.mxu0 0.0
  %4839 = vmatprep.subr.mxu0 0.0
  %4840 = vmatpush1.msra.mxu0 0.0
  %4841 = vmatprep.subr.mxu0 0.0
  %4842 = vmatpush1.msra.mxu0 0.0
  %4843 = vmatprep.subr.mxu0 0.0
  %4844 = vmatpush1.msra.mxu0 0.0
  %4845 = vmatprep.subr.mxu0 0.0
  %4846 = vmatpush1.msra.mxu0 0.0
  %4847 = vmatprep.subr.mxu0 0.0
  %4848 = vmatpush1.msra.mxu0 0.0
  %4849 = vmatprep.subr.mxu0 0.0
  %4850 = vmatpush1.msra.mxu0 0.0
  %4851 = vmatprep.subr.mxu0 0.0
  %4852 = vmatpush1.msra.mxu0 0.0
  %4853 = vmatprep.mubr.f32.mxu0 0.0
  %4854 = vmatmul.mubr.f32.gmra.mrb[0].mxu0 %v4534
  %v4855 = vpop.f32.mrb[0].mxu0
  %v4856 = vadd.f32 %v4787, %v4855
  %v4857 = vpop.f32.mrb[0].mxu0
  %4858 = vmatprep.mubr.f32.mxu0 0.0
  %4859 = vmatmul.mubr.f32.gmra.mrb[0].mxu0 %v4537
  %v4860 = vpop.f32.mrb[0].mxu0
  %v4861 = vadd.f32 %v4787, %v4860
  %v4862 = vpop.f32.mrb[0].mxu0
  %4863 = vmatprep.mubr.f32.mxu0 0.0
  %4864 = vmatmul.mubr.f32.gmra.mrb[0].mxu0 %v4540
  %v4865 = vpop.f32.mrb[0].mxu0
  %v4866 = vadd.f32 %v4787, %v4865
  %v4867 = vpop.f32.mrb[0].mxu0
  %4868 = vmatprep.mubr.f32.mxu0 0.0
  %4869 = vmatmul.mubr.f32.gmra.mrb[0].mxu0 %v4543
  %v4870 = vpop.f32.mrb[0].mxu0
  %v4871 = vadd.f32 %v4787, %v4870
  %v4872 = vpop.f32.mrb[0].mxu0
  %4873 = vmatprep.mubr.f32.mxu0 0.0
  %4874 = vmatmul.mubr.f32.gmra.mrb[0].mxu0 %v4546
  %v4875 = vpop.f32.mrb[0].mxu0
  %v4876 = vadd.f32 %v4787, %v4875
  %v4877 = vpop.f32.mrb[0].mxu0
  %4878 = vmatprep.mubr.f32.mxu0 0.0
  %4879 = vmatmul.mubr.f32.gmra.mrb[0].mxu0 %v4549
  %v4880 = vpop.f32.mrb[0].mxu0
  %v4881 = vadd.f32 %v4787, %v4880
  %v4882 = vpop.f32.mrb[0].mxu0
  %4883 = vmatprep.mubr.f32.mxu0 0.0
  %4884 = vmatmul.mubr.f32.gmra.mrb[0].mxu0 %v4552
  %v4885 = vpop.f32.mrb[0].mxu0
  %v4886 = vadd.f32 %v4787, %v4885
  %v4887 = vpop.f32.mrb[0].mxu0
  %4888 = vmatprep.mubr.f32.mxu0 0.0
  %4889 = vmatmul.mubr.f32.gmra.mrb[0].mxu0 %v4555
  %v4890 = vpop.f32.mrb[0].mxu0
  %v4891 = vadd.f32 %v4787, %v4890
  %v4892 = vpop.f32.mrb[0].mxu0
  %4893 = vdwg.mxu0
  %v4894 = vmul.f32 %v4624, %v532
  %v4895 = vmul.f32 %v4624, %v536
  %v4896 = vmul.f32 %v4624, %v540
  %v4897 = vmul.f32 %v4624, %v544
  %v4898 = vmul.f32 %v4624, %v548
  %v4899 = vmul.f32 %v4624, %v552
  %v4900 = vmul.f32 %v4624, %v556
  %v4901 = vmul.f32 %v4624, %v560
  %v4902 = vmul.f32 %v4629, %v532
  %v4903 = vmul.f32 %v4629, %v536
  %v4904 = vmul.f32 %v4629, %v540
  %v4905 = vmul.f32 %v4629, %v544
  %v4906 = vmul.f32 %v4629, %v548
  %v4907 = vmul.f32 %v4629, %v552
  %v4908 = vmul.f32 %v4629, %v556
  %v4909 = vmul.f32 %v4629, %v560
  %v4910 = vmul.f32 %v4634, %v532
  %v4911 = vmul.f32 %v4634, %v536
  %v4912 = vmul.f32 %v4634, %v540
  %v4913 = vmul.f32 %v4634, %v544
  %v4914 = vmul.f32 %v4634, %v548
  %v4915 = vmul.f32 %v4634, %v552
  %v4916 = vmul.f32 %v4634, %v556
  %v4917 = vmul.f32 %v4634, %v560
  %v4918 = vmul.f32 %v4639, %v532
  %v4919 = vmul.f32 %v4639, %v536
  %v4920 = vmul.f32 %v4639, %v540
  %v4921 = vmul.f32 %v4639, %v544
  %v4922 = vmul.f32 %v4639, %v548
  %v4923 = vmul.f32 %v4639, %v552
  %v4924 = vmul.f32 %v4639, %v556
  %v4925 = vmul.f32 %v4639, %v560
  %v4926 = vmul.f32 %v4644, %v532
  %v4927 = vmul.f32 %v4644, %v536
  %v4928 = vmul.f32 %v4644, %v540
  %v4929 = vmul.f32 %v4644, %v544
  %v4930 = vmul.f32 %v4644, %v548
  %v4931 = vmul.f32 %v4644, %v552
  %v4932 = vmul.f32 %v4644, %v556
  %v4933 = vmul.f32 %v4644, %v560
  %v4934 = vmul.f32 %v4649, %v532
  %v4935 = vmul.f32 %v4649, %v536
  %v4936 = vmul.f32 %v4649, %v540
  %v4937 = vmul.f32 %v4649, %v544
  %v4938 = vmul.f32 %v4649, %v548
  %v4939 = vmul.f32 %v4649, %v552
  %v4940 = vmul.f32 %v4649, %v556
  %v4941 = vmul.f32 %v4649, %v560
  %v4942 = vmul.f32 %v4654, %v532
  %v4943 = vmul.f32 %v4654, %v536
  %v4944 = vmul.f32 %v4654, %v540
  %v4945 = vmul.f32 %v4654, %v544
  %v4946 = vmul.f32 %v4654, %v548
  %v4947 = vmul.f32 %v4654, %v552
  %v4948 = vmul.f32 %v4654, %v556
  %v4949 = vmul.f32 %v4654, %v560
  %v4950 = vmul.f32 %v4659, %v532
  %v4951 = vmul.f32 %v4659, %v536
  %v4952 = vmul.f32 %v4659, %v540
  %v4953 = vmul.f32 %v4659, %v544
  %v4954 = vmul.f32 %v4659, %v548
  %v4955 = vmul.f32 %v4659, %v552
  %v4956 = vmul.f32 %v4659, %v556
  %v4957 = vmul.f32 %v4659, %v560
  %v4959 = vsel %vm121, %v4894, 0
  %v4962 = vsel %vm121, %v4895, 0
  %v4965 = vsel %vm121, %v4896, 0
  %v4968 = vsel %vm121, %v4897, 0
  %v4971 = vsel %vm121, %v4898, 0
  %v4974 = vsel %vm121, %v4899, 0
  %v4977 = vsel %vm121, %v4900, 0
  %v4980 = vsel %vm121, %v4901, 0
  %v4983 = vsel %vm121, %v4740, 0
  %4985 = vmatprep.subr.mxu0 0.0
  %4986 = vmatpush1.xpose.msra.mxu0 %v4983
  %4987 = vmatprep.subr.mxu0 0.0
  %4988 = vmatpush1.xpose.msra.mxu0 0.0
  %4989 = vmatprep.subr.mxu0 0.0
  %4990 = vmatpush1.xpose.msra.mxu0 0.0
  %4991 = vmatprep.subr.mxu0 0.0
  %4992 = vmatpush1.xpose.msra.mxu0 0.0
  %4993 = vmatprep.subr.mxu0 0.0
  %4994 = vmatpush1.xpose.msra.mxu0 0.0
  %4995 = vmatprep.subr.mxu0 0.0
  %4996 = vmatpush1.xpose.msra.mxu0 0.0
  %4997 = vmatprep.subr.mxu0 0.0
  %4998 = vmatpush1.xpose.msra.mxu0 0.0
  %4999 = vmatprep.subr.mxu0 0.0
  %5000 = vmatpush1.xpose.msra.mxu0 0.0
  %5001 = vmatprep.subr.mxu0 0.0
  %5002 = vmatpush1.xpose.msra.mxu0 0.0
  %5003 = vmatprep.subr.mxu0 0.0
  %5004 = vmatpush1.xpose.msra.mxu0 0.0
  %5005 = vmatprep.subr.mxu0 0.0
  %5006 = vmatpush1.xpose.msra.mxu0 0.0
  %5007 = vmatprep.subr.mxu0 0.0
  %5008 = vmatpush1.xpose.msra.mxu0 0.0
  %5009 = vmatprep.subr.mxu0 0.0
  %5010 = vmatpush1.xpose.msra.mxu0 0.0
  %5011 = vmatprep.subr.mxu0 0.0
  %5012 = vmatpush1.xpose.msra.mxu0 0.0
  %5013 = vmatprep.subr.mxu0 0.0
  %5014 = vmatpush1.xpose.msra.mxu0 0.0
  %5015 = vmatprep.subr.mxu0 0.0
  %5016 = vmatpush1.xpose.msra.mxu0 0.0
  %5017 = vmatprep.subr.mxu0 0.0
  %5018 = vmatpush1.xpose.msra.mxu0 0.0
  %5019 = vmatprep.subr.mxu0 0.0
  %5020 = vmatpush1.xpose.msra.mxu0 0.0
  %5021 = vmatprep.subr.mxu0 0.0
  %5022 = vmatpush1.xpose.msra.mxu0 0.0
  %5023 = vmatprep.subr.mxu0 0.0
  %5024 = vmatpush1.xpose.msra.mxu0 0.0
  %5025 = vmatprep.subr.mxu0 0.0
  %5026 = vmatpush1.xpose.msra.mxu0 0.0
  %5027 = vmatprep.subr.mxu0 0.0
  %5028 = vmatpush1.xpose.msra.mxu0 0.0
  %5029 = vmatprep.subr.mxu0 0.0
  %5030 = vmatpush1.xpose.msra.mxu0 0.0
  %5031 = vmatprep.subr.mxu0 0.0
  %5032 = vmatpush1.xpose.msra.mxu0 0.0
  %5033 = vmatprep.subr.mxu0 0.0
  %5034 = vmatpush1.xpose.msra.mxu0 0.0
  %5035 = vmatprep.subr.mxu0 0.0
  %5036 = vmatpush1.xpose.msra.mxu0 0.0
  %5037 = vmatprep.subr.mxu0 0.0
  %5038 = vmatpush1.xpose.msra.mxu0 0.0
  %5039 = vmatprep.subr.mxu0 0.0
  %5040 = vmatpush1.xpose.msra.mxu0 0.0
  %5041 = vmatprep.subr.mxu0 0.0
  %5042 = vmatpush1.xpose.msra.mxu0 0.0
  %5043 = vmatprep.subr.mxu0 0.0
  %5044 = vmatpush1.xpose.msra.mxu0 0.0
  %5045 = vmatprep.subr.mxu0 0.0
  %5046 = vmatpush1.xpose.msra.mxu0 0.0
  %5047 = vmatprep.subr.mxu0 0.0
  %5048 = vmatpush1.xpose.msra.mxu0 0.0
  %5049 = vmatprep.mubr.f32.mxu0 0.0
  %5050 = vmatmul.mubr.f32.gmra.mrb[0].mxu0 %v4959
  %v5051 = vpop.f32.mrb[0].mxu0
  %v5052 = vadd.f32 0.0, %v5051
  %v5053 = vpop.f32.mrb[0].mxu0
  %5054 = vmatprep.mubr.f32.mxu0 0.0
  %5055 = vmatmul.mubr.f32.gmra.mrb[0].mxu0 %v4962
  %v5056 = vpop.f32.mrb[0].mxu0
  %v5057 = vadd.f32 0.0, %v5056
  %v5058 = vpop.f32.mrb[0].mxu0
  %5059 = vmatprep.mubr.f32.mxu0 0.0
  %5060 = vmatmul.mubr.f32.gmra.mrb[0].mxu0 %v4965
  %v5061 = vpop.f32.mrb[0].mxu0
  %v5062 = vadd.f32 0.0, %v5061
  %v5063 = vpop.f32.mrb[0].mxu0
  %5064 = vmatprep.mubr.f32.mxu0 0.0
  %5065 = vmatmul.mubr.f32.gmra.mrb[0].mxu0 %v4968
  %v5066 = vpop.f32.mrb[0].mxu0
  %v5067 = vadd.f32 0.0, %v5066
  %v5068 = vpop.f32.mrb[0].mxu0
  %5069 = vmatprep.mubr.f32.mxu0 0.0
  %5070 = vmatmul.mubr.f32.gmra.mrb[0].mxu0 %v4971
  %v5071 = vpop.f32.mrb[0].mxu0
  %v5072 = vadd.f32 0.0, %v5071
  %v5073 = vpop.f32.mrb[0].mxu0
  %5074 = vmatprep.mubr.f32.mxu0 0.0
  %5075 = vmatmul.mubr.f32.gmra.mrb[0].mxu0 %v4974
  %v5076 = vpop.f32.mrb[0].mxu0
  %v5077 = vadd.f32 0.0, %v5076
  %v5078 = vpop.f32.mrb[0].mxu0
  %5079 = vmatprep.mubr.f32.mxu0 0.0
  %5080 = vmatmul.mubr.f32.gmra.mrb[0].mxu0 %v4977
  %v5081 = vpop.f32.mrb[0].mxu0
  %v5082 = vadd.f32 0.0, %v5081
  %v5083 = vpop.f32.mrb[0].mxu0
  %5084 = vmatprep.mubr.f32.mxu0 0.0
  %5085 = vmatmul.mubr.f32.gmra.mrb[0].mxu0 %v4980
  %v5086 = vpop.f32.mrb[0].mxu0
  %v5087 = vadd.f32 0.0, %v5086
  %v5088 = vpop.f32.mrb[0].mxu0
  %5089 = vdwg.mxu0
  %v5091 = vsel %vm121, %v4902, 0
  %v5094 = vsel %vm121, %v4903, 0
  %v5097 = vsel %vm121, %v4904, 0
  %v5100 = vsel %vm121, %v4905, 0
  %v5103 = vsel %vm121, %v4906, 0
  %v5106 = vsel %vm121, %v4907, 0
  %v5109 = vsel %vm121, %v4908, 0
  %v5112 = vsel %vm121, %v4909, 0
  %v5115 = vsel %vm121, %v4745, 0
  %5117 = vmatprep.subr.mxu0 0.0
  %5118 = vmatpush1.xpose.msra.mxu0 %v5115
  %5119 = vmatprep.subr.mxu0 0.0
  %5120 = vmatpush1.xpose.msra.mxu0 0.0
  %5121 = vmatprep.subr.mxu0 0.0
  %5122 = vmatpush1.xpose.msra.mxu0 0.0
  %5123 = vmatprep.subr.mxu0 0.0
  %5124 = vmatpush1.xpose.msra.mxu0 0.0
  %5125 = vmatprep.subr.mxu0 0.0
  %5126 = vmatpush1.xpose.msra.mxu0 0.0
  %5127 = vmatprep.subr.mxu0 0.0
  %5128 = vmatpush1.xpose.msra.mxu0 0.0
  %5129 = vmatprep.subr.mxu0 0.0
  %5130 = vmatpush1.xpose.msra.mxu0 0.0
  %5131 = vmatprep.subr.mxu0 0.0
  %5132 = vmatpush1.xpose.msra.mxu0 0.0
  %5133 = vmatprep.subr.mxu0 0.0
  %5134 = vmatpush1.xpose.msra.mxu0 0.0
  %5135 = vmatprep.subr.mxu0 0.0
  %5136 = vmatpush1.xpose.msra.mxu0 0.0
  %5137 = vmatprep.subr.mxu0 0.0
  %5138 = vmatpush1.xpose.msra.mxu0 0.0
  %5139 = vmatprep.subr.mxu0 0.0
  %5140 = vmatpush1.xpose.msra.mxu0 0.0
  %5141 = vmatprep.subr.mxu0 0.0
  %5142 = vmatpush1.xpose.msra.mxu0 0.0
  %5143 = vmatprep.subr.mxu0 0.0
  %5144 = vmatpush1.xpose.msra.mxu0 0.0
  %5145 = vmatprep.subr.mxu0 0.0
  %5146 = vmatpush1.xpose.msra.mxu0 0.0
  %5147 = vmatprep.subr.mxu0 0.0
  %5148 = vmatpush1.xpose.msra.mxu0 0.0
  %5149 = vmatprep.subr.mxu0 0.0
  %5150 = vmatpush1.xpose.msra.mxu0 0.0
  %5151 = vmatprep.subr.mxu0 0.0
  %5152 = vmatpush1.xpose.msra.mxu0 0.0
  %5153 = vmatprep.subr.mxu0 0.0
  %5154 = vmatpush1.xpose.msra.mxu0 0.0
  %5155 = vmatprep.subr.mxu0 0.0
  %5156 = vmatpush1.xpose.msra.mxu0 0.0
  %5157 = vmatprep.subr.mxu0 0.0
  %5158 = vmatpush1.xpose.msra.mxu0 0.0
  %5159 = vmatprep.subr.mxu0 0.0
  %5160 = vmatpush1.xpose.msra.mxu0 0.0
  %5161 = vmatprep.subr.mxu0 0.0
  %5162 = vmatpush1.xpose.msra.mxu0 0.0
  %5163 = vmatprep.subr.mxu0 0.0
  %5164 = vmatpush1.xpose.msra.mxu0 0.0
  %5165 = vmatprep.subr.mxu0 0.0
  %5166 = vmatpush1.xpose.msra.mxu0 0.0
  %5167 = vmatprep.subr.mxu0 0.0
  %5168 = vmatpush1.xpose.msra.mxu0 0.0
  %5169 = vmatprep.subr.mxu0 0.0
  %5170 = vmatpush1.xpose.msra.mxu0 0.0
  %5171 = vmatprep.subr.mxu0 0.0
  %5172 = vmatpush1.xpose.msra.mxu0 0.0
  %5173 = vmatprep.subr.mxu0 0.0
  %5174 = vmatpush1.xpose.msra.mxu0 0.0
  %5175 = vmatprep.subr.mxu0 0.0
  %5176 = vmatpush1.xpose.msra.mxu0 0.0
  %5177 = vmatprep.subr.mxu0 0.0
  %5178 = vmatpush1.xpose.msra.mxu0 0.0
  %5179 = vmatprep.subr.mxu0 0.0
  %5180 = vmatpush1.xpose.msra.mxu0 0.0
  %5181 = vmatprep.mubr.f32.mxu0 0.0
  %5182 = vmatmul.mubr.f32.gmra.mrb[0].mxu0 %v5091
  %v5183 = vpop.f32.mrb[0].mxu0
  %v5184 = vadd.f32 0.0, %v5183
  %v5185 = vpop.f32.mrb[0].mxu0
  %5186 = vmatprep.mubr.f32.mxu0 0.0
  %5187 = vmatmul.mubr.f32.gmra.mrb[0].mxu0 %v5094
  %v5188 = vpop.f32.mrb[0].mxu0
  %v5189 = vadd.f32 0.0, %v5188
  %v5190 = vpop.f32.mrb[0].mxu0
  %5191 = vmatprep.mubr.f32.mxu0 0.0
  %5192 = vmatmul.mubr.f32.gmra.mrb[0].mxu0 %v5097
  %v5193 = vpop.f32.mrb[0].mxu0
  %v5194 = vadd.f32 0.0, %v5193
  %v5195 = vpop.f32.mrb[0].mxu0
  %5196 = vmatprep.mubr.f32.mxu0 0.0
  %5197 = vmatmul.mubr.f32.gmra.mrb[0].mxu0 %v5100
  %v5198 = vpop.f32.mrb[0].mxu0
  %v5199 = vadd.f32 0.0, %v5198
  %v5200 = vpop.f32.mrb[0].mxu0
  %5201 = vmatprep.mubr.f32.mxu0 0.0
  %5202 = vmatmul.mubr.f32.gmra.mrb[0].mxu0 %v5103
  %v5203 = vpop.f32.mrb[0].mxu0
  %v5204 = vadd.f32 0.0, %v5203
  %v5205 = vpop.f32.mrb[0].mxu0
  %5206 = vmatprep.mubr.f32.mxu0 0.0
  %5207 = vmatmul.mubr.f32.gmra.mrb[0].mxu0 %v5106
  %v5208 = vpop.f32.mrb[0].mxu0
  %v5209 = vadd.f32 0.0, %v5208
  %v5210 = vpop.f32.mrb[0].mxu0
  %5211 = vmatprep.mubr.f32.mxu0 0.0
  %5212 = vmatmul.mubr.f32.gmra.mrb[0].mxu0 %v5109
  %v5213 = vpop.f32.mrb[0].mxu0
  %v5214 = vadd.f32 0.0, %v5213
  %v5215 = vpop.f32.mrb[0].mxu0
  %5216 = vmatprep.mubr.f32.mxu0 0.0
  %5217 = vmatmul.mubr.f32.gmra.mrb[0].mxu0 %v5112
  %v5218 = vpop.f32.mrb[0].mxu0
  %v5219 = vadd.f32 0.0, %v5218
  %v5220 = vpop.f32.mrb[0].mxu0
  %5221 = vdwg.mxu0
  %v5223 = vsel %vm121, %v4910, 0
  %v5226 = vsel %vm121, %v4911, 0
  %v5229 = vsel %vm121, %v4912, 0
  %v5232 = vsel %vm121, %v4913, 0
  %v5235 = vsel %vm121, %v4914, 0
  %v5238 = vsel %vm121, %v4915, 0
  %v5241 = vsel %vm121, %v4916, 0
  %v5244 = vsel %vm121, %v4917, 0
  %v5247 = vsel %vm121, %v4750, 0
  %5249 = vmatprep.subr.mxu0 0.0
  %5250 = vmatpush1.xpose.msra.mxu0 %v5247
  %5251 = vmatprep.subr.mxu0 0.0
  %5252 = vmatpush1.xpose.msra.mxu0 0.0
  %5253 = vmatprep.subr.mxu0 0.0
  %5254 = vmatpush1.xpose.msra.mxu0 0.0
  %5255 = vmatprep.subr.mxu0 0.0
  %5256 = vmatpush1.xpose.msra.mxu0 0.0
  %5257 = vmatprep.subr.mxu0 0.0
  %5258 = vmatpush1.xpose.msra.mxu0 0.0
  %5259 = vmatprep.subr.mxu0 0.0
  %5260 = vmatpush1.xpose.msra.mxu0 0.0
  %5261 = vmatprep.subr.mxu0 0.0
  %5262 = vmatpush1.xpose.msra.mxu0 0.0
  %5263 = vmatprep.subr.mxu0 0.0
  %5264 = vmatpush1.xpose.msra.mxu0 0.0
  %5265 = vmatprep.subr.mxu0 0.0
  %5266 = vmatpush1.xpose.msra.mxu0 0.0
  %5267 = vmatprep.subr.mxu0 0.0
  %5268 = vmatpush1.xpose.msra.mxu0 0.0
  %5269 = vmatprep.subr.mxu0 0.0
  %5270 = vmatpush1.xpose.msra.mxu0 0.0
  %5271 = vmatprep.subr.mxu0 0.0
  %5272 = vmatpush1.xpose.msra.mxu0 0.0
  %5273 = vmatprep.subr.mxu0 0.0
  %5274 = vmatpush1.xpose.msra.mxu0 0.0
  %5275 = vmatprep.subr.mxu0 0.0
  %5276 = vmatpush1.xpose.msra.mxu0 0.0
  %5277 = vmatprep.subr.mxu0 0.0
  %5278 = vmatpush1.xpose.msra.mxu0 0.0
  %5279 = vmatprep.subr.mxu0 0.0
  %5280 = vmatpush1.xpose.msra.mxu0 0.0
  %5281 = vmatprep.subr.mxu0 0.0
  %5282 = vmatpush1.xpose.msra.mxu0 0.0
  %5283 = vmatprep.subr.mxu0 0.0
  %5284 = vmatpush1.xpose.msra.mxu0 0.0
  %5285 = vmatprep.subr.mxu0 0.0
  %5286 = vmatpush1.xpose.msra.mxu0 0.0
  %5287 = vmatprep.subr.mxu0 0.0
  %5288 = vmatpush1.xpose.msra.mxu0 0.0
  %5289 = vmatprep.subr.mxu0 0.0
  %5290 = vmatpush1.xpose.msra.mxu0 0.0
  %5291 = vmatprep.subr.mxu0 0.0
  %5292 = vmatpush1.xpose.msra.mxu0 0.0
  %5293 = vmatprep.subr.mxu0 0.0
  %5294 = vmatpush1.xpose.msra.mxu0 0.0
  %5295 = vmatprep.subr.mxu0 0.0
  %5296 = vmatpush1.xpose.msra.mxu0 0.0
  %5297 = vmatprep.subr.mxu0 0.0
  %5298 = vmatpush1.xpose.msra.mxu0 0.0
  %5299 = vmatprep.subr.mxu0 0.0
  %5300 = vmatpush1.xpose.msra.mxu0 0.0
  %5301 = vmatprep.subr.mxu0 0.0
  %5302 = vmatpush1.xpose.msra.mxu0 0.0
  %5303 = vmatprep.subr.mxu0 0.0
  %5304 = vmatpush1.xpose.msra.mxu0 0.0
  %5305 = vmatprep.subr.mxu0 0.0
  %5306 = vmatpush1.xpose.msra.mxu0 0.0
  %5307 = vmatprep.subr.mxu0 0.0
  %5308 = vmatpush1.xpose.msra.mxu0 0.0
  %5309 = vmatprep.subr.mxu0 0.0
  %5310 = vmatpush1.xpose.msra.mxu0 0.0
  %5311 = vmatprep.subr.mxu0 0.0
  %5312 = vmatpush1.xpose.msra.mxu0 0.0
  %5313 = vmatprep.mubr.f32.mxu0 0.0
  %5314 = vmatmul.mubr.f32.gmra.mrb[0].mxu0 %v5223
  %v5315 = vpop.f32.mrb[0].mxu0
  %v5316 = vadd.f32 0.0, %v5315
  %v5317 = vpop.f32.mrb[0].mxu0
  %5318 = vmatprep.mubr.f32.mxu0 0.0
  %5319 = vmatmul.mubr.f32.gmra.mrb[0].mxu0 %v5226
  %v5320 = vpop.f32.mrb[0].mxu0
  %v5321 = vadd.f32 0.0, %v5320
  %v5322 = vpop.f32.mrb[0].mxu0
  %5323 = vmatprep.mubr.f32.mxu0 0.0
  %5324 = vmatmul.mubr.f32.gmra.mrb[0].mxu0 %v5229
  %v5325 = vpop.f32.mrb[0].mxu0
  %v5326 = vadd.f32 0.0, %v5325
  %v5327 = vpop.f32.mrb[0].mxu0
  %5328 = vmatprep.mubr.f32.mxu0 0.0
  %5329 = vmatmul.mubr.f32.gmra.mrb[0].mxu0 %v5232
  %v5330 = vpop.f32.mrb[0].mxu0
  %v5331 = vadd.f32 0.0, %v5330
  %v5332 = vpop.f32.mrb[0].mxu0
  %5333 = vmatprep.mubr.f32.mxu0 0.0
  %5334 = vmatmul.mubr.f32.gmra.mrb[0].mxu0 %v5235
  %v5335 = vpop.f32.mrb[0].mxu0
  %v5336 = vadd.f32 0.0, %v5335
  %v5337 = vpop.f32.mrb[0].mxu0
  %5338 = vmatprep.mubr.f32.mxu0 0.0
  %5339 = vmatmul.mubr.f32.gmra.mrb[0].mxu0 %v5238
  %v5340 = vpop.f32.mrb[0].mxu0
  %v5341 = vadd.f32 0.0, %v5340
  %v5342 = vpop.f32.mrb[0].mxu0
  %5343 = vmatprep.mubr.f32.mxu0 0.0
  %5344 = vmatmul.mubr.f32.gmra.mrb[0].mxu0 %v5241
  %v5345 = vpop.f32.mrb[0].mxu0
  %v5346 = vadd.f32 0.0, %v5345
  %v5347 = vpop.f32.mrb[0].mxu0
  %5348 = vmatprep.mubr.f32.mxu0 0.0
  %5349 = vmatmul.mubr.f32.gmra.mrb[0].mxu0 %v5244
  %v5350 = vpop.f32.mrb[0].mxu0
  %v5351 = vadd.f32 0.0, %v5350
  %v5352 = vpop.f32.mrb[0].mxu0
  %5353 = vdwg.mxu0
  %v5355 = vsel %vm121, %v4918, 0
  %v5358 = vsel %vm121, %v4919, 0
  %v5361 = vsel %vm121, %v4920, 0
  %v5364 = vsel %vm121, %v4921, 0
  %v5367 = vsel %vm121, %v4922, 0
  %v5370 = vsel %vm121, %v4923, 0
  %v5373 = vsel %vm121, %v4924, 0
  %v5376 = vsel %vm121, %v4925, 0
  %v5379 = vsel %vm121, %v4755, 0
  %5381 = vmatprep.subr.mxu0 0.0
  %5382 = vmatpush1.xpose.msra.mxu0 %v5379
  %5383 = vmatprep.subr.mxu0 0.0
  %5384 = vmatpush1.xpose.msra.mxu0 0.0
  %5385 = vmatprep.subr.mxu0 0.0
  %5386 = vmatpush1.xpose.msra.mxu0 0.0
  %5387 = vmatprep.subr.mxu0 0.0
  %5388 = vmatpush1.xpose.msra.mxu0 0.0
  %5389 = vmatprep.subr.mxu0 0.0
  %5390 = vmatpush1.xpose.msra.mxu0 0.0
  %5391 = vmatprep.subr.mxu0 0.0
  %5392 = vmatpush1.xpose.msra.mxu0 0.0
  %5393 = vmatprep.subr.mxu0 0.0
  %5394 = vmatpush1.xpose.msra.mxu0 0.0
  %5395 = vmatprep.subr.mxu0 0.0
  %5396 = vmatpush1.xpose.msra.mxu0 0.0
  %5397 = vmatprep.subr.mxu0 0.0
  %5398 = vmatpush1.xpose.msra.mxu0 0.0
  %5399 = vmatprep.subr.mxu0 0.0
  %5400 = vmatpush1.xpose.msra.mxu0 0.0
  %5401 = vmatprep.subr.mxu0 0.0
  %5402 = vmatpush1.xpose.msra.mxu0 0.0
  %5403 = vmatprep.subr.mxu0 0.0
  %5404 = vmatpush1.xpose.msra.mxu0 0.0
  %5405 = vmatprep.subr.mxu0 0.0
  %5406 = vmatpush1.xpose.msra.mxu0 0.0
  %5407 = vmatprep.subr.mxu0 0.0
  %5408 = vmatpush1.xpose.msra.mxu0 0.0
  %5409 = vmatprep.subr.mxu0 0.0
  %5410 = vmatpush1.xpose.msra.mxu0 0.0
  %5411 = vmatprep.subr.mxu0 0.0
  %5412 = vmatpush1.xpose.msra.mxu0 0.0
  %5413 = vmatprep.subr.mxu0 0.0
  %5414 = vmatpush1.xpose.msra.mxu0 0.0
  %5415 = vmatprep.subr.mxu0 0.0
  %5416 = vmatpush1.xpose.msra.mxu0 0.0
  %5417 = vmatprep.subr.mxu0 0.0
  %5418 = vmatpush1.xpose.msra.mxu0 0.0
  %5419 = vmatprep.subr.mxu0 0.0
  %5420 = vmatpush1.xpose.msra.mxu0 0.0
  %5421 = vmatprep.subr.mxu0 0.0
  %5422 = vmatpush1.xpose.msra.mxu0 0.0
  %5423 = vmatprep.subr.mxu0 0.0
  %5424 = vmatpush1.xpose.msra.mxu0 0.0
  %5425 = vmatprep.subr.mxu0 0.0
  %5426 = vmatpush1.xpose.msra.mxu0 0.0
  %5427 = vmatprep.subr.mxu0 0.0
  %5428 = vmatpush1.xpose.msra.mxu0 0.0
  %5429 = vmatprep.subr.mxu0 0.0
  %5430 = vmatpush1.xpose.msra.mxu0 0.0
  %5431 = vmatprep.subr.mxu0 0.0
  %5432 = vmatpush1.xpose.msra.mxu0 0.0
  %5433 = vmatprep.subr.mxu0 0.0
  %5434 = vmatpush1.xpose.msra.mxu0 0.0
  %5435 = vmatprep.subr.mxu0 0.0
  %5436 = vmatpush1.xpose.msra.mxu0 0.0
  %5437 = vmatprep.subr.mxu0 0.0
  %5438 = vmatpush1.xpose.msra.mxu0 0.0
  %5439 = vmatprep.subr.mxu0 0.0
  %5440 = vmatpush1.xpose.msra.mxu0 0.0
  %5441 = vmatprep.subr.mxu0 0.0
  %5442 = vmatpush1.xpose.msra.mxu0 0.0
  %5443 = vmatprep.subr.mxu0 0.0
  %5444 = vmatpush1.xpose.msra.mxu0 0.0
  %5445 = vmatprep.mubr.f32.mxu0 0.0
  %5446 = vmatmul.mubr.f32.gmra.mrb[0].mxu0 %v5355
  %v5447 = vpop.f32.mrb[0].mxu0
  %v5448 = vadd.f32 0.0, %v5447
  %v5449 = vpop.f32.mrb[0].mxu0
  %5450 = vmatprep.mubr.f32.mxu0 0.0
  %5451 = vmatmul.mubr.f32.gmra.mrb[0].mxu0 %v5358
  %v5452 = vpop.f32.mrb[0].mxu0
  %v5453 = vadd.f32 0.0, %v5452
  %v5454 = vpop.f32.mrb[0].mxu0
  %5455 = vmatprep.mubr.f32.mxu0 0.0
  %5456 = vmatmul.mubr.f32.gmra.mrb[0].mxu0 %v5361
  %v5457 = vpop.f32.mrb[0].mxu0
  %v5458 = vadd.f32 0.0, %v5457
  %v5459 = vpop.f32.mrb[0].mxu0
  %5460 = vmatprep.mubr.f32.mxu0 0.0
  %5461 = vmatmul.mubr.f32.gmra.mrb[0].mxu0 %v5364
  %v5462 = vpop.f32.mrb[0].mxu0
  %v5463 = vadd.f32 0.0, %v5462
  %v5464 = vpop.f32.mrb[0].mxu0
  %5465 = vmatprep.mubr.f32.mxu0 0.0
  %5466 = vmatmul.mubr.f32.gmra.mrb[0].mxu0 %v5367
  %v5467 = vpop.f32.mrb[0].mxu0
  %v5468 = vadd.f32 0.0, %v5467
  %v5469 = vpop.f32.mrb[0].mxu0
  %5470 = vmatprep.mubr.f32.mxu0 0.0
  %5471 = vmatmul.mubr.f32.gmra.mrb[0].mxu0 %v5370
  %v5472 = vpop.f32.mrb[0].mxu0
  %v5473 = vadd.f32 0.0, %v5472
  %v5474 = vpop.f32.mrb[0].mxu0
  %5475 = vmatprep.mubr.f32.mxu0 0.0
  %5476 = vmatmul.mubr.f32.gmra.mrb[0].mxu0 %v5373
  %v5477 = vpop.f32.mrb[0].mxu0
  %v5478 = vadd.f32 0.0, %v5477
  %v5479 = vpop.f32.mrb[0].mxu0
  %5480 = vmatprep.mubr.f32.mxu0 0.0
  %5481 = vmatmul.mubr.f32.gmra.mrb[0].mxu0 %v5376
  %v5482 = vpop.f32.mrb[0].mxu0
  %v5483 = vadd.f32 0.0, %v5482
  %v5484 = vpop.f32.mrb[0].mxu0
  %5485 = vdwg.mxu0
  %v5487 = vsel %vm121, %v4926, 0
  %v5490 = vsel %vm121, %v4927, 0
  %v5493 = vsel %vm121, %v4928, 0
  %v5496 = vsel %vm121, %v4929, 0
  %v5499 = vsel %vm121, %v4930, 0
  %v5502 = vsel %vm121, %v4931, 0
  %v5505 = vsel %vm121, %v4932, 0
  %v5508 = vsel %vm121, %v4933, 0
  %v5511 = vsel %vm121, %v4760, 0
  %5513 = vmatprep.subr.mxu0 0.0
  %5514 = vmatpush1.xpose.msra.mxu0 %v5511
  %5515 = vmatprep.subr.mxu0 0.0
  %5516 = vmatpush1.xpose.msra.mxu0 0.0
  %5517 = vmatprep.subr.mxu0 0.0
  %5518 = vmatpush1.xpose.msra.mxu0 0.0
  %5519 = vmatprep.subr.mxu0 0.0
  %5520 = vmatpush1.xpose.msra.mxu0 0.0
  %5521 = vmatprep.subr.mxu0 0.0
  %5522 = vmatpush1.xpose.msra.mxu0 0.0
  %5523 = vmatprep.subr.mxu0 0.0
  %5524 = vmatpush1.xpose.msra.mxu0 0.0
  %5525 = vmatprep.subr.mxu0 0.0
  %5526 = vmatpush1.xpose.msra.mxu0 0.0
  %5527 = vmatprep.subr.mxu0 0.0
  %5528 = vmatpush1.xpose.msra.mxu0 0.0
  %5529 = vmatprep.subr.mxu0 0.0
  %5530 = vmatpush1.xpose.msra.mxu0 0.0
  %5531 = vmatprep.subr.mxu0 0.0
  %5532 = vmatpush1.xpose.msra.mxu0 0.0
  %5533 = vmatprep.subr.mxu0 0.0
  %5534 = vmatpush1.xpose.msra.mxu0 0.0
  %5535 = vmatprep.subr.mxu0 0.0
  %5536 = vmatpush1.xpose.msra.mxu0 0.0
  %5537 = vmatprep.subr.mxu0 0.0
  %5538 = vmatpush1.xpose.msra.mxu0 0.0
  %5539 = vmatprep.subr.mxu0 0.0
  %5540 = vmatpush1.xpose.msra.mxu0 0.0
  %5541 = vmatprep.subr.mxu0 0.0
  %5542 = vmatpush1.xpose.msra.mxu0 0.0
  %5543 = vmatprep.subr.mxu0 0.0
  %5544 = vmatpush1.xpose.msra.mxu0 0.0
  %5545 = vmatprep.subr.mxu0 0.0
  %5546 = vmatpush1.xpose.msra.mxu0 0.0
  %5547 = vmatprep.subr.mxu0 0.0
  %5548 = vmatpush1.xpose.msra.mxu0 0.0
  %5549 = vmatprep.subr.mxu0 0.0
  %5550 = vmatpush1.xpose.msra.mxu0 0.0
  %5551 = vmatprep.subr.mxu0 0.0
  %5552 = vmatpush1.xpose.msra.mxu0 0.0
  %5553 = vmatprep.subr.mxu0 0.0
  %5554 = vmatpush1.xpose.msra.mxu0 0.0
  %5555 = vmatprep.subr.mxu0 0.0
  %5556 = vmatpush1.xpose.msra.mxu0 0.0
  %5557 = vmatprep.subr.mxu0 0.0
  %5558 = vmatpush1.xpose.msra.mxu0 0.0
  %5559 = vmatprep.subr.mxu0 0.0
  %5560 = vmatpush1.xpose.msra.mxu0 0.0
  %5561 = vmatprep.subr.mxu0 0.0
  %5562 = vmatpush1.xpose.msra.mxu0 0.0
  %5563 = vmatprep.subr.mxu0 0.0
  %5564 = vmatpush1.xpose.msra.mxu0 0.0
  %5565 = vmatprep.subr.mxu0 0.0
  %5566 = vmatpush1.xpose.msra.mxu0 0.0
  %5567 = vmatprep.subr.mxu0 0.0
  %5568 = vmatpush1.xpose.msra.mxu0 0.0
  %5569 = vmatprep.subr.mxu0 0.0
  %5570 = vmatpush1.xpose.msra.mxu0 0.0
  %5571 = vmatprep.subr.mxu0 0.0
  %5572 = vmatpush1.xpose.msra.mxu0 0.0
  %5573 = vmatprep.subr.mxu0 0.0
  %5574 = vmatpush1.xpose.msra.mxu0 0.0
  %5575 = vmatprep.subr.mxu0 0.0
  %5576 = vmatpush1.xpose.msra.mxu0 0.0
  %5577 = vmatprep.mubr.f32.mxu0 0.0
  %5578 = vmatmul.mubr.f32.gmra.mrb[0].mxu0 %v5487
  %v5579 = vpop.f32.mrb[0].mxu0
  %v5580 = vadd.f32 0.0, %v5579
  %v5581 = vpop.f32.mrb[0].mxu0
  %5582 = vmatprep.mubr.f32.mxu0 0.0
  %5583 = vmatmul.mubr.f32.gmra.mrb[0].mxu0 %v5490
  %v5584 = vpop.f32.mrb[0].mxu0
  %v5585 = vadd.f32 0.0, %v5584
  %v5586 = vpop.f32.mrb[0].mxu0
  %5587 = vmatprep.mubr.f32.mxu0 0.0
  %5588 = vmatmul.mubr.f32.gmra.mrb[0].mxu0 %v5493
  %v5589 = vpop.f32.mrb[0].mxu0
  %v5590 = vadd.f32 0.0, %v5589
  %v5591 = vpop.f32.mrb[0].mxu0
  %5592 = vmatprep.mubr.f32.mxu0 0.0
  %5593 = vmatmul.mubr.f32.gmra.mrb[0].mxu0 %v5496
  %v5594 = vpop.f32.mrb[0].mxu0
  %v5595 = vadd.f32 0.0, %v5594
  %v5596 = vpop.f32.mrb[0].mxu0
  %5597 = vmatprep.mubr.f32.mxu0 0.0
  %5598 = vmatmul.mubr.f32.gmra.mrb[0].mxu0 %v5499
  %v5599 = vpop.f32.mrb[0].mxu0
  %v5600 = vadd.f32 0.0, %v5599
  %v5601 = vpop.f32.mrb[0].mxu0
  %5602 = vmatprep.mubr.f32.mxu0 0.0
  %5603 = vmatmul.mubr.f32.gmra.mrb[0].mxu0 %v5502
  %v5604 = vpop.f32.mrb[0].mxu0
  %v5605 = vadd.f32 0.0, %v5604
  %v5606 = vpop.f32.mrb[0].mxu0
  %5607 = vmatprep.mubr.f32.mxu0 0.0
  %5608 = vmatmul.mubr.f32.gmra.mrb[0].mxu0 %v5505
  %v5609 = vpop.f32.mrb[0].mxu0
  %v5610 = vadd.f32 0.0, %v5609
  %v5611 = vpop.f32.mrb[0].mxu0
  %5612 = vmatprep.mubr.f32.mxu0 0.0
  %5613 = vmatmul.mubr.f32.gmra.mrb[0].mxu0 %v5508
  %v5614 = vpop.f32.mrb[0].mxu0
  %v5615 = vadd.f32 0.0, %v5614
  %v5616 = vpop.f32.mrb[0].mxu0
  %5617 = vdwg.mxu0
  %v5619 = vsel %vm121, %v4934, 0
  %v5622 = vsel %vm121, %v4935, 0
  %v5625 = vsel %vm121, %v4936, 0
  %v5628 = vsel %vm121, %v4937, 0
  %v5631 = vsel %vm121, %v4938, 0
  %v5634 = vsel %vm121, %v4939, 0
  %v5637 = vsel %vm121, %v4940, 0
  %v5640 = vsel %vm121, %v4941, 0
  %v5643 = vsel %vm121, %v4765, 0
  %5645 = vmatprep.subr.mxu0 0.0
  %5646 = vmatpush1.xpose.msra.mxu0 %v5643
  %5647 = vmatprep.subr.mxu0 0.0
  %5648 = vmatpush1.xpose.msra.mxu0 0.0
  %5649 = vmatprep.subr.mxu0 0.0
  %5650 = vmatpush1.xpose.msra.mxu0 0.0
  %5651 = vmatprep.subr.mxu0 0.0
  %5652 = vmatpush1.xpose.msra.mxu0 0.0
  %5653 = vmatprep.subr.mxu0 0.0
  %5654 = vmatpush1.xpose.msra.mxu0 0.0
  %5655 = vmatprep.subr.mxu0 0.0
  %5656 = vmatpush1.xpose.msra.mxu0 0.0
  %5657 = vmatprep.subr.mxu0 0.0
  %5658 = vmatpush1.xpose.msra.mxu0 0.0
  %5659 = vmatprep.subr.mxu0 0.0
  %5660 = vmatpush1.xpose.msra.mxu0 0.0
  %5661 = vmatprep.subr.mxu0 0.0
  %5662 = vmatpush1.xpose.msra.mxu0 0.0
  %5663 = vmatprep.subr.mxu0 0.0
  %5664 = vmatpush1.xpose.msra.mxu0 0.0
  %5665 = vmatprep.subr.mxu0 0.0
  %5666 = vmatpush1.xpose.msra.mxu0 0.0
  %5667 = vmatprep.subr.mxu0 0.0
  %5668 = vmatpush1.xpose.msra.mxu0 0.0
  %5669 = vmatprep.subr.mxu0 0.0
  %5670 = vmatpush1.xpose.msra.mxu0 0.0
  %5671 = vmatprep.subr.mxu0 0.0
  %5672 = vmatpush1.xpose.msra.mxu0 0.0
  %5673 = vmatprep.subr.mxu0 0.0
  %5674 = vmatpush1.xpose.msra.mxu0 0.0
  %5675 = vmatprep.subr.mxu0 0.0
  %5676 = vmatpush1.xpose.msra.mxu0 0.0
  %5677 = vmatprep.subr.mxu0 0.0
  %5678 = vmatpush1.xpose.msra.mxu0 0.0
  %5679 = vmatprep.subr.mxu0 0.0
  %5680 = vmatpush1.xpose.msra.mxu0 0.0
  %5681 = vmatprep.subr.mxu0 0.0
  %5682 = vmatpush1.xpose.msra.mxu0 0.0
  %5683 = vmatprep.subr.mxu0 0.0
  %5684 = vmatpush1.xpose.msra.mxu0 0.0
  %5685 = vmatprep.subr.mxu0 0.0
  %5686 = vmatpush1.xpose.msra.mxu0 0.0
  %5687 = vmatprep.subr.mxu0 0.0
  %5688 = vmatpush1.xpose.msra.mxu0 0.0
  %5689 = vmatprep.subr.mxu0 0.0
  %5690 = vmatpush1.xpose.msra.mxu0 0.0
  %5691 = vmatprep.subr.mxu0 0.0
  %5692 = vmatpush1.xpose.msra.mxu0 0.0
  %5693 = vmatprep.subr.mxu0 0.0
  %5694 = vmatpush1.xpose.msra.mxu0 0.0
  %5695 = vmatprep.subr.mxu0 0.0
  %5696 = vmatpush1.xpose.msra.mxu0 0.0
  %5697 = vmatprep.subr.mxu0 0.0
  %5698 = vmatpush1.xpose.msra.mxu0 0.0
  %5699 = vmatprep.subr.mxu0 0.0
  %5700 = vmatpush1.xpose.msra.mxu0 0.0
  %5701 = vmatprep.subr.mxu0 0.0
  %5702 = vmatpush1.xpose.msra.mxu0 0.0
  %5703 = vmatprep.subr.mxu0 0.0
  %5704 = vmatpush1.xpose.msra.mxu0 0.0
  %5705 = vmatprep.subr.mxu0 0.0
  %5706 = vmatpush1.xpose.msra.mxu0 0.0
  %5707 = vmatprep.subr.mxu0 0.0
  %5708 = vmatpush1.xpose.msra.mxu0 0.0
  %5709 = vmatprep.mubr.f32.mxu0 0.0
  %5710 = vmatmul.mubr.f32.gmra.mrb[0].mxu0 %v5619
  %v5711 = vpop.f32.mrb[0].mxu0
  %v5712 = vadd.f32 0.0, %v5711
  %v5713 = vpop.f32.mrb[0].mxu0
  %5714 = vmatprep.mubr.f32.mxu0 0.0
  %5715 = vmatmul.mubr.f32.gmra.mrb[0].mxu0 %v5622
  %v5716 = vpop.f32.mrb[0].mxu0
  %v5717 = vadd.f32 0.0, %v5716
  %v5718 = vpop.f32.mrb[0].mxu0
  %5719 = vmatprep.mubr.f32.mxu0 0.0
  %5720 = vmatmul.mubr.f32.gmra.mrb[0].mxu0 %v5625
  %v5721 = vpop.f32.mrb[0].mxu0
  %v5722 = vadd.f32 0.0, %v5721
  %v5723 = vpop.f32.mrb[0].mxu0
  %5724 = vmatprep.mubr.f32.mxu0 0.0
  %5725 = vmatmul.mubr.f32.gmra.mrb[0].mxu0 %v5628
  %v5726 = vpop.f32.mrb[0].mxu0
  %v5727 = vadd.f32 0.0, %v5726
  %v5728 = vpop.f32.mrb[0].mxu0
  %5729 = vmatprep.mubr.f32.mxu0 0.0
  %5730 = vmatmul.mubr.f32.gmra.mrb[0].mxu0 %v5631
  %v5731 = vpop.f32.mrb[0].mxu0
  %v5732 = vadd.f32 0.0, %v5731
  %v5733 = vpop.f32.mrb[0].mxu0
  %5734 = vmatprep.mubr.f32.mxu0 0.0
  %5735 = vmatmul.mubr.f32.gmra.mrb[0].mxu0 %v5634
  %v5736 = vpop.f32.mrb[0].mxu0
  %v5737 = vadd.f32 0.0, %v5736
  %v5738 = vpop.f32.mrb[0].mxu0
  %5739 = vmatprep.mubr.f32.mxu0 0.0
  %5740 = vmatmul.mubr.f32.gmra.mrb[0].mxu0 %v5637
  %v5741 = vpop.f32.mrb[0].mxu0
  %v5742 = vadd.f32 0.0, %v5741
  %v5743 = vpop.f32.mrb[0].mxu0
  %5744 = vmatprep.mubr.f32.mxu0 0.0
  %5745 = vmatmul.mubr.f32.gmra.mrb[0].mxu0 %v5640
  %v5746 = vpop.f32.mrb[0].mxu0
  %v5747 = vadd.f32 0.0, %v5746
  %v5748 = vpop.f32.mrb[0].mxu0
  %5749 = vdwg.mxu0
  %v5751 = vsel %vm121, %v4942, 0
  %v5754 = vsel %vm121, %v4943, 0
  %v5757 = vsel %vm121, %v4944, 0
  %v5760 = vsel %vm121, %v4945, 0
  %v5763 = vsel %vm121, %v4946, 0
  %v5766 = vsel %vm121, %v4947, 0
  %v5769 = vsel %vm121, %v4948, 0
  %v5772 = vsel %vm121, %v4949, 0
  %v5775 = vsel %vm121, %v4770, 0
  %5777 = vmatprep.subr.mxu0 0.0
  %5778 = vmatpush1.xpose.msra.mxu0 %v5775
  %5779 = vmatprep.subr.mxu0 0.0
  %5780 = vmatpush1.xpose.msra.mxu0 0.0
  %5781 = vmatprep.subr.mxu0 0.0
  %5782 = vmatpush1.xpose.msra.mxu0 0.0
  %5783 = vmatprep.subr.mxu0 0.0
  %5784 = vmatpush1.xpose.msra.mxu0 0.0
  %5785 = vmatprep.subr.mxu0 0.0
  %5786 = vmatpush1.xpose.msra.mxu0 0.0
  %5787 = vmatprep.subr.mxu0 0.0
  %5788 = vmatpush1.xpose.msra.mxu0 0.0
  %5789 = vmatprep.subr.mxu0 0.0
  %5790 = vmatpush1.xpose.msra.mxu0 0.0
  %5791 = vmatprep.subr.mxu0 0.0
  %5792 = vmatpush1.xpose.msra.mxu0 0.0
  %5793 = vmatprep.subr.mxu0 0.0
  %5794 = vmatpush1.xpose.msra.mxu0 0.0
  %5795 = vmatprep.subr.mxu0 0.0
  %5796 = vmatpush1.xpose.msra.mxu0 0.0
  %5797 = vmatprep.subr.mxu0 0.0
  %5798 = vmatpush1.xpose.msra.mxu0 0.0
  %5799 = vmatprep.subr.mxu0 0.0
  %5800 = vmatpush1.xpose.msra.mxu0 0.0
  %5801 = vmatprep.subr.mxu0 0.0
  %5802 = vmatpush1.xpose.msra.mxu0 0.0
  %5803 = vmatprep.subr.mxu0 0.0
  %5804 = vmatpush1.xpose.msra.mxu0 0.0
  %5805 = vmatprep.subr.mxu0 0.0
  %5806 = vmatpush1.xpose.msra.mxu0 0.0
  %5807 = vmatprep.subr.mxu0 0.0
  %5808 = vmatpush1.xpose.msra.mxu0 0.0
  %5809 = vmatprep.subr.mxu0 0.0
  %5810 = vmatpush1.xpose.msra.mxu0 0.0
  %5811 = vmatprep.subr.mxu0 0.0
  %5812 = vmatpush1.xpose.msra.mxu0 0.0
  %5813 = vmatprep.subr.mxu0 0.0
  %5814 = vmatpush1.xpose.msra.mxu0 0.0
  %5815 = vmatprep.subr.mxu0 0.0
  %5816 = vmatpush1.xpose.msra.mxu0 0.0
  %5817 = vmatprep.subr.mxu0 0.0
  %5818 = vmatpush1.xpose.msra.mxu0 0.0
  %5819 = vmatprep.subr.mxu0 0.0
  %5820 = vmatpush1.xpose.msra.mxu0 0.0
  %5821 = vmatprep.subr.mxu0 0.0
  %5822 = vmatpush1.xpose.msra.mxu0 0.0
  %5823 = vmatprep.subr.mxu0 0.0
  %5824 = vmatpush1.xpose.msra.mxu0 0.0
  %5825 = vmatprep.subr.mxu0 0.0
  %5826 = vmatpush1.xpose.msra.mxu0 0.0
  %5827 = vmatprep.subr.mxu0 0.0
  %5828 = vmatpush1.xpose.msra.mxu0 0.0
  %5829 = vmatprep.subr.mxu0 0.0
  %5830 = vmatpush1.xpose.msra.mxu0 0.0
  %5831 = vmatprep.subr.mxu0 0.0
  %5832 = vmatpush1.xpose.msra.mxu0 0.0
  %5833 = vmatprep.subr.mxu0 0.0
  %5834 = vmatpush1.xpose.msra.mxu0 0.0
  %5835 = vmatprep.subr.mxu0 0.0
  %5836 = vmatpush1.xpose.msra.mxu0 0.0
  %5837 = vmatprep.subr.mxu0 0.0
  %5838 = vmatpush1.xpose.msra.mxu0 0.0
  %5839 = vmatprep.subr.mxu0 0.0
  %5840 = vmatpush1.xpose.msra.mxu0 0.0
  %5841 = vmatprep.mubr.f32.mxu0 0.0
  %5842 = vmatmul.mubr.f32.gmra.mrb[0].mxu0 %v5751
  %v5843 = vpop.f32.mrb[0].mxu0
  %v5844 = vadd.f32 0.0, %v5843
  %v5845 = vpop.f32.mrb[0].mxu0
  %5846 = vmatprep.mubr.f32.mxu0 0.0
  %5847 = vmatmul.mubr.f32.gmra.mrb[0].mxu0 %v5754
  %v5848 = vpop.f32.mrb[0].mxu0
  %v5849 = vadd.f32 0.0, %v5848
  %v5850 = vpop.f32.mrb[0].mxu0
  %5851 = vmatprep.mubr.f32.mxu0 0.0
  %5852 = vmatmul.mubr.f32.gmra.mrb[0].mxu0 %v5757
  %v5853 = vpop.f32.mrb[0].mxu0
  %v5854 = vadd.f32 0.0, %v5853
  %v5855 = vpop.f32.mrb[0].mxu0
  %5856 = vmatprep.mubr.f32.mxu0 0.0
  %5857 = vmatmul.mubr.f32.gmra.mrb[0].mxu0 %v5760
  %v5858 = vpop.f32.mrb[0].mxu0
  %v5859 = vadd.f32 0.0, %v5858
  %v5860 = vpop.f32.mrb[0].mxu0
  %5861 = vmatprep.mubr.f32.mxu0 0.0
  %5862 = vmatmul.mubr.f32.gmra.mrb[0].mxu0 %v5763
  %v5863 = vpop.f32.mrb[0].mxu0
  %v5864 = vadd.f32 0.0, %v5863
  %v5865 = vpop.f32.mrb[0].mxu0
  %5866 = vmatprep.mubr.f32.mxu0 0.0
  %5867 = vmatmul.mubr.f32.gmra.mrb[0].mxu0 %v5766
  %v5868 = vpop.f32.mrb[0].mxu0
  %v5869 = vadd.f32 0.0, %v5868
  %v5870 = vpop.f32.mrb[0].mxu0
  %5871 = vmatprep.mubr.f32.mxu0 0.0
  %5872 = vmatmul.mubr.f32.gmra.mrb[0].mxu0 %v5769
  %v5873 = vpop.f32.mrb[0].mxu0
  %v5874 = vadd.f32 0.0, %v5873
  %v5875 = vpop.f32.mrb[0].mxu0
  %5876 = vmatprep.mubr.f32.mxu0 0.0
  %5877 = vmatmul.mubr.f32.gmra.mrb[0].mxu0 %v5772
  %v5878 = vpop.f32.mrb[0].mxu0
  %v5879 = vadd.f32 0.0, %v5878
  %v5880 = vpop.f32.mrb[0].mxu0
  %5881 = vdwg.mxu0
  %v5883 = vsel %vm121, %v4950, 0
  %v5886 = vsel %vm121, %v4951, 0
  %v5889 = vsel %vm121, %v4952, 0
  %v5892 = vsel %vm121, %v4953, 0
  %v5895 = vsel %vm121, %v4954, 0
  %v5898 = vsel %vm121, %v4955, 0
  %v5901 = vsel %vm121, %v4956, 0
  %v5904 = vsel %vm121, %v4957, 0
  %v5907 = vsel %vm121, %v4775, 0
  %5909 = vmatprep.subr.mxu0 0.0
  %5910 = vmatpush1.xpose.msra.mxu0 %v5907
  %5911 = vmatprep.subr.mxu0 0.0
  %5912 = vmatpush1.xpose.msra.mxu0 0.0
  %5913 = vmatprep.subr.mxu0 0.0
  %5914 = vmatpush1.xpose.msra.mxu0 0.0
  %5915 = vmatprep.subr.mxu0 0.0
  %5916 = vmatpush1.xpose.msra.mxu0 0.0
  %5917 = vmatprep.subr.mxu0 0.0
  %5918 = vmatpush1.xpose.msra.mxu0 0.0
  %5919 = vmatprep.subr.mxu0 0.0
  %5920 = vmatpush1.xpose.msra.mxu0 0.0
  %5921 = vmatprep.subr.mxu0 0.0
  %5922 = vmatpush1.xpose.msra.mxu0 0.0
  %5923 = vmatprep.subr.mxu0 0.0
  %5924 = vmatpush1.xpose.msra.mxu0 0.0
  %5925 = vmatprep.subr.mxu0 0.0
  %5926 = vmatpush1.xpose.msra.mxu0 0.0
  %5927 = vmatprep.subr.mxu0 0.0
  %5928 = vmatpush1.xpose.msra.mxu0 0.0
  %5929 = vmatprep.subr.mxu0 0.0
  %5930 = vmatpush1.xpose.msra.mxu0 0.0
  %5931 = vmatprep.subr.mxu0 0.0
  %5932 = vmatpush1.xpose.msra.mxu0 0.0
  %5933 = vmatprep.subr.mxu0 0.0
  %5934 = vmatpush1.xpose.msra.mxu0 0.0
  %5935 = vmatprep.subr.mxu0 0.0
  %5936 = vmatpush1.xpose.msra.mxu0 0.0
  %5937 = vmatprep.subr.mxu0 0.0
  %5938 = vmatpush1.xpose.msra.mxu0 0.0
  %5939 = vmatprep.subr.mxu0 0.0
  %5940 = vmatpush1.xpose.msra.mxu0 0.0
  %5941 = vmatprep.subr.mxu0 0.0
  %5942 = vmatpush1.xpose.msra.mxu0 0.0
  %5943 = vmatprep.subr.mxu0 0.0
  %5944 = vmatpush1.xpose.msra.mxu0 0.0
  %5945 = vmatprep.subr.mxu0 0.0
  %5946 = vmatpush1.xpose.msra.mxu0 0.0
  %5947 = vmatprep.subr.mxu0 0.0
  %5948 = vmatpush1.xpose.msra.mxu0 0.0
  %5949 = vmatprep.subr.mxu0 0.0
  %5950 = vmatpush1.xpose.msra.mxu0 0.0
  %5951 = vmatprep.subr.mxu0 0.0
  %5952 = vmatpush1.xpose.msra.mxu0 0.0
  %5953 = vmatprep.subr.mxu0 0.0
  %5954 = vmatpush1.xpose.msra.mxu0 0.0
  %5955 = vmatprep.subr.mxu0 0.0
  %5956 = vmatpush1.xpose.msra.mxu0 0.0
  %5957 = vmatprep.subr.mxu0 0.0
  %5958 = vmatpush1.xpose.msra.mxu0 0.0
  %5959 = vmatprep.subr.mxu0 0.0
  %5960 = vmatpush1.xpose.msra.mxu0 0.0
  %5961 = vmatprep.subr.mxu0 0.0
  %5962 = vmatpush1.xpose.msra.mxu0 0.0
  %5963 = vmatprep.subr.mxu0 0.0
  %5964 = vmatpush1.xpose.msra.mxu0 0.0
  %5965 = vmatprep.subr.mxu0 0.0
  %5966 = vmatpush1.xpose.msra.mxu0 0.0
  %5967 = vmatprep.subr.mxu0 0.0
  %5968 = vmatpush1.xpose.msra.mxu0 0.0
  %5969 = vmatprep.subr.mxu0 0.0
  %5970 = vmatpush1.xpose.msra.mxu0 0.0
  %5971 = vmatprep.subr.mxu0 0.0
  %5972 = vmatpush1.xpose.msra.mxu0 0.0
  %5973 = vmatprep.mubr.f32.mxu0 0.0
  %5974 = vmatmul.mubr.f32.gmra.mrb[0].mxu0 %v5883
  %v5975 = vpop.f32.mrb[0].mxu0
  %v5976 = vadd.f32 0.0, %v5975
  %v5977 = vpop.f32.mrb[0].mxu0
  %5978 = vmatprep.mubr.f32.mxu0 0.0
  %5979 = vmatmul.mubr.f32.gmra.mrb[0].mxu0 %v5886
  %v5980 = vpop.f32.mrb[0].mxu0
  %v5981 = vadd.f32 0.0, %v5980
  %v5982 = vpop.f32.mrb[0].mxu0
  %5983 = vmatprep.mubr.f32.mxu0 0.0
  %5984 = vmatmul.mubr.f32.gmra.mrb[0].mxu0 %v5889
  %v5985 = vpop.f32.mrb[0].mxu0
  %v5986 = vadd.f32 0.0, %v5985
  %v5987 = vpop.f32.mrb[0].mxu0
  %5988 = vmatprep.mubr.f32.mxu0 0.0
  %5989 = vmatmul.mubr.f32.gmra.mrb[0].mxu0 %v5892
  %v5990 = vpop.f32.mrb[0].mxu0
  %v5991 = vadd.f32 0.0, %v5990
  %v5992 = vpop.f32.mrb[0].mxu0
  %5993 = vmatprep.mubr.f32.mxu0 0.0
  %5994 = vmatmul.mubr.f32.gmra.mrb[0].mxu0 %v5895
  %v5995 = vpop.f32.mrb[0].mxu0
  %v5996 = vadd.f32 0.0, %v5995
  %v5997 = vpop.f32.mrb[0].mxu0
  %5998 = vmatprep.mubr.f32.mxu0 0.0
  %5999 = vmatmul.mubr.f32.gmra.mrb[0].mxu0 %v5898
  %v6000 = vpop.f32.mrb[0].mxu0
  %v6001 = vadd.f32 0.0, %v6000
  %v6002 = vpop.f32.mrb[0].mxu0
  %6003 = vmatprep.mubr.f32.mxu0 0.0
  %6004 = vmatmul.mubr.f32.gmra.mrb[0].mxu0 %v5901
  %v6005 = vpop.f32.mrb[0].mxu0
  %v6006 = vadd.f32 0.0, %v6005
  %v6007 = vpop.f32.mrb[0].mxu0
  %6008 = vmatprep.mubr.f32.mxu0 0.0
  %6009 = vmatmul.mubr.f32.gmra.mrb[0].mxu0 %v5904
  %v6010 = vpop.f32.mrb[0].mxu0
  %v6011 = vadd.f32 0.0, %v6010
  %v6012 = vpop.f32.mrb[0].mxu0
  %6013 = vdwg.mxu0
  %v6014 = vmul.f32 %v5052, 0.70710677
  %v6015 = vmul.f32 %v5057, 0.70710677
  %v6016 = vmul.f32 %v5062, 0.70710677
  %v6017 = vmul.f32 %v5067, 0.70710677
  %v6018 = vmul.f32 %v5072, 0.70710677
  %v6019 = vmul.f32 %v5077, 0.70710677
  %v6020 = vmul.f32 %v5082, 0.70710677
  %v6021 = vmul.f32 %v5087, 0.70710677
  %v6022 = vmul.f32 %v5184, 0.70710677
  %v6023 = vmul.f32 %v5189, 0.70710677
  %v6024 = vmul.f32 %v5194, 0.70710677
  %v6025 = vmul.f32 %v5199, 0.70710677
  %v6026 = vmul.f32 %v5204, 0.70710677
  %v6027 = vmul.f32 %v5209, 0.70710677
  %v6028 = vmul.f32 %v5214, 0.70710677
  %v6029 = vmul.f32 %v5219, 0.70710677
  %v6030 = vmul.f32 %v5316, 0.70710677
  %v6031 = vmul.f32 %v5321, 0.70710677
  %v6032 = vmul.f32 %v5326, 0.70710677
  %v6033 = vmul.f32 %v5331, 0.70710677
  %v6034 = vmul.f32 %v5336, 0.70710677
  %v6035 = vmul.f32 %v5341, 0.70710677
  %v6036 = vmul.f32 %v5346, 0.70710677
  %v6037 = vmul.f32 %v5351, 0.70710677
  %v6038 = vmul.f32 %v5448, 0.70710677
  %v6039 = vmul.f32 %v5453, 0.70710677
  %v6040 = vmul.f32 %v5458, 0.70710677
  %v6041 = vmul.f32 %v5463, 0.70710677
  %v6042 = vmul.f32 %v5468, 0.70710677
  %v6043 = vmul.f32 %v5473, 0.70710677
  %v6044 = vmul.f32 %v5478, 0.70710677
  %v6045 = vmul.f32 %v5483, 0.70710677
  %v6046 = vmul.f32 %v5580, 0.70710677
  %v6047 = vmul.f32 %v5585, 0.70710677
  %v6048 = vmul.f32 %v5590, 0.70710677
  %v6049 = vmul.f32 %v5595, 0.70710677
  %v6050 = vmul.f32 %v5600, 0.70710677
  %v6051 = vmul.f32 %v5605, 0.70710677
  %v6052 = vmul.f32 %v5610, 0.70710677
  %v6053 = vmul.f32 %v5615, 0.70710677
  %v6054 = vmul.f32 %v5712, 0.70710677
  %v6055 = vmul.f32 %v5717, 0.70710677
  %v6056 = vmul.f32 %v5722, 0.70710677
  %v6057 = vmul.f32 %v5727, 0.70710677
  %v6058 = vmul.f32 %v5732, 0.70710677
  %v6059 = vmul.f32 %v5737, 0.70710677
  %v6060 = vmul.f32 %v5742, 0.70710677
  %v6061 = vmul.f32 %v5747, 0.70710677
  %v6062 = vmul.f32 %v5844, 0.70710677
  %v6063 = vmul.f32 %v5849, 0.70710677
  %v6064 = vmul.f32 %v5854, 0.70710677
  %v6065 = vmul.f32 %v5859, 0.70710677
  %v6066 = vmul.f32 %v5864, 0.70710677
  %v6067 = vmul.f32 %v5869, 0.70710677
  %v6068 = vmul.f32 %v5874, 0.70710677
  %v6069 = vmul.f32 %v5879, 0.70710677
  %v6070 = vmul.f32 %v5976, 0.70710677
  %v6071 = vmul.f32 %v5981, 0.70710677
  %v6072 = vmul.f32 %v5986, 0.70710677
  %v6073 = vmul.f32 %v5991, 0.70710677
  %v6074 = vmul.f32 %v5996, 0.70710677
  %v6075 = vmul.f32 %v6001, 0.70710677
  %v6076 = vmul.f32 %v6006, 0.70710677
  %v6077 = vmul.f32 %v6011, 0.70710677
  %v6078 = vadd.f32 %v6014, %v1764
  %v6079 = vadd.f32 %v6015, %v1764
  %v6080 = vadd.f32 %v6016, %v1764
  %v6081 = vadd.f32 %v6017, %v1764
  %v6082 = vadd.f32 %v6018, %v1764
  %v6083 = vadd.f32 %v6019, %v1764
  %v6084 = vadd.f32 %v6020, %v1764
  %v6085 = vadd.f32 %v6021, %v1764
  %v6086 = vadd.f32 %v6022, %v1768
  %v6087 = vadd.f32 %v6023, %v1768
  %v6088 = vadd.f32 %v6024, %v1768
  %v6089 = vadd.f32 %v6025, %v1768
  %v6090 = vadd.f32 %v6026, %v1768
  %v6091 = vadd.f32 %v6027, %v1768
  %v6092 = vadd.f32 %v6028, %v1768
  %v6093 = vadd.f32 %v6029, %v1768
  %v6094 = vadd.f32 %v6030, %v1772
  %v6095 = vadd.f32 %v6031, %v1772
  %v6096 = vadd.f32 %v6032, %v1772
  %v6097 = vadd.f32 %v6033, %v1772
  %v6098 = vadd.f32 %v6034, %v1772
  %v6099 = vadd.f32 %v6035, %v1772
  %v6100 = vadd.f32 %v6036, %v1772
  %v6101 = vadd.f32 %v6037, %v1772
  %v6102 = vadd.f32 %v6038, %v1776
  %v6103 = vadd.f32 %v6039, %v1776
  %v6104 = vadd.f32 %v6040, %v1776
  %v6105 = vadd.f32 %v6041, %v1776
  %v6106 = vadd.f32 %v6042, %v1776
  %v6107 = vadd.f32 %v6043, %v1776
  %v6108 = vadd.f32 %v6044, %v1776
  %v6109 = vadd.f32 %v6045, %v1776
  %v6110 = vadd.f32 %v6046, %v1780
  %v6111 = vadd.f32 %v6047, %v1780
  %v6112 = vadd.f32 %v6048, %v1780
  %v6113 = vadd.f32 %v6049, %v1780
  %v6114 = vadd.f32 %v6050, %v1780
  %v6115 = vadd.f32 %v6051, %v1780
  %v6116 = vadd.f32 %v6052, %v1780
  %v6117 = vadd.f32 %v6053, %v1780
  %v6118 = vadd.f32 %v6054, %v1784
  %v6119 = vadd.f32 %v6055, %v1784
  %v6120 = vadd.f32 %v6056, %v1784
  %v6121 = vadd.f32 %v6057, %v1784
  %v6122 = vadd.f32 %v6058, %v1784
  %v6123 = vadd.f32 %v6059, %v1784
  %v6124 = vadd.f32 %v6060, %v1784
  %v6125 = vadd.f32 %v6061, %v1784
  %v6126 = vadd.f32 %v6062, %v1788
  %v6127 = vadd.f32 %v6063, %v1788
  %v6128 = vadd.f32 %v6064, %v1788
  %v6129 = vadd.f32 %v6065, %v1788
  %v6130 = vadd.f32 %v6066, %v1788
  %v6131 = vadd.f32 %v6067, %v1788
  %v6132 = vadd.f32 %v6068, %v1788
  %v6133 = vadd.f32 %v6069, %v1788
  %v6134 = vadd.f32 %v6070, %v1792
  %v6135 = vadd.f32 %v6071, %v1792
  %v6136 = vadd.f32 %v6072, %v1792
  %v6137 = vadd.f32 %v6073, %v1792
  %v6138 = vadd.f32 %v6074, %v1792
  %v6139 = vadd.f32 %v6075, %v1792
  %v6140 = vadd.f32 %v6076, %v1792
  %v6141 = vadd.f32 %v6077, %v1792
  %v6142 = vsel %vm1865, %v6078, -inf
  %6143 = vmax.xlane.f32.xlu0 %v6142
  %v6144 = vpop.xlane.xlu0 %6143
  %v6145 = vsel %vm1865, %v6079, -inf
  %6146 = vmax.xlane.f32.xlu0 %v6145
  %v6147 = vpop.xlane.xlu0 %6146
  %v6148 = vsel %vm1865, %v6080, -inf
  %6149 = vmax.xlane.f32.xlu0 %v6148
  %v6150 = vpop.xlane.xlu0 %6149
  %v6151 = vsel %vm1865, %v6081, -inf
  %6152 = vmax.xlane.f32.xlu0 %v6151
  %v6153 = vpop.xlane.xlu0 %6152
  %v6154 = vsel %vm1865, %v6082, -inf
  %6155 = vmax.xlane.f32.xlu0 %v6154
  %v6156 = vpop.xlane.xlu0 %6155
  %v6157 = vsel %vm1865, %v6083, -inf
  %6158 = vmax.xlane.f32.xlu0 %v6157
  %v6159 = vpop.xlane.xlu0 %6158
  %v6160 = vsel %vm1865, %v6084, -inf
  %6161 = vmax.xlane.f32.xlu0 %v6160
  %v6162 = vpop.xlane.xlu0 %6161
  %v6163 = vsel %vm1865, %v6085, -inf
  %6164 = vmax.xlane.f32.xlu0 %v6163
  %v6165 = vpop.xlane.xlu0 %6164
  %v6166 = vsel %vm1865, %v6086, -inf
  %6167 = vmax.xlane.f32.xlu0 %v6166
  %v6168 = vpop.xlane.xlu0 %6167
  %v6169 = vsel %vm1865, %v6087, -inf
  %6170 = vmax.xlane.f32.xlu0 %v6169
  %v6171 = vpop.xlane.xlu0 %6170
  %v6172 = vsel %vm1865, %v6088, -inf
  %6173 = vmax.xlane.f32.xlu0 %v6172
  %v6174 = vpop.xlane.xlu0 %6173
  %v6175 = vsel %vm1865, %v6089, -inf
  %6176 = vmax.xlane.f32.xlu0 %v6175
  %v6177 = vpop.xlane.xlu0 %6176
  %v6178 = vsel %vm1865, %v6090, -inf
  %6179 = vmax.xlane.f32.xlu0 %v6178
  %v6180 = vpop.xlane.xlu0 %6179
  %v6181 = vsel %vm1865, %v6091, -inf
  %6182 = vmax.xlane.f32.xlu0 %v6181
  %v6183 = vpop.xlane.xlu0 %6182
  %v6184 = vsel %vm1865, %v6092, -inf
  %6185 = vmax.xlane.f32.xlu0 %v6184
  %v6186 = vpop.xlane.xlu0 %6185
  %v6187 = vsel %vm1865, %v6093, -inf
  %6188 = vmax.xlane.f32.xlu0 %v6187
  %v6189 = vpop.xlane.xlu0 %6188
  %v6190 = vsel %vm1865, %v6094, -inf
  %6191 = vmax.xlane.f32.xlu0 %v6190
  %v6192 = vpop.xlane.xlu0 %6191
  %v6193 = vsel %vm1865, %v6095, -inf
  %6194 = vmax.xlane.f32.xlu0 %v6193
  %v6195 = vpop.xlane.xlu0 %6194
  %v6196 = vsel %vm1865, %v6096, -inf
  %6197 = vmax.xlane.f32.xlu0 %v6196
  %v6198 = vpop.xlane.xlu0 %6197
  %v6199 = vsel %vm1865, %v6097, -inf
  %6200 = vmax.xlane.f32.xlu0 %v6199
  %v6201 = vpop.xlane.xlu0 %6200
  %v6202 = vsel %vm1865, %v6098, -inf
  %6203 = vmax.xlane.f32.xlu0 %v6202
  %v6204 = vpop.xlane.xlu0 %6203
  %v6205 = vsel %vm1865, %v6099, -inf
  %6206 = vmax.xlane.f32.xlu0 %v6205
  %v6207 = vpop.xlane.xlu0 %6206
  %v6208 = vsel %vm1865, %v6100, -inf
  %6209 = vmax.xlane.f32.xlu0 %v6208
  %v6210 = vpop.xlane.xlu0 %6209
  %v6211 = vsel %vm1865, %v6101, -inf
  %6212 = vmax.xlane.f32.xlu0 %v6211
  %v6213 = vpop.xlane.xlu0 %6212
  %v6214 = vsel %vm1865, %v6102, -inf
  %6215 = vmax.xlane.f32.xlu0 %v6214
  %v6216 = vpop.xlane.xlu0 %6215
  %v6217 = vsel %vm1865, %v6103, -inf
  %6218 = vmax.xlane.f32.xlu0 %v6217
  %v6219 = vpop.xlane.xlu0 %6218
  %v6220 = vsel %vm1865, %v6104, -inf
  %6221 = vmax.xlane.f32.xlu0 %v6220
  %v6222 = vpop.xlane.xlu0 %6221
  %v6223 = vsel %vm1865, %v6105, -inf
  %6224 = vmax.xlane.f32.xlu0 %v6223
  %v6225 = vpop.xlane.xlu0 %6224
  %v6226 = vsel %vm1865, %v6106, -inf
  %6227 = vmax.xlane.f32.xlu0 %v6226
  %v6228 = vpop.xlane.xlu0 %6227
  %v6229 = vsel %vm1865, %v6107, -inf
  %6230 = vmax.xlane.f32.xlu0 %v6229
  %v6231 = vpop.xlane.xlu0 %6230
  %v6232 = vsel %vm1865, %v6108, -inf
  %6233 = vmax.xlane.f32.xlu0 %v6232
  %v6234 = vpop.xlane.xlu0 %6233
  %v6235 = vsel %vm1865, %v6109, -inf
  %6236 = vmax.xlane.f32.xlu0 %v6235
  %v6237 = vpop.xlane.xlu0 %6236
  %v6238 = vsel %vm1865, %v6110, -inf
  %6239 = vmax.xlane.f32.xlu0 %v6238
  %v6240 = vpop.xlane.xlu0 %6239
  %v6241 = vsel %vm1865, %v6111, -inf
  %6242 = vmax.xlane.f32.xlu0 %v6241
  %v6243 = vpop.xlane.xlu0 %6242
  %v6244 = vsel %vm1865, %v6112, -inf
  %6245 = vmax.xlane.f32.xlu0 %v6244
  %v6246 = vpop.xlane.xlu0 %6245
  %v6247 = vsel %vm1865, %v6113, -inf
  %6248 = vmax.xlane.f32.xlu0 %v6247
  %v6249 = vpop.xlane.xlu0 %6248
  %v6250 = vsel %vm1865, %v6114, -inf
  %6251 = vmax.xlane.f32.xlu0 %v6250
  %v6252 = vpop.xlane.xlu0 %6251
  %v6253 = vsel %vm1865, %v6115, -inf
  %6254 = vmax.xlane.f32.xlu0 %v6253
  %v6255 = vpop.xlane.xlu0 %6254
  %v6256 = vsel %vm1865, %v6116, -inf
  %6257 = vmax.xlane.f32.xlu0 %v6256
  %v6258 = vpop.xlane.xlu0 %6257
  %v6259 = vsel %vm1865, %v6117, -inf
  %6260 = vmax.xlane.f32.xlu0 %v6259
  %v6261 = vpop.xlane.xlu0 %6260
  %v6262 = vsel %vm1865, %v6118, -inf
  %6263 = vmax.xlane.f32.xlu0 %v6262
  %v6264 = vpop.xlane.xlu0 %6263
  %v6265 = vsel %vm1865, %v6119, -inf
  %6266 = vmax.xlane.f32.xlu0 %v6265
  %v6267 = vpop.xlane.xlu0 %6266
  %v6268 = vsel %vm1865, %v6120, -inf
  %6269 = vmax.xlane.f32.xlu0 %v6268
  %v6270 = vpop.xlane.xlu0 %6269
  %v6271 = vsel %vm1865, %v6121, -inf
  %6272 = vmax.xlane.f32.xlu0 %v6271
  %v6273 = vpop.xlane.xlu0 %6272
  %v6274 = vsel %vm1865, %v6122, -inf
  %6275 = vmax.xlane.f32.xlu0 %v6274
  %v6276 = vpop.xlane.xlu0 %6275
  %v6277 = vsel %vm1865, %v6123, -inf
  %6278 = vmax.xlane.f32.xlu0 %v6277
  %v6279 = vpop.xlane.xlu0 %6278
  %v6280 = vsel %vm1865, %v6124, -inf
  %6281 = vmax.xlane.f32.xlu0 %v6280
  %v6282 = vpop.xlane.xlu0 %6281
  %v6283 = vsel %vm1865, %v6125, -inf
  %6284 = vmax.xlane.f32.xlu0 %v6283
  %v6285 = vpop.xlane.xlu0 %6284
  %v6286 = vsel %vm1865, %v6126, -inf
  %6287 = vmax.xlane.f32.xlu0 %v6286
  %v6288 = vpop.xlane.xlu0 %6287
  %v6289 = vsel %vm1865, %v6127, -inf
  %6290 = vmax.xlane.f32.xlu0 %v6289
  %v6291 = vpop.xlane.xlu0 %6290
  %v6292 = vsel %vm1865, %v6128, -inf
  %6293 = vmax.xlane.f32.xlu0 %v6292
  %v6294 = vpop.xlane.xlu0 %6293
  %v6295 = vsel %vm1865, %v6129, -inf
  %6296 = vmax.xlane.f32.xlu0 %v6295
  %v6297 = vpop.xlane.xlu0 %6296
  %v6298 = vsel %vm1865, %v6130, -inf
  %6299 = vmax.xlane.f32.xlu0 %v6298
  %v6300 = vpop.xlane.xlu0 %6299
  %v6301 = vsel %vm1865, %v6131, -inf
  %6302 = vmax.xlane.f32.xlu0 %v6301
  %v6303 = vpop.xlane.xlu0 %6302
  %v6304 = vsel %vm1865, %v6132, -inf
  %6305 = vmax.xlane.f32.xlu0 %v6304
  %v6306 = vpop.xlane.xlu0 %6305
  %v6307 = vsel %vm1865, %v6133, -inf
  %6308 = vmax.xlane.f32.xlu0 %v6307
  %v6309 = vpop.xlane.xlu0 %6308
  %v6310 = vsel %vm1865, %v6134, -inf
  %6311 = vmax.xlane.f32.xlu0 %v6310
  %v6312 = vpop.xlane.xlu0 %6311
  %v6313 = vsel %vm1865, %v6135, -inf
  %6314 = vmax.xlane.f32.xlu0 %v6313
  %v6315 = vpop.xlane.xlu0 %6314
  %v6316 = vsel %vm1865, %v6136, -inf
  %6317 = vmax.xlane.f32.xlu0 %v6316
  %v6318 = vpop.xlane.xlu0 %6317
  %v6319 = vsel %vm1865, %v6137, -inf
  %6320 = vmax.xlane.f32.xlu0 %v6319
  %v6321 = vpop.xlane.xlu0 %6320
  %v6322 = vsel %vm1865, %v6138, -inf
  %6323 = vmax.xlane.f32.xlu0 %v6322
  %v6324 = vpop.xlane.xlu0 %6323
  %v6325 = vsel %vm1865, %v6139, -inf
  %6326 = vmax.xlane.f32.xlu0 %v6325
  %v6327 = vpop.xlane.xlu0 %6326
  %v6328 = vsel %vm1865, %v6140, -inf
  %6329 = vmax.xlane.f32.xlu0 %v6328
  %v6330 = vpop.xlane.xlu0 %6329
  %v6331 = vsel %vm1865, %v6141, -inf
  %6332 = vmax.xlane.f32.xlu0 %v6331
  %v6333 = vpop.xlane.xlu0 %6332
  %v6334 = vsub.f32 %v6078, %v6144
  %v6335 = vsub.f32 %v6079, %v6147
  %v6336 = vsub.f32 %v6080, %v6150
  %v6337 = vsub.f32 %v6081, %v6153
  %v6338 = vsub.f32 %v6082, %v6156
  %v6339 = vsub.f32 %v6083, %v6159
  %v6340 = vsub.f32 %v6084, %v6162
  %v6341 = vsub.f32 %v6085, %v6165
  %v6342 = vsub.f32 %v6086, %v6168
  %v6343 = vsub.f32 %v6087, %v6171
  %v6344 = vsub.f32 %v6088, %v6174
  %v6345 = vsub.f32 %v6089, %v6177
  %v6346 = vsub.f32 %v6090, %v6180
  %v6347 = vsub.f32 %v6091, %v6183
  %v6348 = vsub.f32 %v6092, %v6186
  %v6349 = vsub.f32 %v6093, %v6189
  %v6350 = vsub.f32 %v6094, %v6192
  %v6351 = vsub.f32 %v6095, %v6195
  %v6352 = vsub.f32 %v6096, %v6198
  %v6353 = vsub.f32 %v6097, %v6201
  %v6354 = vsub.f32 %v6098, %v6204
  %v6355 = vsub.f32 %v6099, %v6207
  %v6356 = vsub.f32 %v6100, %v6210
  %v6357 = vsub.f32 %v6101, %v6213
  %v6358 = vsub.f32 %v6102, %v6216
  %v6359 = vsub.f32 %v6103, %v6219
  %v6360 = vsub.f32 %v6104, %v6222
  %v6361 = vsub.f32 %v6105, %v6225
  %v6362 = vsub.f32 %v6106, %v6228
  %v6363 = vsub.f32 %v6107, %v6231
  %v6364 = vsub.f32 %v6108, %v6234
  %v6365 = vsub.f32 %v6109, %v6237
  %v6366 = vsub.f32 %v6110, %v6240
  %v6367 = vsub.f32 %v6111, %v6243
  %v6368 = vsub.f32 %v6112, %v6246
  %v6369 = vsub.f32 %v6113, %v6249
  %v6370 = vsub.f32 %v6114, %v6252
  %v6371 = vsub.f32 %v6115, %v6255
  %v6372 = vsub.f32 %v6116, %v6258
  %v6373 = vsub.f32 %v6117, %v6261
  %v6374 = vsub.f32 %v6118, %v6264
  %v6375 = vsub.f32 %v6119, %v6267
  %v6376 = vsub.f32 %v6120, %v6270
  %v6377 = vsub.f32 %v6121, %v6273
  %v6378 = vsub.f32 %v6122, %v6276
  %v6379 = vsub.f32 %v6123, %v6279
  %v6380 = vsub.f32 %v6124, %v6282
  %v6381 = vsub.f32 %v6125, %v6285
  %v6382 = vsub.f32 %v6126, %v6288
  %v6383 = vsub.f32 %v6127, %v6291
  %v6384 = vsub.f32 %v6128, %v6294
  %v6385 = vsub.f32 %v6129, %v6297
  %v6386 = vsub.f32 %v6130, %v6300
  %v6387 = vsub.f32 %v6131, %v6303
  %v6388 = vsub.f32 %v6132, %v6306
  %v6389 = vsub.f32 %v6133, %v6309
  %v6390 = vsub.f32 %v6134, %v6312
  %v6391 = vsub.f32 %v6135, %v6315
  %v6392 = vsub.f32 %v6136, %v6318
  %v6393 = vsub.f32 %v6137, %v6321
  %v6394 = vsub.f32 %v6138, %v6324
  %v6395 = vsub.f32 %v6139, %v6327
  %v6396 = vsub.f32 %v6140, %v6330
  %v6397 = vsub.f32 %v6141, %v6333
  %v6398 = vmul.f32 %v6334, 1.442695
  %v6399 = vpow.pop %v6398
  %v6400 = vmul.f32 %v6335, 1.442695
  %v6401 = vpow.pop %v6400
  %v6402 = vmul.f32 %v6336, 1.442695
  %v6403 = vpow.pop %v6402
  %v6404 = vmul.f32 %v6337, 1.442695
  %v6405 = vpow.pop %v6404
  %v6406 = vmul.f32 %v6338, 1.442695
  %v6407 = vpow.pop %v6406
  %v6408 = vmul.f32 %v6339, 1.442695
  %v6409 = vpow.pop %v6408
  %v6410 = vmul.f32 %v6340, 1.442695
  %v6411 = vpow.pop %v6410
  %v6412 = vmul.f32 %v6341, 1.442695
  %v6413 = vpow.pop %v6412
  %v6414 = vmul.f32 %v6342, 1.442695
  %v6415 = vpow.pop %v6414
  %v6416 = vmul.f32 %v6343, 1.442695
  %v6417 = vpow.pop %v6416
  %v6418 = vmul.f32 %v6344, 1.442695
  %v6419 = vpow.pop %v6418
  %v6420 = vmul.f32 %v6345, 1.442695
  %v6421 = vpow.pop %v6420
  %v6422 = vmul.f32 %v6346, 1.442695
  %v6423 = vpow.pop %v6422
  %v6424 = vmul.f32 %v6347, 1.442695
  %v6425 = vpow.pop %v6424
  %v6426 = vmul.f32 %v6348, 1.442695
  %v6427 = vpow.pop %v6426
  %v6428 = vmul.f32 %v6349, 1.442695
  %v6429 = vpow.pop %v6428
  %v6430 = vmul.f32 %v6350, 1.442695
  %v6431 = vpow.pop %v6430
  %v6432 = vmul.f32 %v6351, 1.442695
  %v6433 = vpow.pop %v6432
  %v6434 = vmul.f32 %v6352, 1.442695
  %v6435 = vpow.pop %v6434
  %v6436 = vmul.f32 %v6353, 1.442695
  %v6437 = vpow.pop %v6436
  %v6438 = vmul.f32 %v6354, 1.442695
  %v6439 = vpow.pop %v6438
  %v6440 = vmul.f32 %v6355, 1.442695
  %v6441 = vpow.pop %v6440
  %v6442 = vmul.f32 %v6356, 1.442695
  %v6443 = vpow.pop %v6442
  %v6444 = vmul.f32 %v6357, 1.442695
  %v6445 = vpow.pop %v6444
  %v6446 = vmul.f32 %v6358, 1.442695
  %v6447 = vpow.pop %v6446
  %v6448 = vmul.f32 %v6359, 1.442695
  %v6449 = vpow.pop %v6448
  %v6450 = vmul.f32 %v6360, 1.442695
  %v6451 = vpow.pop %v6450
  %v6452 = vmul.f32 %v6361, 1.442695
  %v6453 = vpow.pop %v6452
  %v6454 = vmul.f32 %v6362, 1.442695
  %v6455 = vpow.pop %v6454
  %v6456 = vmul.f32 %v6363, 1.442695
  %v6457 = vpow.pop %v6456
  %v6458 = vmul.f32 %v6364, 1.442695
  %v6459 = vpow.pop %v6458
  %v6460 = vmul.f32 %v6365, 1.442695
  %v6461 = vpow.pop %v6460
  %v6462 = vmul.f32 %v6366, 1.442695
  %v6463 = vpow.pop %v6462
  %v6464 = vmul.f32 %v6367, 1.442695
  %v6465 = vpow.pop %v6464
  %v6466 = vmul.f32 %v6368, 1.442695
  %v6467 = vpow.pop %v6466
  %v6468 = vmul.f32 %v6369, 1.442695
  %v6469 = vpow.pop %v6468
  %v6470 = vmul.f32 %v6370, 1.442695
  %v6471 = vpow.pop %v6470
  %v6472 = vmul.f32 %v6371, 1.442695
  %v6473 = vpow.pop %v6472
  %v6474 = vmul.f32 %v6372, 1.442695
  %v6475 = vpow.pop %v6474
  %v6476 = vmul.f32 %v6373, 1.442695
  %v6477 = vpow.pop %v6476
  %v6478 = vmul.f32 %v6374, 1.442695
  %v6479 = vpow.pop %v6478
  %v6480 = vmul.f32 %v6375, 1.442695
  %v6481 = vpow.pop %v6480
  %v6482 = vmul.f32 %v6376, 1.442695
  %v6483 = vpow.pop %v6482
  %v6484 = vmul.f32 %v6377, 1.442695
  %v6485 = vpow.pop %v6484
  %v6486 = vmul.f32 %v6378, 1.442695
  %v6487 = vpow.pop %v6486
  %v6488 = vmul.f32 %v6379, 1.442695
  %v6489 = vpow.pop %v6488
  %v6490 = vmul.f32 %v6380, 1.442695
  %v6491 = vpow.pop %v6490
  %v6492 = vmul.f32 %v6381, 1.442695
  %v6493 = vpow.pop %v6492
  %v6494 = vmul.f32 %v6382, 1.442695
  %v6495 = vpow.pop %v6494
  %v6496 = vmul.f32 %v6383, 1.442695
  %v6497 = vpow.pop %v6496
  %v6498 = vmul.f32 %v6384, 1.442695
  %v6499 = vpow.pop %v6498
  %v6500 = vmul.f32 %v6385, 1.442695
  %v6501 = vpow.pop %v6500
  %v6502 = vmul.f32 %v6386, 1.442695
  %v6503 = vpow.pop %v6502
  %v6504 = vmul.f32 %v6387, 1.442695
  %v6505 = vpow.pop %v6504
  %v6506 = vmul.f32 %v6388, 1.442695
  %v6507 = vpow.pop %v6506
  %v6508 = vmul.f32 %v6389, 1.442695
  %v6509 = vpow.pop %v6508
  %v6510 = vmul.f32 %v6390, 1.442695
  %v6511 = vpow.pop %v6510
  %v6512 = vmul.f32 %v6391, 1.442695
  %v6513 = vpow.pop %v6512
  %v6514 = vmul.f32 %v6392, 1.442695
  %v6515 = vpow.pop %v6514
  %v6516 = vmul.f32 %v6393, 1.442695
  %v6517 = vpow.pop %v6516
  %v6518 = vmul.f32 %v6394, 1.442695
  %v6519 = vpow.pop %v6518
  %v6520 = vmul.f32 %v6395, 1.442695
  %v6521 = vpow.pop %v6520
  %v6522 = vmul.f32 %v6396, 1.442695
  %v6523 = vpow.pop %v6522
  %v6524 = vmul.f32 %v6397, 1.442695
  %v6525 = vpow.pop %v6524
  %v6526 = vsel %vm1865, %v6399, 0.0
  %6527 = vadd.xlane.f32.xlu0 %v6526
  %v6528 = vpop.xlane.xlu0 %6527
  %v6529 = vsel %vm1865, %v6401, 0.0
  %6530 = vadd.xlane.f32.xlu0 %v6529
  %v6531 = vpop.xlane.xlu0 %6530
  %v6532 = vsel %vm1865, %v6403, 0.0
  %6533 = vadd.xlane.f32.xlu0 %v6532
  %v6534 = vpop.xlane.xlu0 %6533
  %v6535 = vsel %vm1865, %v6405, 0.0
  %6536 = vadd.xlane.f32.xlu0 %v6535
  %v6537 = vpop.xlane.xlu0 %6536
  %v6538 = vsel %vm1865, %v6407, 0.0
  %6539 = vadd.xlane.f32.xlu0 %v6538
  %v6540 = vpop.xlane.xlu0 %6539
  %v6541 = vsel %vm1865, %v6409, 0.0
  %6542 = vadd.xlane.f32.xlu0 %v6541
  %v6543 = vpop.xlane.xlu0 %6542
  %v6544 = vsel %vm1865, %v6411, 0.0
  %6545 = vadd.xlane.f32.xlu0 %v6544
  %v6546 = vpop.xlane.xlu0 %6545
  %v6547 = vsel %vm1865, %v6413, 0.0
  %6548 = vadd.xlane.f32.xlu0 %v6547
  %v6549 = vpop.xlane.xlu0 %6548
  %v6550 = vsel %vm1865, %v6415, 0.0
  %6551 = vadd.xlane.f32.xlu0 %v6550
  %v6552 = vpop.xlane.xlu0 %6551
  %v6553 = vsel %vm1865, %v6417, 0.0
  %6554 = vadd.xlane.f32.xlu0 %v6553
  %v6555 = vpop.xlane.xlu0 %6554
  %v6556 = vsel %vm1865, %v6419, 0.0
  %6557 = vadd.xlane.f32.xlu0 %v6556
  %v6558 = vpop.xlane.xlu0 %6557
  %v6559 = vsel %vm1865, %v6421, 0.0
  %6560 = vadd.xlane.f32.xlu0 %v6559
  %v6561 = vpop.xlane.xlu0 %6560
  %v6562 = vsel %vm1865, %v6423, 0.0
  %6563 = vadd.xlane.f32.xlu0 %v6562
  %v6564 = vpop.xlane.xlu0 %6563
  %v6565 = vsel %vm1865, %v6425, 0.0
  %6566 = vadd.xlane.f32.xlu0 %v6565
  %v6567 = vpop.xlane.xlu0 %6566
  %v6568 = vsel %vm1865, %v6427, 0.0
  %6569 = vadd.xlane.f32.xlu0 %v6568
  %v6570 = vpop.xlane.xlu0 %6569
  %v6571 = vsel %vm1865, %v6429, 0.0
  %6572 = vadd.xlane.f32.xlu0 %v6571
  %v6573 = vpop.xlane.xlu0 %6572
  %v6574 = vsel %vm1865, %v6431, 0.0
  %6575 = vadd.xlane.f32.xlu0 %v6574
  %v6576 = vpop.xlane.xlu0 %6575
  %v6577 = vsel %vm1865, %v6433, 0.0
  %6578 = vadd.xlane.f32.xlu0 %v6577
  %v6579 = vpop.xlane.xlu0 %6578
  %v6580 = vsel %vm1865, %v6435, 0.0
  %6581 = vadd.xlane.f32.xlu0 %v6580
  %v6582 = vpop.xlane.xlu0 %6581
  %v6583 = vsel %vm1865, %v6437, 0.0
  %6584 = vadd.xlane.f32.xlu0 %v6583
  %v6585 = vpop.xlane.xlu0 %6584
  %v6586 = vsel %vm1865, %v6439, 0.0
  %6587 = vadd.xlane.f32.xlu0 %v6586
  %v6588 = vpop.xlane.xlu0 %6587
  %v6589 = vsel %vm1865, %v6441, 0.0
  %6590 = vadd.xlane.f32.xlu0 %v6589
  %v6591 = vpop.xlane.xlu0 %6590
  %v6592 = vsel %vm1865, %v6443, 0.0
  %6593 = vadd.xlane.f32.xlu0 %v6592
  %v6594 = vpop.xlane.xlu0 %6593
  %v6595 = vsel %vm1865, %v6445, 0.0
  %6596 = vadd.xlane.f32.xlu0 %v6595
  %v6597 = vpop.xlane.xlu0 %6596
  %v6598 = vsel %vm1865, %v6447, 0.0
  %6599 = vadd.xlane.f32.xlu0 %v6598
  %v6600 = vpop.xlane.xlu0 %6599
  %v6601 = vsel %vm1865, %v6449, 0.0
  %6602 = vadd.xlane.f32.xlu0 %v6601
  %v6603 = vpop.xlane.xlu0 %6602
  %v6604 = vsel %vm1865, %v6451, 0.0
  %6605 = vadd.xlane.f32.xlu0 %v6604
  %v6606 = vpop.xlane.xlu0 %6605
  %v6607 = vsel %vm1865, %v6453, 0.0
  %6608 = vadd.xlane.f32.xlu0 %v6607
  %v6609 = vpop.xlane.xlu0 %6608
  %v6610 = vsel %vm1865, %v6455, 0.0
  %6611 = vadd.xlane.f32.xlu0 %v6610
  %v6612 = vpop.xlane.xlu0 %6611
  %v6613 = vsel %vm1865, %v6457, 0.0
  %6614 = vadd.xlane.f32.xlu0 %v6613
  %v6615 = vpop.xlane.xlu0 %6614
  %v6616 = vsel %vm1865, %v6459, 0.0
  %6617 = vadd.xlane.f32.xlu0 %v6616
  %v6618 = vpop.xlane.xlu0 %6617
  %v6619 = vsel %vm1865, %v6461, 0.0
  %6620 = vadd.xlane.f32.xlu0 %v6619
  %v6621 = vpop.xlane.xlu0 %6620
  %v6622 = vsel %vm1865, %v6463, 0.0
  %6623 = vadd.xlane.f32.xlu0 %v6622
  %v6624 = vpop.xlane.xlu0 %6623
  %v6625 = vsel %vm1865, %v6465, 0.0
  %6626 = vadd.xlane.f32.xlu0 %v6625
  %v6627 = vpop.xlane.xlu0 %6626
  %v6628 = vsel %vm1865, %v6467, 0.0
  %6629 = vadd.xlane.f32.xlu0 %v6628
  %v6630 = vpop.xlane.xlu0 %6629
  %v6631 = vsel %vm1865, %v6469, 0.0
  %6632 = vadd.xlane.f32.xlu0 %v6631
  %v6633 = vpop.xlane.xlu0 %6632
  %v6634 = vsel %vm1865, %v6471, 0.0
  %6635 = vadd.xlane.f32.xlu0 %v6634
  %v6636 = vpop.xlane.xlu0 %6635
  %v6637 = vsel %vm1865, %v6473, 0.0
  %6638 = vadd.xlane.f32.xlu0 %v6637
  %v6639 = vpop.xlane.xlu0 %6638
  %v6640 = vsel %vm1865, %v6475, 0.0
  %6641 = vadd.xlane.f32.xlu0 %v6640
  %v6642 = vpop.xlane.xlu0 %6641
  %v6643 = vsel %vm1865, %v6477, 0.0
  %6644 = vadd.xlane.f32.xlu0 %v6643
  %v6645 = vpop.xlane.xlu0 %6644
  %v6646 = vsel %vm1865, %v6479, 0.0
  %6647 = vadd.xlane.f32.xlu0 %v6646
  %v6648 = vpop.xlane.xlu0 %6647
  %v6649 = vsel %vm1865, %v6481, 0.0
  %6650 = vadd.xlane.f32.xlu0 %v6649
  %v6651 = vpop.xlane.xlu0 %6650
  %v6652 = vsel %vm1865, %v6483, 0.0
  %6653 = vadd.xlane.f32.xlu0 %v6652
  %v6654 = vpop.xlane.xlu0 %6653
  %v6655 = vsel %vm1865, %v6485, 0.0
  %6656 = vadd.xlane.f32.xlu0 %v6655
  %v6657 = vpop.xlane.xlu0 %6656
  %v6658 = vsel %vm1865, %v6487, 0.0
  %6659 = vadd.xlane.f32.xlu0 %v6658
  %v6660 = vpop.xlane.xlu0 %6659
  %v6661 = vsel %vm1865, %v6489, 0.0
  %6662 = vadd.xlane.f32.xlu0 %v6661
  %v6663 = vpop.xlane.xlu0 %6662
  %v6664 = vsel %vm1865, %v6491, 0.0
  %6665 = vadd.xlane.f32.xlu0 %v6664
  %v6666 = vpop.xlane.xlu0 %6665
  %v6667 = vsel %vm1865, %v6493, 0.0
  %6668 = vadd.xlane.f32.xlu0 %v6667
  %v6669 = vpop.xlane.xlu0 %6668
  %v6670 = vsel %vm1865, %v6495, 0.0
  %6671 = vadd.xlane.f32.xlu0 %v6670
  %v6672 = vpop.xlane.xlu0 %6671
  %v6673 = vsel %vm1865, %v6497, 0.0
  %6674 = vadd.xlane.f32.xlu0 %v6673
  %v6675 = vpop.xlane.xlu0 %6674
  %v6676 = vsel %vm1865, %v6499, 0.0
  %6677 = vadd.xlane.f32.xlu0 %v6676
  %v6678 = vpop.xlane.xlu0 %6677
  %v6679 = vsel %vm1865, %v6501, 0.0
  %6680 = vadd.xlane.f32.xlu0 %v6679
  %v6681 = vpop.xlane.xlu0 %6680
  %v6682 = vsel %vm1865, %v6503, 0.0
  %6683 = vadd.xlane.f32.xlu0 %v6682
  %v6684 = vpop.xlane.xlu0 %6683
  %v6685 = vsel %vm1865, %v6505, 0.0
  %6686 = vadd.xlane.f32.xlu0 %v6685
  %v6687 = vpop.xlane.xlu0 %6686
  %v6688 = vsel %vm1865, %v6507, 0.0
  %6689 = vadd.xlane.f32.xlu0 %v6688
  %v6690 = vpop.xlane.xlu0 %6689
  %v6691 = vsel %vm1865, %v6509, 0.0
  %6692 = vadd.xlane.f32.xlu0 %v6691
  %v6693 = vpop.xlane.xlu0 %6692
  %v6694 = vsel %vm1865, %v6511, 0.0
  %6695 = vadd.xlane.f32.xlu0 %v6694
  %v6696 = vpop.xlane.xlu0 %6695
  %v6697 = vsel %vm1865, %v6513, 0.0
  %6698 = vadd.xlane.f32.xlu0 %v6697
  %v6699 = vpop.xlane.xlu0 %6698
  %v6700 = vsel %vm1865, %v6515, 0.0
  %6701 = vadd.xlane.f32.xlu0 %v6700
  %v6702 = vpop.xlane.xlu0 %6701
  %v6703 = vsel %vm1865, %v6517, 0.0
  %6704 = vadd.xlane.f32.xlu0 %v6703
  %v6705 = vpop.xlane.xlu0 %6704
  %v6706 = vsel %vm1865, %v6519, 0.0
  %6707 = vadd.xlane.f32.xlu0 %v6706
  %v6708 = vpop.xlane.xlu0 %6707
  %v6709 = vsel %vm1865, %v6521, 0.0
  %6710 = vadd.xlane.f32.xlu0 %v6709
  %v6711 = vpop.xlane.xlu0 %6710
  %v6712 = vsel %vm1865, %v6523, 0.0
  %6713 = vadd.xlane.f32.xlu0 %v6712
  %v6714 = vpop.xlane.xlu0 %6713
  %v6715 = vsel %vm1865, %v6525, 0.0
  %6716 = vadd.xlane.f32.xlu0 %v6715
  %v6717 = vpop.xlane.xlu0 %6716
  %v6718 = vrcp.pop %v6528
  %v6719 = vrcp.pop %v6531
  %v6720 = vrcp.pop %v6534
  %v6721 = vrcp.pop %v6537
  %v6722 = vrcp.pop %v6540
  %v6723 = vrcp.pop %v6543
  %v6724 = vrcp.pop %v6546
  %v6725 = vrcp.pop %v6549
  %v6726 = vrcp.pop %v6552
  %v6727 = vrcp.pop %v6555
  %v6728 = vrcp.pop %v6558
  %v6729 = vrcp.pop %v6561
  %v6730 = vrcp.pop %v6564
  %v6731 = vrcp.pop %v6567
  %v6732 = vrcp.pop %v6570
  %v6733 = vrcp.pop %v6573
  %v6734 = vrcp.pop %v6576
  %v6735 = vrcp.pop %v6579
  %v6736 = vrcp.pop %v6582
  %v6737 = vrcp.pop %v6585
  %v6738 = vrcp.pop %v6588
  %v6739 = vrcp.pop %v6591
  %v6740 = vrcp.pop %v6594
  %v6741 = vrcp.pop %v6597
  %v6742 = vrcp.pop %v6600
  %v6743 = vrcp.pop %v6603
  %v6744 = vrcp.pop %v6606
  %v6745 = vrcp.pop %v6609
  %v6746 = vrcp.pop %v6612
  %v6747 = vrcp.pop %v6615
  %v6748 = vrcp.pop %v6618
  %v6749 = vrcp.pop %v6621
  %v6750 = vrcp.pop %v6624
  %v6751 = vrcp.pop %v6627
  %v6752 = vrcp.pop %v6630
  %v6753 = vrcp.pop %v6633
  %v6754 = vrcp.pop %v6636
  %v6755 = vrcp.pop %v6639
  %v6756 = vrcp.pop %v6642
  %v6757 = vrcp.pop %v6645
  %v6758 = vrcp.pop %v6648
  %v6759 = vrcp.pop %v6651
  %v6760 = vrcp.pop %v6654
  %v6761 = vrcp.pop %v6657
  %v6762 = vrcp.pop %v6660
  %v6763 = vrcp.pop %v6663
  %v6764 = vrcp.pop %v6666
  %v6765 = vrcp.pop %v6669
  %v6766 = vrcp.pop %v6672
  %v6767 = vrcp.pop %v6675
  %v6768 = vrcp.pop %v6678
  %v6769 = vrcp.pop %v6681
  %v6770 = vrcp.pop %v6684
  %v6771 = vrcp.pop %v6687
  %v6772 = vrcp.pop %v6690
  %v6773 = vrcp.pop %v6693
  %v6774 = vrcp.pop %v6696
  %v6775 = vrcp.pop %v6699
  %v6776 = vrcp.pop %v6702
  %v6777 = vrcp.pop %v6705
  %v6778 = vrcp.pop %v6708
  %v6779 = vrcp.pop %v6711
  %v6780 = vrcp.pop %v6714
  %v6781 = vrcp.pop %v6717
  %v6782 = vmul.f32 %v6399, %v6718
  %v6783 = vmul.f32 %v6401, %v6719
  %v6784 = vmul.f32 %v6403, %v6720
  %v6785 = vmul.f32 %v6405, %v6721
  %v6786 = vmul.f32 %v6407, %v6722
  %v6787 = vmul.f32 %v6409, %v6723
  %v6788 = vmul.f32 %v6411, %v6724
  %v6789 = vmul.f32 %v6413, %v6725
  %v6790 = vmul.f32 %v6415, %v6726
  %v6791 = vmul.f32 %v6417, %v6727
  %v6792 = vmul.f32 %v6419, %v6728
  %v6793 = vmul.f32 %v6421, %v6729
  %v6794 = vmul.f32 %v6423, %v6730
  %v6795 = vmul.f32 %v6425, %v6731
  %v6796 = vmul.f32 %v6427, %v6732
  %v6797 = vmul.f32 %v6429, %v6733
  %v6798 = vmul.f32 %v6431, %v6734
  %v6799 = vmul.f32 %v6433, %v6735
  %v6800 = vmul.f32 %v6435, %v6736
  %v6801 = vmul.f32 %v6437, %v6737
  %v6802 = vmul.f32 %v6439, %v6738
  %v6803 = vmul.f32 %v6441, %v6739
  %v6804 = vmul.f32 %v6443, %v6740
  %v6805 = vmul.f32 %v6445, %v6741
  %v6806 = vmul.f32 %v6447, %v6742
  %v6807 = vmul.f32 %v6449, %v6743
  %v6808 = vmul.f32 %v6451, %v6744
  %v6809 = vmul.f32 %v6453, %v6745
  %v6810 = vmul.f32 %v6455, %v6746
  %v6811 = vmul.f32 %v6457, %v6747
  %v6812 = vmul.f32 %v6459, %v6748
  %v6813 = vmul.f32 %v6461, %v6749
  %v6814 = vmul.f32 %v6463, %v6750
  %v6815 = vmul.f32 %v6465, %v6751
  %v6816 = vmul.f32 %v6467, %v6752
  %v6817 = vmul.f32 %v6469, %v6753
  %v6818 = vmul.f32 %v6471, %v6754
  %v6819 = vmul.f32 %v6473, %v6755
  %v6820 = vmul.f32 %v6475, %v6756
  %v6821 = vmul.f32 %v6477, %v6757
  %v6822 = vmul.f32 %v6479, %v6758
  %v6823 = vmul.f32 %v6481, %v6759
  %v6824 = vmul.f32 %v6483, %v6760
  %v6825 = vmul.f32 %v6485, %v6761
  %v6826 = vmul.f32 %v6487, %v6762
  %v6827 = vmul.f32 %v6489, %v6763
  %v6828 = vmul.f32 %v6491, %v6764
  %v6829 = vmul.f32 %v6493, %v6765
  %v6830 = vmul.f32 %v6495, %v6766
  %v6831 = vmul.f32 %v6497, %v6767
  %v6832 = vmul.f32 %v6499, %v6768
  %v6833 = vmul.f32 %v6501, %v6769
  %v6834 = vmul.f32 %v6503, %v6770
  %v6835 = vmul.f32 %v6505, %v6771
  %v6836 = vmul.f32 %v6507, %v6772
  %v6837 = vmul.f32 %v6509, %v6773
  %v6838 = vmul.f32 %v6511, %v6774
  %v6839 = vmul.f32 %v6513, %v6775
  %v6840 = vmul.f32 %v6515, %v6776
  %v6841 = vmul.f32 %v6517, %v6777
  %v6842 = vmul.f32 %v6519, %v6778
  %v6843 = vmul.f32 %v6521, %v6779
  %v6844 = vmul.f32 %v6523, %v6780
  %v6845 = vmul.f32 %v6525, %v6781
  %v6847 = vsel %vm1865, %v6782, 0
  %v6850 = vsel %vm1865, %v6783, 0
  %v6853 = vsel %vm1865, %v6784, 0
  %v6856 = vsel %vm1865, %v6785, 0
  %v6859 = vsel %vm1865, %v6786, 0
  %v6862 = vsel %vm1865, %v6787, 0
  %v6865 = vsel %vm1865, %v6788, 0
  %v6868 = vsel %vm1865, %v6789, 0
  %6870 = vmatprep.subr.mxu0 0.0
  %6871 = vmatpush1.msra.mxu0 %v4856
  %6872 = vmatprep.subr.mxu0 0.0
  %6873 = vmatpush1.msra.mxu0 0.0
  %6874 = vmatprep.subr.mxu0 0.0
  %6875 = vmatpush1.msra.mxu0 0.0
  %6876 = vmatprep.subr.mxu0 0.0
  %6877 = vmatpush1.msra.mxu0 0.0
  %6878 = vmatprep.subr.mxu0 0.0
  %6879 = vmatpush1.msra.mxu0 0.0
  %6880 = vmatprep.subr.mxu0 0.0
  %6881 = vmatpush1.msra.mxu0 0.0
  %6882 = vmatprep.subr.mxu0 0.0
  %6883 = vmatpush1.msra.mxu0 0.0
  %6884 = vmatprep.subr.mxu0 0.0
  %6885 = vmatpush1.msra.mxu0 0.0
  %6886 = vmatprep.subr.mxu0 0.0
  %6887 = vmatpush1.msra.mxu0 0.0
  %6888 = vmatprep.subr.mxu0 0.0
  %6889 = vmatpush1.msra.mxu0 0.0
  %6890 = vmatprep.subr.mxu0 0.0
  %6891 = vmatpush1.msra.mxu0 0.0
  %6892 = vmatprep.subr.mxu0 0.0
  %6893 = vmatpush1.msra.mxu0 0.0
  %6894 = vmatprep.subr.mxu0 0.0
  %6895 = vmatpush1.msra.mxu0 0.0
  %6896 = vmatprep.subr.mxu0 0.0
  %6897 = vmatpush1.msra.mxu0 0.0
  %6898 = vmatprep.subr.mxu0 0.0
  %6899 = vmatpush1.msra.mxu0 0.0
  %6900 = vmatprep.subr.mxu0 0.0
  %6901 = vmatpush1.msra.mxu0 0.0
  %6902 = vmatprep.subr.mxu0 0.0
  %6903 = vmatpush1.msra.mxu0 0.0
  %6904 = vmatprep.subr.mxu0 0.0
  %6905 = vmatpush1.msra.mxu0 0.0
  %6906 = vmatprep.subr.mxu0 0.0
  %6907 = vmatpush1.msra.mxu0 0.0
  %6908 = vmatprep.subr.mxu0 0.0
  %6909 = vmatpush1.msra.mxu0 0.0
  %6910 = vmatprep.subr.mxu0 0.0
  %6911 = vmatpush1.msra.mxu0 0.0
  %6912 = vmatprep.subr.mxu0 0.0
  %6913 = vmatpush1.msra.mxu0 0.0
  %6914 = vmatprep.subr.mxu0 0.0
  %6915 = vmatpush1.msra.mxu0 0.0
  %6916 = vmatprep.subr.mxu0 0.0
  %6917 = vmatpush1.msra.mxu0 0.0
  %6918 = vmatprep.subr.mxu0 0.0
  %6919 = vmatpush1.msra.mxu0 0.0
  %6920 = vmatprep.subr.mxu0 0.0
  %6921 = vmatpush1.msra.mxu0 0.0
  %6922 = vmatprep.subr.mxu0 0.0
  %6923 = vmatpush1.msra.mxu0 0.0
  %6924 = vmatprep.subr.mxu0 0.0
  %6925 = vmatpush1.msra.mxu0 0.0
  %6926 = vmatprep.subr.mxu0 0.0
  %6927 = vmatpush1.msra.mxu0 0.0
  %6928 = vmatprep.subr.mxu0 0.0
  %6929 = vmatpush1.msra.mxu0 0.0
  %6930 = vmatprep.subr.mxu0 0.0
  %6931 = vmatpush1.msra.mxu0 0.0
  %6932 = vmatprep.subr.mxu0 0.0
  %6933 = vmatpush1.msra.mxu0 0.0
  %6934 = vmatprep.mubr.f32.mxu0 0.0
  %6935 = vmatmul.mubr.f32.gmra.mrb[0].mxu0 %v6847
  %v6936 = vpop.f32.mrb[0].mxu0
  %v6937 = vadd.f32 0.0, %v6936
  %v6938 = vpop.f32.mrb[0].mxu0
  %6939 = vmatprep.mubr.f32.mxu0 0.0
  %6940 = vmatmul.mubr.f32.gmra.mrb[0].mxu0 %v6850
  %v6941 = vpop.f32.mrb[0].mxu0
  %v6942 = vadd.f32 0.0, %v6941
  %v6943 = vpop.f32.mrb[0].mxu0
  %6944 = vmatprep.mubr.f32.mxu0 0.0
  %6945 = vmatmul.mubr.f32.gmra.mrb[0].mxu0 %v6853
  %v6946 = vpop.f32.mrb[0].mxu0
  %v6947 = vadd.f32 0.0, %v6946
  %v6948 = vpop.f32.mrb[0].mxu0
  %6949 = vmatprep.mubr.f32.mxu0 0.0
  %6950 = vmatmul.mubr.f32.gmra.mrb[0].mxu0 %v6856
  %v6951 = vpop.f32.mrb[0].mxu0
  %v6952 = vadd.f32 0.0, %v6951
  %v6953 = vpop.f32.mrb[0].mxu0
  %6954 = vmatprep.mubr.f32.mxu0 0.0
  %6955 = vmatmul.mubr.f32.gmra.mrb[0].mxu0 %v6859
  %v6956 = vpop.f32.mrb[0].mxu0
  %v6957 = vadd.f32 0.0, %v6956
  %v6958 = vpop.f32.mrb[0].mxu0
  %6959 = vmatprep.mubr.f32.mxu0 0.0
  %6960 = vmatmul.mubr.f32.gmra.mrb[0].mxu0 %v6862
  %v6961 = vpop.f32.mrb[0].mxu0
  %v6962 = vadd.f32 0.0, %v6961
  %v6963 = vpop.f32.mrb[0].mxu0
  %6964 = vmatprep.mubr.f32.mxu0 0.0
  %6965 = vmatmul.mubr.f32.gmra.mrb[0].mxu0 %v6865
  %v6966 = vpop.f32.mrb[0].mxu0
  %v6967 = vadd.f32 0.0, %v6966
  %v6968 = vpop.f32.mrb[0].mxu0
  %6969 = vmatprep.mubr.f32.mxu0 0.0
  %6970 = vmatmul.mubr.f32.gmra.mrb[0].mxu0 %v6868
  %v6971 = vpop.f32.mrb[0].mxu0
  %v6972 = vadd.f32 0.0, %v6971
  %v6973 = vpop.f32.mrb[0].mxu0
  %6974 = vdwg.mxu0
  %v6976 = vsel %vm1865, %v6790, 0
  %v6979 = vsel %vm1865, %v6791, 0
  %v6982 = vsel %vm1865, %v6792, 0
  %v6985 = vsel %vm1865, %v6793, 0
  %v6988 = vsel %vm1865, %v6794, 0
  %v6991 = vsel %vm1865, %v6795, 0
  %v6994 = vsel %vm1865, %v6796, 0
  %v6997 = vsel %vm1865, %v6797, 0
  %6999 = vmatprep.subr.mxu0 0.0
  %7000 = vmatpush1.msra.mxu0 %v4861
  %7001 = vmatprep.subr.mxu0 0.0
  %7002 = vmatpush1.msra.mxu0 0.0
  %7003 = vmatprep.subr.mxu0 0.0
  %7004 = vmatpush1.msra.mxu0 0.0
  %7005 = vmatprep.subr.mxu0 0.0
  %7006 = vmatpush1.msra.mxu0 0.0
  %7007 = vmatprep.subr.mxu0 0.0
  %7008 = vmatpush1.msra.mxu0 0.0
  %7009 = vmatprep.subr.mxu0 0.0
  %7010 = vmatpush1.msra.mxu0 0.0
  %7011 = vmatprep.subr.mxu0 0.0
  %7012 = vmatpush1.msra.mxu0 0.0
  %7013 = vmatprep.subr.mxu0 0.0
  %7014 = vmatpush1.msra.mxu0 0.0
  %7015 = vmatprep.subr.mxu0 0.0
  %7016 = vmatpush1.msra.mxu0 0.0
  %7017 = vmatprep.subr.mxu0 0.0
  %7018 = vmatpush1.msra.mxu0 0.0
  %7019 = vmatprep.subr.mxu0 0.0
  %7020 = vmatpush1.msra.mxu0 0.0
  %7021 = vmatprep.subr.mxu0 0.0
  %7022 = vmatpush1.msra.mxu0 0.0
  %7023 = vmatprep.subr.mxu0 0.0
  %7024 = vmatpush1.msra.mxu0 0.0
  %7025 = vmatprep.subr.mxu0 0.0
  %7026 = vmatpush1.msra.mxu0 0.0
  %7027 = vmatprep.subr.mxu0 0.0
  %7028 = vmatpush1.msra.mxu0 0.0
  %7029 = vmatprep.subr.mxu0 0.0
  %7030 = vmatpush1.msra.mxu0 0.0
  %7031 = vmatprep.subr.mxu0 0.0
  %7032 = vmatpush1.msra.mxu0 0.0
  %7033 = vmatprep.subr.mxu0 0.0
  %7034 = vmatpush1.msra.mxu0 0.0
  %7035 = vmatprep.subr.mxu0 0.0
  %7036 = vmatpush1.msra.mxu0 0.0
  %7037 = vmatprep.subr.mxu0 0.0
  %7038 = vmatpush1.msra.mxu0 0.0
  %7039 = vmatprep.subr.mxu0 0.0
  %7040 = vmatpush1.msra.mxu0 0.0
  %7041 = vmatprep.subr.mxu0 0.0
  %7042 = vmatpush1.msra.mxu0 0.0
  %7043 = vmatprep.subr.mxu0 0.0
  %7044 = vmatpush1.msra.mxu0 0.0
  %7045 = vmatprep.subr.mxu0 0.0
  %7046 = vmatpush1.msra.mxu0 0.0
  %7047 = vmatprep.subr.mxu0 0.0
  %7048 = vmatpush1.msra.mxu0 0.0
  %7049 = vmatprep.subr.mxu0 0.0
  %7050 = vmatpush1.msra.mxu0 0.0
  %7051 = vmatprep.subr.mxu0 0.0
  %7052 = vmatpush1.msra.mxu0 0.0
  %7053 = vmatprep.subr.mxu0 0.0
  %7054 = vmatpush1.msra.mxu0 0.0
  %7055 = vmatprep.subr.mxu0 0.0
  %7056 = vmatpush1.msra.mxu0 0.0
  %7057 = vmatprep.subr.mxu0 0.0
  %7058 = vmatpush1.msra.mxu0 0.0
  %7059 = vmatprep.subr.mxu0 0.0
  %7060 = vmatpush1.msra.mxu0 0.0
  %7061 = vmatprep.subr.mxu0 0.0
  %7062 = vmatpush1.msra.mxu0 0.0
  %7063 = vmatprep.mubr.f32.mxu0 0.0
  %7064 = vmatmul.mubr.f32.gmra.mrb[0].mxu0 %v6976
  %v7065 = vpop.f32.mrb[0].mxu0
  %v7066 = vadd.f32 0.0, %v7065
  %v7067 = vpop.f32.mrb[0].mxu0
  %7068 = vmatprep.mubr.f32.mxu0 0.0
  %7069 = vmatmul.mubr.f32.gmra.mrb[0].mxu0 %v6979
  %v7070 = vpop.f32.mrb[0].mxu0
  %v7071 = vadd.f32 0.0, %v7070
  %v7072 = vpop.f32.mrb[0].mxu0
  %7073 = vmatprep.mubr.f32.mxu0 0.0
  %7074 = vmatmul.mubr.f32.gmra.mrb[0].mxu0 %v6982
  %v7075 = vpop.f32.mrb[0].mxu0
  %v7076 = vadd.f32 0.0, %v7075
  %v7077 = vpop.f32.mrb[0].mxu0
  %7078 = vmatprep.mubr.f32.mxu0 0.0
  %7079 = vmatmul.mubr.f32.gmra.mrb[0].mxu0 %v6985
  %v7080 = vpop.f32.mrb[0].mxu0
  %v7081 = vadd.f32 0.0, %v7080
  %v7082 = vpop.f32.mrb[0].mxu0
  %7083 = vmatprep.mubr.f32.mxu0 0.0
  %7084 = vmatmul.mubr.f32.gmra.mrb[0].mxu0 %v6988
  %v7085 = vpop.f32.mrb[0].mxu0
  %v7086 = vadd.f32 0.0, %v7085
  %v7087 = vpop.f32.mrb[0].mxu0
  %7088 = vmatprep.mubr.f32.mxu0 0.0
  %7089 = vmatmul.mubr.f32.gmra.mrb[0].mxu0 %v6991
  %v7090 = vpop.f32.mrb[0].mxu0
  %v7091 = vadd.f32 0.0, %v7090
  %v7092 = vpop.f32.mrb[0].mxu0
  %7093 = vmatprep.mubr.f32.mxu0 0.0
  %7094 = vmatmul.mubr.f32.gmra.mrb[0].mxu0 %v6994
  %v7095 = vpop.f32.mrb[0].mxu0
  %v7096 = vadd.f32 0.0, %v7095
  %v7097 = vpop.f32.mrb[0].mxu0
  %7098 = vmatprep.mubr.f32.mxu0 0.0
  %7099 = vmatmul.mubr.f32.gmra.mrb[0].mxu0 %v6997
  %v7100 = vpop.f32.mrb[0].mxu0
  %v7101 = vadd.f32 0.0, %v7100
  %v7102 = vpop.f32.mrb[0].mxu0
  %7103 = vdwg.mxu0
  %v7105 = vsel %vm1865, %v6798, 0
  %v7108 = vsel %vm1865, %v6799, 0
  %v7111 = vsel %vm1865, %v6800, 0
  %v7114 = vsel %vm1865, %v6801, 0
  %v7117 = vsel %vm1865, %v6802, 0
  %v7120 = vsel %vm1865, %v6803, 0
  %v7123 = vsel %vm1865, %v6804, 0
  %v7126 = vsel %vm1865, %v6805, 0
  %7128 = vmatprep.subr.mxu0 0.0
  %7129 = vmatpush1.msra.mxu0 %v4866
  %7130 = vmatprep.subr.mxu0 0.0
  %7131 = vmatpush1.msra.mxu0 0.0
  %7132 = vmatprep.subr.mxu0 0.0
  %7133 = vmatpush1.msra.mxu0 0.0
  %7134 = vmatprep.subr.mxu0 0.0
  %7135 = vmatpush1.msra.mxu0 0.0
  %7136 = vmatprep.subr.mxu0 0.0
  %7137 = vmatpush1.msra.mxu0 0.0
  %7138 = vmatprep.subr.mxu0 0.0
  %7139 = vmatpush1.msra.mxu0 0.0
  %7140 = vmatprep.subr.mxu0 0.0
  %7141 = vmatpush1.msra.mxu0 0.0
  %7142 = vmatprep.subr.mxu0 0.0
  %7143 = vmatpush1.msra.mxu0 0.0
  %7144 = vmatprep.subr.mxu0 0.0
  %7145 = vmatpush1.msra.mxu0 0.0
  %7146 = vmatprep.subr.mxu0 0.0
  %7147 = vmatpush1.msra.mxu0 0.0
  %7148 = vmatprep.subr.mxu0 0.0
  %7149 = vmatpush1.msra.mxu0 0.0
  %7150 = vmatprep.subr.mxu0 0.0
  %7151 = vmatpush1.msra.mxu0 0.0
  %7152 = vmatprep.subr.mxu0 0.0
  %7153 = vmatpush1.msra.mxu0 0.0
  %7154 = vmatprep.subr.mxu0 0.0
  %7155 = vmatpush1.msra.mxu0 0.0
  %7156 = vmatprep.subr.mxu0 0.0
  %7157 = vmatpush1.msra.mxu0 0.0
  %7158 = vmatprep.subr.mxu0 0.0
  %7159 = vmatpush1.msra.mxu0 0.0
  %7160 = vmatprep.subr.mxu0 0.0
  %7161 = vmatpush1.msra.mxu0 0.0
  %7162 = vmatprep.subr.mxu0 0.0
  %7163 = vmatpush1.msra.mxu0 0.0
  %7164 = vmatprep.subr.mxu0 0.0
  %7165 = vmatpush1.msra.mxu0 0.0
  %7166 = vmatprep.subr.mxu0 0.0
  %7167 = vmatpush1.msra.mxu0 0.0
  %7168 = vmatprep.subr.mxu0 0.0
  %7169 = vmatpush1.msra.mxu0 0.0
  %7170 = vmatprep.subr.mxu0 0.0
  %7171 = vmatpush1.msra.mxu0 0.0
  %7172 = vmatprep.subr.mxu0 0.0
  %7173 = vmatpush1.msra.mxu0 0.0
  %7174 = vmatprep.subr.mxu0 0.0
  %7175 = vmatpush1.msra.mxu0 0.0
  %7176 = vmatprep.subr.mxu0 0.0
  %7177 = vmatpush1.msra.mxu0 0.0
  %7178 = vmatprep.subr.mxu0 0.0
  %7179 = vmatpush1.msra.mxu0 0.0
  %7180 = vmatprep.subr.mxu0 0.0
  %7181 = vmatpush1.msra.mxu0 0.0
  %7182 = vmatprep.subr.mxu0 0.0
  %7183 = vmatpush1.msra.mxu0 0.0
  %7184 = vmatprep.subr.mxu0 0.0
  %7185 = vmatpush1.msra.mxu0 0.0
  %7186 = vmatprep.subr.mxu0 0.0
  %7187 = vmatpush1.msra.mxu0 0.0
  %7188 = vmatprep.subr.mxu0 0.0
  %7189 = vmatpush1.msra.mxu0 0.0
  %7190 = vmatprep.subr.mxu0 0.0
  %7191 = vmatpush1.msra.mxu0 0.0
  %7192 = vmatprep.mubr.f32.mxu0 0.0
  %7193 = vmatmul.mubr.f32.gmra.mrb[0].mxu0 %v7105
  %v7194 = vpop.f32.mrb[0].mxu0
  %v7195 = vadd.f32 0.0, %v7194
  %v7196 = vpop.f32.mrb[0].mxu0
  %7197 = vmatprep.mubr.f32.mxu0 0.0
  %7198 = vmatmul.mubr.f32.gmra.mrb[0].mxu0 %v7108
  %v7199 = vpop.f32.mrb[0].mxu0
  %v7200 = vadd.f32 0.0, %v7199
  %v7201 = vpop.f32.mrb[0].mxu0
  %7202 = vmatprep.mubr.f32.mxu0 0.0
  %7203 = vmatmul.mubr.f32.gmra.mrb[0].mxu0 %v7111
  %v7204 = vpop.f32.mrb[0].mxu0
  %v7205 = vadd.f32 0.0, %v7204
  %v7206 = vpop.f32.mrb[0].mxu0
  %7207 = vmatprep.mubr.f32.mxu0 0.0
  %7208 = vmatmul.mubr.f32.gmra.mrb[0].mxu0 %v7114
  %v7209 = vpop.f32.mrb[0].mxu0
  %v7210 = vadd.f32 0.0, %v7209
  %v7211 = vpop.f32.mrb[0].mxu0
  %7212 = vmatprep.mubr.f32.mxu0 0.0
  %7213 = vmatmul.mubr.f32.gmra.mrb[0].mxu0 %v7117
  %v7214 = vpop.f32.mrb[0].mxu0
  %v7215 = vadd.f32 0.0, %v7214
  %v7216 = vpop.f32.mrb[0].mxu0
  %7217 = vmatprep.mubr.f32.mxu0 0.0
  %7218 = vmatmul.mubr.f32.gmra.mrb[0].mxu0 %v7120
  %v7219 = vpop.f32.mrb[0].mxu0
  %v7220 = vadd.f32 0.0, %v7219
  %v7221 = vpop.f32.mrb[0].mxu0
  %7222 = vmatprep.mubr.f32.mxu0 0.0
  %7223 = vmatmul.mubr.f32.gmra.mrb[0].mxu0 %v7123
  %v7224 = vpop.f32.mrb[0].mxu0
  %v7225 = vadd.f32 0.0, %v7224
  %v7226 = vpop.f32.mrb[0].mxu0
  %7227 = vmatprep.mubr.f32.mxu0 0.0
  %7228 = vmatmul.mubr.f32.gmra.mrb[0].mxu0 %v7126
  %v7229 = vpop.f32.mrb[0].mxu0
  %v7230 = vadd.f32 0.0, %v7229
  %v7231 = vpop.f32.mrb[0].mxu0
  %7232 = vdwg.mxu0
  %v7234 = vsel %vm1865, %v6806, 0
  %v7237 = vsel %vm1865, %v6807, 0
  %v7240 = vsel %vm1865, %v6808, 0
  %v7243 = vsel %vm1865, %v6809, 0
  %v7246 = vsel %vm1865, %v6810, 0
  %v7249 = vsel %vm1865, %v6811, 0
  %v7252 = vsel %vm1865, %v6812, 0
  %v7255 = vsel %vm1865, %v6813, 0
  %7257 = vmatprep.subr.mxu0 0.0
  %7258 = vmatpush1.msra.mxu0 %v4871
  %7259 = vmatprep.subr.mxu0 0.0
  %7260 = vmatpush1.msra.mxu0 0.0
  %7261 = vmatprep.subr.mxu0 0.0
  %7262 = vmatpush1.msra.mxu0 0.0
  %7263 = vmatprep.subr.mxu0 0.0
  %7264 = vmatpush1.msra.mxu0 0.0
  %7265 = vmatprep.subr.mxu0 0.0
  %7266 = vmatpush1.msra.mxu0 0.0
  %7267 = vmatprep.subr.mxu0 0.0
  %7268 = vmatpush1.msra.mxu0 0.0
  %7269 = vmatprep.subr.mxu0 0.0
  %7270 = vmatpush1.msra.mxu0 0.0
  %7271 = vmatprep.subr.mxu0 0.0
  %7272 = vmatpush1.msra.mxu0 0.0
  %7273 = vmatprep.subr.mxu0 0.0
  %7274 = vmatpush1.msra.mxu0 0.0
  %7275 = vmatprep.subr.mxu0 0.0
  %7276 = vmatpush1.msra.mxu0 0.0
  %7277 = vmatprep.subr.mxu0 0.0
  %7278 = vmatpush1.msra.mxu0 0.0
  %7279 = vmatprep.subr.mxu0 0.0
  %7280 = vmatpush1.msra.mxu0 0.0
  %7281 = vmatprep.subr.mxu0 0.0
  %7282 = vmatpush1.msra.mxu0 0.0
  %7283 = vmatprep.subr.mxu0 0.0
  %7284 = vmatpush1.msra.mxu0 0.0
  %7285 = vmatprep.subr.mxu0 0.0
  %7286 = vmatpush1.msra.mxu0 0.0
  %7287 = vmatprep.subr.mxu0 0.0
  %7288 = vmatpush1.msra.mxu0 0.0
  %7289 = vmatprep.subr.mxu0 0.0
  %7290 = vmatpush1.msra.mxu0 0.0
  %7291 = vmatprep.subr.mxu0 0.0
  %7292 = vmatpush1.msra.mxu0 0.0
  %7293 = vmatprep.subr.mxu0 0.0
  %7294 = vmatpush1.msra.mxu0 0.0
  %7295 = vmatprep.subr.mxu0 0.0
  %7296 = vmatpush1.msra.mxu0 0.0
  %7297 = vmatprep.subr.mxu0 0.0
  %7298 = vmatpush1.msra.mxu0 0.0
  %7299 = vmatprep.subr.mxu0 0.0
  %7300 = vmatpush1.msra.mxu0 0.0
  %7301 = vmatprep.subr.mxu0 0.0
  %7302 = vmatpush1.msra.mxu0 0.0
  %7303 = vmatprep.subr.mxu0 0.0
  %7304 = vmatpush1.msra.mxu0 0.0
  %7305 = vmatprep.subr.mxu0 0.0
  %7306 = vmatpush1.msra.mxu0 0.0
  %7307 = vmatprep.subr.mxu0 0.0
  %7308 = vmatpush1.msra.mxu0 0.0
  %7309 = vmatprep.subr.mxu0 0.0
  %7310 = vmatpush1.msra.mxu0 0.0
  %7311 = vmatprep.subr.mxu0 0.0
  %7312 = vmatpush1.msra.mxu0 0.0
  %7313 = vmatprep.subr.mxu0 0.0
  %7314 = vmatpush1.msra.mxu0 0.0
  %7315 = vmatprep.subr.mxu0 0.0
  %7316 = vmatpush1.msra.mxu0 0.0
  %7317 = vmatprep.subr.mxu0 0.0
  %7318 = vmatpush1.msra.mxu0 0.0
  %7319 = vmatprep.subr.mxu0 0.0
  %7320 = vmatpush1.msra.mxu0 0.0
  %7321 = vmatprep.mubr.f32.mxu0 0.0
  %7322 = vmatmul.mubr.f32.gmra.mrb[0].mxu0 %v7234
  %v7323 = vpop.f32.mrb[0].mxu0
  %v7324 = vadd.f32 0.0, %v7323
  %v7325 = vpop.f32.mrb[0].mxu0
  %7326 = vmatprep.mubr.f32.mxu0 0.0
  %7327 = vmatmul.mubr.f32.gmra.mrb[0].mxu0 %v7237
  %v7328 = vpop.f32.mrb[0].mxu0
  %v7329 = vadd.f32 0.0, %v7328
  %v7330 = vpop.f32.mrb[0].mxu0
  %7331 = vmatprep.mubr.f32.mxu0 0.0
  %7332 = vmatmul.mubr.f32.gmra.mrb[0].mxu0 %v7240
  %v7333 = vpop.f32.mrb[0].mxu0
  %v7334 = vadd.f32 0.0, %v7333
  %v7335 = vpop.f32.mrb[0].mxu0
  %7336 = vmatprep.mubr.f32.mxu0 0.0
  %7337 = vmatmul.mubr.f32.gmra.mrb[0].mxu0 %v7243
  %v7338 = vpop.f32.mrb[0].mxu0
  %v7339 = vadd.f32 0.0, %v7338
  %v7340 = vpop.f32.mrb[0].mxu0
  %7341 = vmatprep.mubr.f32.mxu0 0.0
  %7342 = vmatmul.mubr.f32.gmra.mrb[0].mxu0 %v7246
  %v7343 = vpop.f32.mrb[0].mxu0
  %v7344 = vadd.f32 0.0, %v7343
  %v7345 = vpop.f32.mrb[0].mxu0
  %7346 = vmatprep.mubr.f32.mxu0 0.0
  %7347 = vmatmul.mubr.f32.gmra.mrb[0].mxu0 %v7249
  %v7348 = vpop.f32.mrb[0].mxu0
  %v7349 = vadd.f32 0.0, %v7348
  %v7350 = vpop.f32.mrb[0].mxu0
  %7351 = vmatprep.mubr.f32.mxu0 0.0
  %7352 = vmatmul.mubr.f32.gmra.mrb[0].mxu0 %v7252
  %v7353 = vpop.f32.mrb[0].mxu0
  %v7354 = vadd.f32 0.0, %v7353
  %v7355 = vpop.f32.mrb[0].mxu0
  %7356 = vmatprep.mubr.f32.mxu0 0.0
  %7357 = vmatmul.mubr.f32.gmra.mrb[0].mxu0 %v7255
  %v7358 = vpop.f32.mrb[0].mxu0
  %v7359 = vadd.f32 0.0, %v7358
  %v7360 = vpop.f32.mrb[0].mxu0
  %7361 = vdwg.mxu0
  %v7363 = vsel %vm1865, %v6814, 0
  %v7366 = vsel %vm1865, %v6815, 0
  %v7369 = vsel %vm1865, %v6816, 0
  %v7372 = vsel %vm1865, %v6817, 0
  %v7375 = vsel %vm1865, %v6818, 0
  %v7378 = vsel %vm1865, %v6819, 0
  %v7381 = vsel %vm1865, %v6820, 0
  %v7384 = vsel %vm1865, %v6821, 0
  %7386 = vmatprep.subr.mxu0 0.0
  %7387 = vmatpush1.msra.mxu0 %v4876
  %7388 = vmatprep.subr.mxu0 0.0
  %7389 = vmatpush1.msra.mxu0 0.0
  %7390 = vmatprep.subr.mxu0 0.0
  %7391 = vmatpush1.msra.mxu0 0.0
  %7392 = vmatprep.subr.mxu0 0.0
  %7393 = vmatpush1.msra.mxu0 0.0
  %7394 = vmatprep.subr.mxu0 0.0
  %7395 = vmatpush1.msra.mxu0 0.0
  %7396 = vmatprep.subr.mxu0 0.0
  %7397 = vmatpush1.msra.mxu0 0.0
  %7398 = vmatprep.subr.mxu0 0.0
  %7399 = vmatpush1.msra.mxu0 0.0
  %7400 = vmatprep.subr.mxu0 0.0
  %7401 = vmatpush1.msra.mxu0 0.0
  %7402 = vmatprep.subr.mxu0 0.0
  %7403 = vmatpush1.msra.mxu0 0.0
  %7404 = vmatprep.subr.mxu0 0.0
  %7405 = vmatpush1.msra.mxu0 0.0
  %7406 = vmatprep.subr.mxu0 0.0
  %7407 = vmatpush1.msra.mxu0 0.0
  %7408 = vmatprep.subr.mxu0 0.0
  %7409 = vmatpush1.msra.mxu0 0.0
  %7410 = vmatprep.subr.mxu0 0.0
  %7411 = vmatpush1.msra.mxu0 0.0
  %7412 = vmatprep.subr.mxu0 0.0
  %7413 = vmatpush1.msra.mxu0 0.0
  %7414 = vmatprep.subr.mxu0 0.0
  %7415 = vmatpush1.msra.mxu0 0.0
  %7416 = vmatprep.subr.mxu0 0.0
  %7417 = vmatpush1.msra.mxu0 0.0
  %7418 = vmatprep.subr.mxu0 0.0
  %7419 = vmatpush1.msra.mxu0 0.0
  %7420 = vmatprep.subr.mxu0 0.0
  %7421 = vmatpush1.msra.mxu0 0.0
  %7422 = vmatprep.subr.mxu0 0.0
  %7423 = vmatpush1.msra.mxu0 0.0
  %7424 = vmatprep.subr.mxu0 0.0
  %7425 = vmatpush1.msra.mxu0 0.0
  %7426 = vmatprep.subr.mxu0 0.0
  %7427 = vmatpush1.msra.mxu0 0.0
  %7428 = vmatprep.subr.mxu0 0.0
  %7429 = vmatpush1.msra.mxu0 0.0
  %7430 = vmatprep.subr.mxu0 0.0
  %7431 = vmatpush1.msra.mxu0 0.0
  %7432 = vmatprep.subr.mxu0 0.0
  %7433 = vmatpush1.msra.mxu0 0.0
  %7434 = vmatprep.subr.mxu0 0.0
  %7435 = vmatpush1.msra.mxu0 0.0
  %7436 = vmatprep.subr.mxu0 0.0
  %7437 = vmatpush1.msra.mxu0 0.0
  %7438 = vmatprep.subr.mxu0 0.0
  %7439 = vmatpush1.msra.mxu0 0.0
  %7440 = vmatprep.subr.mxu0 0.0
  %7441 = vmatpush1.msra.mxu0 0.0
  %7442 = vmatprep.subr.mxu0 0.0
  %7443 = vmatpush1.msra.mxu0 0.0
  %7444 = vmatprep.subr.mxu0 0.0
  %7445 = vmatpush1.msra.mxu0 0.0
  %7446 = vmatprep.subr.mxu0 0.0
  %7447 = vmatpush1.msra.mxu0 0.0
  %7448 = vmatprep.subr.mxu0 0.0
  %7449 = vmatpush1.msra.mxu0 0.0
  %7450 = vmatprep.mubr.f32.mxu0 0.0
  %7451 = vmatmul.mubr.f32.gmra.mrb[0].mxu0 %v7363
  %v7452 = vpop.f32.mrb[0].mxu0
  %v7453 = vadd.f32 0.0, %v7452
  %v7454 = vpop.f32.mrb[0].mxu0
  %7455 = vmatprep.mubr.f32.mxu0 0.0
  %7456 = vmatmul.mubr.f32.gmra.mrb[0].mxu0 %v7366
  %v7457 = vpop.f32.mrb[0].mxu0
  %v7458 = vadd.f32 0.0, %v7457
  %v7459 = vpop.f32.mrb[0].mxu0
  %7460 = vmatprep.mubr.f32.mxu0 0.0
  %7461 = vmatmul.mubr.f32.gmra.mrb[0].mxu0 %v7369
  %v7462 = vpop.f32.mrb[0].mxu0
  %v7463 = vadd.f32 0.0, %v7462
  %v7464 = vpop.f32.mrb[0].mxu0
  %7465 = vmatprep.mubr.f32.mxu0 0.0
  %7466 = vmatmul.mubr.f32.gmra.mrb[0].mxu0 %v7372
  %v7467 = vpop.f32.mrb[0].mxu0
  %v7468 = vadd.f32 0.0, %v7467
  %v7469 = vpop.f32.mrb[0].mxu0
  %7470 = vmatprep.mubr.f32.mxu0 0.0
  %7471 = vmatmul.mubr.f32.gmra.mrb[0].mxu0 %v7375
  %v7472 = vpop.f32.mrb[0].mxu0
  %v7473 = vadd.f32 0.0, %v7472
  %v7474 = vpop.f32.mrb[0].mxu0
  %7475 = vmatprep.mubr.f32.mxu0 0.0
  %7476 = vmatmul.mubr.f32.gmra.mrb[0].mxu0 %v7378
  %v7477 = vpop.f32.mrb[0].mxu0
  %v7478 = vadd.f32 0.0, %v7477
  %v7479 = vpop.f32.mrb[0].mxu0
  %7480 = vmatprep.mubr.f32.mxu0 0.0
  %7481 = vmatmul.mubr.f32.gmra.mrb[0].mxu0 %v7381
  %v7482 = vpop.f32.mrb[0].mxu0
  %v7483 = vadd.f32 0.0, %v7482
  %v7484 = vpop.f32.mrb[0].mxu0
  %7485 = vmatprep.mubr.f32.mxu0 0.0
  %7486 = vmatmul.mubr.f32.gmra.mrb[0].mxu0 %v7384
  %v7487 = vpop.f32.mrb[0].mxu0
  %v7488 = vadd.f32 0.0, %v7487
  %v7489 = vpop.f32.mrb[0].mxu0
  %7490 = vdwg.mxu0
  %v7492 = vsel %vm1865, %v6822, 0
  %v7495 = vsel %vm1865, %v6823, 0
  %v7498 = vsel %vm1865, %v6824, 0
  %v7501 = vsel %vm1865, %v6825, 0
  %v7504 = vsel %vm1865, %v6826, 0
  %v7507 = vsel %vm1865, %v6827, 0
  %v7510 = vsel %vm1865, %v6828, 0
  %v7513 = vsel %vm1865, %v6829, 0
  %7515 = vmatprep.subr.mxu0 0.0
  %7516 = vmatpush1.msra.mxu0 %v4881
  %7517 = vmatprep.subr.mxu0 0.0
  %7518 = vmatpush1.msra.mxu0 0.0
  %7519 = vmatprep.subr.mxu0 0.0
  %7520 = vmatpush1.msra.mxu0 0.0
  %7521 = vmatprep.subr.mxu0 0.0
  %7522 = vmatpush1.msra.mxu0 0.0
  %7523 = vmatprep.subr.mxu0 0.0
  %7524 = vmatpush1.msra.mxu0 0.0
  %7525 = vmatprep.subr.mxu0 0.0
  %7526 = vmatpush1.msra.mxu0 0.0
  %7527 = vmatprep.subr.mxu0 0.0
  %7528 = vmatpush1.msra.mxu0 0.0
  %7529 = vmatprep.subr.mxu0 0.0
  %7530 = vmatpush1.msra.mxu0 0.0
  %7531 = vmatprep.subr.mxu0 0.0
  %7532 = vmatpush1.msra.mxu0 0.0
  %7533 = vmatprep.subr.mxu0 0.0
  %7534 = vmatpush1.msra.mxu0 0.0
  %7535 = vmatprep.subr.mxu0 0.0
  %7536 = vmatpush1.msra.mxu0 0.0
  %7537 = vmatprep.subr.mxu0 0.0
  %7538 = vmatpush1.msra.mxu0 0.0
  %7539 = vmatprep.subr.mxu0 0.0
  %7540 = vmatpush1.msra.mxu0 0.0
  %7541 = vmatprep.subr.mxu0 0.0
  %7542 = vmatpush1.msra.mxu0 0.0
  %7543 = vmatprep.subr.mxu0 0.0
  %7544 = vmatpush1.msra.mxu0 0.0
  %7545 = vmatprep.subr.mxu0 0.0
  %7546 = vmatpush1.msra.mxu0 0.0
  %7547 = vmatprep.subr.mxu0 0.0
  %7548 = vmatpush1.msra.mxu0 0.0
  %7549 = vmatprep.subr.mxu0 0.0
  %7550 = vmatpush1.msra.mxu0 0.0
  %7551 = vmatprep.subr.mxu0 0.0
  %7552 = vmatpush1.msra.mxu0 0.0
  %7553 = vmatprep.subr.mxu0 0.0
  %7554 = vmatpush1.msra.mxu0 0.0
  %7555 = vmatprep.subr.mxu0 0.0
  %7556 = vmatpush1.msra.mxu0 0.0
  %7557 = vmatprep.subr.mxu0 0.0
  %7558 = vmatpush1.msra.mxu0 0.0
  %7559 = vmatprep.subr.mxu0 0.0
  %7560 = vmatpush1.msra.mxu0 0.0
  %7561 = vmatprep.subr.mxu0 0.0
  %7562 = vmatpush1.msra.mxu0 0.0
  %7563 = vmatprep.subr.mxu0 0.0
  %7564 = vmatpush1.msra.mxu0 0.0
  %7565 = vmatprep.subr.mxu0 0.0
  %7566 = vmatpush1.msra.mxu0 0.0
  %7567 = vmatprep.subr.mxu0 0.0
  %7568 = vmatpush1.msra.mxu0 0.0
  %7569 = vmatprep.subr.mxu0 0.0
  %7570 = vmatpush1.msra.mxu0 0.0
  %7571 = vmatprep.subr.mxu0 0.0
  %7572 = vmatpush1.msra.mxu0 0.0
  %7573 = vmatprep.subr.mxu0 0.0
  %7574 = vmatpush1.msra.mxu0 0.0
  %7575 = vmatprep.subr.mxu0 0.0
  %7576 = vmatpush1.msra.mxu0 0.0
  %7577 = vmatprep.subr.mxu0 0.0
  %7578 = vmatpush1.msra.mxu0 0.0
  %7579 = vmatprep.mubr.f32.mxu0 0.0
  %7580 = vmatmul.mubr.f32.gmra.mrb[0].mxu0 %v7492
  %v7581 = vpop.f32.mrb[0].mxu0
  %v7582 = vadd.f32 0.0, %v7581
  %v7583 = vpop.f32.mrb[0].mxu0
  %7584 = vmatprep.mubr.f32.mxu0 0.0
  %7585 = vmatmul.mubr.f32.gmra.mrb[0].mxu0 %v7495
  %v7586 = vpop.f32.mrb[0].mxu0
  %v7587 = vadd.f32 0.0, %v7586
  %v7588 = vpop.f32.mrb[0].mxu0
  %7589 = vmatprep.mubr.f32.mxu0 0.0
  %7590 = vmatmul.mubr.f32.gmra.mrb[0].mxu0 %v7498
  %v7591 = vpop.f32.mrb[0].mxu0
  %v7592 = vadd.f32 0.0, %v7591
  %v7593 = vpop.f32.mrb[0].mxu0
  %7594 = vmatprep.mubr.f32.mxu0 0.0
  %7595 = vmatmul.mubr.f32.gmra.mrb[0].mxu0 %v7501
  %v7596 = vpop.f32.mrb[0].mxu0
  %v7597 = vadd.f32 0.0, %v7596
  %v7598 = vpop.f32.mrb[0].mxu0
  %7599 = vmatprep.mubr.f32.mxu0 0.0
  %7600 = vmatmul.mubr.f32.gmra.mrb[0].mxu0 %v7504
  %v7601 = vpop.f32.mrb[0].mxu0
  %v7602 = vadd.f32 0.0, %v7601
  %v7603 = vpop.f32.mrb[0].mxu0
  %7604 = vmatprep.mubr.f32.mxu0 0.0
  %7605 = vmatmul.mubr.f32.gmra.mrb[0].mxu0 %v7507
  %v7606 = vpop.f32.mrb[0].mxu0
  %v7607 = vadd.f32 0.0, %v7606
  %v7608 = vpop.f32.mrb[0].mxu0
  %7609 = vmatprep.mubr.f32.mxu0 0.0
  %7610 = vmatmul.mubr.f32.gmra.mrb[0].mxu0 %v7510
  %v7611 = vpop.f32.mrb[0].mxu0
  %v7612 = vadd.f32 0.0, %v7611
  %v7613 = vpop.f32.mrb[0].mxu0
  %7614 = vmatprep.mubr.f32.mxu0 0.0
  %7615 = vmatmul.mubr.f32.gmra.mrb[0].mxu0 %v7513
  %v7616 = vpop.f32.mrb[0].mxu0
  %v7617 = vadd.f32 0.0, %v7616
  %v7618 = vpop.f32.mrb[0].mxu0
  %7619 = vdwg.mxu0
  %v7621 = vsel %vm1865, %v6830, 0
  %v7624 = vsel %vm1865, %v6831, 0
  %v7627 = vsel %vm1865, %v6832, 0
  %v7630 = vsel %vm1865, %v6833, 0
  %v7633 = vsel %vm1865, %v6834, 0
  %v7636 = vsel %vm1865, %v6835, 0
  %v7639 = vsel %vm1865, %v6836, 0
  %v7642 = vsel %vm1865, %v6837, 0
  %7644 = vmatprep.subr.mxu0 0.0
  %7645 = vmatpush1.msra.mxu0 %v4886
  %7646 = vmatprep.subr.mxu0 0.0
  %7647 = vmatpush1.msra.mxu0 0.0
  %7648 = vmatprep.subr.mxu0 0.0
  %7649 = vmatpush1.msra.mxu0 0.0
  %7650 = vmatprep.subr.mxu0 0.0
  %7651 = vmatpush1.msra.mxu0 0.0
  %7652 = vmatprep.subr.mxu0 0.0
  %7653 = vmatpush1.msra.mxu0 0.0
  %7654 = vmatprep.subr.mxu0 0.0
  %7655 = vmatpush1.msra.mxu0 0.0
  %7656 = vmatprep.subr.mxu0 0.0
  %7657 = vmatpush1.msra.mxu0 0.0
  %7658 = vmatprep.subr.mxu0 0.0
  %7659 = vmatpush1.msra.mxu0 0.0
  %7660 = vmatprep.subr.mxu0 0.0
  %7661 = vmatpush1.msra.mxu0 0.0
  %7662 = vmatprep.subr.mxu0 0.0
  %7663 = vmatpush1.msra.mxu0 0.0
  %7664 = vmatprep.subr.mxu0 0.0
  %7665 = vmatpush1.msra.mxu0 0.0
  %7666 = vmatprep.subr.mxu0 0.0
  %7667 = vmatpush1.msra.mxu0 0.0
  %7668 = vmatprep.subr.mxu0 0.0
  %7669 = vmatpush1.msra.mxu0 0.0
  %7670 = vmatprep.subr.mxu0 0.0
  %7671 = vmatpush1.msra.mxu0 0.0
  %7672 = vmatprep.subr.mxu0 0.0
  %7673 = vmatpush1.msra.mxu0 0.0
  %7674 = vmatprep.subr.mxu0 0.0
  %7675 = vmatpush1.msra.mxu0 0.0
  %7676 = vmatprep.subr.mxu0 0.0
  %7677 = vmatpush1.msra.mxu0 0.0
  %7678 = vmatprep.subr.mxu0 0.0
  %7679 = vmatpush1.msra.mxu0 0.0
  %7680 = vmatprep.subr.mxu0 0.0
  %7681 = vmatpush1.msra.mxu0 0.0
  %7682 = vmatprep.subr.mxu0 0.0
  %7683 = vmatpush1.msra.mxu0 0.0
  %7684 = vmatprep.subr.mxu0 0.0
  %7685 = vmatpush1.msra.mxu0 0.0
  %7686 = vmatprep.subr.mxu0 0.0
  %7687 = vmatpush1.msra.mxu0 0.0
  %7688 = vmatprep.subr.mxu0 0.0
  %7689 = vmatpush1.msra.mxu0 0.0
  %7690 = vmatprep.subr.mxu0 0.0
  %7691 = vmatpush1.msra.mxu0 0.0
  %7692 = vmatprep.subr.mxu0 0.0
  %7693 = vmatpush1.msra.mxu0 0.0
  %7694 = vmatprep.subr.mxu0 0.0
  %7695 = vmatpush1.msra.mxu0 0.0
  %7696 = vmatprep.subr.mxu0 0.0
  %7697 = vmatpush1.msra.mxu0 0.0
  %7698 = vmatprep.subr.mxu0 0.0
  %7699 = vmatpush1.msra.mxu0 0.0
  %7700 = vmatprep.subr.mxu0 0.0
  %7701 = vmatpush1.msra.mxu0 0.0
  %7702 = vmatprep.subr.mxu0 0.0
  %7703 = vmatpush1.msra.mxu0 0.0
  %7704 = vmatprep.subr.mxu0 0.0
  %7705 = vmatpush1.msra.mxu0 0.0
  %7706 = vmatprep.subr.mxu0 0.0
  %7707 = vmatpush1.msra.mxu0 0.0
  %7708 = vmatprep.mubr.f32.mxu0 0.0
  %7709 = vmatmul.mubr.f32.gmra.mrb[0].mxu0 %v7621
  %v7710 = vpop.f32.mrb[0].mxu0
  %v7711 = vadd.f32 0.0, %v7710
  %v7712 = vpop.f32.mrb[0].mxu0
  %7713 = vmatprep.mubr.f32.mxu0 0.0
  %7714 = vmatmul.mubr.f32.gmra.mrb[0].mxu0 %v7624
  %v7715 = vpop.f32.mrb[0].mxu0
  %v7716 = vadd.f32 0.0, %v7715
  %v7717 = vpop.f32.mrb[0].mxu0
  %7718 = vmatprep.mubr.f32.mxu0 0.0
  %7719 = vmatmul.mubr.f32.gmra.mrb[0].mxu0 %v7627
  %v7720 = vpop.f32.mrb[0].mxu0
  %v7721 = vadd.f32 0.0, %v7720
  %v7722 = vpop.f32.mrb[0].mxu0
  %7723 = vmatprep.mubr.f32.mxu0 0.0
  %7724 = vmatmul.mubr.f32.gmra.mrb[0].mxu0 %v7630
  %v7725 = vpop.f32.mrb[0].mxu0
  %v7726 = vadd.f32 0.0, %v7725
  %v7727 = vpop.f32.mrb[0].mxu0
  %7728 = vmatprep.mubr.f32.mxu0 0.0
  %7729 = vmatmul.mubr.f32.gmra.mrb[0].mxu0 %v7633
  %v7730 = vpop.f32.mrb[0].mxu0
  %v7731 = vadd.f32 0.0, %v7730
  %v7732 = vpop.f32.mrb[0].mxu0
  %7733 = vmatprep.mubr.f32.mxu0 0.0
  %7734 = vmatmul.mubr.f32.gmra.mrb[0].mxu0 %v7636
  %v7735 = vpop.f32.mrb[0].mxu0
  %v7736 = vadd.f32 0.0, %v7735
  %v7737 = vpop.f32.mrb[0].mxu0
  %7738 = vmatprep.mubr.f32.mxu0 0.0
  %7739 = vmatmul.mubr.f32.gmra.mrb[0].mxu0 %v7639
  %v7740 = vpop.f32.mrb[0].mxu0
  %v7741 = vadd.f32 0.0, %v7740
  %v7742 = vpop.f32.mrb[0].mxu0
  %7743 = vmatprep.mubr.f32.mxu0 0.0
  %7744 = vmatmul.mubr.f32.gmra.mrb[0].mxu0 %v7642
  %v7745 = vpop.f32.mrb[0].mxu0
  %v7746 = vadd.f32 0.0, %v7745
  %v7747 = vpop.f32.mrb[0].mxu0
  %7748 = vdwg.mxu0
  %v7750 = vsel %vm1865, %v6838, 0
  %v7753 = vsel %vm1865, %v6839, 0
  %v7756 = vsel %vm1865, %v6840, 0
  %v7759 = vsel %vm1865, %v6841, 0
  %v7762 = vsel %vm1865, %v6842, 0
  %v7765 = vsel %vm1865, %v6843, 0
  %v7768 = vsel %vm1865, %v6844, 0
  %v7771 = vsel %vm1865, %v6845, 0
  %7773 = vmatprep.subr.mxu0 0.0
  %7774 = vmatpush1.msra.mxu0 %v4891
  %7775 = vmatprep.subr.mxu0 0.0
  %7776 = vmatpush1.msra.mxu0 0.0
  %7777 = vmatprep.subr.mxu0 0.0
  %7778 = vmatpush1.msra.mxu0 0.0
  %7779 = vmatprep.subr.mxu0 0.0
  %7780 = vmatpush1.msra.mxu0 0.0
  %7781 = vmatprep.subr.mxu0 0.0
  %7782 = vmatpush1.msra.mxu0 0.0
  %7783 = vmatprep.subr.mxu0 0.0
  %7784 = vmatpush1.msra.mxu0 0.0
  %7785 = vmatprep.subr.mxu0 0.0
  %7786 = vmatpush1.msra.mxu0 0.0
  %7787 = vmatprep.subr.mxu0 0.0
  %7788 = vmatpush1.msra.mxu0 0.0
  %7789 = vmatprep.subr.mxu0 0.0
  %7790 = vmatpush1.msra.mxu0 0.0
  %7791 = vmatprep.subr.mxu0 0.0
  %7792 = vmatpush1.msra.mxu0 0.0
  %7793 = vmatprep.subr.mxu0 0.0
  %7794 = vmatpush1.msra.mxu0 0.0
  %7795 = vmatprep.subr.mxu0 0.0
  %7796 = vmatpush1.msra.mxu0 0.0
  %7797 = vmatprep.subr.mxu0 0.0
  %7798 = vmatpush1.msra.mxu0 0.0
  %7799 = vmatprep.subr.mxu0 0.0
  %7800 = vmatpush1.msra.mxu0 0.0
  %7801 = vmatprep.subr.mxu0 0.0
  %7802 = vmatpush1.msra.mxu0 0.0
  %7803 = vmatprep.subr.mxu0 0.0
  %7804 = vmatpush1.msra.mxu0 0.0
  %7805 = vmatprep.subr.mxu0 0.0
  %7806 = vmatpush1.msra.mxu0 0.0
  %7807 = vmatprep.subr.mxu0 0.0
  %7808 = vmatpush1.msra.mxu0 0.0
  %7809 = vmatprep.subr.mxu0 0.0
  %7810 = vmatpush1.msra.mxu0 0.0
  %7811 = vmatprep.subr.mxu0 0.0
  %7812 = vmatpush1.msra.mxu0 0.0
  %7813 = vmatprep.subr.mxu0 0.0
  %7814 = vmatpush1.msra.mxu0 0.0
  %7815 = vmatprep.subr.mxu0 0.0
  %7816 = vmatpush1.msra.mxu0 0.0
  %7817 = vmatprep.subr.mxu0 0.0
  %7818 = vmatpush1.msra.mxu0 0.0
  %7819 = vmatprep.subr.mxu0 0.0
  %7820 = vmatpush1.msra.mxu0 0.0
  %7821 = vmatprep.subr.mxu0 0.0
  %7822 = vmatpush1.msra.mxu0 0.0
  %7823 = vmatprep.subr.mxu0 0.0
  %7824 = vmatpush1.msra.mxu0 0.0
  %7825 = vmatprep.subr.mxu0 0.0
  %7826 = vmatpush1.msra.mxu0 0.0
  %7827 = vmatprep.subr.mxu0 0.0
  %7828 = vmatpush1.msra.mxu0 0.0
  %7829 = vmatprep.subr.mxu0 0.0
  %7830 = vmatpush1.msra.mxu0 0.0
  %7831 = vmatprep.subr.mxu0 0.0
  %7832 = vmatpush1.msra.mxu0 0.0
  %7833 = vmatprep.subr.mxu0 0.0
  %7834 = vmatpush1.msra.mxu0 0.0
  %7835 = vmatprep.subr.mxu0 0.0
  %7836 = vmatpush1.msra.mxu0 0.0
  %7837 = vmatprep.mubr.f32.mxu0 0.0
  %7838 = vmatmul.mubr.f32.gmra.mrb[0].mxu0 %v7750
  %v7839 = vpop.f32.mrb[0].mxu0
  %v7840 = vadd.f32 0.0, %v7839
  %v7841 = vpop.f32.mrb[0].mxu0
  %7842 = vmatprep.mubr.f32.mxu0 0.0
  %7843 = vmatmul.mubr.f32.gmra.mrb[0].mxu0 %v7753
  %v7844 = vpop.f32.mrb[0].mxu0
  %v7845 = vadd.f32 0.0, %v7844
  %v7846 = vpop.f32.mrb[0].mxu0
  %7847 = vmatprep.mubr.f32.mxu0 0.0
  %7848 = vmatmul.mubr.f32.gmra.mrb[0].mxu0 %v7756
  %v7849 = vpop.f32.mrb[0].mxu0
  %v7850 = vadd.f32 0.0, %v7849
  %v7851 = vpop.f32.mrb[0].mxu0
  %7852 = vmatprep.mubr.f32.mxu0 0.0
  %7853 = vmatmul.mubr.f32.gmra.mrb[0].mxu0 %v7759
  %v7854 = vpop.f32.mrb[0].mxu0
  %v7855 = vadd.f32 0.0, %v7854
  %v7856 = vpop.f32.mrb[0].mxu0
  %7857 = vmatprep.mubr.f32.mxu0 0.0
  %7858 = vmatmul.mubr.f32.gmra.mrb[0].mxu0 %v7762
  %v7859 = vpop.f32.mrb[0].mxu0
  %v7860 = vadd.f32 0.0, %v7859
  %v7861 = vpop.f32.mrb[0].mxu0
  %7862 = vmatprep.mubr.f32.mxu0 0.0
  %7863 = vmatmul.mubr.f32.gmra.mrb[0].mxu0 %v7765
  %v7864 = vpop.f32.mrb[0].mxu0
  %v7865 = vadd.f32 0.0, %v7864
  %v7866 = vpop.f32.mrb[0].mxu0
  %7867 = vmatprep.mubr.f32.mxu0 0.0
  %7868 = vmatmul.mubr.f32.gmra.mrb[0].mxu0 %v7768
  %v7869 = vpop.f32.mrb[0].mxu0
  %v7870 = vadd.f32 0.0, %v7869
  %v7871 = vpop.f32.mrb[0].mxu0
  %7872 = vmatprep.mubr.f32.mxu0 0.0
  %7873 = vmatmul.mubr.f32.gmra.mrb[0].mxu0 %v7771
  %v7874 = vpop.f32.mrb[0].mxu0
  %v7875 = vadd.f32 0.0, %v7874
  %v7876 = vpop.f32.mrb[0].mxu0
  %7877 = vdwg.mxu0
  %v7878 = vmul.f32 %v6937, %v532
  %v7879 = vmul.f32 %v6942, %v536
  %v7880 = vmul.f32 %v6947, %v540
  %v7881 = vmul.f32 %v6952, %v544
  %v7882 = vmul.f32 %v6957, %v548
  %v7883 = vmul.f32 %v6962, %v552
  %v7884 = vmul.f32 %v6967, %v556
  %v7885 = vmul.f32 %v6972, %v560
  %v7886 = vmul.f32 %v7066, %v532
  %v7887 = vmul.f32 %v7071, %v536
  %v7888 = vmul.f32 %v7076, %v540
  %v7889 = vmul.f32 %v7081, %v544
  %v7890 = vmul.f32 %v7086, %v548
  %v7891 = vmul.f32 %v7091, %v552
  %v7892 = vmul.f32 %v7096, %v556
  %v7893 = vmul.f32 %v7101, %v560
  %v7894 = vmul.f32 %v7195, %v532
  %v7895 = vmul.f32 %v7200, %v536
  %v7896 = vmul.f32 %v7205, %v540
  %v7897 = vmul.f32 %v7210, %v544
  %v7898 = vmul.f32 %v7215, %v548
  %v7899 = vmul.f32 %v7220, %v552
  %v7900 = vmul.f32 %v7225, %v556
  %v7901 = vmul.f32 %v7230, %v560
  %v7902 = vmul.f32 %v7324, %v532
  %v7903 = vmul.f32 %v7329, %v536
  %v7904 = vmul.f32 %v7334, %v540
  %v7905 = vmul.f32 %v7339, %v544
  %v7906 = vmul.f32 %v7344, %v548
  %v7907 = vmul.f32 %v7349, %v552
  %v7908 = vmul.f32 %v7354, %v556
  %v7909 = vmul.f32 %v7359, %v560
  %v7910 = vmul.f32 %v7453, %v532
  %v7911 = vmul.f32 %v7458, %v536
  %v7912 = vmul.f32 %v7463, %v540
  %v7913 = vmul.f32 %v7468, %v544
  %v7914 = vmul.f32 %v7473, %v548
  %v7915 = vmul.f32 %v7478, %v552
  %v7916 = vmul.f32 %v7483, %v556
  %v7917 = vmul.f32 %v7488, %v560
  %v7918 = vmul.f32 %v7582, %v532
  %v7919 = vmul.f32 %v7587, %v536
  %v7920 = vmul.f32 %v7592, %v540
  %v7921 = vmul.f32 %v7597, %v544
  %v7922 = vmul.f32 %v7602, %v548
  %v7923 = vmul.f32 %v7607, %v552
  %v7924 = vmul.f32 %v7612, %v556
  %v7925 = vmul.f32 %v7617, %v560
  %v7926 = vmul.f32 %v7711, %v532
  %v7927 = vmul.f32 %v7716, %v536
  %v7928 = vmul.f32 %v7721, %v540
  %v7929 = vmul.f32 %v7726, %v544
  %v7930 = vmul.f32 %v7731, %v548
  %v7931 = vmul.f32 %v7736, %v552
  %v7932 = vmul.f32 %v7741, %v556
  %v7933 = vmul.f32 %v7746, %v560
  %v7934 = vmul.f32 %v7840, %v532
  %v7935 = vmul.f32 %v7845, %v536
  %v7936 = vmul.f32 %v7850, %v540
  %v7937 = vmul.f32 %v7855, %v544
  %v7938 = vmul.f32 %v7860, %v548
  %v7939 = vmul.f32 %v7865, %v552
  %v7940 = vmul.f32 %v7870, %v556
  %v7941 = vmul.f32 %v7875, %v560
  %v7942 = vsel %vm121, %v7878, 0.0
  %v7943 = vsel %vm121, %v7879, 0.0
  %v7944 = vadd.f32 %v7942, %v7943
  %v7945 = vsel %vm121, %v7880, 0.0
  %v7946 = vadd.f32 %v7944, %v7945
  %v7947 = vsel %vm121, %v7881, 0.0
  %v7948 = vadd.f32 %v7946, %v7947
  %v7949 = vsel %vm121, %v7882, 0.0
  %v7950 = vadd.f32 %v7948, %v7949
  %v7951 = vsel %vm121, %v7883, 0.0
  %v7952 = vadd.f32 %v7950, %v7951
  %v7953 = vsel %vm121, %v7884, 0.0
  %v7954 = vadd.f32 %v7952, %v7953
  %v7955 = vsel %vm121, %v7885, 0.0
  %v7956 = vadd.f32 %v7954, %v7955
  %v7957 = vsel %vm121, %v7886, 0.0
  %v7958 = vsel %vm121, %v7887, 0.0
  %v7959 = vadd.f32 %v7957, %v7958
  %v7960 = vsel %vm121, %v7888, 0.0
  %v7961 = vadd.f32 %v7959, %v7960
  %v7962 = vsel %vm121, %v7889, 0.0
  %v7963 = vadd.f32 %v7961, %v7962
  %v7964 = vsel %vm121, %v7890, 0.0
  %v7965 = vadd.f32 %v7963, %v7964
  %v7966 = vsel %vm121, %v7891, 0.0
  %v7967 = vadd.f32 %v7965, %v7966
  %v7968 = vsel %vm121, %v7892, 0.0
  %v7969 = vadd.f32 %v7967, %v7968
  %v7970 = vsel %vm121, %v7893, 0.0
  %v7971 = vadd.f32 %v7969, %v7970
  %v7972 = vsel %vm121, %v7894, 0.0
  %v7973 = vsel %vm121, %v7895, 0.0
  %v7974 = vadd.f32 %v7972, %v7973
  %v7975 = vsel %vm121, %v7896, 0.0
  %v7976 = vadd.f32 %v7974, %v7975
  %v7977 = vsel %vm121, %v7897, 0.0
  %v7978 = vadd.f32 %v7976, %v7977
  %v7979 = vsel %vm121, %v7898, 0.0
  %v7980 = vadd.f32 %v7978, %v7979
  %v7981 = vsel %vm121, %v7899, 0.0
  %v7982 = vadd.f32 %v7980, %v7981
  %v7983 = vsel %vm121, %v7900, 0.0
  %v7984 = vadd.f32 %v7982, %v7983
  %v7985 = vsel %vm121, %v7901, 0.0
  %v7986 = vadd.f32 %v7984, %v7985
  %v7987 = vsel %vm121, %v7902, 0.0
  %v7988 = vsel %vm121, %v7903, 0.0
  %v7989 = vadd.f32 %v7987, %v7988
  %v7990 = vsel %vm121, %v7904, 0.0
  %v7991 = vadd.f32 %v7989, %v7990
  %v7992 = vsel %vm121, %v7905, 0.0
  %v7993 = vadd.f32 %v7991, %v7992
  %v7994 = vsel %vm121, %v7906, 0.0
  %v7995 = vadd.f32 %v7993, %v7994
  %v7996 = vsel %vm121, %v7907, 0.0
  %v7997 = vadd.f32 %v7995, %v7996
  %v7998 = vsel %vm121, %v7908, 0.0
  %v7999 = vadd.f32 %v7997, %v7998
  %v8000 = vsel %vm121, %v7909, 0.0
  %v8001 = vadd.f32 %v7999, %v8000
  %v8002 = vsel %vm121, %v7910, 0.0
  %v8003 = vsel %vm121, %v7911, 0.0
  %v8004 = vadd.f32 %v8002, %v8003
  %v8005 = vsel %vm121, %v7912, 0.0
  %v8006 = vadd.f32 %v8004, %v8005
  %v8007 = vsel %vm121, %v7913, 0.0
  %v8008 = vadd.f32 %v8006, %v8007
  %v8009 = vsel %vm121, %v7914, 0.0
  %v8010 = vadd.f32 %v8008, %v8009
  %v8011 = vsel %vm121, %v7915, 0.0
  %v8012 = vadd.f32 %v8010, %v8011
  %v8013 = vsel %vm121, %v7916, 0.0
  %v8014 = vadd.f32 %v8012, %v8013
  %v8015 = vsel %vm121, %v7917, 0.0
  %v8016 = vadd.f32 %v8014, %v8015
  %v8017 = vsel %vm121, %v7918, 0.0
  %v8018 = vsel %vm121, %v7919, 0.0
  %v8019 = vadd.f32 %v8017, %v8018
  %v8020 = vsel %vm121, %v7920, 0.0
  %v8021 = vadd.f32 %v8019, %v8020
  %v8022 = vsel %vm121, %v7921, 0.0
  %v8023 = vadd.f32 %v8021, %v8022
  %v8024 = vsel %vm121, %v7922, 0.0
  %v8025 = vadd.f32 %v8023, %v8024
  %v8026 = vsel %vm121, %v7923, 0.0
  %v8027 = vadd.f32 %v8025, %v8026
  %v8028 = vsel %vm121, %v7924, 0.0
  %v8029 = vadd.f32 %v8027, %v8028
  %v8030 = vsel %vm121, %v7925, 0.0
  %v8031 = vadd.f32 %v8029, %v8030
  %v8032 = vsel %vm121, %v7926, 0.0
  %v8033 = vsel %vm121, %v7927, 0.0
  %v8034 = vadd.f32 %v8032, %v8033
  %v8035 = vsel %vm121, %v7928, 0.0
  %v8036 = vadd.f32 %v8034, %v8035
  %v8037 = vsel %vm121, %v7929, 0.0
  %v8038 = vadd.f32 %v8036, %v8037
  %v8039 = vsel %vm121, %v7930, 0.0
  %v8040 = vadd.f32 %v8038, %v8039
  %v8041 = vsel %vm121, %v7931, 0.0
  %v8042 = vadd.f32 %v8040, %v8041
  %v8043 = vsel %vm121, %v7932, 0.0
  %v8044 = vadd.f32 %v8042, %v8043
  %v8045 = vsel %vm121, %v7933, 0.0
  %v8046 = vadd.f32 %v8044, %v8045
  %v8047 = vsel %vm121, %v7934, 0.0
  %v8048 = vsel %vm121, %v7935, 0.0
  %v8049 = vadd.f32 %v8047, %v8048
  %v8050 = vsel %vm121, %v7936, 0.0
  %v8051 = vadd.f32 %v8049, %v8050
  %v8052 = vsel %vm121, %v7937, 0.0
  %v8053 = vadd.f32 %v8051, %v8052
  %v8054 = vsel %vm121, %v7938, 0.0
  %v8055 = vadd.f32 %v8053, %v8054
  %v8056 = vsel %vm121, %v7939, 0.0
  %v8057 = vadd.f32 %v8055, %v8056
  %v8058 = vsel %vm121, %v7940, 0.0
  %v8059 = vadd.f32 %v8057, %v8058
  %v8060 = vsel %vm121, %v7941, 0.0
  %v8061 = vadd.f32 %v8059, %v8060
  %s8062 = scalar_lea.vmem %s10, 16
  %v8063 = vld [vmem:[%s8062] sm:$0xff]
  %v8064 = vld [vmem:[%s8062 + $0x8] sm:$0xff]
  %s8065 = scalar_lea.vmem %s11, 1
  %v8066 = vld [vmem:[%s8065] sm:$0x1]
  %v8068 = vlaneseq
  %v8069 = vshrl.u32 %v8068, 7
  %v8070 = vsub.s32 0, %v8069
  %v8071 = vrot.slane %v8066, %v8070
  %v8074 = vsel %vm121, %v7956, 0
  %v8077 = vsel %vm121, %v7971, 0
  %v8080 = vsel %vm121, %v7986, 0
  %v8083 = vsel %vm121, %v8001, 0
  %v8086 = vsel %vm121, %v8016, 0
  %v8089 = vsel %vm121, %v8031, 0
  %v8092 = vsel %vm121, %v8046, 0
  %v8095 = vsel %vm121, %v8061, 0
  %8097 = vmatprep.subr.mxu0 0.0
  %8098 = vmatpush1.msra.mxu0 %v8063
  %8099 = vmatprep.subr.mxu0 0.0
  %8100 = vmatpush1.msra.mxu0 %v8064
  %8101 = vmatprep.subr.mxu0 0.0
  %8102 = vmatpush1.msra.mxu0 0.0
  %8103 = vmatprep.subr.mxu0 0.0
  %8104 = vmatpush1.msra.mxu0 0.0
  %8105 = vmatprep.subr.mxu0 0.0
  %8106 = vmatpush1.msra.mxu0 0.0
  %8107 = vmatprep.subr.mxu0 0.0
  %8108 = vmatpush1.msra.mxu0 0.0
  %8109 = vmatprep.subr.mxu0 0.0
  %8110 = vmatpush1.msra.mxu0 0.0
  %8111 = vmatprep.subr.mxu0 0.0
  %8112 = vmatpush1.msra.mxu0 0.0
  %8113 = vmatprep.subr.mxu0 0.0
  %8114 = vmatpush1.msra.mxu0 0.0
  %8115 = vmatprep.subr.mxu0 0.0
  %8116 = vmatpush1.msra.mxu0 0.0
  %8117 = vmatprep.subr.mxu0 0.0
  %8118 = vmatpush1.msra.mxu0 0.0
  %8119 = vmatprep.subr.mxu0 0.0
  %8120 = vmatpush1.msra.mxu0 0.0
  %8121 = vmatprep.subr.mxu0 0.0
  %8122 = vmatpush1.msra.mxu0 0.0
  %8123 = vmatprep.subr.mxu0 0.0
  %8124 = vmatpush1.msra.mxu0 0.0
  %8125 = vmatprep.subr.mxu0 0.0
  %8126 = vmatpush1.msra.mxu0 0.0
  %8127 = vmatprep.subr.mxu0 0.0
  %8128 = vmatpush1.msra.mxu0 0.0
  %8129 = vmatprep.subr.mxu0 0.0
  %8130 = vmatpush1.msra.mxu0 0.0
  %8131 = vmatprep.subr.mxu0 0.0
  %8132 = vmatpush1.msra.mxu0 0.0
  %8133 = vmatprep.subr.mxu0 0.0
  %8134 = vmatpush1.msra.mxu0 0.0
  %8135 = vmatprep.subr.mxu0 0.0
  %8136 = vmatpush1.msra.mxu0 0.0
  %8137 = vmatprep.subr.mxu0 0.0
  %8138 = vmatpush1.msra.mxu0 0.0
  %8139 = vmatprep.subr.mxu0 0.0
  %8140 = vmatpush1.msra.mxu0 0.0
  %8141 = vmatprep.subr.mxu0 0.0
  %8142 = vmatpush1.msra.mxu0 0.0
  %8143 = vmatprep.subr.mxu0 0.0
  %8144 = vmatpush1.msra.mxu0 0.0
  %8145 = vmatprep.subr.mxu0 0.0
  %8146 = vmatpush1.msra.mxu0 0.0
  %8147 = vmatprep.subr.mxu0 0.0
  %8148 = vmatpush1.msra.mxu0 0.0
  %8149 = vmatprep.subr.mxu0 0.0
  %8150 = vmatpush1.msra.mxu0 0.0
  %8151 = vmatprep.subr.mxu0 0.0
  %8152 = vmatpush1.msra.mxu0 0.0
  %8153 = vmatprep.subr.mxu0 0.0
  %8154 = vmatpush1.msra.mxu0 0.0
  %8155 = vmatprep.subr.mxu0 0.0
  %8156 = vmatpush1.msra.mxu0 0.0
  %8157 = vmatprep.subr.mxu0 0.0
  %8158 = vmatpush1.msra.mxu0 0.0
  %8159 = vmatprep.subr.mxu0 0.0
  %8160 = vmatpush1.msra.mxu0 0.0
  %8161 = vmatprep.mubr.f32.mxu0 0.0
  %8162 = vmatmul.mubr.f32.gmra.mrb[0].mxu0 %v8074
  %v8163 = vpop.f32.mrb[0].mxu0
  %v8164 = vadd.f32 %v8071, %v8163
  %v8165 = vpop.f32.mrb[0].mxu0
  %8166 = vmatprep.mubr.f32.mxu0 0.0
  %8167 = vmatmul.mubr.f32.gmra.mrb[0].mxu0 %v8077
  %v8168 = vpop.f32.mrb[0].mxu0
  %v8169 = vadd.f32 %v8071, %v8168
  %v8170 = vpop.f32.mrb[0].mxu0
  %8171 = vmatprep.mubr.f32.mxu0 0.0
  %8172 = vmatmul.mubr.f32.gmra.mrb[0].mxu0 %v8080
  %v8173 = vpop.f32.mrb[0].mxu0
  %v8174 = vadd.f32 %v8071, %v8173
  %v8175 = vpop.f32.mrb[0].mxu0
  %8176 = vmatprep.mubr.f32.mxu0 0.0
  %8177 = vmatmul.mubr.f32.gmra.mrb[0].mxu0 %v8083
  %v8178 = vpop.f32.mrb[0].mxu0
  %v8179 = vadd.f32 %v8071, %v8178
  %v8180 = vpop.f32.mrb[0].mxu0
  %8181 = vmatprep.mubr.f32.mxu0 0.0
  %8182 = vmatmul.mubr.f32.gmra.mrb[0].mxu0 %v8086
  %v8183 = vpop.f32.mrb[0].mxu0
  %v8184 = vadd.f32 %v8071, %v8183
  %v8185 = vpop.f32.mrb[0].mxu0
  %8186 = vmatprep.mubr.f32.mxu0 0.0
  %8187 = vmatmul.mubr.f32.gmra.mrb[0].mxu0 %v8089
  %v8188 = vpop.f32.mrb[0].mxu0
  %v8189 = vadd.f32 %v8071, %v8188
  %v8190 = vpop.f32.mrb[0].mxu0
  %8191 = vmatprep.mubr.f32.mxu0 0.0
  %8192 = vmatmul.mubr.f32.gmra.mrb[0].mxu0 %v8092
  %v8193 = vpop.f32.mrb[0].mxu0
  %v8194 = vadd.f32 %v8071, %v8193
  %v8195 = vpop.f32.mrb[0].mxu0
  %8196 = vmatprep.mubr.f32.mxu0 0.0
  %8197 = vmatmul.mubr.f32.gmra.mrb[0].mxu0 %v8095
  %v8198 = vpop.f32.mrb[0].mxu0
  %v8199 = vadd.f32 %v8071, %v8198
  %v8200 = vpop.f32.mrb[0].mxu0
  %8201 = vdwg.mxu0
  %v8202 = vadd.f32 %v4514, %v8164
  %v8203 = vadd.f32 %v4515, %v8169
  %v8204 = vadd.f32 %v4516, %v8174
  %v8205 = vadd.f32 %v4517, %v8179
  %v8206 = vadd.f32 %v4518, %v8184
  %v8207 = vadd.f32 %v4519, %v8189
  %v8208 = vadd.f32 %v4520, %v8194
  %v8209 = vadd.f32 %v4521, %v8199
  %s8210 = scalar_lea.vmem %s12, 1
  %v8211 = vld [vmem:[%s8210] sm:$0x1]
  %s8212 = scalar_lea.vmem %s13, 1
  %v8213 = vld [vmem:[%s8212] sm:$0x1]
  %v8214 = vsel %vm121, %v8202, 0.0
  %8215 = vadd.xlane.f32.xlu0 %v8214
  %v8216 = vpop.xlane.xlu0 %8215
  %v8217 = vsel %vm121, %v8203, 0.0
  %8218 = vadd.xlane.f32.xlu0 %v8217
  %v8219 = vpop.xlane.xlu0 %8218
  %v8220 = vsel %vm121, %v8204, 0.0
  %8221 = vadd.xlane.f32.xlu0 %v8220
  %v8222 = vpop.xlane.xlu0 %8221
  %v8223 = vsel %vm121, %v8205, 0.0
  %8224 = vadd.xlane.f32.xlu0 %v8223
  %v8225 = vpop.xlane.xlu0 %8224
  %v8226 = vsel %vm121, %v8206, 0.0
  %8227 = vadd.xlane.f32.xlu0 %v8226
  %v8228 = vpop.xlane.xlu0 %8227
  %v8229 = vsel %vm121, %v8207, 0.0
  %8230 = vadd.xlane.f32.xlu0 %v8229
  %v8231 = vpop.xlane.xlu0 %8230
  %v8232 = vsel %vm121, %v8208, 0.0
  %8233 = vadd.xlane.f32.xlu0 %v8232
  %v8234 = vpop.xlane.xlu0 %8233
  %v8235 = vsel %vm121, %v8209, 0.0
  %8236 = vadd.xlane.f32.xlu0 %v8235
  %v8237 = vpop.xlane.xlu0 %8236
  %v8238 = vmul.f32 %v8216, %v3958
  %v8239 = vmul.f32 %v8219, %v3958
  %v8240 = vmul.f32 %v8222, %v3958
  %v8241 = vmul.f32 %v8225, %v3958
  %v8242 = vmul.f32 %v8228, %v3958
  %v8243 = vmul.f32 %v8231, %v3958
  %v8244 = vmul.f32 %v8234, %v3958
  %v8245 = vmul.f32 %v8237, %v3958
  %v8246 = vsub.f32 %v8202, %v8238
  %v8247 = vsub.f32 %v8203, %v8239
  %v8248 = vsub.f32 %v8204, %v8240
  %v8249 = vsub.f32 %v8205, %v8241
  %v8250 = vsub.f32 %v8206, %v8242
  %v8251 = vsub.f32 %v8207, %v8243
  %v8252 = vsub.f32 %v8208, %v8244
  %v8253 = vsub.f32 %v8209, %v8245
  %v8254 = vmul.f32 %v8246, %v8246
  %v8255 = vmul.f32 %v8247, %v8247
  %v8256 = vmul.f32 %v8248, %v8248
  %v8257 = vmul.f32 %v8249, %v8249
  %v8258 = vmul.f32 %v8250, %v8250
  %v8259 = vmul.f32 %v8251, %v8251
  %v8260 = vmul.f32 %v8252, %v8252
  %v8261 = vmul.f32 %v8253, %v8253
  %v8262 = vsel %vm121, %v8254, 0.0
  %8263 = vadd.xlane.f32.xlu0 %v8262
  %v8264 = vpop.xlane.xlu0 %8263
  %v8265 = vsel %vm121, %v8255, 0.0
  %8266 = vadd.xlane.f32.xlu0 %v8265
  %v8267 = vpop.xlane.xlu0 %8266
  %v8268 = vsel %vm121, %v8256, 0.0
  %8269 = vadd.xlane.f32.xlu0 %v8268
  %v8270 = vpop.xlane.xlu0 %8269
  %v8271 = vsel %vm121, %v8257, 0.0
  %8272 = vadd.xlane.f32.xlu0 %v8271
  %v8273 = vpop.xlane.xlu0 %8272
  %v8274 = vsel %vm121, %v8258, 0.0
  %8275 = vadd.xlane.f32.xlu0 %v8274
  %v8276 = vpop.xlane.xlu0 %8275
  %v8277 = vsel %vm121, %v8259, 0.0
  %8278 = vadd.xlane.f32.xlu0 %v8277
  %v8279 = vpop.xlane.xlu0 %8278
  %v8280 = vsel %vm121, %v8260, 0.0
  %8281 = vadd.xlane.f32.xlu0 %v8280
  %v8282 = vpop.xlane.xlu0 %8281
  %v8283 = vsel %vm121, %v8261, 0.0
  %8284 = vadd.xlane.f32.xlu0 %v8283
  %v8285 = vpop.xlane.xlu0 %8284
  %v8286 = vmul.f32 %v8264, %v3958
  %v8287 = vmul.f32 %v8267, %v3958
  %v8288 = vmul.f32 %v8270, %v3958
  %v8289 = vmul.f32 %v8273, %v3958
  %v8290 = vmul.f32 %v8276, %v3958
  %v8291 = vmul.f32 %v8279, %v3958
  %v8292 = vmul.f32 %v8282, %v3958
  %v8293 = vmul.f32 %v8285, %v3958
  %v8294 = vadd.f32 %v8286, 1e-05
  %v8295 = vadd.f32 %v8287, 1e-05
  %v8296 = vadd.f32 %v8288, 1e-05
  %v8297 = vadd.f32 %v8289, 1e-05
  %v8298 = vadd.f32 %v8290, 1e-05
  %v8299 = vadd.f32 %v8291, 1e-05
  %v8300 = vadd.f32 %v8292, 1e-05
  %v8301 = vadd.f32 %v8293, 1e-05
  %v8302 = vrsqrt.pop %v8294
  %v8303 = vrsqrt.pop %v8295
  %v8304 = vrsqrt.pop %v8296
  %v8305 = vrsqrt.pop %v8297
  %v8306 = vrsqrt.pop %v8298
  %v8307 = vrsqrt.pop %v8299
  %v8308 = vrsqrt.pop %v8300
  %v8309 = vrsqrt.pop %v8301
  %v8310 = vmul.f32 %v8246, %v8302
  %v8311 = vmul.f32 %v8247, %v8303
  %v8312 = vmul.f32 %v8248, %v8304
  %v8313 = vmul.f32 %v8249, %v8305
  %v8314 = vmul.f32 %v8250, %v8306
  %v8315 = vmul.f32 %v8251, %v8307
  %v8316 = vmul.f32 %v8252, %v8308
  %v8317 = vmul.f32 %v8253, %v8309
  %v8319 = vlaneseq
  %v8320 = vshrl.u32 %v8319, 7
  %v8321 = vsub.s32 0, %v8320
  %v8322 = vrot.slane %v8211, %v8321
  %v8324 = vmul.f32 %v8310, %v8322
  %v8325 = vmul.f32 %v8311, %v8322
  %v8326 = vmul.f32 %v8312, %v8322
  %v8327 = vmul.f32 %v8313, %v8322
  %v8328 = vmul.f32 %v8314, %v8322
  %v8329 = vmul.f32 %v8315, %v8322
  %v8330 = vmul.f32 %v8316, %v8322
  %v8331 = vmul.f32 %v8317, %v8322
  %v8333 = vlaneseq
  %v8334 = vshrl.u32 %v8333, 7
  %v8335 = vsub.s32 0, %v8334
  %v8336 = vrot.slane %v8213, %v8335
  %v8338 = vadd.f32 %v8324, %v8336
  %v8339 = vadd.f32 %v8325, %v8336
  %v8340 = vadd.f32 %v8326, %v8336
  %v8341 = vadd.f32 %v8327, %v8336
  %v8342 = vadd.f32 %v8328, %v8336
  %v8343 = vadd.f32 %v8329, %v8336
  %v8344 = vadd.f32 %v8330, %v8336
  %v8345 = vadd.f32 %v8331, %v8336
  %s8346 = scalar_lea.vmem %s14, 32
  %v8347 = vld [vmem:[%s8346] sm:$0xff]
  %v8348 = vld [vmem:[%s8346 + $0x8] sm:$0xff]
  %v8349 = vld [vmem:[%s8346 + $0x10] sm:$0xff]
  %v8350 = vld [vmem:[%s8346 + $0x18] sm:$0xff]
  %s8351 = scalar_lea.vmem %s15, 2
  %v8352 = vld [vmem:[%s8351] sm:$0x3]
  %v8354 = vlaneseq
  %v8355 = vshrl.u32 %v8354, 7
  %v8356 = vsub.s32 0, %v8355
  %v8357 = vrot.slane %v8352, %v8356
  %v8358 = vlaneseq
  %v8359 = vshrl.u32 %v8358, 7
  %v8360 = vsub.s32 1, %v8359
  %v8361 = vrot.slane %v8352, %v8360
  %v8365 = vsel %vm121, %v8338, 0
  %v8368 = vsel %vm121, %v8339, 0
  %v8371 = vsel %vm121, %v8340, 0
  %v8374 = vsel %vm121, %v8341, 0
  %v8377 = vsel %vm121, %v8342, 0
  %v8380 = vsel %vm121, %v8343, 0
  %v8383 = vsel %vm121, %v8344, 0
  %v8386 = vsel %vm121, %v8345, 0
  %8388 = vmatprep.subr.mxu0 %v8348
  %8389 = vmatpush1.msra.mxu0 %v8347
  %8390 = vmatprep.subr.mxu0 %v8350
  %8391 = vmatpush1.msra.mxu0 %v8349
  %8392 = vmatprep.subr.mxu0 0.0
  %8393 = vmatpush1.msra.mxu0 0.0
  %8394 = vmatprep.subr.mxu0 0.0
  %8395 = vmatpush1.msra.mxu0 0.0
  %8396 = vmatprep.subr.mxu0 0.0
  %8397 = vmatpush1.msra.mxu0 0.0
  %8398 = vmatprep.subr.mxu0 0.0
  %8399 = vmatpush1.msra.mxu0 0.0
  %8400 = vmatprep.subr.mxu0 0.0
  %8401 = vmatpush1.msra.mxu0 0.0
  %8402 = vmatprep.subr.mxu0 0.0
  %8403 = vmatpush1.msra.mxu0 0.0
  %8404 = vmatprep.subr.mxu0 0.0
  %8405 = vmatpush1.msra.mxu0 0.0
  %8406 = vmatprep.subr.mxu0 0.0
  %8407 = vmatpush1.msra.mxu0 0.0
  %8408 = vmatprep.subr.mxu0 0.0
  %8409 = vmatpush1.msra.mxu0 0.0
  %8410 = vmatprep.subr.mxu0 0.0
  %8411 = vmatpush1.msra.mxu0 0.0
  %8412 = vmatprep.subr.mxu0 0.0
  %8413 = vmatpush1.msra.mxu0 0.0
  %8414 = vmatprep.subr.mxu0 0.0
  %8415 = vmatpush1.msra.mxu0 0.0
  %8416 = vmatprep.subr.mxu0 0.0
  %8417 = vmatpush1.msra.mxu0 0.0
  %8418 = vmatprep.subr.mxu0 0.0
  %8419 = vmatpush1.msra.mxu0 0.0
  %8420 = vmatprep.subr.mxu0 0.0
  %8421 = vmatpush1.msra.mxu0 0.0
  %8422 = vmatprep.subr.mxu0 0.0
  %8423 = vmatpush1.msra.mxu0 0.0
  %8424 = vmatprep.subr.mxu0 0.0
  %8425 = vmatpush1.msra.mxu0 0.0
  %8426 = vmatprep.subr.mxu0 0.0
  %8427 = vmatpush1.msra.mxu0 0.0
  %8428 = vmatprep.subr.mxu0 0.0
  %8429 = vmatpush1.msra.mxu0 0.0
  %8430 = vmatprep.subr.mxu0 0.0
  %8431 = vmatpush1.msra.mxu0 0.0
  %8432 = vmatprep.subr.mxu0 0.0
  %8433 = vmatpush1.msra.mxu0 0.0
  %8434 = vmatprep.subr.mxu0 0.0
  %8435 = vmatpush1.msra.mxu0 0.0
  %8436 = vmatprep.subr.mxu0 0.0
  %8437 = vmatpush1.msra.mxu0 0.0
  %8438 = vmatprep.subr.mxu0 0.0
  %8439 = vmatpush1.msra.mxu0 0.0
  %8440 = vmatprep.subr.mxu0 0.0
  %8441 = vmatpush1.msra.mxu0 0.0
  %8442 = vmatprep.subr.mxu0 0.0
  %8443 = vmatpush1.msra.mxu0 0.0
  %8444 = vmatprep.subr.mxu0 0.0
  %8445 = vmatpush1.msra.mxu0 0.0
  %8446 = vmatprep.subr.mxu0 0.0
  %8447 = vmatpush1.msra.mxu0 0.0
  %8448 = vmatprep.subr.mxu0 0.0
  %8449 = vmatpush1.msra.mxu0 0.0
  %8450 = vmatprep.subr.mxu0 0.0
  %8451 = vmatpush1.msra.mxu0 0.0
  %8452 = vmatprep.mubr.f32.mxu0 0.0
  %8453 = vmatmul.mubr.f32.gmra.mrb[0].mxu0 %v8365
  %v8454 = vpop.f32.mrb[0].mxu0
  %v8455 = vadd.f32 %v8357, %v8454
  %v8456 = vpop.f32.mrb[0].mxu0
  %v8457 = vadd.f32 %v8361, %v8456
  %8458 = vmatprep.mubr.f32.mxu0 0.0
  %8459 = vmatmul.mubr.f32.gmra.mrb[0].mxu0 %v8368
  %v8460 = vpop.f32.mrb[0].mxu0
  %v8461 = vadd.f32 %v8357, %v8460
  %v8462 = vpop.f32.mrb[0].mxu0
  %v8463 = vadd.f32 %v8361, %v8462
  %8464 = vmatprep.mubr.f32.mxu0 0.0
  %8465 = vmatmul.mubr.f32.gmra.mrb[0].mxu0 %v8371
  %v8466 = vpop.f32.mrb[0].mxu0
  %v8467 = vadd.f32 %v8357, %v8466
  %v8468 = vpop.f32.mrb[0].mxu0
  %v8469 = vadd.f32 %v8361, %v8468
  %8470 = vmatprep.mubr.f32.mxu0 0.0
  %8471 = vmatmul.mubr.f32.gmra.mrb[0].mxu0 %v8374
  %v8472 = vpop.f32.mrb[0].mxu0
  %v8473 = vadd.f32 %v8357, %v8472
  %v8474 = vpop.f32.mrb[0].mxu0
  %v8475 = vadd.f32 %v8361, %v8474
  %8476 = vmatprep.mubr.f32.mxu0 0.0
  %8477 = vmatmul.mubr.f32.gmra.mrb[0].mxu0 %v8377
  %v8478 = vpop.f32.mrb[0].mxu0
  %v8479 = vadd.f32 %v8357, %v8478
  %v8480 = vpop.f32.mrb[0].mxu0
  %v8481 = vadd.f32 %v8361, %v8480
  %8482 = vmatprep.mubr.f32.mxu0 0.0
  %8483 = vmatmul.mubr.f32.gmra.mrb[0].mxu0 %v8380
  %v8484 = vpop.f32.mrb[0].mxu0
  %v8485 = vadd.f32 %v8357, %v8484
  %v8486 = vpop.f32.mrb[0].mxu0
  %v8487 = vadd.f32 %v8361, %v8486
  %8488 = vmatprep.mubr.f32.mxu0 0.0
  %8489 = vmatmul.mubr.f32.gmra.mrb[0].mxu0 %v8383
  %v8490 = vpop.f32.mrb[0].mxu0
  %v8491 = vadd.f32 %v8357, %v8490
  %v8492 = vpop.f32.mrb[0].mxu0
  %v8493 = vadd.f32 %v8361, %v8492
  %8494 = vmatprep.mubr.f32.mxu0 0.0
  %8495 = vmatmul.mubr.f32.gmra.mrb[0].mxu0 %v8386
  %v8496 = vpop.f32.mrb[0].mxu0
  %v8497 = vadd.f32 %v8357, %v8496
  %v8498 = vpop.f32.mrb[0].mxu0
  %v8499 = vadd.f32 %v8361, %v8498
  %8500 = vdwg.mxu0
  %v8501 = vmax.f32 %v8455, 0.0
  %v8502 = vmax.f32 %v8457, 0.0
  %v8503 = vmax.f32 %v8461, 0.0
  %v8504 = vmax.f32 %v8463, 0.0
  %v8505 = vmax.f32 %v8467, 0.0
  %v8506 = vmax.f32 %v8469, 0.0
  %v8507 = vmax.f32 %v8473, 0.0
  %v8508 = vmax.f32 %v8475, 0.0
  %v8509 = vmax.f32 %v8479, 0.0
  %v8510 = vmax.f32 %v8481, 0.0
  %v8511 = vmax.f32 %v8485, 0.0
  %v8512 = vmax.f32 %v8487, 0.0
  %v8513 = vmax.f32 %v8491, 0.0
  %v8514 = vmax.f32 %v8493, 0.0
  %v8515 = vmax.f32 %v8497, 0.0
  %v8516 = vmax.f32 %v8499, 0.0
  %s8517 = scalar_lea.vmem %s16, 256
  %v8518 = vld [vmem:[%s8517] sm:$0xff]
  %v8519 = vld [vmem:[%s8517 + $0x8] sm:$0xff]
  %v8520 = vld [vmem:[%s8517 + $0x10] sm:$0xff]
  %v8521 = vld [vmem:[%s8517 + $0x18] sm:$0xff]
  %v8522 = vld [vmem:[%s8517 + $0x20] sm:$0xff]
  %v8523 = vld [vmem:[%s8517 + $0x28] sm:$0xff]
  %v8524 = vld [vmem:[%s8517 + $0x30] sm:$0xff]
  %v8525 = vld [vmem:[%s8517 + $0x38] sm:$0xff]
  %v8526 = vld [vmem:[%s8517 + $0x40] sm:$0xff]
  %v8527 = vld [vmem:[%s8517 + $0x48] sm:$0xff]
  %v8528 = vld [vmem:[%s8517 + $0x50] sm:$0xff]
  %v8529 = vld [vmem:[%s8517 + $0x58] sm:$0xff]
  %v8530 = vld [vmem:[%s8517 + $0x60] sm:$0xff]
  %v8531 = vld [vmem:[%s8517 + $0x68] sm:$0xff]
  %v8532 = vld [vmem:[%s8517 + $0x70] sm:$0xff]
  %v8533 = vld [vmem:[%s8517 + $0x78] sm:$0xff]
  %v8534 = vld [vmem:[%s8517 + $0x80] sm:$0xff]
  %v8535 = vld [vmem:[%s8517 + $0x88] sm:$0xff]
  %v8536 = vld [vmem:[%s8517 + $0x90] sm:$0xff]
  %v8537 = vld [vmem:[%s8517 + $0x98] sm:$0xff]
  %v8538 = vld [vmem:[%s8517 + $0xa0] sm:$0xff]
  %v8539 = vld [vmem:[%s8517 + $0xa8] sm:$0xff]
  %v8540 = vld [vmem:[%s8517 + $0xb0] sm:$0xff]
  %v8541 = vld [vmem:[%s8517 + $0xb8] sm:$0xff]
  %v8542 = vld [vmem:[%s8517 + $0xc0] sm:$0xff]
  %v8543 = vld [vmem:[%s8517 + $0xc8] sm:$0xff]
  %v8544 = vld [vmem:[%s8517 + $0xd0] sm:$0xff]
  %v8545 = vld [vmem:[%s8517 + $0xd8] sm:$0xff]
  %v8546 = vld [vmem:[%s8517 + $0xe0] sm:$0xff]
  %v8547 = vld [vmem:[%s8517 + $0xe8] sm:$0xff]
  %v8548 = vld [vmem:[%s8517 + $0xf0] sm:$0xff]
  %v8549 = vld [vmem:[%s8517 + $0xf8] sm:$0xff]
  %s8550 = scalar_lea.vmem %s17, 1
  %v8551 = vld [vmem:[%s8550] sm:$0x1]
  %v8553 = vlaneseq
  %v8554 = vshrl.u32 %v8553, 7
  %v8555 = vsub.s32 0, %v8554
  %v8556 = vrot.slane %v8551, %v8555
  %8558 = vmatprep.subr.mxu0 0.0
  %8559 = vmatpush1.msra.mxu0 %v8518
  %8560 = vmatprep.subr.mxu0 0.0
  %8561 = vmatpush1.msra.mxu0 %v8519
  %8562 = vmatprep.subr.mxu0 0.0
  %8563 = vmatpush1.msra.mxu0 %v8520
  %8564 = vmatprep.subr.mxu0 0.0
  %8565 = vmatpush1.msra.mxu0 %v8521
  %8566 = vmatprep.subr.mxu0 0.0
  %8567 = vmatpush1.msra.mxu0 %v8522
  %8568 = vmatprep.subr.mxu0 0.0
  %8569 = vmatpush1.msra.mxu0 %v8523
  %8570 = vmatprep.subr.mxu0 0.0
  %8571 = vmatpush1.msra.mxu0 %v8524
  %8572 = vmatprep.subr.mxu0 0.0
  %8573 = vmatpush1.msra.mxu0 %v8525
  %8574 = vmatprep.subr.mxu0 0.0
  %8575 = vmatpush1.msra.mxu0 %v8526
  %8576 = vmatprep.subr.mxu0 0.0
  %8577 = vmatpush1.msra.mxu0 %v8527
  %8578 = vmatprep.subr.mxu0 0.0
  %8579 = vmatpush1.msra.mxu0 %v8528
  %8580 = vmatprep.subr.mxu0 0.0
  %8581 = vmatpush1.msra.mxu0 %v8529
  %8582 = vmatprep.subr.mxu0 0.0
  %8583 = vmatpush1.msra.mxu0 %v8530
  %8584 = vmatprep.subr.mxu0 0.0
  %8585 = vmatpush1.msra.mxu0 %v8531
  %8586 = vmatprep.subr.mxu0 0.0
  %8587 = vmatpush1.msra.mxu0 %v8532
  %8588 = vmatprep.subr.mxu0 0.0
  %8589 = vmatpush1.msra.mxu0 %v8533
  %8590 = vmatprep.subr.mxu0 0.0
  %8591 = vmatpush1.msra.mxu0 %v8534
  %8592 = vmatprep.subr.mxu0 0.0
  %8593 = vmatpush1.msra.mxu0 %v8535
  %8594 = vmatprep.subr.mxu0 0.0
  %8595 = vmatpush1.msra.mxu0 %v8536
  %8596 = vmatprep.subr.mxu0 0.0
  %8597 = vmatpush1.msra.mxu0 %v8537
  %8598 = vmatprep.subr.mxu0 0.0
  %8599 = vmatpush1.msra.mxu0 %v8538
  %8600 = vmatprep.subr.mxu0 0.0
  %8601 = vmatpush1.msra.mxu0 %v8539
  %8602 = vmatprep.subr.mxu0 0.0
  %8603 = vmatpush1.msra.mxu0 %v8540
  %8604 = vmatprep.subr.mxu0 0.0
  %8605 = vmatpush1.msra.mxu0 %v8541
  %8606 = vmatprep.subr.mxu0 0.0
  %8607 = vmatpush1.msra.mxu0 %v8542
  %8608 = vmatprep.subr.mxu0 0.0
  %8609 = vmatpush1.msra.mxu0 %v8543
  %8610 = vmatprep.subr.mxu0 0.0
  %8611 = vmatpush1.msra.mxu0 %v8544
  %8612 = vmatprep.subr.mxu0 0.0
  %8613 = vmatpush1.msra.mxu0 %v8545
  %8614 = vmatprep.subr.mxu0 0.0
  %8615 = vmatpush1.msra.mxu0 %v8546
  %8616 = vmatprep.subr.mxu0 0.0
  %8617 = vmatpush1.msra.mxu0 %v8547
  %8618 = vmatprep.subr.mxu0 0.0
  %8619 = vmatpush1.msra.mxu0 %v8548
  %8620 = vmatprep.subr.mxu0 0.0
  %8621 = vmatpush1.msra.mxu0 %v8549
  %8622 = vmatprep.mubr.f32.mxu0 %v8502
  %8623 = vmatmul.mubr.f32.gmra.mrb[0].mxu0 %v8501
  %v8624 = vpop.f32.mrb[0].mxu0
  %v8625 = vadd.f32 %v8556, %v8624
  %v8626 = vpop.f32.mrb[0].mxu0
  %8627 = vmatprep.mubr.f32.mxu0 %v8504
  %8628 = vmatmul.mubr.f32.gmra.mrb[0].mxu0 %v8503
  %v8629 = vpop.f32.mrb[0].mxu0
  %v8630 = vadd.f32 %v8556, %v8629
  %v8631 = vpop.f32.mrb[0].mxu0
  %8632 = vmatprep.mubr.f32.mxu0 %v8506
  %8633 = vmatmul.mubr.f32.gmra.mrb[0].mxu0 %v8505
  %v8634 = vpop.f32.mrb[0].mxu0
  %v8635 = vadd.f32 %v8556, %v8634
  %v8636 = vpop.f32.mrb[0].mxu0
  %8637 = vmatprep.mubr.f32.mxu0 %v8508
  %8638 = vmatmul.mubr.f32.gmra.mrb[0].mxu0 %v8507
  %v8639 = vpop.f32.mrb[0].mxu0
  %v8640 = vadd.f32 %v8556, %v8639
  %v8641 = vpop.f32.mrb[0].mxu0
  %8642 = vmatprep.mubr.f32.mxu0 %v8510
  %8643 = vmatmul.mubr.f32.gmra.mrb[0].mxu0 %v8509
  %v8644 = vpop.f32.mrb[0].mxu0
  %v8645 = vadd.f32 %v8556, %v8644
  %v8646 = vpop.f32.mrb[0].mxu0
  %8647 = vmatprep.mubr.f32.mxu0 %v8512
  %8648 = vmatmul.mubr.f32.gmra.mrb[0].mxu0 %v8511
  %v8649 = vpop.f32.mrb[0].mxu0
  %v8650 = vadd.f32 %v8556, %v8649
  %v8651 = vpop.f32.mrb[0].mxu0
  %8652 = vmatprep.mubr.f32.mxu0 %v8514
  %8653 = vmatmul.mubr.f32.gmra.mrb[0].mxu0 %v8513
  %v8654 = vpop.f32.mrb[0].mxu0
  %v8655 = vadd.f32 %v8556, %v8654
  %v8656 = vpop.f32.mrb[0].mxu0
  %8657 = vmatprep.mubr.f32.mxu0 %v8516
  %8658 = vmatmul.mubr.f32.gmra.mrb[0].mxu0 %v8515
  %v8659 = vpop.f32.mrb[0].mxu0
  %v8660 = vadd.f32 %v8556, %v8659
  %v8661 = vpop.f32.mrb[0].mxu0
  %8662 = vdwg.mxu0
  %v8663 = vadd.f32 %v8338, %v8625
  %v8664 = vadd.f32 %v8339, %v8630
  %v8665 = vadd.f32 %v8340, %v8635
  %v8666 = vadd.f32 %v8341, %v8640
  %v8667 = vadd.f32 %v8342, %v8645
  %v8668 = vadd.f32 %v8343, %v8650
  %v8669 = vadd.f32 %v8344, %v8655
  %v8670 = vadd.f32 %v8345, %v8660
  %s8671 = scalar_lea.vmem %s18, 1
  %v8672 = vld [vmem:[%s8671] sm:$0x1]
  %s8673 = scalar_lea.vmem %s19, 1
  %v8674 = vld [vmem:[%s8673] sm:$0x1]
  %v8675 = vsel %vm121, %v8663, 0.0
  %8676 = vadd.xlane.f32.xlu0 %v8675
  %v8677 = vpop.xlane.xlu0 %8676
  %v8678 = vsel %vm121, %v8664, 0.0
  %8679 = vadd.xlane.f32.xlu0 %v8678
  %v8680 = vpop.xlane.xlu0 %8679
  %v8681 = vsel %vm121, %v8665, 0.0
  %8682 = vadd.xlane.f32.xlu0 %v8681
  %v8683 = vpop.xlane.xlu0 %8682
  %v8684 = vsel %vm121, %v8666, 0.0
  %8685 = vadd.xlane.f32.xlu0 %v8684
  %v8686 = vpop.xlane.xlu0 %8685
  %v8687 = vsel %vm121, %v8667, 0.0
  %8688 = vadd.xlane.f32.xlu0 %v8687
  %v8689 = vpop.xlane.xlu0 %8688
  %v8690 = vsel %vm121, %v8668, 0.0
  %8691 = vadd.xlane.f32.xlu0 %v8690
  %v8692 = vpop.xlane.xlu0 %8691
  %v8693 = vsel %vm121, %v8669, 0.0
  %8694 = vadd.xlane.f32.xlu0 %v8693
  %v8695 = vpop.xlane.xlu0 %8694
  %v8696 = vsel %vm121, %v8670, 0.0
  %8697 = vadd.xlane.f32.xlu0 %v8696
  %v8698 = vpop.xlane.xlu0 %8697
  %v8699 = vmul.f32 %v8677, %v3958
  %v8700 = vmul.f32 %v8680, %v3958
  %v8701 = vmul.f32 %v8683, %v3958
  %v8702 = vmul.f32 %v8686, %v3958
  %v8703 = vmul.f32 %v8689, %v3958
  %v8704 = vmul.f32 %v8692, %v3958
  %v8705 = vmul.f32 %v8695, %v3958
  %v8706 = vmul.f32 %v8698, %v3958
  %v8707 = vsub.f32 %v8663, %v8699
  %v8708 = vsub.f32 %v8664, %v8700
  %v8709 = vsub.f32 %v8665, %v8701
  %v8710 = vsub.f32 %v8666, %v8702
  %v8711 = vsub.f32 %v8667, %v8703
  %v8712 = vsub.f32 %v8668, %v8704
  %v8713 = vsub.f32 %v8669, %v8705
  %v8714 = vsub.f32 %v8670, %v8706
  %v8715 = vmul.f32 %v8707, %v8707
  %v8716 = vmul.f32 %v8708, %v8708
  %v8717 = vmul.f32 %v8709, %v8709
  %v8718 = vmul.f32 %v8710, %v8710
  %v8719 = vmul.f32 %v8711, %v8711
  %v8720 = vmul.f32 %v8712, %v8712
  %v8721 = vmul.f32 %v8713, %v8713
  %v8722 = vmul.f32 %v8714, %v8714
  %v8723 = vsel %vm121, %v8715, 0.0
  %8724 = vadd.xlane.f32.xlu0 %v8723
  %v8725 = vpop.xlane.xlu0 %8724
  %v8726 = vsel %vm121, %v8716, 0.0
  %8727 = vadd.xlane.f32.xlu0 %v8726
  %v8728 = vpop.xlane.xlu0 %8727
  %v8729 = vsel %vm121, %v8717, 0.0
  %8730 = vadd.xlane.f32.xlu0 %v8729
  %v8731 = vpop.xlane.xlu0 %8730
  %v8732 = vsel %vm121, %v8718, 0.0
  %8733 = vadd.xlane.f32.xlu0 %v8732
  %v8734 = vpop.xlane.xlu0 %8733
  %v8735 = vsel %vm121, %v8719, 0.0
  %8736 = vadd.xlane.f32.xlu0 %v8735
  %v8737 = vpop.xlane.xlu0 %8736
  %v8738 = vsel %vm121, %v8720, 0.0
  %8739 = vadd.xlane.f32.xlu0 %v8738
  %v8740 = vpop.xlane.xlu0 %8739
  %v8741 = vsel %vm121, %v8721, 0.0
  %8742 = vadd.xlane.f32.xlu0 %v8741
  %v8743 = vpop.xlane.xlu0 %8742
  %v8744 = vsel %vm121, %v8722, 0.0
  %8745 = vadd.xlane.f32.xlu0 %v8744
  %v8746 = vpop.xlane.xlu0 %8745
  %v8747 = vmul.f32 %v8725, %v3958
  %v8748 = vmul.f32 %v8728, %v3958
  %v8749 = vmul.f32 %v8731, %v3958
  %v8750 = vmul.f32 %v8734, %v3958
  %v8751 = vmul.f32 %v8737, %v3958
  %v8752 = vmul.f32 %v8740, %v3958
  %v8753 = vmul.f32 %v8743, %v3958
  %v8754 = vmul.f32 %v8746, %v3958
  %v8755 = vadd.f32 %v8747, 1e-05
  %v8756 = vadd.f32 %v8748, 1e-05
  %v8757 = vadd.f32 %v8749, 1e-05
  %v8758 = vadd.f32 %v8750, 1e-05
  %v8759 = vadd.f32 %v8751, 1e-05
  %v8760 = vadd.f32 %v8752, 1e-05
  %v8761 = vadd.f32 %v8753, 1e-05
  %v8762 = vadd.f32 %v8754, 1e-05
  %v8763 = vrsqrt.pop %v8755
  %v8764 = vrsqrt.pop %v8756
  %v8765 = vrsqrt.pop %v8757
  %v8766 = vrsqrt.pop %v8758
  %v8767 = vrsqrt.pop %v8759
  %v8768 = vrsqrt.pop %v8760
  %v8769 = vrsqrt.pop %v8761
  %v8770 = vrsqrt.pop %v8762
  %v8771 = vmul.f32 %v8707, %v8763
  %v8772 = vmul.f32 %v8708, %v8764
  %v8773 = vmul.f32 %v8709, %v8765
  %v8774 = vmul.f32 %v8710, %v8766
  %v8775 = vmul.f32 %v8711, %v8767
  %v8776 = vmul.f32 %v8712, %v8768
  %v8777 = vmul.f32 %v8713, %v8769
  %v8778 = vmul.f32 %v8714, %v8770
  %v8780 = vlaneseq
  %v8781 = vshrl.u32 %v8780, 7
  %v8782 = vsub.s32 0, %v8781
  %v8783 = vrot.slane %v8672, %v8782
  %v8785 = vmul.f32 %v8771, %v8783
  %v8786 = vmul.f32 %v8772, %v8783
  %v8787 = vmul.f32 %v8773, %v8783
  %v8788 = vmul.f32 %v8774, %v8783
  %v8789 = vmul.f32 %v8775, %v8783
  %v8790 = vmul.f32 %v8776, %v8783
  %v8791 = vmul.f32 %v8777, %v8783
  %v8792 = vmul.f32 %v8778, %v8783
  %v8794 = vlaneseq
  %v8795 = vshrl.u32 %v8794, 7
  %v8796 = vsub.s32 0, %v8795
  %v8797 = vrot.slane %v8674, %v8796
  %v8799 = vadd.f32 %v8785, %v8797
  %v8800 = vadd.f32 %v8786, %v8797
  %v8801 = vadd.f32 %v8787, %v8797
  %v8802 = vadd.f32 %v8788, %v8797
  %v8803 = vadd.f32 %v8789, %v8797
  %v8804 = vadd.f32 %v8790, %v8797
  %v8805 = vadd.f32 %v8791, %v8797
  %v8806 = vadd.f32 %v8792, %v8797
  %v8807 = vsel %vm121, %v8799, 0.0
  %v8808 = vrot.slane %v8807, 4
  %v8809 = vadd.f32 %v8807, %v8808
  %v8810 = vrot.slane %v8809, 2
  %v8811 = vadd.f32 %v8809, %v8810
  %v8812 = vrot.slane %v8811, 1
  %v8813 = vadd.f32 %v8811, %v8812
  %v8814 = vsel %vm121, %v8800, 0.0
  %v8815 = vrot.slane %v8814, 4
  %v8816 = vadd.f32 %v8814, %v8815
  %v8817 = vrot.slane %v8816, 2
  %v8818 = vadd.f32 %v8816, %v8817
  %v8819 = vrot.slane %v8818, 1
  %v8820 = vadd.f32 %v8818, %v8819
  %v8821 = vsel %vm121, %v8801, 0.0
  %v8822 = vrot.slane %v8821, 4
  %v8823 = vadd.f32 %v8821, %v8822
  %v8824 = vrot.slane %v8823, 2
  %v8825 = vadd.f32 %v8823, %v8824
  %v8826 = vrot.slane %v8825, 1
  %v8827 = vadd.f32 %v8825, %v8826
  %v8828 = vsel %vm121, %v8802, 0.0
  %v8829 = vrot.slane %v8828, 4
  %v8830 = vadd.f32 %v8828, %v8829
  %v8831 = vrot.slane %v8830, 2
  %v8832 = vadd.f32 %v8830, %v8831
  %v8833 = vrot.slane %v8832, 1
  %v8834 = vadd.f32 %v8832, %v8833
  %v8835 = vsel %vm121, %v8803, 0.0
  %v8836 = vrot.slane %v8835, 4
  %v8837 = vadd.f32 %v8835, %v8836
  %v8838 = vrot.slane %v8837, 2
  %v8839 = vadd.f32 %v8837, %v8838
  %v8840 = vrot.slane %v8839, 1
  %v8841 = vadd.f32 %v8839, %v8840
  %v8842 = vsel %vm121, %v8804, 0.0
  %v8843 = vrot.slane %v8842, 4
  %v8844 = vadd.f32 %v8842, %v8843
  %v8845 = vrot.slane %v8844, 2
  %v8846 = vadd.f32 %v8844, %v8845
  %v8847 = vrot.slane %v8846, 1
  %v8848 = vadd.f32 %v8846, %v8847
  %v8849 = vsel %vm121, %v8805, 0.0
  %v8850 = vrot.slane %v8849, 4
  %v8851 = vadd.f32 %v8849, %v8850
  %v8852 = vrot.slane %v8851, 2
  %v8853 = vadd.f32 %v8851, %v8852
  %v8854 = vrot.slane %v8853, 1
  %v8855 = vadd.f32 %v8853, %v8854
  %v8856 = vsel %vm121, %v8806, 0.0
  %v8857 = vrot.slane %v8856, 4
  %v8858 = vadd.f32 %v8856, %v8857
  %v8859 = vrot.slane %v8858, 2
  %v8860 = vadd.f32 %v8858, %v8859
  %v8861 = vrot.slane %v8860, 1
  %v8862 = vadd.f32 %v8860, %v8861
  %v8863 = vrcp.pop 8.0
  %v8864 = vmul.f32 %v8813, %v8863
  %v8865 = vmul.f32 %v8820, %v8863
  %v8866 = vmul.f32 %v8827, %v8863
  %v8867 = vmul.f32 %v8834, %v8863
  %v8868 = vmul.f32 %v8841, %v8863
  %v8869 = vmul.f32 %v8848, %v8863
  %v8870 = vmul.f32 %v8855, %v8863
  %v8871 = vmul.f32 %v8862, %v8863
  %v8872 = vld [vmem:[%s20] sm:$0xff]
  %v8873 = vld [vmem:[%s20 + $0x8] sm:$0xff]
  %v8874 = vld [vmem:[%s21] sm:$0x1]
  %v8876 = vlaneseq
  %v8877 = vshrl.u32 %v8876, 7
  %v8878 = vsub.s32 0, %v8877
  %v8879 = vrot.slane %v8874, %v8878
  %vm8889 = vcmask 1041409
  %v8890 = vsel %vm8889, %v8865, %v8864
  %vm8891 = vcmask 1042434
  %v8892 = vsel %vm8891, %v8866, %v8890
  %vm8893 = vcmask 1043459
  %v8894 = vsel %vm8893, %v8867, %v8892
  %vm8895 = vcmask 1044484
  %v8896 = vsel %vm8895, %v8868, %v8894
  %vm8897 = vcmask 1045509
  %v8898 = vsel %vm8897, %v8869, %v8896
  %vm8899 = vcmask 1046534
  %v8900 = vsel %vm8899, %v8870, %v8898
  %vm8901 = vcmask 1047559
  %v8902 = vsel %vm8901, %v8871, %v8900
  %v8903 = vsel %vm121, %v8902, 0
  %8905 = vmatprep.subr.mxu0 0.0
  %8906 = vmatpush1.msra.mxu0 %v8872
  %8907 = vmatprep.subr.mxu0 0.0
  %8908 = vmatpush1.msra.mxu0 %v8873
  %8909 = vmatprep.subr.mxu0 0.0
  %8910 = vmatpush1.msra.mxu0 0.0
  %8911 = vmatprep.subr.mxu0 0.0
  %8912 = vmatpush1.msra.mxu0 0.0
  %8913 = vmatprep.subr.mxu0 0.0
  %8914 = vmatpush1.msra.mxu0 0.0
  %8915 = vmatprep.subr.mxu0 0.0
  %8916 = vmatpush1.msra.mxu0 0.0
  %8917 = vmatprep.subr.mxu0 0.0
  %8918 = vmatpush1.msra.mxu0 0.0
  %8919 = vmatprep.subr.mxu0 0.0
  %8920 = vmatpush1.msra.mxu0 0.0
  %8921 = vmatprep.subr.mxu0 0.0
  %8922 = vmatpush1.msra.mxu0 0.0
  %8923 = vmatprep.subr.mxu0 0.0
  %8924 = vmatpush1.msra.mxu0 0.0
  %8925 = vmatprep.subr.mxu0 0.0
  %8926 = vmatpush1.msra.mxu0 0.0
  %8927 = vmatprep.subr.mxu0 0.0
  %8928 = vmatpush1.msra.mxu0 0.0
  %8929 = vmatprep.subr.mxu0 0.0
  %8930 = vmatpush1.msra.mxu0 0.0
  %8931 = vmatprep.subr.mxu0 0.0
  %8932 = vmatpush1.msra.mxu0 0.0
  %8933 = vmatprep.subr.mxu0 0.0
  %8934 = vmatpush1.msra.mxu0 0.0
  %8935 = vmatprep.subr.mxu0 0.0
  %8936 = vmatpush1.msra.mxu0 0.0
  %8937 = vmatprep.subr.mxu0 0.0
  %8938 = vmatpush1.msra.mxu0 0.0
  %8939 = vmatprep.subr.mxu0 0.0
  %8940 = vmatpush1.msra.mxu0 0.0
  %8941 = vmatprep.subr.mxu0 0.0
  %8942 = vmatpush1.msra.mxu0 0.0
  %8943 = vmatprep.subr.mxu0 0.0
  %8944 = vmatpush1.msra.mxu0 0.0
  %8945 = vmatprep.subr.mxu0 0.0
  %8946 = vmatpush1.msra.mxu0 0.0
  %8947 = vmatprep.subr.mxu0 0.0
  %8948 = vmatpush1.msra.mxu0 0.0
  %8949 = vmatprep.subr.mxu0 0.0
  %8950 = vmatpush1.msra.mxu0 0.0
  %8951 = vmatprep.subr.mxu0 0.0
  %8952 = vmatpush1.msra.mxu0 0.0
  %8953 = vmatprep.subr.mxu0 0.0
  %8954 = vmatpush1.msra.mxu0 0.0
  %8955 = vmatprep.subr.mxu0 0.0
  %8956 = vmatpush1.msra.mxu0 0.0
  %8957 = vmatprep.subr.mxu0 0.0
  %8958 = vmatpush1.msra.mxu0 0.0
  %8959 = vmatprep.subr.mxu0 0.0
  %8960 = vmatpush1.msra.mxu0 0.0
  %8961 = vmatprep.subr.mxu0 0.0
  %8962 = vmatpush1.msra.mxu0 0.0
  %8963 = vmatprep.subr.mxu0 0.0
  %8964 = vmatpush1.msra.mxu0 0.0
  %8965 = vmatprep.subr.mxu0 0.0
  %8966 = vmatpush1.msra.mxu0 0.0
  %8967 = vmatprep.subr.mxu0 0.0
  %8968 = vmatpush1.msra.mxu0 0.0
  %8969 = vmatprep.mubr.f32.mxu0 0.0
  %8970 = vmatmul.mubr.f32.gmra.mrb[0].mxu0 %v8903
  %v8971 = vpop.f32.mrb[0].mxu0
  %v8972 = vadd.f32 %v8879, %v8971
  %v8973 = vpop.f32.mrb[0].mxu0
  %8974 = vdwg.mxu0
  %vm8975 = vcmask 15360
  %8976 = vst.msk [vmem:[%s22] sm:$0xff] %vm8975, %v8972
  // Predicated region
  $region90: #{model_tr_forward.1} parent=0 // pred_check
    _
  $region91: #{model_tr_forward.1} parent=0 // pred_check_branch
    %8978 = sbr.rel (0) target = $region93
  $region92: #{model_tr_forward.1} parent=0 // pred_region
    _
  $region93: #{model_tr_forward.1} parent=0 // pred_fallthru
    _
  // Predicated region
  $region94: #{model_tr_forward.1} parent=0 // pred_check
    _
  $region95: #{model_tr_forward.1} parent=0 // pred_check_branch
    %8980 = sbr.rel (0) target = $region97
  $region96: #{model_tr_forward.1} parent=0 // pred_region
    _
  $region97: #{model_tr_forward.1} parent=0 // pred_fallthru
    _

</llo_original>
